<compile_context>
chip_gen: v7x
topology: tpu7x:2x2x1
jax: 0.10.0
libtpu: 0.0.40
codegen_flags: <defaults>
</compile_context>

<pallas_src>
import jax
import jax.numpy as jnp
from jax import lax
from jax.experimental import pallas as pl
from jax.experimental.pallas import tpu as pltpu

# ---- problem sizes (small, consistent with the module) -------------------------
T_ENC = 8       # encoder sequence length
T_DEC = 8       # decoder sequence length
VOCAB = 16      # vocab_size
HID = 32        # n_hidden


# ---- Pallas kernel --------------------------------------------------------------
def attention_kernel(x_ref, h0_ref, whh_ref, wslab_ref, out_ref):
    f32 = jnp.float32
    hp = lax.Precision.HIGHEST
    V, H = VOCAB, HID

    # ---- static carve-up of the packed operands (zero-cost slices) -------------
    w_ih = wslab_ref[0:V, :]                         # (V, 2H)   [enc_wih | dec_wih]
    w_p2 = wslab_ref[V:V + H, :]                     # (H, H+2V) [attn_w | out_w_ctx | out_w_dec]
    ihb = wslab_ref[V + H:V + H + 1, :]              # (1, 2H)   [enc_b | dec_b]
    attn_b = wslab_ref[V + H + 1:V + H + 2, 0:H]     # (1, H)
    out_b = wslab_ref[V + H + 2:V + H + 3, 0:V]      # (1, V)
    enc_whh = whh_ref[0:H, :]                        # (H, H)
    dec_whh = whh_ref[H:2 * H, :]                    # (H, H)

    # ---- fused input projection: ONE MXU push for both RNNs --------------------
    # [enc_x ; dec_x] (T_enc+T_dec, V) @ [enc_wih | dec_wih] (V, 2H) -> (16, 2H)
    pre = jnp.dot(x_ref[...], w_ih, preferred_element_type=f32, precision=hp) + ihb
    enc_pre = pre[0:T_ENC, 0:H]                      # (T_enc, H)
    dec_pre = pre[T_ENC:T_ENC + T_DEC, H:2 * H]      # (T_dec, H)

    # ---- serial recurrences (fully unrolled), state kept in vregs --------------
    h = h0_ref[...]                                  # (1, H)
    enc_rows = []
    for t in range(T_ENC):
        h = jnp.tanh(enc_pre[t:t + 1, :]
                     + jnp.dot(h, enc_whh, preferred_element_type=f32, precision=hp))
        enc_rows.append(h)
    dec_rows = []
    for i in range(T_DEC):
        h = jnp.tanh(dec_pre[i:i + 1, :]
                     + jnp.dot(h, dec_whh, preferred_element_type=f32, precision=hp))
        dec_rows.append(h)
    enc_outs = jnp.concatenate(enc_rows, axis=0)     # (T_enc, H)
    dec_hs = jnp.concatenate(dec_rows, axis=0)       # (T_dec, H)

    # ---- phase 2: attention + output projection, fully batched -----------------
    # enc_outs @ [attn_w | out_w_ctx | out_w_dec]: one push; the out_w_dec columns
    # are wasted MXU width (free) and avoid slicing the weight operand.
    enc_fused = jnp.dot(enc_outs, w_p2, preferred_element_type=f32, precision=hp)
    attn_proj = enc_fused[:, 0:H] + attn_b           # (T_enc, H)
    enc_ctx = enc_fused[:, H:H + V]                  # (T_enc, V) = enc_outs @ out_w_ctx

    # dec_hs @ out_w_dec — independent of the attention chain, overlaps with it.
    dec_fused = jnp.dot(dec_hs, w_p2, preferred_element_type=f32, precision=hp)
    dec_part = dec_fused[:, H + V:H + 2 * V]         # (T_dec, V) = dec_hs @ out_w_dec

    # scores[i, j] = dot(dec_hs[i], attn_proj[j])
    scores = lax.dot_general(
        dec_hs, attn_proj,
        dimension_numbers=(((1,), (1,)), ((), ())),
        preferred_element_type=f32, precision=hp)    # (T_dec, T_enc)

    m = jnp.max(scores, axis=1, keepdims=True)
    e = jnp.exp(scores - m)
    aw = e * pl.reciprocal(jnp.sum(e, axis=1, keepdims=True), approx=True)

    # logits = dec_hs @ W_dec + (aw @ enc_outs) @ W_ctx + b, reassociated so the
    # context never needs to be materialized.
    ctx_part = jnp.dot(aw, enc_ctx, preferred_element_type=f32, precision=hp)  # (T_dec, V)
    logits = dec_part + ctx_part + out_b             # (T_dec, V)

    # one lane-packed combined store: [model | attention weights]
    out_ref[...] = jnp.concatenate([logits, aw], axis=1)


# ---- wrapper ---------------------------------------------------------------------
@jax.jit
def attention_forward(enc_inputs, hidden, dec_inputs, packed):
    """enc_inputs: (1, T_enc, V), hidden: (1, 1, H), dec_inputs: (1, T_dec, V)."""
    enc_x = enc_inputs[0]          # transpose(0,1) + squeeze batch=1 -> (T_enc, V)
    dec_x = dec_inputs[0]          # (T_dec, V)
    h0 = hidden[0]                 # (1, H)
    x_all = jnp.concatenate([enc_x, dec_x], axis=0)   # (T_enc+T_dec, V)

    vmem = pl.BlockSpec(memory_space=pltpu.MemorySpace.VMEM)
    out = pl.pallas_call(
        attention_kernel,
        out_shape=jax.ShapeDtypeStruct((T_DEC, VOCAB + T_ENC), jnp.float32),
        in_specs=[vmem] * 4,
        out_specs=vmem,
        cost_estimate=pl.CostEstimate(
            flops=150_000, transcendentals=600, bytes_accessed=24_000),
    )(x_all, h0, packed["w_hh"], packed["w_slab"])

    model = out[:, :VOCAB]         # (T_dec, V)
    attn = out[:, VOCAB:]          # (T_dec, T_enc)
    return model, attn


# ---- parameter packing (done once, at init time) ----------------------------------
def pack_params(p):
    w_ih = jnp.concatenate([p["enc_wih"], p["dec_wih"]], axis=1)                    # (V, 2H)
    w_p2 = jnp.concatenate([p["attn_w"], p["out_w_ctx"], p["out_w_dec"]], axis=1)   # (H, 2H)
    ihb = jnp.concatenate([p["enc_b"], p["dec_b"]], axis=1)                         # (1, 2H)
    attn_b = jnp.pad(p["attn_b"], ((0, 0), (0, 2 * HID - HID)))                     # (1, 2H)
    out_b = jnp.pad(p["out_b"], ((0, 0), (0, 2 * HID - VOCAB)))                     # (1, 2H)
    w_slab = jnp.concatenate([w_ih, w_p2, ihb, attn_b, out_b], axis=0)              # (51, 2H)
    w_hh = jnp.concatenate([p["enc_whh"], p["dec_whh"]], axis=0)                    # (2H, H)
    return {"w_slab": w_slab, "w_hh": w_hh}


# ---- pure-JAX reference (same math, per-step form, full f32 precision) ------------
def attention_reference(enc_inputs, hidden, dec_inputs, p):
    enc_x, dec_x, h = enc_inputs[0], dec_inputs[0], hidden[0]
    hp = lax.Precision.HIGHEST

    def rnn(x, h, wih, whh, b):
        return jnp.tanh(jnp.dot(x, wih, precision=hp)
                        + jnp.dot(h, whh, precision=hp) + b)

    enc_outs = []
    for t in range(enc_x.shape[0]):
        h = rnn(enc_x[t:t + 1], h, p["enc_wih"], p["enc_whh"], p["enc_b"])
        enc_outs.append(h)
    enc_outs = jnp.concatenate(enc_outs, axis=0)

    model, attns = [], []
    for i in range(dec_x.shape[0]):
        h = rnn(dec_x[i:i + 1], h, p["dec_wih"], p["dec_whh"], p["dec_b"])
        proj = jnp.dot(enc_outs, p["attn_w"], precision=hp) + p["attn_b"]
        scores = (proj * h).sum(axis=1)
        aw = jax.nn.softmax(scores)
        context = jnp.dot(aw[None, :], enc_outs, precision=hp)
        logits = (jnp.dot(h, p["out_w_dec"], precision=hp)
                  + jnp.dot(context, p["out_w_ctx"], precision=hp)
                  + p["out_b"])
        model.append(logits)
        attns.append(aw[None, :])
    return jnp.concatenate(model, axis=0), jnp.concatenate(attns, axis=0)


# ---- deterministic parameter init --------------------------------------------------
def init_params(key):
    k = 1.0 / jnp.sqrt(HID)

    def u(key, shape):
        return jax.random.uniform(key, shape, jnp.float32, -k, k)

    keys = jax.random.split(key, 13)
    return {
        "enc_wih": u(keys[0], (VOCAB, HID)),
        "enc_whh": u(keys[1], (HID, HID)),
        "enc_b": u(keys[2], (1, HID)) + u(keys[3], (1, HID)),   # b_ih + b_hh
        "dec_wih": u(keys[4], (VOCAB, HID)),
        "dec_whh": u(keys[5], (HID, HID)),
        "dec_b": u(keys[6], (1, HID)) + u(keys[7], (1, HID)),
        "attn_w": u(keys[8], (HID, HID)),
        "attn_b": u(keys[9], (1, HID)),
        "out_w_dec": u(keys[10], (HID, VOCAB)),                 # first half of out.weight^T
        "out_w_ctx": u(keys[11], (HID, VOCAB)),                 # second half
        "out_b": u(keys[12], (1, VOCAB)),
    }


if __name__ == "__main__":
    key = jax.random.PRNGKey(0)
    k_enc, k_dec, k_h, k_p = jax.random.split(key, 4)

    enc_inputs = jax.random.normal(k_enc, (1, T_ENC, VOCAB), jnp.float32)
    dec_inputs = jax.random.normal(k_dec, (1, T_DEC, VOCAB), jnp.float32)
    hidden = jax.random.normal(k_h, (1, 1, HID), jnp.float32)
    params = init_params(k_p)
    packed = pack_params(params)          # pre-concatenated slabs, built once

    model, attn = attention_forward(enc_inputs, hidden, dec_inputs, packed)
    model = jax.block_until_ready(model)
    attn = jax.block_until_ready(attn)

    model_ref, attn_ref = attention_reference(enc_inputs, hidden, dec_inputs, params)

    assert model.shape == (T_DEC, VOCAB) and attn.shape == (T_DEC, T_ENC)
    # Kernel matmuls run at HIGHEST precision now; remaining drift comes from the
    # approximate softmax reciprocal (EUP vrcp), so the tolerance is narrowed vs
    # the previous bf16-precision version while keeping ample margin.
    assert jnp.allclose(model, model_ref, atol=1e-2, rtol=1e-2), "model mismatch"
    assert jnp.allclose(attn, attn_ref, atol=1e-2, rtol=1e-2), "attention mismatch"

    print("KERNEL_OK")
</pallas_src>

<mosaic_0001>
module attributes {stable_mosaic.version = 11 : i64} {
  func.func @attention_kernel(%arg0: memref<16x16xf32, #tpu.memory_space<vmem>>, %arg1: memref<1x32xf32, #tpu.memory_space<vmem>>, %arg2: memref<64x32xf32, #tpu.memory_space<vmem>>, %arg3: memref<51x64xf32, #tpu.memory_space<vmem>>, %arg4: memref<8x24xf32, #tpu.memory_space<vmem>>) attributes {dimension_semantics = [], scalar_prefetch = 0 : i64, scratch_operands = 0 : i64, tpu.core_type = #tpu.core_type<tc>} {
    %c0 = arith.constant 0 : index
    %c0_0 = arith.constant 0 : index
    %0 = vector.load %arg3[%c0, %c0_0] : memref<51x64xf32, #tpu.memory_space<vmem>>, vector<16x64xf32>
    %c16 = arith.constant 16 : index
    %c0_1 = arith.constant 0 : index
    %1 = vector.load %arg3[%c16, %c0_1] : memref<51x64xf32, #tpu.memory_space<vmem>>, vector<32x64xf32>
    %c48 = arith.constant 48 : index
    %c0_2 = arith.constant 0 : index
    %2 = vector.load %arg3[%c48, %c0_2] : memref<51x64xf32, #tpu.memory_space<vmem>>, vector<1x64xf32>
    %c49 = arith.constant 49 : index
    %c0_3 = arith.constant 0 : index
    %3 = vector.load %arg3[%c49, %c0_3] : memref<51x64xf32, #tpu.memory_space<vmem>>, vector<1x32xf32>
    %c50 = arith.constant 50 : index
    %c0_4 = arith.constant 0 : index
    %4 = vector.load %arg3[%c50, %c0_4] : memref<51x64xf32, #tpu.memory_space<vmem>>, vector<1x16xf32>
    %c0_5 = arith.constant 0 : index
    %c0_6 = arith.constant 0 : index
    %5 = vector.load %arg2[%c0_5, %c0_6] : memref<64x32xf32, #tpu.memory_space<vmem>>, vector<32x32xf32>
    %c32 = arith.constant 32 : index
    %c0_7 = arith.constant 0 : index
    %6 = vector.load %arg2[%c32, %c0_7] : memref<64x32xf32, #tpu.memory_space<vmem>>, vector<32x32xf32>
    %c0_8 = arith.constant 0 : index
    %c0_9 = arith.constant 0 : index
    %7 = vector.load %arg0[%c0_8, %c0_9] : memref<16x16xf32, #tpu.memory_space<vmem>>, vector<16x16xf32>
    %cst = arith.constant dense<0.000000e+00> : vector<16x64xf32>
    %8 = tpu.matmul %7, %0, %cst {dimension_numbers = #tpu.dot_dimension_numbers<[1], [0], [0], [1], [0, 0, 1, 1], [], []>, precision = #tpu.contract_precision<fp32>} : vector<16x16xf32>, vector<16x64xf32>, vector<16x64xf32> -> vector<16x64xf32>
    %9 = vector.broadcast %2 : vector<1x64xf32> to vector<16x64xf32>
    %10 = arith.addf %8, %9 : vector<16x64xf32>
    %11 = vector.extract_strided_slice %10 {offsets = [0, 0], sizes = [8, 32], strides = [1, 1]} : vector<16x64xf32> to vector<8x32xf32>
    %12 = vector.extract_strided_slice %10 {offsets = [8, 32], sizes = [8, 32], strides = [1, 1]} : vector<16x64xf32> to vector<8x32xf32>
    %c0_10 = arith.constant 0 : index
    %c0_11 = arith.constant 0 : index
    %13 = vector.load %arg1[%c0_10, %c0_11] : memref<1x32xf32, #tpu.memory_space<vmem>>, vector<1x32xf32>
    %14 = vector.extract_strided_slice %11 {offsets = [0, 0], sizes = [1, 32], strides = [1, 1]} : vector<8x32xf32> to vector<1x32xf32>
    %cst_12 = arith.constant dense<0.000000e+00> : vector<1x32xf32>
    %15 = tpu.matmul %13, %5, %cst_12 {dimension_numbers = #tpu.dot_dimension_numbers<[1], [0], [0], [1], [0, 0, 1, 1], [], []>, precision = #tpu.contract_precision<fp32>} : vector<1x32xf32>, vector<32x32xf32>, vector<1x32xf32> -> vector<1x32xf32>
    %16 = arith.addf %14, %15 : vector<1x32xf32>
    %17 = math.tanh %16 : vector<1x32xf32>
    %18 = vector.extract_strided_slice %11 {offsets = [1, 0], sizes = [1, 32], strides = [1, 1]} : vector<8x32xf32> to vector<1x32xf32>
    %cst_13 = arith.constant dense<0.000000e+00> : vector<1x32xf32>
    %19 = tpu.matmul %17, %5, %cst_13 {dimension_numbers = #tpu.dot_dimension_numbers<[1], [0], [0], [1], [0, 0, 1, 1], [], []>, precision = #tpu.contract_precision<fp32>} : vector<1x32xf32>, vector<32x32xf32>, vector<1x32xf32> -> vector<1x32xf32>
    %20 = arith.addf %18, %19 : vector<1x32xf32>
    %21 = math.tanh %20 : vector<1x32xf32>
    %22 = vector.extract_strided_slice %11 {offsets = [2, 0], sizes = [1, 32], strides = [1, 1]} : vector<8x32xf32> to vector<1x32xf32>
    %cst_14 = arith.constant dense<0.000000e+00> : vector<1x32xf32>
    %23 = tpu.matmul %21, %5, %cst_14 {dimension_numbers = #tpu.dot_dimension_numbers<[1], [0], [0], [1], [0, 0, 1, 1], [], []>, precision = #tpu.contract_precision<fp32>} : vector<1x32xf32>, vector<32x32xf32>, vector<1x32xf32> -> vector<1x32xf32>
    %24 = arith.addf %22, %23 : vector<1x32xf32>
    %25 = math.tanh %24 : vector<1x32xf32>
    %26 = vector.extract_strided_slice %11 {offsets = [3, 0], sizes = [1, 32], strides = [1, 1]} : vector<8x32xf32> to vector<1x32xf32>
    %cst_15 = arith.constant dense<0.000000e+00> : vector<1x32xf32>
    %27 = tpu.matmul %25, %5, %cst_15 {dimension_numbers = #tpu.dot_dimension_numbers<[1], [0], [0], [1], [0, 0, 1, 1], [], []>, precision = #tpu.contract_precision<fp32>} : vector<1x32xf32>, vector<32x32xf32>, vector<1x32xf32> -> vector<1x32xf32>
    %28 = arith.addf %26, %27 : vector<1x32xf32>
    %29 = math.tanh %28 : vector<1x32xf32>
    %30 = vector.extract_strided_slice %11 {offsets = [4, 0], sizes = [1, 32], strides = [1, 1]} : vector<8x32xf32> to vector<1x32xf32>
    %cst_16 = arith.constant dense<0.000000e+00> : vector<1x32xf32>
    %31 = tpu.matmul %29, %5, %cst_16 {dimension_numbers = #tpu.dot_dimension_numbers<[1], [0], [0], [1], [0, 0, 1, 1], [], []>, precision = #tpu.contract_precision<fp32>} : vector<1x32xf32>, vector<32x32xf32>, vector<1x32xf32> -> vector<1x32xf32>
    %32 = arith.addf %30, %31 : vector<1x32xf32>
    %33 = math.tanh %32 : vector<1x32xf32>
    %34 = vector.extract_strided_slice %11 {offsets = [5, 0], sizes = [1, 32], strides = [1, 1]} : vector<8x32xf32> to vector<1x32xf32>
    %cst_17 = arith.constant dense<0.000000e+00> : vector<1x32xf32>
    %35 = tpu.matmul %33, %5, %cst_17 {dimension_numbers = #tpu.dot_dimension_numbers<[1], [0], [0], [1], [0, 0, 1, 1], [], []>, precision = #tpu.contract_precision<fp32>} : vector<1x32xf32>, vector<32x32xf32>, vector<1x32xf32> -> vector<1x32xf32>
    %36 = arith.addf %34, %35 : vector<1x32xf32>
    %37 = math.tanh %36 : vector<1x32xf32>
    %38 = vector.extract_strided_slice %11 {offsets = [6, 0], sizes = [1, 32], strides = [1, 1]} : vector<8x32xf32> to vector<1x32xf32>
    %cst_18 = arith.constant dense<0.000000e+00> : vector<1x32xf32>
    %39 = tpu.matmul %37, %5, %cst_18 {dimension_numbers = #tpu.dot_dimension_numbers<[1], [0], [0], [1], [0, 0, 1, 1], [], []>, precision = #tpu.contract_precision<fp32>} : vector<1x32xf32>, vector<32x32xf32>, vector<1x32xf32> -> vector<1x32xf32>
    %40 = arith.addf %38, %39 : vector<1x32xf32>
    %41 = math.tanh %40 : vector<1x32xf32>
    %42 = vector.extract_strided_slice %11 {offsets = [7, 0], sizes = [1, 32], strides = [1, 1]} : vector<8x32xf32> to vector<1x32xf32>
    %cst_19 = arith.constant dense<0.000000e+00> : vector<1x32xf32>
    %43 = tpu.matmul %41, %5, %cst_19 {dimension_numbers = #tpu.dot_dimension_numbers<[1], [0], [0], [1], [0, 0, 1, 1], [], []>, precision = #tpu.contract_precision<fp32>} : vector<1x32xf32>, vector<32x32xf32>, vector<1x32xf32> -> vector<1x32xf32>
    %44 = arith.addf %42, %43 : vector<1x32xf32>
    %45 = math.tanh %44 : vector<1x32xf32>
    %46 = vector.extract_strided_slice %12 {offsets = [0, 0], sizes = [1, 32], strides = [1, 1]} : vector<8x32xf32> to vector<1x32xf32>
    %cst_20 = arith.constant dense<0.000000e+00> : vector<1x32xf32>
    %47 = tpu.matmul %45, %6, %cst_20 {dimension_numbers = #tpu.dot_dimension_numbers<[1], [0], [0], [1], [0, 0, 1, 1], [], []>, precision = #tpu.contract_precision<fp32>} : vector<1x32xf32>, vector<32x32xf32>, vector<1x32xf32> -> vector<1x32xf32>
    %48 = arith.addf %46, %47 : vector<1x32xf32>
    %49 = math.tanh %48 : vector<1x32xf32>
    %50 = vector.extract_strided_slice %12 {offsets = [1, 0], sizes = [1, 32], strides = [1, 1]} : vector<8x32xf32> to vector<1x32xf32>
    %cst_21 = arith.constant dense<0.000000e+00> : vector<1x32xf32>
    %51 = tpu.matmul %49, %6, %cst_21 {dimension_numbers = #tpu.dot_dimension_numbers<[1], [0], [0], [1], [0, 0, 1, 1], [], []>, precision = #tpu.contract_precision<fp32>} : vector<1x32xf32>, vector<32x32xf32>, vector<1x32xf32> -> vector<1x32xf32>
    %52 = arith.addf %50, %51 : vector<1x32xf32>
    %53 = math.tanh %52 : vector<1x32xf32>
    %54 = vector.extract_strided_slice %12 {offsets = [2, 0], sizes = [1, 32], strides = [1, 1]} : vector<8x32xf32> to vector<1x32xf32>
    %cst_22 = arith.constant dense<0.000000e+00> : vector<1x32xf32>
    %55 = tpu.matmul %53, %6, %cst_22 {dimension_numbers = #tpu.dot_dimension_numbers<[1], [0], [0], [1], [0, 0, 1, 1], [], []>, precision = #tpu.contract_precision<fp32>} : vector<1x32xf32>, vector<32x32xf32>, vector<1x32xf32> -> vector<1x32xf32>
    %56 = arith.addf %54, %55 : vector<1x32xf32>
    %57 = math.tanh %56 : vector<1x32xf32>
    %58 = vector.extract_strided_slice %12 {offsets = [3, 0], sizes = [1, 32], strides = [1, 1]} : vector<8x32xf32> to vector<1x32xf32>
    %cst_23 = arith.constant dense<0.000000e+00> : vector<1x32xf32>
    %59 = tpu.matmul %57, %6, %cst_23 {dimension_numbers = #tpu.dot_dimension_numbers<[1], [0], [0], [1], [0, 0, 1, 1], [], []>, precision = #tpu.contract_precision<fp32>} : vector<1x32xf32>, vector<32x32xf32>, vector<1x32xf32> -> vector<1x32xf32>
    %60 = arith.addf %58, %59 : vector<1x32xf32>
    %61 = math.tanh %60 : vector<1x32xf32>
    %62 = vector.extract_strided_slice %12 {offsets = [4, 0], sizes = [1, 32], strides = [1, 1]} : vector<8x32xf32> to vector<1x32xf32>
    %cst_24 = arith.constant dense<0.000000e+00> : vector<1x32xf32>
    %63 = tpu.matmul %61, %6, %cst_24 {dimension_numbers = #tpu.dot_dimension_numbers<[1], [0], [0], [1], [0, 0, 1, 1], [], []>, precision = #tpu.contract_precision<fp32>} : vector<1x32xf32>, vector<32x32xf32>, vector<1x32xf32> -> vector<1x32xf32>
    %64 = arith.addf %62, %63 : vector<1x32xf32>
    %65 = math.tanh %64 : vector<1x32xf32>
    %66 = vector.extract_strided_slice %12 {offsets = [5, 0], sizes = [1, 32], strides = [1, 1]} : vector<8x32xf32> to vector<1x32xf32>
    %cst_25 = arith.constant dense<0.000000e+00> : vector<1x32xf32>
    %67 = tpu.matmul %65, %6, %cst_25 {dimension_numbers = #tpu.dot_dimension_numbers<[1], [0], [0], [1], [0, 0, 1, 1], [], []>, precision = #tpu.contract_precision<fp32>} : vector<1x32xf32>, vector<32x32xf32>, vector<1x32xf32> -> vector<1x32xf32>
    %68 = arith.addf %66, %67 : vector<1x32xf32>
    %69 = math.tanh %68 : vector<1x32xf32>
    %70 = vector.extract_strided_slice %12 {offsets = [6, 0], sizes = [1, 32], strides = [1, 1]} : vector<8x32xf32> to vector<1x32xf32>
    %cst_26 = arith.constant dense<0.000000e+00> : vector<1x32xf32>
    %71 = tpu.matmul %69, %6, %cst_26 {dimension_numbers = #tpu.dot_dimension_numbers<[1], [0], [0], [1], [0, 0, 1, 1], [], []>, precision = #tpu.contract_precision<fp32>} : vector<1x32xf32>, vector<32x32xf32>, vector<1x32xf32> -> vector<1x32xf32>
    %72 = arith.addf %70, %71 : vector<1x32xf32>
    %73 = math.tanh %72 : vector<1x32xf32>
    %74 = vector.extract_strided_slice %12 {offsets = [7, 0], sizes = [1, 32], strides = [1, 1]} : vector<8x32xf32> to vector<1x32xf32>
    %cst_27 = arith.constant dense<0.000000e+00> : vector<1x32xf32>
    %75 = tpu.matmul %73, %6, %cst_27 {dimension_numbers = #tpu.dot_dimension_numbers<[1], [0], [0], [1], [0, 0, 1, 1], [], []>, precision = #tpu.contract_precision<fp32>} : vector<1x32xf32>, vector<32x32xf32>, vector<1x32xf32> -> vector<1x32xf32>
    %76 = arith.addf %74, %75 : vector<1x32xf32>
    %77 = math.tanh %76 : vector<1x32xf32>
    %78 = tpu.concatenate %17, %21, %25, %29, %33, %37, %41, %45 in 0 : vector<1x32xf32>, vector<1x32xf32>, vector<1x32xf32>, vector<1x32xf32>, vector<1x32xf32>, vector<1x32xf32>, vector<1x32xf32>, vector<1x32xf32> -> vector<8x32xf32>
    %79 = tpu.concatenate %49, %53, %57, %61, %65, %69, %73, %77 in 0 : vector<1x32xf32>, vector<1x32xf32>, vector<1x32xf32>, vector<1x32xf32>, vector<1x32xf32>, vector<1x32xf32>, vector<1x32xf32>, vector<1x32xf32> -> vector<8x32xf32>
    %cst_28 = arith.constant dense<0.000000e+00> : vector<8x64xf32>
    %80 = tpu.matmul %78, %1, %cst_28 {dimension_numbers = #tpu.dot_dimension_numbers<[1], [0], [0], [1], [0, 0, 1, 1], [], []>, precision = #tpu.contract_precision<fp32>} : vector<8x32xf32>, vector<32x64xf32>, vector<8x64xf32> -> vector<8x64xf32>
    %81 = vector.extract_strided_slice %80 {offsets = [0, 0], sizes = [8, 32], strides = [1, 1]} : vector<8x64xf32> to vector<8x32xf32>
    %82 = vector.broadcast %3 : vector<1x32xf32> to vector<8x32xf32>
    %83 = arith.addf %81, %82 : vector<8x32xf32>
    %84 = vector.extract_strided_slice %80 {offsets = [0, 32], sizes = [8, 16], strides = [1, 1]} : vector<8x64xf32> to vector<8x16xf32>
    %cst_29 = arith.constant dense<0.000000e+00> : vector<8x64xf32>
    %85 = tpu.matmul %79, %1, %cst_29 {dimension_numbers = #tpu.dot_dimension_numbers<[1], [0], [0], [1], [0, 0, 1, 1], [], []>, precision = #tpu.contract_precision<fp32>} : vector<8x32xf32>, vector<32x64xf32>, vector<8x64xf32> -> vector<8x64xf32>
    %86 = vector.extract_strided_slice %85 {offsets = [0, 48], sizes = [8, 16], strides = [1, 1]} : vector<8x64xf32> to vector<8x16xf32>
    %cst_30 = arith.constant dense<0.000000e+00> : vector<8x8xf32>
    %87 = tpu.matmul %79, %83, %cst_30 {dimension_numbers = #tpu.dot_dimension_numbers<[1], [1], [0], [0], [0, 0, 1, 0], [], []>, precision = #tpu.contract_precision<fp32>} : vector<8x32xf32>, vector<8x32xf32>, vector<8x8xf32> -> vector<8x8xf32>
    %cst_31 = arith.constant dense<0xFF800000> : vector<8xf32>
    %88 = vector.multi_reduction <maximumf>, %87, %cst_31 [1] : vector<8x8xf32> to vector<8xf32>
    %89 = vector.shape_cast %88 : vector<8xf32> to vector<8x1xf32>
    %90 = vector.broadcast %89 : vector<8x1xf32> to vector<8x8xf32>
    %91 = arith.subf %87, %90 : vector<8x8xf32>
    %92 = math.exp %91 : vector<8x8xf32>
    %cst_32 = arith.constant dense<0.000000e+00> : vector<8xf32>
    %93 = vector.multi_reduction <add>, %92, %cst_32 [1] : vector<8x8xf32> to vector<8xf32>
    %94 = vector.shape_cast %93 : vector<8xf32> to vector<8x1xf32>
    %95 = tpu.reciprocal %94 {approx = true} : vector<8x1xf32> -> vector<8x1xf32>
    %96 = vector.broadcast %95 : vector<8x1xf32> to vector<8x8xf32>
    %97 = arith.mulf %92, %96 : vector<8x8xf32>
    %cst_33 = arith.constant dense<0.000000e+00> : vector<8x16xf32>
    %98 = tpu.matmul %97, %84, %cst_33 {dimension_numbers = #tpu.dot_dimension_numbers<[1], [0], [0], [1], [0, 0, 1, 1], [], []>, precision = #tpu.contract_precision<fp32>} : vector<8x8xf32>, vector<8x16xf32>, vector<8x16xf32> -> vector<8x16xf32>
    %99 = arith.addf %86, %98 : vector<8x16xf32>
    %100 = vector.broadcast %4 : vector<1x16xf32> to vector<8x16xf32>
    %101 = arith.addf %99, %100 : vector<8x16xf32>
    %102 = tpu.concatenate %101, %97 in 1 : vector<8x16xf32>, vector<8x8xf32> -> vector<8x24xf32>
    %c0_34 = arith.constant 0 : index
    %c0_35 = arith.constant 0 : index
    %103 = vector.load %arg4[%c0_34, %c0_35] : memref<8x24xf32, #tpu.memory_space<vmem>>, vector<8x24xf32>
    tpu.vector_store %arg4[%c0_34, %c0_35], %102 {strides = array<i32>} : memref<8x24xf32, #tpu.memory_space<vmem>>, vector<8x24xf32>,
    return
  }
}

</mosaic_0001>

<llo_original>
// kernel: attention_forward.1
$region0: #{attention_forward.1}
  #allocation0 [shape = 'u32[]', space=smem, size = 0x4, offset = 0x4, fixed_abs, tag = 'smem constant byte address 0x4 - core index']
  #allocation1 [shape = 'u32[144,128]{1,0:T(1,128)}', space=vmem, size = 0x12000, scoped, tag = 'internal scratch']
  %s0 = inlined_call_operand.vmem [shape: f32[16,16], index: 0, kind: input, shape index: {}]
  %s1 = inlined_call_operand.vmem [shape: f32[1,32], index: 1, kind: input, shape index: {}]
  %s2 = inlined_call_operand.vmem [shape: f32[64,32], index: 2, kind: input, shape index: {}]
  %s3 = inlined_call_operand.vmem [shape: f32[51,64], index: 3, kind: input, shape index: {}]
  %s4 = inlined_call_operand.vmem [shape: f32[8,24], index: 4, kind: output, shape index: {}]
  %s5 = sld [smem:[#allocation0]]
  $region26: #{attention_forward.1} parent=0
    _
  %s7 = ssub.s32 1, %s5
  %s8 = scalar_select 0, %s7, %s5
  // Predicated region
  $region2: #{attention_forward.1} parent=0 // pred_check
    _
  $region3: #{attention_forward.1} parent=0 // pred_check_branch
    %10 = sbr.rel (0) target = $region5
  $region4: #{attention_forward.1} parent=0 // pred_region
    _
  $region5: #{attention_forward.1} parent=0 // pred_fallthru
    _
  // Predicated region
  $region6: #{attention_forward.1} parent=0 // pred_check
    _
  $region7: #{attention_forward.1} parent=0 // pred_check_branch
    %12 = sbr.rel (0) target = $region9
  $region8: #{attention_forward.1} parent=0 // pred_region
    _
  $region9: #{attention_forward.1} parent=0 // pred_fallthru
    _
  // Predicated region
  $region10: #{attention_forward.1} parent=0 // pred_check
    _
  $region11: #{attention_forward.1} parent=0 // pred_check_branch
    %14 = sbr.rel (0) target = $region13
  $region12: #{attention_forward.1} parent=0 // pred_region
    _
  $region13: #{attention_forward.1} parent=0 // pred_fallthru
    _
  // Predicated region
  $region14: #{attention_forward.1} parent=0 // pred_check
    _
  $region15: #{attention_forward.1} parent=0 // pred_check_branch
    %16 = sbr.rel (0) target = $region17
  $region16: #{attention_forward.1} parent=0 // pred_region
    _
  $region17: #{attention_forward.1} parent=0 // pred_fallthru
    _
  %v17 = vld [vmem:[%s3] sm:$0xff]
  %v18 = vld [vmem:[%s3 + $0x8] sm:$0xff]
  %v19 = vld [vmem:[%s3 + $0x10] sm:$0xff]
  %v20 = vld [vmem:[%s3 + $0x18] sm:$0xff]
  %v21 = vld [vmem:[%s3 + $0x20] sm:$0xff]
  %v22 = vld [vmem:[%s3 + $0x28] sm:$0xff]
  %v23 = vld [vmem:[%s3 + $0x30] sm:$0x1]
  %v24 = vld [vmem:[%s3 + $0x31] sm:$0x1]
  %v25 = vld [vmem:[%s3 + $0x32] sm:$0x1]
  %v26 = vld [vmem:[%s2] sm:$0xff]
  %v27 = vld [vmem:[%s2 + $0x8] sm:$0xff]
  %v28 = vld [vmem:[%s2 + $0x10] sm:$0xff]
  %v29 = vld [vmem:[%s2 + $0x18] sm:$0xff]
  %v30 = vld [vmem:[%s2 + $0x20] sm:$0xff]
  %v31 = vld [vmem:[%s2 + $0x28] sm:$0xff]
  %v32 = vld [vmem:[%s2 + $0x30] sm:$0xff]
  %v33 = vld [vmem:[%s2 + $0x38] sm:$0xff]
  %v34 = vld [vmem:[%s0] sm:$0xff]
  %v35 = vld [vmem:[%s0 + $0x8] sm:$0xff]
  %v36 = vlaneseq
  %v37 = vshrl.u32 %v36, 7
  %v38 = vsub.s32 0, %v37
  %v39 = vrot.slane %v23, %v38
  %vm40 = vcmask 130048
  %v42 = vsel %vm40, %v34, 0
  %v45 = vsel %vm40, %v35, 0
  %47 = vmatprep.subr.mxu0 0.0
  %v48 = vand.u32 %v17, 4294901760
  %49 = vmatpush1.msra.mxu0 %v48
  %50 = vmatprep.subr.mxu0 0.0
  %v51 = vand.u32 %v18, 4294901760
  %52 = vmatpush1.msra.mxu0 %v51
  %53 = vmatprep.subr.mxu0 0.0
  %54 = vmatpush1.msra.mxu0 0.0
  %55 = vmatprep.subr.mxu0 0.0
  %56 = vmatpush1.msra.mxu0 0.0
  %57 = vmatprep.subr.mxu0 0.0
  %58 = vmatpush1.msra.mxu0 0.0
  %59 = vmatprep.subr.mxu0 0.0
  %60 = vmatpush1.msra.mxu0 0.0
  %61 = vmatprep.subr.mxu0 0.0
  %62 = vmatpush1.msra.mxu0 0.0
  %63 = vmatprep.subr.mxu0 0.0
  %64 = vmatpush1.msra.mxu0 0.0
  %65 = vmatprep.subr.mxu0 0.0
  %66 = vmatpush1.msra.mxu0 0.0
  %67 = vmatprep.subr.mxu0 0.0
  %68 = vmatpush1.msra.mxu0 0.0
  %69 = vmatprep.subr.mxu0 0.0
  %70 = vmatpush1.msra.mxu0 0.0
  %71 = vmatprep.subr.mxu0 0.0
  %72 = vmatpush1.msra.mxu0 0.0
  %73 = vmatprep.subr.mxu0 0.0
  %74 = vmatpush1.msra.mxu0 0.0
  %75 = vmatprep.subr.mxu0 0.0
  %76 = vmatpush1.msra.mxu0 0.0
  %77 = vmatprep.subr.mxu0 0.0
  %78 = vmatpush1.msra.mxu0 0.0
  %79 = vmatprep.subr.mxu0 0.0
  %80 = vmatpush1.msra.mxu0 0.0
  %81 = vmatprep.subr.mxu0 0.0
  %82 = vmatpush1.msra.mxu0 0.0
  %83 = vmatprep.subr.mxu0 0.0
  %84 = vmatpush1.msra.mxu0 0.0
  %85 = vmatprep.subr.mxu0 0.0
  %86 = vmatpush1.msra.mxu0 0.0
  %87 = vmatprep.subr.mxu0 0.0
  %88 = vmatpush1.msra.mxu0 0.0
  %89 = vmatprep.subr.mxu0 0.0
  %90 = vmatpush1.msra.mxu0 0.0
  %91 = vmatprep.subr.mxu0 0.0
  %92 = vmatpush1.msra.mxu0 0.0
  %93 = vmatprep.subr.mxu0 0.0
  %94 = vmatpush1.msra.mxu0 0.0
  %95 = vmatprep.subr.mxu0 0.0
  %96 = vmatpush1.msra.mxu0 0.0
  %97 = vmatprep.subr.mxu0 0.0
  %98 = vmatpush1.msra.mxu0 0.0
  %99 = vmatprep.subr.mxu0 0.0
  %100 = vmatpush1.msra.mxu0 0.0
  %101 = vmatprep.subr.mxu0 0.0
  %102 = vmatpush1.msra.mxu0 0.0
  %103 = vmatprep.subr.mxu0 0.0
  %104 = vmatpush1.msra.mxu0 0.0
  %105 = vmatprep.subr.mxu0 0.0
  %106 = vmatpush1.msra.mxu0 0.0
  %107 = vmatprep.subr.mxu0 0.0
  %108 = vmatpush1.msra.mxu0 0.0
  %109 = vmatprep.subr.mxu0 0.0
  %110 = vmatpush1.msra.mxu0 0.0
  %111 = vmatprep.subr.mxu0 0.0
  %112 = vmatpush1.msra.mxu0 0.0
  %113 = vmatprep.mubr.f32.mxu0 0.0
  %v114 = vand.u32 %v42, 4294901760
  %v115 = vsub.f32 %v42, %v114
  %v116 = vand.u32 %v115, 4294901760
  %v117 = vsub.f32 %v115, %v116
  %v118 = vand.u32 %v117, 4294901760
  %119 = vmatmul.mubr.f32.gmra.mrb[0].mxu0 %v118
  %v120 = vpop.f32.mrb[0].mxu0
  %v121 = vadd.f32 %v39, %v120
  %v122 = vpop.f32.mrb[0].mxu0
  %123 = vmatprep.mubr.f32.mxu0 0.0
  %v124 = vand.u32 %v45, 4294901760
  %v125 = vsub.f32 %v45, %v124
  %v126 = vand.u32 %v125, 4294901760
  %v127 = vsub.f32 %v125, %v126
  %v128 = vand.u32 %v127, 4294901760
  %129 = vmatmul.mubr.f32.gmra.mrb[0].mxu0 %v128
  %v130 = vpop.f32.mrb[0].mxu0
  %v131 = vadd.f32 %v39, %v130
  %v132 = vpop.f32.mrb[0].mxu0
  %133 = vdwg.mxu0
  %134 = vmatprep.subr.mxu0 0.0
  %v135 = vand.u32 %v17, 4294901760
  %v136 = vsub.f32 %v17, %v135
  %v137 = vand.u32 %v136, 4294901760
  %v138 = vsub.f32 %v136, %v137
  %v139 = vand.u32 %v138, 4294901760
  %140 = vmatpush1.msra.mxu0 %v139
  %141 = vmatprep.subr.mxu0 0.0
  %v142 = vand.u32 %v18, 4294901760
  %v143 = vsub.f32 %v18, %v142
  %v144 = vand.u32 %v143, 4294901760
  %v145 = vsub.f32 %v143, %v144
  %v146 = vand.u32 %v145, 4294901760
  %147 = vmatpush1.msra.mxu0 %v146
  %148 = vmatprep.subr.mxu0 0.0
  %149 = vmatpush1.msra.mxu0 0.0
  %150 = vmatprep.subr.mxu0 0.0
  %151 = vmatpush1.msra.mxu0 0.0
  %152 = vmatprep.subr.mxu0 0.0
  %153 = vmatpush1.msra.mxu0 0.0
  %154 = vmatprep.subr.mxu0 0.0
  %155 = vmatpush1.msra.mxu0 0.0
  %156 = vmatprep.subr.mxu0 0.0
  %157 = vmatpush1.msra.mxu0 0.0
  %158 = vmatprep.subr.mxu0 0.0
  %159 = vmatpush1.msra.mxu0 0.0
  %160 = vmatprep.subr.mxu0 0.0
  %161 = vmatpush1.msra.mxu0 0.0
  %162 = vmatprep.subr.mxu0 0.0
  %163 = vmatpush1.msra.mxu0 0.0
  %164 = vmatprep.subr.mxu0 0.0
  %165 = vmatpush1.msra.mxu0 0.0
  %166 = vmatprep.subr.mxu0 0.0
  %167 = vmatpush1.msra.mxu0 0.0
  %168 = vmatprep.subr.mxu0 0.0
  %169 = vmatpush1.msra.mxu0 0.0
  %170 = vmatprep.subr.mxu0 0.0
  %171 = vmatpush1.msra.mxu0 0.0
  %172 = vmatprep.subr.mxu0 0.0
  %173 = vmatpush1.msra.mxu0 0.0
  %174 = vmatprep.subr.mxu0 0.0
  %175 = vmatpush1.msra.mxu0 0.0
  %176 = vmatprep.subr.mxu0 0.0
  %177 = vmatpush1.msra.mxu0 0.0
  %178 = vmatprep.subr.mxu0 0.0
  %179 = vmatpush1.msra.mxu0 0.0
  %180 = vmatprep.subr.mxu0 0.0
  %181 = vmatpush1.msra.mxu0 0.0
  %182 = vmatprep.subr.mxu0 0.0
  %183 = vmatpush1.msra.mxu0 0.0
  %184 = vmatprep.subr.mxu0 0.0
  %185 = vmatpush1.msra.mxu0 0.0
  %186 = vmatprep.subr.mxu0 0.0
  %187 = vmatpush1.msra.mxu0 0.0
  %188 = vmatprep.subr.mxu0 0.0
  %189 = vmatpush1.msra.mxu0 0.0
  %190 = vmatprep.subr.mxu0 0.0
  %191 = vmatpush1.msra.mxu0 0.0
  %192 = vmatprep.subr.mxu0 0.0
  %193 = vmatpush1.msra.mxu0 0.0
  %194 = vmatprep.subr.mxu0 0.0
  %195 = vmatpush1.msra.mxu0 0.0
  %196 = vmatprep.subr.mxu0 0.0
  %197 = vmatpush1.msra.mxu0 0.0
  %198 = vmatprep.subr.mxu0 0.0
  %199 = vmatpush1.msra.mxu0 0.0
  %200 = vmatprep.subr.mxu0 0.0
  %201 = vmatpush1.msra.mxu0 0.0
  %202 = vmatprep.subr.mxu0 0.0
  %203 = vmatpush1.msra.mxu0 0.0
  %204 = vmatprep.subr.mxu0 0.0
  %205 = vmatpush1.msra.mxu0 0.0
  %206 = vmatprep.subr.mxu0 0.0
  %207 = vmatpush1.msra.mxu0 0.0
  %208 = vmatprep.mubr.f32.mxu0 0.0
  %v209 = vand.u32 %v42, 4294901760
  %210 = vmatmul.mubr.f32.gmra.mrb[0].mxu0 %v209
  %v211 = vpop.f32.mrb[0].mxu0
  %v212 = vadd.f32 %v121, %v211
  %v213 = vpop.f32.mrb[0].mxu0
  %214 = vmatprep.mubr.f32.mxu0 0.0
  %v215 = vand.u32 %v45, 4294901760
  %216 = vmatmul.mubr.f32.gmra.mrb[0].mxu0 %v215
  %v217 = vpop.f32.mrb[0].mxu0
  %v218 = vadd.f32 %v131, %v217
  %v219 = vpop.f32.mrb[0].mxu0
  %220 = vdwg.mxu0
  %221 = vmatprep.subr.mxu0 0.0
  %v222 = vand.u32 %v17, 4294901760
  %v223 = vsub.f32 %v17, %v222
  %224 = vmatpush1.msra.mxu0 %v223
  %225 = vmatprep.subr.mxu0 0.0
  %v226 = vand.u32 %v18, 4294901760
  %v227 = vsub.f32 %v18, %v226
  %228 = vmatpush1.msra.mxu0 %v227
  %229 = vmatprep.subr.mxu0 0.0
  %230 = vmatpush1.msra.mxu0 0.0
  %231 = vmatprep.subr.mxu0 0.0
  %232 = vmatpush1.msra.mxu0 0.0
  %233 = vmatprep.subr.mxu0 0.0
  %234 = vmatpush1.msra.mxu0 0.0
  %235 = vmatprep.subr.mxu0 0.0
  %236 = vmatpush1.msra.mxu0 0.0
  %237 = vmatprep.subr.mxu0 0.0
  %238 = vmatpush1.msra.mxu0 0.0
  %239 = vmatprep.subr.mxu0 0.0
  %240 = vmatpush1.msra.mxu0 0.0
  %241 = vmatprep.subr.mxu0 0.0
  %242 = vmatpush1.msra.mxu0 0.0
  %243 = vmatprep.subr.mxu0 0.0
  %244 = vmatpush1.msra.mxu0 0.0
  %245 = vmatprep.subr.mxu0 0.0
  %246 = vmatpush1.msra.mxu0 0.0
  %247 = vmatprep.subr.mxu0 0.0
  %248 = vmatpush1.msra.mxu0 0.0
  %249 = vmatprep.subr.mxu0 0.0
  %250 = vmatpush1.msra.mxu0 0.0
  %251 = vmatprep.subr.mxu0 0.0
  %252 = vmatpush1.msra.mxu0 0.0
  %253 = vmatprep.subr.mxu0 0.0
  %254 = vmatpush1.msra.mxu0 0.0
  %255 = vmatprep.subr.mxu0 0.0
  %256 = vmatpush1.msra.mxu0 0.0
  %257 = vmatprep.subr.mxu0 0.0
  %258 = vmatpush1.msra.mxu0 0.0
  %259 = vmatprep.subr.mxu0 0.0
  %260 = vmatpush1.msra.mxu0 0.0
  %261 = vmatprep.subr.mxu0 0.0
  %262 = vmatpush1.msra.mxu0 0.0
  %263 = vmatprep.subr.mxu0 0.0
  %264 = vmatpush1.msra.mxu0 0.0
  %265 = vmatprep.subr.mxu0 0.0
  %266 = vmatpush1.msra.mxu0 0.0
  %267 = vmatprep.subr.mxu0 0.0
  %268 = vmatpush1.msra.mxu0 0.0
  %269 = vmatprep.subr.mxu0 0.0
  %270 = vmatpush1.msra.mxu0 0.0
  %271 = vmatprep.subr.mxu0 0.0
  %272 = vmatpush1.msra.mxu0 0.0
  %273 = vmatprep.subr.mxu0 0.0
  %274 = vmatpush1.msra.mxu0 0.0
  %275 = vmatprep.subr.mxu0 0.0
  %276 = vmatpush1.msra.mxu0 0.0
  %277 = vmatprep.subr.mxu0 0.0
  %278 = vmatpush1.msra.mxu0 0.0
  %279 = vmatprep.subr.mxu0 0.0
  %280 = vmatpush1.msra.mxu0 0.0
  %281 = vmatprep.subr.mxu0 0.0
  %282 = vmatpush1.msra.mxu0 0.0
  %283 = vmatprep.subr.mxu0 0.0
  %284 = vmatpush1.msra.mxu0 0.0
  %285 = vmatprep.subr.mxu0 0.0
  %286 = vmatpush1.msra.mxu0 0.0
  %287 = vmatprep.subr.mxu0 0.0
  %288 = vmatpush1.msra.mxu0 0.0
  %289 = vmatprep.mubr.f32.mxu0 0.0
  %v290 = vand.u32 %v42, 4294901760
  %v291 = vsub.f32 %v42, %v290
  %292 = vmatmul.mubr.f32.gmra.mrb[0].mxu0 %v291
  %v293 = vpop.f32.mrb[0].mxu0
  %v294 = vadd.f32 %v212, %v293
  %v295 = vpop.f32.mrb[0].mxu0
  %296 = vmatprep.mubr.f32.mxu0 0.0
  %v297 = vand.u32 %v45, 4294901760
  %v298 = vsub.f32 %v45, %v297
  %299 = vmatmul.mubr.f32.gmra.mrb[0].mxu0 %v298
  %v300 = vpop.f32.mrb[0].mxu0
  %v301 = vadd.f32 %v218, %v300
  %v302 = vpop.f32.mrb[0].mxu0
  %303 = vdwg.mxu0
  %304 = vmatprep.subr.mxu0 0.0
  %v305 = vand.u32 %v17, 4294901760
  %306 = vmatpush1.msra.mxu0 %v305
  %307 = vmatprep.subr.mxu0 0.0
  %v308 = vand.u32 %v18, 4294901760
  %309 = vmatpush1.msra.mxu0 %v308
  %310 = vmatprep.subr.mxu0 0.0
  %311 = vmatpush1.msra.mxu0 0.0
  %312 = vmatprep.subr.mxu0 0.0
  %313 = vmatpush1.msra.mxu0 0.0
  %314 = vmatprep.subr.mxu0 0.0
  %315 = vmatpush1.msra.mxu0 0.0
  %316 = vmatprep.subr.mxu0 0.0
  %317 = vmatpush1.msra.mxu0 0.0
  %318 = vmatprep.subr.mxu0 0.0
  %319 = vmatpush1.msra.mxu0 0.0
  %320 = vmatprep.subr.mxu0 0.0
  %321 = vmatpush1.msra.mxu0 0.0
  %322 = vmatprep.subr.mxu0 0.0
  %323 = vmatpush1.msra.mxu0 0.0
  %324 = vmatprep.subr.mxu0 0.0
  %325 = vmatpush1.msra.mxu0 0.0
  %326 = vmatprep.subr.mxu0 0.0
  %327 = vmatpush1.msra.mxu0 0.0
  %328 = vmatprep.subr.mxu0 0.0
  %329 = vmatpush1.msra.mxu0 0.0
  %330 = vmatprep.subr.mxu0 0.0
  %331 = vmatpush1.msra.mxu0 0.0
  %332 = vmatprep.subr.mxu0 0.0
  %333 = vmatpush1.msra.mxu0 0.0
  %334 = vmatprep.subr.mxu0 0.0
  %335 = vmatpush1.msra.mxu0 0.0
  %336 = vmatprep.subr.mxu0 0.0
  %337 = vmatpush1.msra.mxu0 0.0
  %338 = vmatprep.subr.mxu0 0.0
  %339 = vmatpush1.msra.mxu0 0.0
  %340 = vmatprep.subr.mxu0 0.0
  %341 = vmatpush1.msra.mxu0 0.0
  %342 = vmatprep.subr.mxu0 0.0
  %343 = vmatpush1.msra.mxu0 0.0
  %344 = vmatprep.subr.mxu0 0.0
  %345 = vmatpush1.msra.mxu0 0.0
  %346 = vmatprep.subr.mxu0 0.0
  %347 = vmatpush1.msra.mxu0 0.0
  %348 = vmatprep.subr.mxu0 0.0
  %349 = vmatpush1.msra.mxu0 0.0
  %350 = vmatprep.subr.mxu0 0.0
  %351 = vmatpush1.msra.mxu0 0.0
  %352 = vmatprep.subr.mxu0 0.0
  %353 = vmatpush1.msra.mxu0 0.0
  %354 = vmatprep.subr.mxu0 0.0
  %355 = vmatpush1.msra.mxu0 0.0
  %356 = vmatprep.subr.mxu0 0.0
  %357 = vmatpush1.msra.mxu0 0.0
  %358 = vmatprep.subr.mxu0 0.0
  %359 = vmatpush1.msra.mxu0 0.0
  %360 = vmatprep.subr.mxu0 0.0
  %361 = vmatpush1.msra.mxu0 0.0
  %362 = vmatprep.subr.mxu0 0.0
  %363 = vmatpush1.msra.mxu0 0.0
  %364 = vmatprep.subr.mxu0 0.0
  %365 = vmatpush1.msra.mxu0 0.0
  %366 = vmatprep.subr.mxu0 0.0
  %367 = vmatpush1.msra.mxu0 0.0
  %368 = vmatprep.subr.mxu0 0.0
  %369 = vmatpush1.msra.mxu0 0.0
  %370 = vmatprep.mubr.f32.mxu0 0.0
  %v371 = vand.u32 %v42, 4294901760
  %v372 = vsub.f32 %v42, %v371
  %v373 = vand.u32 %v372, 4294901760
  %374 = vmatmul.mubr.f32.gmra.mrb[0].mxu0 %v373
  %v375 = vpop.f32.mrb[0].mxu0
  %v376 = vadd.f32 %v294, %v375
  %v377 = vpop.f32.mrb[0].mxu0
  %378 = vmatprep.mubr.f32.mxu0 0.0
  %v379 = vand.u32 %v45, 4294901760
  %v380 = vsub.f32 %v45, %v379
  %v381 = vand.u32 %v380, 4294901760
  %382 = vmatmul.mubr.f32.gmra.mrb[0].mxu0 %v381
  %v383 = vpop.f32.mrb[0].mxu0
  %v384 = vadd.f32 %v301, %v383
  %v385 = vpop.f32.mrb[0].mxu0
  %386 = vdwg.mxu0
  %387 = vmatprep.subr.mxu0 0.0
  %v388 = vand.u32 %v17, 4294901760
  %v389 = vsub.f32 %v17, %v388
  %v390 = vand.u32 %v389, 4294901760
  %391 = vmatpush1.msra.mxu0 %v390
  %392 = vmatprep.subr.mxu0 0.0
  %v393 = vand.u32 %v18, 4294901760
  %v394 = vsub.f32 %v18, %v393
  %v395 = vand.u32 %v394, 4294901760
  %396 = vmatpush1.msra.mxu0 %v395
  %397 = vmatprep.subr.mxu0 0.0
  %398 = vmatpush1.msra.mxu0 0.0
  %399 = vmatprep.subr.mxu0 0.0
  %400 = vmatpush1.msra.mxu0 0.0
  %401 = vmatprep.subr.mxu0 0.0
  %402 = vmatpush1.msra.mxu0 0.0
  %403 = vmatprep.subr.mxu0 0.0
  %404 = vmatpush1.msra.mxu0 0.0
  %405 = vmatprep.subr.mxu0 0.0
  %406 = vmatpush1.msra.mxu0 0.0
  %407 = vmatprep.subr.mxu0 0.0
  %408 = vmatpush1.msra.mxu0 0.0
  %409 = vmatprep.subr.mxu0 0.0
  %410 = vmatpush1.msra.mxu0 0.0
  %411 = vmatprep.subr.mxu0 0.0
  %412 = vmatpush1.msra.mxu0 0.0
  %413 = vmatprep.subr.mxu0 0.0
  %414 = vmatpush1.msra.mxu0 0.0
  %415 = vmatprep.subr.mxu0 0.0
  %416 = vmatpush1.msra.mxu0 0.0
  %417 = vmatprep.subr.mxu0 0.0
  %418 = vmatpush1.msra.mxu0 0.0
  %419 = vmatprep.subr.mxu0 0.0
  %420 = vmatpush1.msra.mxu0 0.0
  %421 = vmatprep.subr.mxu0 0.0
  %422 = vmatpush1.msra.mxu0 0.0
  %423 = vmatprep.subr.mxu0 0.0
  %424 = vmatpush1.msra.mxu0 0.0
  %425 = vmatprep.subr.mxu0 0.0
  %426 = vmatpush1.msra.mxu0 0.0
  %427 = vmatprep.subr.mxu0 0.0
  %428 = vmatpush1.msra.mxu0 0.0
  %429 = vmatprep.subr.mxu0 0.0
  %430 = vmatpush1.msra.mxu0 0.0
  %431 = vmatprep.subr.mxu0 0.0
  %432 = vmatpush1.msra.mxu0 0.0
  %433 = vmatprep.subr.mxu0 0.0
  %434 = vmatpush1.msra.mxu0 0.0
  %435 = vmatprep.subr.mxu0 0.0
  %436 = vmatpush1.msra.mxu0 0.0
  %437 = vmatprep.subr.mxu0 0.0
  %438 = vmatpush1.msra.mxu0 0.0
  %439 = vmatprep.subr.mxu0 0.0
  %440 = vmatpush1.msra.mxu0 0.0
  %441 = vmatprep.subr.mxu0 0.0
  %442 = vmatpush1.msra.mxu0 0.0
  %443 = vmatprep.subr.mxu0 0.0
  %444 = vmatpush1.msra.mxu0 0.0
  %445 = vmatprep.subr.mxu0 0.0
  %446 = vmatpush1.msra.mxu0 0.0
  %447 = vmatprep.subr.mxu0 0.0
  %448 = vmatpush1.msra.mxu0 0.0
  %449 = vmatprep.subr.mxu0 0.0
  %450 = vmatpush1.msra.mxu0 0.0
  %451 = vmatprep.subr.mxu0 0.0
  %452 = vmatpush1.msra.mxu0 0.0
  %453 = vmatprep.subr.mxu0 0.0
  %454 = vmatpush1.msra.mxu0 0.0
  %455 = vmatprep.subr.mxu0 0.0
  %456 = vmatpush1.msra.mxu0 0.0
  %457 = vmatprep.mubr.f32.mxu0 0.0
  %v458 = vand.u32 %v42, 4294901760
  %459 = vmatmul.mubr.f32.gmra.mrb[0].mxu0 %v458
  %v460 = vpop.f32.mrb[0].mxu0
  %v461 = vadd.f32 %v376, %v460
  %v462 = vpop.f32.mrb[0].mxu0
  %463 = vmatprep.mubr.f32.mxu0 0.0
  %v464 = vand.u32 %v45, 4294901760
  %465 = vmatmul.mubr.f32.gmra.mrb[0].mxu0 %v464
  %v466 = vpop.f32.mrb[0].mxu0
  %v467 = vadd.f32 %v384, %v466
  %v468 = vpop.f32.mrb[0].mxu0
  %469 = vdwg.mxu0
  %470 = vmatprep.subr.mxu0 0.0
  %v471 = vand.u32 %v17, 4294901760
  %472 = vmatpush1.msra.mxu0 %v471
  %473 = vmatprep.subr.mxu0 0.0
  %v474 = vand.u32 %v18, 4294901760
  %475 = vmatpush1.msra.mxu0 %v474
  %476 = vmatprep.subr.mxu0 0.0
  %477 = vmatpush1.msra.mxu0 0.0
  %478 = vmatprep.subr.mxu0 0.0
  %479 = vmatpush1.msra.mxu0 0.0
  %480 = vmatprep.subr.mxu0 0.0
  %481 = vmatpush1.msra.mxu0 0.0
  %482 = vmatprep.subr.mxu0 0.0
  %483 = vmatpush1.msra.mxu0 0.0
  %484 = vmatprep.subr.mxu0 0.0
  %485 = vmatpush1.msra.mxu0 0.0
  %486 = vmatprep.subr.mxu0 0.0
  %487 = vmatpush1.msra.mxu0 0.0
  %488 = vmatprep.subr.mxu0 0.0
  %489 = vmatpush1.msra.mxu0 0.0
  %490 = vmatprep.subr.mxu0 0.0
  %491 = vmatpush1.msra.mxu0 0.0
  %492 = vmatprep.subr.mxu0 0.0
  %493 = vmatpush1.msra.mxu0 0.0
  %494 = vmatprep.subr.mxu0 0.0
  %495 = vmatpush1.msra.mxu0 0.0
  %496 = vmatprep.subr.mxu0 0.0
  %497 = vmatpush1.msra.mxu0 0.0
  %498 = vmatprep.subr.mxu0 0.0
  %499 = vmatpush1.msra.mxu0 0.0
  %500 = vmatprep.subr.mxu0 0.0
  %501 = vmatpush1.msra.mxu0 0.0
  %502 = vmatprep.subr.mxu0 0.0
  %503 = vmatpush1.msra.mxu0 0.0
  %504 = vmatprep.subr.mxu0 0.0
  %505 = vmatpush1.msra.mxu0 0.0
  %506 = vmatprep.subr.mxu0 0.0
  %507 = vmatpush1.msra.mxu0 0.0
  %508 = vmatprep.subr.mxu0 0.0
  %509 = vmatpush1.msra.mxu0 0.0
  %510 = vmatprep.subr.mxu0 0.0
  %511 = vmatpush1.msra.mxu0 0.0
  %512 = vmatprep.subr.mxu0 0.0
  %513 = vmatpush1.msra.mxu0 0.0
  %514 = vmatprep.subr.mxu0 0.0
  %515 = vmatpush1.msra.mxu0 0.0
  %516 = vmatprep.subr.mxu0 0.0
  %517 = vmatpush1.msra.mxu0 0.0
  %518 = vmatprep.subr.mxu0 0.0
  %519 = vmatpush1.msra.mxu0 0.0
  %520 = vmatprep.subr.mxu0 0.0
  %521 = vmatpush1.msra.mxu0 0.0
  %522 = vmatprep.subr.mxu0 0.0
  %523 = vmatpush1.msra.mxu0 0.0
  %524 = vmatprep.subr.mxu0 0.0
  %525 = vmatpush1.msra.mxu0 0.0
  %526 = vmatprep.subr.mxu0 0.0
  %527 = vmatpush1.msra.mxu0 0.0
  %528 = vmatprep.subr.mxu0 0.0
  %529 = vmatpush1.msra.mxu0 0.0
  %530 = vmatprep.subr.mxu0 0.0
  %531 = vmatpush1.msra.mxu0 0.0
  %532 = vmatprep.subr.mxu0 0.0
  %533 = vmatpush1.msra.mxu0 0.0
  %534 = vmatprep.subr.mxu0 0.0
  %535 = vmatpush1.msra.mxu0 0.0
  %536 = vmatprep.mubr.f32.mxu0 0.0
  %v537 = vand.u32 %v42, 4294901760
  %538 = vmatmul.mubr.f32.gmra.mrb[0].mxu0 %v537
  %v539 = vpop.f32.mrb[0].mxu0
  %v540 = vadd.f32 %v461, %v539
  %v541 = vpop.f32.mrb[0].mxu0
  %542 = vmatprep.mubr.f32.mxu0 0.0
  %v543 = vand.u32 %v45, 4294901760
  %544 = vmatmul.mubr.f32.gmra.mrb[0].mxu0 %v543
  %v545 = vpop.f32.mrb[0].mxu0
  %v546 = vadd.f32 %v467, %v545
  %v547 = vpop.f32.mrb[0].mxu0
  %548 = vdwg.mxu0
  %v549 = vld [vmem:[%s1] sm:$0x1]
  %vm550 = vcmask 261120
  %v552 = vsel %vm550, %v549, 0
  %554 = vmatprep.subr.mxu0 0.0
  %v555 = vand.u32 %v26, 4294901760
  %556 = vmatpush1.msra.mxu0 %v555
  %557 = vmatprep.subr.mxu0 0.0
  %v558 = vand.u32 %v27, 4294901760
  %559 = vmatpush1.msra.mxu0 %v558
  %560 = vmatprep.subr.mxu0 0.0
  %v561 = vand.u32 %v28, 4294901760
  %562 = vmatpush1.msra.mxu0 %v561
  %563 = vmatprep.subr.mxu0 0.0
  %v564 = vand.u32 %v29, 4294901760
  %565 = vmatpush1.msra.mxu0 %v564
  %566 = vmatprep.subr.mxu0 0.0
  %567 = vmatpush1.msra.mxu0 0.0
  %568 = vmatprep.subr.mxu0 0.0
  %569 = vmatpush1.msra.mxu0 0.0
  %570 = vmatprep.subr.mxu0 0.0
  %571 = vmatpush1.msra.mxu0 0.0
  %572 = vmatprep.subr.mxu0 0.0
  %573 = vmatpush1.msra.mxu0 0.0
  %574 = vmatprep.subr.mxu0 0.0
  %575 = vmatpush1.msra.mxu0 0.0
  %576 = vmatprep.subr.mxu0 0.0
  %577 = vmatpush1.msra.mxu0 0.0
  %578 = vmatprep.subr.mxu0 0.0
  %579 = vmatpush1.msra.mxu0 0.0
  %580 = vmatprep.subr.mxu0 0.0
  %581 = vmatpush1.msra.mxu0 0.0
  %582 = vmatprep.subr.mxu0 0.0
  %583 = vmatpush1.msra.mxu0 0.0
  %584 = vmatprep.subr.mxu0 0.0
  %585 = vmatpush1.msra.mxu0 0.0
  %586 = vmatprep.subr.mxu0 0.0
  %587 = vmatpush1.msra.mxu0 0.0
  %588 = vmatprep.subr.mxu0 0.0
  %589 = vmatpush1.msra.mxu0 0.0
  %590 = vmatprep.subr.mxu0 0.0
  %591 = vmatpush1.msra.mxu0 0.0
  %592 = vmatprep.subr.mxu0 0.0
  %593 = vmatpush1.msra.mxu0 0.0
  %594 = vmatprep.subr.mxu0 0.0
  %595 = vmatpush1.msra.mxu0 0.0
  %596 = vmatprep.subr.mxu0 0.0
  %597 = vmatpush1.msra.mxu0 0.0
  %598 = vmatprep.subr.mxu0 0.0
  %599 = vmatpush1.msra.mxu0 0.0
  %600 = vmatprep.subr.mxu0 0.0
  %601 = vmatpush1.msra.mxu0 0.0
  %602 = vmatprep.subr.mxu0 0.0
  %603 = vmatpush1.msra.mxu0 0.0
  %604 = vmatprep.subr.mxu0 0.0
  %605 = vmatpush1.msra.mxu0 0.0
  %606 = vmatprep.subr.mxu0 0.0
  %607 = vmatpush1.msra.mxu0 0.0
  %608 = vmatprep.subr.mxu0 0.0
  %609 = vmatpush1.msra.mxu0 0.0
  %610 = vmatprep.subr.mxu0 0.0
  %611 = vmatpush1.msra.mxu0 0.0
  %612 = vmatprep.subr.mxu0 0.0
  %613 = vmatpush1.msra.mxu0 0.0
  %614 = vmatprep.subr.mxu0 0.0
  %615 = vmatpush1.msra.mxu0 0.0
  %616 = vmatprep.subr.mxu0 0.0
  %617 = vmatpush1.msra.mxu0 0.0
  %618 = vmatprep.subr.mxu0 0.0
  %619 = vmatpush1.msra.mxu0 0.0
  %620 = vmatprep.subr.mxu0 0.0
  %621 = vmatpush1.msra.mxu0 0.0
  %622 = vmatprep.mubr.f32.mxu0 0.0
  %v623 = vand.u32 %v552, 4294901760
  %v624 = vsub.f32 %v552, %v623
  %v625 = vand.u32 %v624, 4294901760
  %v626 = vsub.f32 %v624, %v625
  %v627 = vand.u32 %v626, 4294901760
  %628 = vmatmul.mubr.f32.gmra.mrb[0].mxu0 %v627
  %v629 = vpop.f32.mrb[0].mxu0
  %v630 = vadd.f32 0.0, %v629
  %v631 = vpop.f32.mrb[0].mxu0
  %632 = vdwg.mxu0
  %633 = vmatprep.subr.mxu0 0.0
  %v634 = vand.u32 %v26, 4294901760
  %v635 = vsub.f32 %v26, %v634
  %v636 = vand.u32 %v635, 4294901760
  %v637 = vsub.f32 %v635, %v636
  %v638 = vand.u32 %v637, 4294901760
  %639 = vmatpush1.msra.mxu0 %v638
  %640 = vmatprep.subr.mxu0 0.0
  %v641 = vand.u32 %v27, 4294901760
  %v642 = vsub.f32 %v27, %v641
  %v643 = vand.u32 %v642, 4294901760
  %v644 = vsub.f32 %v642, %v643
  %v645 = vand.u32 %v644, 4294901760
  %646 = vmatpush1.msra.mxu0 %v645
  %647 = vmatprep.subr.mxu0 0.0
  %v648 = vand.u32 %v28, 4294901760
  %v649 = vsub.f32 %v28, %v648
  %v650 = vand.u32 %v649, 4294901760
  %v651 = vsub.f32 %v649, %v650
  %v652 = vand.u32 %v651, 4294901760
  %653 = vmatpush1.msra.mxu0 %v652
  %654 = vmatprep.subr.mxu0 0.0
  %v655 = vand.u32 %v29, 4294901760
  %v656 = vsub.f32 %v29, %v655
  %v657 = vand.u32 %v656, 4294901760
  %v658 = vsub.f32 %v656, %v657
  %v659 = vand.u32 %v658, 4294901760
  %660 = vmatpush1.msra.mxu0 %v659
  %661 = vmatprep.subr.mxu0 0.0
  %662 = vmatpush1.msra.mxu0 0.0
  %663 = vmatprep.subr.mxu0 0.0
  %664 = vmatpush1.msra.mxu0 0.0
  %665 = vmatprep.subr.mxu0 0.0
  %666 = vmatpush1.msra.mxu0 0.0
  %667 = vmatprep.subr.mxu0 0.0
  %668 = vmatpush1.msra.mxu0 0.0
  %669 = vmatprep.subr.mxu0 0.0
  %670 = vmatpush1.msra.mxu0 0.0
  %671 = vmatprep.subr.mxu0 0.0
  %672 = vmatpush1.msra.mxu0 0.0
  %673 = vmatprep.subr.mxu0 0.0
  %674 = vmatpush1.msra.mxu0 0.0
  %675 = vmatprep.subr.mxu0 0.0
  %676 = vmatpush1.msra.mxu0 0.0
  %677 = vmatprep.subr.mxu0 0.0
  %678 = vmatpush1.msra.mxu0 0.0
  %679 = vmatprep.subr.mxu0 0.0
  %680 = vmatpush1.msra.mxu0 0.0
  %681 = vmatprep.subr.mxu0 0.0
  %682 = vmatpush1.msra.mxu0 0.0
  %683 = vmatprep.subr.mxu0 0.0
  %684 = vmatpush1.msra.mxu0 0.0
  %685 = vmatprep.subr.mxu0 0.0
  %686 = vmatpush1.msra.mxu0 0.0
  %687 = vmatprep.subr.mxu0 0.0
  %688 = vmatpush1.msra.mxu0 0.0
  %689 = vmatprep.subr.mxu0 0.0
  %690 = vmatpush1.msra.mxu0 0.0
  %691 = vmatprep.subr.mxu0 0.0
  %692 = vmatpush1.msra.mxu0 0.0
  %693 = vmatprep.subr.mxu0 0.0
  %694 = vmatpush1.msra.mxu0 0.0
  %695 = vmatprep.subr.mxu0 0.0
  %696 = vmatpush1.msra.mxu0 0.0
  %697 = vmatprep.subr.mxu0 0.0
  %698 = vmatpush1.msra.mxu0 0.0
  %699 = vmatprep.subr.mxu0 0.0
  %700 = vmatpush1.msra.mxu0 0.0
  %701 = vmatprep.subr.mxu0 0.0
  %702 = vmatpush1.msra.mxu0 0.0
  %703 = vmatprep.subr.mxu0 0.0
  %704 = vmatpush1.msra.mxu0 0.0
  %705 = vmatprep.subr.mxu0 0.0
  %706 = vmatpush1.msra.mxu0 0.0
  %707 = vmatprep.subr.mxu0 0.0
  %708 = vmatpush1.msra.mxu0 0.0
  %709 = vmatprep.subr.mxu0 0.0
  %710 = vmatpush1.msra.mxu0 0.0
  %711 = vmatprep.subr.mxu0 0.0
  %712 = vmatpush1.msra.mxu0 0.0
  %713 = vmatprep.subr.mxu0 0.0
  %714 = vmatpush1.msra.mxu0 0.0
  %715 = vmatprep.subr.mxu0 0.0
  %716 = vmatpush1.msra.mxu0 0.0
  %717 = vmatprep.mubr.f32.mxu0 0.0
  %v718 = vand.u32 %v552, 4294901760
  %719 = vmatmul.mubr.f32.gmra.mrb[0].mxu0 %v718
  %v720 = vpop.f32.mrb[0].mxu0
  %v721 = vadd.f32 %v630, %v720
  %v722 = vpop.f32.mrb[0].mxu0
  %723 = vdwg.mxu0
  %724 = vmatprep.subr.mxu0 0.0
  %v725 = vand.u32 %v26, 4294901760
  %v726 = vsub.f32 %v26, %v725
  %727 = vmatpush1.msra.mxu0 %v726
  %728 = vmatprep.subr.mxu0 0.0
  %v729 = vand.u32 %v27, 4294901760
  %v730 = vsub.f32 %v27, %v729
  %731 = vmatpush1.msra.mxu0 %v730
  %732 = vmatprep.subr.mxu0 0.0
  %v733 = vand.u32 %v28, 4294901760
  %v734 = vsub.f32 %v28, %v733
  %735 = vmatpush1.msra.mxu0 %v734
  %736 = vmatprep.subr.mxu0 0.0
  %v737 = vand.u32 %v29, 4294901760
  %v738 = vsub.f32 %v29, %v737
  %739 = vmatpush1.msra.mxu0 %v738
  %740 = vmatprep.subr.mxu0 0.0
  %741 = vmatpush1.msra.mxu0 0.0
  %742 = vmatprep.subr.mxu0 0.0
  %743 = vmatpush1.msra.mxu0 0.0
  %744 = vmatprep.subr.mxu0 0.0
  %745 = vmatpush1.msra.mxu0 0.0
  %746 = vmatprep.subr.mxu0 0.0
  %747 = vmatpush1.msra.mxu0 0.0
  %748 = vmatprep.subr.mxu0 0.0
  %749 = vmatpush1.msra.mxu0 0.0
  %750 = vmatprep.subr.mxu0 0.0
  %751 = vmatpush1.msra.mxu0 0.0
  %752 = vmatprep.subr.mxu0 0.0
  %753 = vmatpush1.msra.mxu0 0.0
  %754 = vmatprep.subr.mxu0 0.0
  %755 = vmatpush1.msra.mxu0 0.0
  %756 = vmatprep.subr.mxu0 0.0
  %757 = vmatpush1.msra.mxu0 0.0
  %758 = vmatprep.subr.mxu0 0.0
  %759 = vmatpush1.msra.mxu0 0.0
  %760 = vmatprep.subr.mxu0 0.0
  %761 = vmatpush1.msra.mxu0 0.0
  %762 = vmatprep.subr.mxu0 0.0
  %763 = vmatpush1.msra.mxu0 0.0
  %764 = vmatprep.subr.mxu0 0.0
  %765 = vmatpush1.msra.mxu0 0.0
  %766 = vmatprep.subr.mxu0 0.0
  %767 = vmatpush1.msra.mxu0 0.0
  %768 = vmatprep.subr.mxu0 0.0
  %769 = vmatpush1.msra.mxu0 0.0
  %770 = vmatprep.subr.mxu0 0.0
  %771 = vmatpush1.msra.mxu0 0.0
  %772 = vmatprep.subr.mxu0 0.0
  %773 = vmatpush1.msra.mxu0 0.0
  %774 = vmatprep.subr.mxu0 0.0
  %775 = vmatpush1.msra.mxu0 0.0
  %776 = vmatprep.subr.mxu0 0.0
  %777 = vmatpush1.msra.mxu0 0.0
  %778 = vmatprep.subr.mxu0 0.0
  %779 = vmatpush1.msra.mxu0 0.0
  %780 = vmatprep.subr.mxu0 0.0
  %781 = vmatpush1.msra.mxu0 0.0
  %782 = vmatprep.subr.mxu0 0.0
  %783 = vmatpush1.msra.mxu0 0.0
  %784 = vmatprep.subr.mxu0 0.0
  %785 = vmatpush1.msra.mxu0 0.0
  %786 = vmatprep.subr.mxu0 0.0
  %787 = vmatpush1.msra.mxu0 0.0
  %788 = vmatprep.subr.mxu0 0.0
  %789 = vmatpush1.msra.mxu0 0.0
  %790 = vmatprep.subr.mxu0 0.0
  %791 = vmatpush1.msra.mxu0 0.0
  %792 = vmatprep.subr.mxu0 0.0
  %793 = vmatpush1.msra.mxu0 0.0
  %794 = vmatprep.subr.mxu0 0.0
  %795 = vmatpush1.msra.mxu0 0.0
  %796 = vmatprep.mubr.f32.mxu0 0.0
  %v797 = vand.u32 %v552, 4294901760
  %v798 = vsub.f32 %v552, %v797
  %799 = vmatmul.mubr.f32.gmra.mrb[0].mxu0 %v798
  %v800 = vpop.f32.mrb[0].mxu0
  %v801 = vadd.f32 %v721, %v800
  %v802 = vpop.f32.mrb[0].mxu0
  %803 = vdwg.mxu0
  %804 = vmatprep.subr.mxu0 0.0
  %v805 = vand.u32 %v26, 4294901760
  %806 = vmatpush1.msra.mxu0 %v805
  %807 = vmatprep.subr.mxu0 0.0
  %v808 = vand.u32 %v27, 4294901760
  %809 = vmatpush1.msra.mxu0 %v808
  %810 = vmatprep.subr.mxu0 0.0
  %v811 = vand.u32 %v28, 4294901760
  %812 = vmatpush1.msra.mxu0 %v811
  %813 = vmatprep.subr.mxu0 0.0
  %v814 = vand.u32 %v29, 4294901760
  %815 = vmatpush1.msra.mxu0 %v814
  %816 = vmatprep.subr.mxu0 0.0
  %817 = vmatpush1.msra.mxu0 0.0
  %818 = vmatprep.subr.mxu0 0.0
  %819 = vmatpush1.msra.mxu0 0.0
  %820 = vmatprep.subr.mxu0 0.0
  %821 = vmatpush1.msra.mxu0 0.0
  %822 = vmatprep.subr.mxu0 0.0
  %823 = vmatpush1.msra.mxu0 0.0
  %824 = vmatprep.subr.mxu0 0.0
  %825 = vmatpush1.msra.mxu0 0.0
  %826 = vmatprep.subr.mxu0 0.0
  %827 = vmatpush1.msra.mxu0 0.0
  %828 = vmatprep.subr.mxu0 0.0
  %829 = vmatpush1.msra.mxu0 0.0
  %830 = vmatprep.subr.mxu0 0.0
  %831 = vmatpush1.msra.mxu0 0.0
  %832 = vmatprep.subr.mxu0 0.0
  %833 = vmatpush1.msra.mxu0 0.0
  %834 = vmatprep.subr.mxu0 0.0
  %835 = vmatpush1.msra.mxu0 0.0
  %836 = vmatprep.subr.mxu0 0.0
  %837 = vmatpush1.msra.mxu0 0.0
  %838 = vmatprep.subr.mxu0 0.0
  %839 = vmatpush1.msra.mxu0 0.0
  %840 = vmatprep.subr.mxu0 0.0
  %841 = vmatpush1.msra.mxu0 0.0
  %842 = vmatprep.subr.mxu0 0.0
  %843 = vmatpush1.msra.mxu0 0.0
  %844 = vmatprep.subr.mxu0 0.0
  %845 = vmatpush1.msra.mxu0 0.0
  %846 = vmatprep.subr.mxu0 0.0
  %847 = vmatpush1.msra.mxu0 0.0
  %848 = vmatprep.subr.mxu0 0.0
  %849 = vmatpush1.msra.mxu0 0.0
  %850 = vmatprep.subr.mxu0 0.0
  %851 = vmatpush1.msra.mxu0 0.0
  %852 = vmatprep.subr.mxu0 0.0
  %853 = vmatpush1.msra.mxu0 0.0
  %854 = vmatprep.subr.mxu0 0.0
  %855 = vmatpush1.msra.mxu0 0.0
  %856 = vmatprep.subr.mxu0 0.0
  %857 = vmatpush1.msra.mxu0 0.0
  %858 = vmatprep.subr.mxu0 0.0
  %859 = vmatpush1.msra.mxu0 0.0
  %860 = vmatprep.subr.mxu0 0.0
  %861 = vmatpush1.msra.mxu0 0.0
  %862 = vmatprep.subr.mxu0 0.0
  %863 = vmatpush1.msra.mxu0 0.0
  %864 = vmatprep.subr.mxu0 0.0
  %865 = vmatpush1.msra.mxu0 0.0
  %866 = vmatprep.subr.mxu0 0.0
  %867 = vmatpush1.msra.mxu0 0.0
  %868 = vmatprep.subr.mxu0 0.0
  %869 = vmatpush1.msra.mxu0 0.0
  %870 = vmatprep.subr.mxu0 0.0
  %871 = vmatpush1.msra.mxu0 0.0
  %872 = vmatprep.mubr.f32.mxu0 0.0
  %v873 = vand.u32 %v552, 4294901760
  %v874 = vsub.f32 %v552, %v873
  %v875 = vand.u32 %v874, 4294901760
  %876 = vmatmul.mubr.f32.gmra.mrb[0].mxu0 %v875
  %v877 = vpop.f32.mrb[0].mxu0
  %v878 = vadd.f32 %v801, %v877
  %v879 = vpop.f32.mrb[0].mxu0
  %880 = vdwg.mxu0
  %881 = vmatprep.subr.mxu0 0.0
  %v882 = vand.u32 %v26, 4294901760
  %v883 = vsub.f32 %v26, %v882
  %v884 = vand.u32 %v883, 4294901760
  %885 = vmatpush1.msra.mxu0 %v884
  %886 = vmatprep.subr.mxu0 0.0
  %v887 = vand.u32 %v27, 4294901760
  %v888 = vsub.f32 %v27, %v887
  %v889 = vand.u32 %v888, 4294901760
  %890 = vmatpush1.msra.mxu0 %v889
  %891 = vmatprep.subr.mxu0 0.0
  %v892 = vand.u32 %v28, 4294901760
  %v893 = vsub.f32 %v28, %v892
  %v894 = vand.u32 %v893, 4294901760
  %895 = vmatpush1.msra.mxu0 %v894
  %896 = vmatprep.subr.mxu0 0.0
  %v897 = vand.u32 %v29, 4294901760
  %v898 = vsub.f32 %v29, %v897
  %v899 = vand.u32 %v898, 4294901760
  %900 = vmatpush1.msra.mxu0 %v899
  %901 = vmatprep.subr.mxu0 0.0
  %902 = vmatpush1.msra.mxu0 0.0
  %903 = vmatprep.subr.mxu0 0.0
  %904 = vmatpush1.msra.mxu0 0.0
  %905 = vmatprep.subr.mxu0 0.0
  %906 = vmatpush1.msra.mxu0 0.0
  %907 = vmatprep.subr.mxu0 0.0
  %908 = vmatpush1.msra.mxu0 0.0
  %909 = vmatprep.subr.mxu0 0.0
  %910 = vmatpush1.msra.mxu0 0.0
  %911 = vmatprep.subr.mxu0 0.0
  %912 = vmatpush1.msra.mxu0 0.0
  %913 = vmatprep.subr.mxu0 0.0
  %914 = vmatpush1.msra.mxu0 0.0
  %915 = vmatprep.subr.mxu0 0.0
  %916 = vmatpush1.msra.mxu0 0.0
  %917 = vmatprep.subr.mxu0 0.0
  %918 = vmatpush1.msra.mxu0 0.0
  %919 = vmatprep.subr.mxu0 0.0
  %920 = vmatpush1.msra.mxu0 0.0
  %921 = vmatprep.subr.mxu0 0.0
  %922 = vmatpush1.msra.mxu0 0.0
  %923 = vmatprep.subr.mxu0 0.0
  %924 = vmatpush1.msra.mxu0 0.0
  %925 = vmatprep.subr.mxu0 0.0
  %926 = vmatpush1.msra.mxu0 0.0
  %927 = vmatprep.subr.mxu0 0.0
  %928 = vmatpush1.msra.mxu0 0.0
  %929 = vmatprep.subr.mxu0 0.0
  %930 = vmatpush1.msra.mxu0 0.0
  %931 = vmatprep.subr.mxu0 0.0
  %932 = vmatpush1.msra.mxu0 0.0
  %933 = vmatprep.subr.mxu0 0.0
  %934 = vmatpush1.msra.mxu0 0.0
  %935 = vmatprep.subr.mxu0 0.0
  %936 = vmatpush1.msra.mxu0 0.0
  %937 = vmatprep.subr.mxu0 0.0
  %938 = vmatpush1.msra.mxu0 0.0
  %939 = vmatprep.subr.mxu0 0.0
  %940 = vmatpush1.msra.mxu0 0.0
  %941 = vmatprep.subr.mxu0 0.0
  %942 = vmatpush1.msra.mxu0 0.0
  %943 = vmatprep.subr.mxu0 0.0
  %944 = vmatpush1.msra.mxu0 0.0
  %945 = vmatprep.subr.mxu0 0.0
  %946 = vmatpush1.msra.mxu0 0.0
  %947 = vmatprep.subr.mxu0 0.0
  %948 = vmatpush1.msra.mxu0 0.0
  %949 = vmatprep.subr.mxu0 0.0
  %950 = vmatpush1.msra.mxu0 0.0
  %951 = vmatprep.subr.mxu0 0.0
  %952 = vmatpush1.msra.mxu0 0.0
  %953 = vmatprep.subr.mxu0 0.0
  %954 = vmatpush1.msra.mxu0 0.0
  %955 = vmatprep.subr.mxu0 0.0
  %956 = vmatpush1.msra.mxu0 0.0
  %957 = vmatprep.mubr.f32.mxu0 0.0
  %v958 = vand.u32 %v552, 4294901760
  %959 = vmatmul.mubr.f32.gmra.mrb[0].mxu0 %v958
  %v960 = vpop.f32.mrb[0].mxu0
  %v961 = vadd.f32 %v878, %v960
  %v962 = vpop.f32.mrb[0].mxu0
  %963 = vdwg.mxu0
  %964 = vmatprep.subr.mxu0 0.0
  %v965 = vand.u32 %v26, 4294901760
  %966 = vmatpush1.msra.mxu0 %v965
  %967 = vmatprep.subr.mxu0 0.0
  %v968 = vand.u32 %v27, 4294901760
  %969 = vmatpush1.msra.mxu0 %v968
  %970 = vmatprep.subr.mxu0 0.0
  %v971 = vand.u32 %v28, 4294901760
  %972 = vmatpush1.msra.mxu0 %v971
  %973 = vmatprep.subr.mxu0 0.0
  %v974 = vand.u32 %v29, 4294901760
  %975 = vmatpush1.msra.mxu0 %v974
  %976 = vmatprep.subr.mxu0 0.0
  %977 = vmatpush1.msra.mxu0 0.0
  %978 = vmatprep.subr.mxu0 0.0
  %979 = vmatpush1.msra.mxu0 0.0
  %980 = vmatprep.subr.mxu0 0.0
  %981 = vmatpush1.msra.mxu0 0.0
  %982 = vmatprep.subr.mxu0 0.0
  %983 = vmatpush1.msra.mxu0 0.0
  %984 = vmatprep.subr.mxu0 0.0
  %985 = vmatpush1.msra.mxu0 0.0
  %986 = vmatprep.subr.mxu0 0.0
  %987 = vmatpush1.msra.mxu0 0.0
  %988 = vmatprep.subr.mxu0 0.0
  %989 = vmatpush1.msra.mxu0 0.0
  %990 = vmatprep.subr.mxu0 0.0
  %991 = vmatpush1.msra.mxu0 0.0
  %992 = vmatprep.subr.mxu0 0.0
  %993 = vmatpush1.msra.mxu0 0.0
  %994 = vmatprep.subr.mxu0 0.0
  %995 = vmatpush1.msra.mxu0 0.0
  %996 = vmatprep.subr.mxu0 0.0
  %997 = vmatpush1.msra.mxu0 0.0
  %998 = vmatprep.subr.mxu0 0.0
  %999 = vmatpush1.msra.mxu0 0.0
  %1000 = vmatprep.subr.mxu0 0.0
  %1001 = vmatpush1.msra.mxu0 0.0
  %1002 = vmatprep.subr.mxu0 0.0
  %1003 = vmatpush1.msra.mxu0 0.0
  %1004 = vmatprep.subr.mxu0 0.0
  %1005 = vmatpush1.msra.mxu0 0.0
  %1006 = vmatprep.subr.mxu0 0.0
  %1007 = vmatpush1.msra.mxu0 0.0
  %1008 = vmatprep.subr.mxu0 0.0
  %1009 = vmatpush1.msra.mxu0 0.0
  %1010 = vmatprep.subr.mxu0 0.0
  %1011 = vmatpush1.msra.mxu0 0.0
  %1012 = vmatprep.subr.mxu0 0.0
  %1013 = vmatpush1.msra.mxu0 0.0
  %1014 = vmatprep.subr.mxu0 0.0
  %1015 = vmatpush1.msra.mxu0 0.0
  %1016 = vmatprep.subr.mxu0 0.0
  %1017 = vmatpush1.msra.mxu0 0.0
  %1018 = vmatprep.subr.mxu0 0.0
  %1019 = vmatpush1.msra.mxu0 0.0
  %1020 = vmatprep.subr.mxu0 0.0
  %1021 = vmatpush1.msra.mxu0 0.0
  %1022 = vmatprep.subr.mxu0 0.0
  %1023 = vmatpush1.msra.mxu0 0.0
  %1024 = vmatprep.subr.mxu0 0.0
  %1025 = vmatpush1.msra.mxu0 0.0
  %1026 = vmatprep.subr.mxu0 0.0
  %1027 = vmatpush1.msra.mxu0 0.0
  %1028 = vmatprep.subr.mxu0 0.0
  %1029 = vmatpush1.msra.mxu0 0.0
  %1030 = vmatprep.subr.mxu0 0.0
  %1031 = vmatpush1.msra.mxu0 0.0
  %1032 = vmatprep.mubr.f32.mxu0 0.0
  %v1033 = vand.u32 %v552, 4294901760
  %1034 = vmatmul.mubr.f32.gmra.mrb[0].mxu0 %v1033
  %v1035 = vpop.f32.mrb[0].mxu0
  %v1036 = vadd.f32 %v961, %v1035
  %v1037 = vpop.f32.mrb[0].mxu0
  %1038 = vdwg.mxu0
  %v1039 = vadd.f32 %v540, %v1036
  %v1040 = vtanh.pop %v1039
  %v1042 = vsel %vm550, %v1040, 0
  %1044 = vmatprep.subr.mxu0 0.0
  %v1045 = vand.u32 %v26, 4294901760
  %1046 = vmatpush1.msra.mxu0 %v1045
  %1047 = vmatprep.subr.mxu0 0.0
  %v1048 = vand.u32 %v27, 4294901760
  %1049 = vmatpush1.msra.mxu0 %v1048
  %1050 = vmatprep.subr.mxu0 0.0
  %v1051 = vand.u32 %v28, 4294901760
  %1052 = vmatpush1.msra.mxu0 %v1051
  %1053 = vmatprep.subr.mxu0 0.0
  %v1054 = vand.u32 %v29, 4294901760
  %1055 = vmatpush1.msra.mxu0 %v1054
  %1056 = vmatprep.subr.mxu0 0.0
  %1057 = vmatpush1.msra.mxu0 0.0
  %1058 = vmatprep.subr.mxu0 0.0
  %1059 = vmatpush1.msra.mxu0 0.0
  %1060 = vmatprep.subr.mxu0 0.0
  %1061 = vmatpush1.msra.mxu0 0.0
  %1062 = vmatprep.subr.mxu0 0.0
  %1063 = vmatpush1.msra.mxu0 0.0
  %1064 = vmatprep.subr.mxu0 0.0
  %1065 = vmatpush1.msra.mxu0 0.0
  %1066 = vmatprep.subr.mxu0 0.0
  %1067 = vmatpush1.msra.mxu0 0.0
  %1068 = vmatprep.subr.mxu0 0.0
  %1069 = vmatpush1.msra.mxu0 0.0
  %1070 = vmatprep.subr.mxu0 0.0
  %1071 = vmatpush1.msra.mxu0 0.0
  %1072 = vmatprep.subr.mxu0 0.0
  %1073 = vmatpush1.msra.mxu0 0.0
  %1074 = vmatprep.subr.mxu0 0.0
  %1075 = vmatpush1.msra.mxu0 0.0
  %1076 = vmatprep.subr.mxu0 0.0
  %1077 = vmatpush1.msra.mxu0 0.0
  %1078 = vmatprep.subr.mxu0 0.0
  %1079 = vmatpush1.msra.mxu0 0.0
  %1080 = vmatprep.subr.mxu0 0.0
  %1081 = vmatpush1.msra.mxu0 0.0
  %1082 = vmatprep.subr.mxu0 0.0
  %1083 = vmatpush1.msra.mxu0 0.0
  %1084 = vmatprep.subr.mxu0 0.0
  %1085 = vmatpush1.msra.mxu0 0.0
  %1086 = vmatprep.subr.mxu0 0.0
  %1087 = vmatpush1.msra.mxu0 0.0
  %1088 = vmatprep.subr.mxu0 0.0
  %1089 = vmatpush1.msra.mxu0 0.0
  %1090 = vmatprep.subr.mxu0 0.0
  %1091 = vmatpush1.msra.mxu0 0.0
  %1092 = vmatprep.subr.mxu0 0.0
  %1093 = vmatpush1.msra.mxu0 0.0
  %1094 = vmatprep.subr.mxu0 0.0
  %1095 = vmatpush1.msra.mxu0 0.0
  %1096 = vmatprep.subr.mxu0 0.0
  %1097 = vmatpush1.msra.mxu0 0.0
  %1098 = vmatprep.subr.mxu0 0.0
  %1099 = vmatpush1.msra.mxu0 0.0
  %1100 = vmatprep.subr.mxu0 0.0
  %1101 = vmatpush1.msra.mxu0 0.0
  %1102 = vmatprep.subr.mxu0 0.0
  %1103 = vmatpush1.msra.mxu0 0.0
  %1104 = vmatprep.subr.mxu0 0.0
  %1105 = vmatpush1.msra.mxu0 0.0
  %1106 = vmatprep.subr.mxu0 0.0
  %1107 = vmatpush1.msra.mxu0 0.0
  %1108 = vmatprep.subr.mxu0 0.0
  %1109 = vmatpush1.msra.mxu0 0.0
  %1110 = vmatprep.subr.mxu0 0.0
  %1111 = vmatpush1.msra.mxu0 0.0
  %1112 = vmatprep.mubr.f32.mxu0 0.0
  %v1113 = vand.u32 %v1042, 4294901760
  %v1114 = vsub.f32 %v1042, %v1113
  %v1115 = vand.u32 %v1114, 4294901760
  %v1116 = vsub.f32 %v1114, %v1115
  %v1117 = vand.u32 %v1116, 4294901760
  %1118 = vmatmul.mubr.f32.gmra.mrb[0].mxu0 %v1117
  %v1119 = vpop.f32.mrb[0].mxu0
  %v1120 = vadd.f32 0.0, %v1119
  %v1121 = vpop.f32.mrb[0].mxu0
  %1122 = vdwg.mxu0
  %1123 = vmatprep.subr.mxu0 0.0
  %v1124 = vand.u32 %v26, 4294901760
  %v1125 = vsub.f32 %v26, %v1124
  %v1126 = vand.u32 %v1125, 4294901760
  %v1127 = vsub.f32 %v1125, %v1126
  %v1128 = vand.u32 %v1127, 4294901760
  %1129 = vmatpush1.msra.mxu0 %v1128
  %1130 = vmatprep.subr.mxu0 0.0
  %v1131 = vand.u32 %v27, 4294901760
  %v1132 = vsub.f32 %v27, %v1131
  %v1133 = vand.u32 %v1132, 4294901760
  %v1134 = vsub.f32 %v1132, %v1133
  %v1135 = vand.u32 %v1134, 4294901760
  %1136 = vmatpush1.msra.mxu0 %v1135
  %1137 = vmatprep.subr.mxu0 0.0
  %v1138 = vand.u32 %v28, 4294901760
  %v1139 = vsub.f32 %v28, %v1138
  %v1140 = vand.u32 %v1139, 4294901760
  %v1141 = vsub.f32 %v1139, %v1140
  %v1142 = vand.u32 %v1141, 4294901760
  %1143 = vmatpush1.msra.mxu0 %v1142
  %1144 = vmatprep.subr.mxu0 0.0
  %v1145 = vand.u32 %v29, 4294901760
  %v1146 = vsub.f32 %v29, %v1145
  %v1147 = vand.u32 %v1146, 4294901760
  %v1148 = vsub.f32 %v1146, %v1147
  %v1149 = vand.u32 %v1148, 4294901760
  %1150 = vmatpush1.msra.mxu0 %v1149
  %1151 = vmatprep.subr.mxu0 0.0
  %1152 = vmatpush1.msra.mxu0 0.0
  %1153 = vmatprep.subr.mxu0 0.0
  %1154 = vmatpush1.msra.mxu0 0.0
  %1155 = vmatprep.subr.mxu0 0.0
  %1156 = vmatpush1.msra.mxu0 0.0
  %1157 = vmatprep.subr.mxu0 0.0
  %1158 = vmatpush1.msra.mxu0 0.0
  %1159 = vmatprep.subr.mxu0 0.0
  %1160 = vmatpush1.msra.mxu0 0.0
  %1161 = vmatprep.subr.mxu0 0.0
  %1162 = vmatpush1.msra.mxu0 0.0
  %1163 = vmatprep.subr.mxu0 0.0
  %1164 = vmatpush1.msra.mxu0 0.0
  %1165 = vmatprep.subr.mxu0 0.0
  %1166 = vmatpush1.msra.mxu0 0.0
  %1167 = vmatprep.subr.mxu0 0.0
  %1168 = vmatpush1.msra.mxu0 0.0
  %1169 = vmatprep.subr.mxu0 0.0
  %1170 = vmatpush1.msra.mxu0 0.0
  %1171 = vmatprep.subr.mxu0 0.0
  %1172 = vmatpush1.msra.mxu0 0.0
  %1173 = vmatprep.subr.mxu0 0.0
  %1174 = vmatpush1.msra.mxu0 0.0
  %1175 = vmatprep.subr.mxu0 0.0
  %1176 = vmatpush1.msra.mxu0 0.0
  %1177 = vmatprep.subr.mxu0 0.0
  %1178 = vmatpush1.msra.mxu0 0.0
  %1179 = vmatprep.subr.mxu0 0.0
  %1180 = vmatpush1.msra.mxu0 0.0
  %1181 = vmatprep.subr.mxu0 0.0
  %1182 = vmatpush1.msra.mxu0 0.0
  %1183 = vmatprep.subr.mxu0 0.0
  %1184 = vmatpush1.msra.mxu0 0.0
  %1185 = vmatprep.subr.mxu0 0.0
  %1186 = vmatpush1.msra.mxu0 0.0
  %1187 = vmatprep.subr.mxu0 0.0
  %1188 = vmatpush1.msra.mxu0 0.0
  %1189 = vmatprep.subr.mxu0 0.0
  %1190 = vmatpush1.msra.mxu0 0.0
  %1191 = vmatprep.subr.mxu0 0.0
  %1192 = vmatpush1.msra.mxu0 0.0
  %1193 = vmatprep.subr.mxu0 0.0
  %1194 = vmatpush1.msra.mxu0 0.0
  %1195 = vmatprep.subr.mxu0 0.0
  %1196 = vmatpush1.msra.mxu0 0.0
  %1197 = vmatprep.subr.mxu0 0.0
  %1198 = vmatpush1.msra.mxu0 0.0
  %1199 = vmatprep.subr.mxu0 0.0
  %1200 = vmatpush1.msra.mxu0 0.0
  %1201 = vmatprep.subr.mxu0 0.0
  %1202 = vmatpush1.msra.mxu0 0.0
  %1203 = vmatprep.subr.mxu0 0.0
  %1204 = vmatpush1.msra.mxu0 0.0
  %1205 = vmatprep.subr.mxu0 0.0
  %1206 = vmatpush1.msra.mxu0 0.0
  %1207 = vmatprep.mubr.f32.mxu0 0.0
  %v1208 = vand.u32 %v1042, 4294901760
  %1209 = vmatmul.mubr.f32.gmra.mrb[0].mxu0 %v1208
  %v1210 = vpop.f32.mrb[0].mxu0
  %v1211 = vadd.f32 %v1120, %v1210
  %v1212 = vpop.f32.mrb[0].mxu0
  %1213 = vdwg.mxu0
  %1214 = vmatprep.subr.mxu0 0.0
  %v1215 = vand.u32 %v26, 4294901760
  %v1216 = vsub.f32 %v26, %v1215
  %1217 = vmatpush1.msra.mxu0 %v1216
  %1218 = vmatprep.subr.mxu0 0.0
  %v1219 = vand.u32 %v27, 4294901760
  %v1220 = vsub.f32 %v27, %v1219
  %1221 = vmatpush1.msra.mxu0 %v1220
  %1222 = vmatprep.subr.mxu0 0.0
  %v1223 = vand.u32 %v28, 4294901760
  %v1224 = vsub.f32 %v28, %v1223
  %1225 = vmatpush1.msra.mxu0 %v1224
  %1226 = vmatprep.subr.mxu0 0.0
  %v1227 = vand.u32 %v29, 4294901760
  %v1228 = vsub.f32 %v29, %v1227
  %1229 = vmatpush1.msra.mxu0 %v1228
  %1230 = vmatprep.subr.mxu0 0.0
  %1231 = vmatpush1.msra.mxu0 0.0
  %1232 = vmatprep.subr.mxu0 0.0
  %1233 = vmatpush1.msra.mxu0 0.0
  %1234 = vmatprep.subr.mxu0 0.0
  %1235 = vmatpush1.msra.mxu0 0.0
  %1236 = vmatprep.subr.mxu0 0.0
  %1237 = vmatpush1.msra.mxu0 0.0
  %1238 = vmatprep.subr.mxu0 0.0
  %1239 = vmatpush1.msra.mxu0 0.0
  %1240 = vmatprep.subr.mxu0 0.0
  %1241 = vmatpush1.msra.mxu0 0.0
  %1242 = vmatprep.subr.mxu0 0.0
  %1243 = vmatpush1.msra.mxu0 0.0
  %1244 = vmatprep.subr.mxu0 0.0
  %1245 = vmatpush1.msra.mxu0 0.0
  %1246 = vmatprep.subr.mxu0 0.0
  %1247 = vmatpush1.msra.mxu0 0.0
  %1248 = vmatprep.subr.mxu0 0.0
  %1249 = vmatpush1.msra.mxu0 0.0
  %1250 = vmatprep.subr.mxu0 0.0
  %1251 = vmatpush1.msra.mxu0 0.0
  %1252 = vmatprep.subr.mxu0 0.0
  %1253 = vmatpush1.msra.mxu0 0.0
  %1254 = vmatprep.subr.mxu0 0.0
  %1255 = vmatpush1.msra.mxu0 0.0
  %1256 = vmatprep.subr.mxu0 0.0
  %1257 = vmatpush1.msra.mxu0 0.0
  %1258 = vmatprep.subr.mxu0 0.0
  %1259 = vmatpush1.msra.mxu0 0.0
  %1260 = vmatprep.subr.mxu0 0.0
  %1261 = vmatpush1.msra.mxu0 0.0
  %1262 = vmatprep.subr.mxu0 0.0
  %1263 = vmatpush1.msra.mxu0 0.0
  %1264 = vmatprep.subr.mxu0 0.0
  %1265 = vmatpush1.msra.mxu0 0.0
  %1266 = vmatprep.subr.mxu0 0.0
  %1267 = vmatpush1.msra.mxu0 0.0
  %1268 = vmatprep.subr.mxu0 0.0
  %1269 = vmatpush1.msra.mxu0 0.0
  %1270 = vmatprep.subr.mxu0 0.0
  %1271 = vmatpush1.msra.mxu0 0.0
  %1272 = vmatprep.subr.mxu0 0.0
  %1273 = vmatpush1.msra.mxu0 0.0
  %1274 = vmatprep.subr.mxu0 0.0
  %1275 = vmatpush1.msra.mxu0 0.0
  %1276 = vmatprep.subr.mxu0 0.0
  %1277 = vmatpush1.msra.mxu0 0.0
  %1278 = vmatprep.subr.mxu0 0.0
  %1279 = vmatpush1.msra.mxu0 0.0
  %1280 = vmatprep.subr.mxu0 0.0
  %1281 = vmatpush1.msra.mxu0 0.0
  %1282 = vmatprep.subr.mxu0 0.0
  %1283 = vmatpush1.msra.mxu0 0.0
  %1284 = vmatprep.subr.mxu0 0.0
  %1285 = vmatpush1.msra.mxu0 0.0
  %1286 = vmatprep.mubr.f32.mxu0 0.0
  %v1287 = vand.u32 %v1042, 4294901760
  %v1288 = vsub.f32 %v1042, %v1287
  %1289 = vmatmul.mubr.f32.gmra.mrb[0].mxu0 %v1288
  %v1290 = vpop.f32.mrb[0].mxu0
  %v1291 = vadd.f32 %v1211, %v1290
  %v1292 = vpop.f32.mrb[0].mxu0
  %1293 = vdwg.mxu0
  %1294 = vmatprep.subr.mxu0 0.0
  %v1295 = vand.u32 %v26, 4294901760
  %1296 = vmatpush1.msra.mxu0 %v1295
  %1297 = vmatprep.subr.mxu0 0.0
  %v1298 = vand.u32 %v27, 4294901760
  %1299 = vmatpush1.msra.mxu0 %v1298
  %1300 = vmatprep.subr.mxu0 0.0
  %v1301 = vand.u32 %v28, 4294901760
  %1302 = vmatpush1.msra.mxu0 %v1301
  %1303 = vmatprep.subr.mxu0 0.0
  %v1304 = vand.u32 %v29, 4294901760
  %1305 = vmatpush1.msra.mxu0 %v1304
  %1306 = vmatprep.subr.mxu0 0.0
  %1307 = vmatpush1.msra.mxu0 0.0
  %1308 = vmatprep.subr.mxu0 0.0
  %1309 = vmatpush1.msra.mxu0 0.0
  %1310 = vmatprep.subr.mxu0 0.0
  %1311 = vmatpush1.msra.mxu0 0.0
  %1312 = vmatprep.subr.mxu0 0.0
  %1313 = vmatpush1.msra.mxu0 0.0
  %1314 = vmatprep.subr.mxu0 0.0
  %1315 = vmatpush1.msra.mxu0 0.0
  %1316 = vmatprep.subr.mxu0 0.0
  %1317 = vmatpush1.msra.mxu0 0.0
  %1318 = vmatprep.subr.mxu0 0.0
  %1319 = vmatpush1.msra.mxu0 0.0
  %1320 = vmatprep.subr.mxu0 0.0
  %1321 = vmatpush1.msra.mxu0 0.0
  %1322 = vmatprep.subr.mxu0 0.0
  %1323 = vmatpush1.msra.mxu0 0.0
  %1324 = vmatprep.subr.mxu0 0.0
  %1325 = vmatpush1.msra.mxu0 0.0
  %1326 = vmatprep.subr.mxu0 0.0
  %1327 = vmatpush1.msra.mxu0 0.0
  %1328 = vmatprep.subr.mxu0 0.0
  %1329 = vmatpush1.msra.mxu0 0.0
  %1330 = vmatprep.subr.mxu0 0.0
  %1331 = vmatpush1.msra.mxu0 0.0
  %1332 = vmatprep.subr.mxu0 0.0
  %1333 = vmatpush1.msra.mxu0 0.0
  %1334 = vmatprep.subr.mxu0 0.0
  %1335 = vmatpush1.msra.mxu0 0.0
  %1336 = vmatprep.subr.mxu0 0.0
  %1337 = vmatpush1.msra.mxu0 0.0
  %1338 = vmatprep.subr.mxu0 0.0
  %1339 = vmatpush1.msra.mxu0 0.0
  %1340 = vmatprep.subr.mxu0 0.0
  %1341 = vmatpush1.msra.mxu0 0.0
  %1342 = vmatprep.subr.mxu0 0.0
  %1343 = vmatpush1.msra.mxu0 0.0
  %1344 = vmatprep.subr.mxu0 0.0
  %1345 = vmatpush1.msra.mxu0 0.0
  %1346 = vmatprep.subr.mxu0 0.0
  %1347 = vmatpush1.msra.mxu0 0.0
  %1348 = vmatprep.subr.mxu0 0.0
  %1349 = vmatpush1.msra.mxu0 0.0
  %1350 = vmatprep.subr.mxu0 0.0
  %1351 = vmatpush1.msra.mxu0 0.0
  %1352 = vmatprep.subr.mxu0 0.0
  %1353 = vmatpush1.msra.mxu0 0.0
  %1354 = vmatprep.subr.mxu0 0.0
  %1355 = vmatpush1.msra.mxu0 0.0
  %1356 = vmatprep.subr.mxu0 0.0
  %1357 = vmatpush1.msra.mxu0 0.0
  %1358 = vmatprep.subr.mxu0 0.0
  %1359 = vmatpush1.msra.mxu0 0.0
  %1360 = vmatprep.subr.mxu0 0.0
  %1361 = vmatpush1.msra.mxu0 0.0
  %1362 = vmatprep.mubr.f32.mxu0 0.0
  %v1363 = vand.u32 %v1042, 4294901760
  %v1364 = vsub.f32 %v1042, %v1363
  %v1365 = vand.u32 %v1364, 4294901760
  %1366 = vmatmul.mubr.f32.gmra.mrb[0].mxu0 %v1365
  %v1367 = vpop.f32.mrb[0].mxu0
  %v1368 = vadd.f32 %v1291, %v1367
  %v1369 = vpop.f32.mrb[0].mxu0
  %1370 = vdwg.mxu0
  %1371 = vmatprep.subr.mxu0 0.0
  %v1372 = vand.u32 %v26, 4294901760
  %v1373 = vsub.f32 %v26, %v1372
  %v1374 = vand.u32 %v1373, 4294901760
  %1375 = vmatpush1.msra.mxu0 %v1374
  %1376 = vmatprep.subr.mxu0 0.0
  %v1377 = vand.u32 %v27, 4294901760
  %v1378 = vsub.f32 %v27, %v1377
  %v1379 = vand.u32 %v1378, 4294901760
  %1380 = vmatpush1.msra.mxu0 %v1379
  %1381 = vmatprep.subr.mxu0 0.0
  %v1382 = vand.u32 %v28, 4294901760
  %v1383 = vsub.f32 %v28, %v1382
  %v1384 = vand.u32 %v1383, 4294901760
  %1385 = vmatpush1.msra.mxu0 %v1384
  %1386 = vmatprep.subr.mxu0 0.0
  %v1387 = vand.u32 %v29, 4294901760
  %v1388 = vsub.f32 %v29, %v1387
  %v1389 = vand.u32 %v1388, 4294901760
  %1390 = vmatpush1.msra.mxu0 %v1389
  %1391 = vmatprep.subr.mxu0 0.0
  %1392 = vmatpush1.msra.mxu0 0.0
  %1393 = vmatprep.subr.mxu0 0.0
  %1394 = vmatpush1.msra.mxu0 0.0
  %1395 = vmatprep.subr.mxu0 0.0
  %1396 = vmatpush1.msra.mxu0 0.0
  %1397 = vmatprep.subr.mxu0 0.0
  %1398 = vmatpush1.msra.mxu0 0.0
  %1399 = vmatprep.subr.mxu0 0.0
  %1400 = vmatpush1.msra.mxu0 0.0
  %1401 = vmatprep.subr.mxu0 0.0
  %1402 = vmatpush1.msra.mxu0 0.0
  %1403 = vmatprep.subr.mxu0 0.0
  %1404 = vmatpush1.msra.mxu0 0.0
  %1405 = vmatprep.subr.mxu0 0.0
  %1406 = vmatpush1.msra.mxu0 0.0
  %1407 = vmatprep.subr.mxu0 0.0
  %1408 = vmatpush1.msra.mxu0 0.0
  %1409 = vmatprep.subr.mxu0 0.0
  %1410 = vmatpush1.msra.mxu0 0.0
  %1411 = vmatprep.subr.mxu0 0.0
  %1412 = vmatpush1.msra.mxu0 0.0
  %1413 = vmatprep.subr.mxu0 0.0
  %1414 = vmatpush1.msra.mxu0 0.0
  %1415 = vmatprep.subr.mxu0 0.0
  %1416 = vmatpush1.msra.mxu0 0.0
  %1417 = vmatprep.subr.mxu0 0.0
  %1418 = vmatpush1.msra.mxu0 0.0
  %1419 = vmatprep.subr.mxu0 0.0
  %1420 = vmatpush1.msra.mxu0 0.0
  %1421 = vmatprep.subr.mxu0 0.0
  %1422 = vmatpush1.msra.mxu0 0.0
  %1423 = vmatprep.subr.mxu0 0.0
  %1424 = vmatpush1.msra.mxu0 0.0
  %1425 = vmatprep.subr.mxu0 0.0
  %1426 = vmatpush1.msra.mxu0 0.0
  %1427 = vmatprep.subr.mxu0 0.0
  %1428 = vmatpush1.msra.mxu0 0.0
  %1429 = vmatprep.subr.mxu0 0.0
  %1430 = vmatpush1.msra.mxu0 0.0
  %1431 = vmatprep.subr.mxu0 0.0
  %1432 = vmatpush1.msra.mxu0 0.0
  %1433 = vmatprep.subr.mxu0 0.0
  %1434 = vmatpush1.msra.mxu0 0.0
  %1435 = vmatprep.subr.mxu0 0.0
  %1436 = vmatpush1.msra.mxu0 0.0
  %1437 = vmatprep.subr.mxu0 0.0
  %1438 = vmatpush1.msra.mxu0 0.0
  %1439 = vmatprep.subr.mxu0 0.0
  %1440 = vmatpush1.msra.mxu0 0.0
  %1441 = vmatprep.subr.mxu0 0.0
  %1442 = vmatpush1.msra.mxu0 0.0
  %1443 = vmatprep.subr.mxu0 0.0
  %1444 = vmatpush1.msra.mxu0 0.0
  %1445 = vmatprep.subr.mxu0 0.0
  %1446 = vmatpush1.msra.mxu0 0.0
  %1447 = vmatprep.mubr.f32.mxu0 0.0
  %v1448 = vand.u32 %v1042, 4294901760
  %1449 = vmatmul.mubr.f32.gmra.mrb[0].mxu0 %v1448
  %v1450 = vpop.f32.mrb[0].mxu0
  %v1451 = vadd.f32 %v1368, %v1450
  %v1452 = vpop.f32.mrb[0].mxu0
  %1453 = vdwg.mxu0
  %1454 = vmatprep.subr.mxu0 0.0
  %v1455 = vand.u32 %v26, 4294901760
  %1456 = vmatpush1.msra.mxu0 %v1455
  %1457 = vmatprep.subr.mxu0 0.0
  %v1458 = vand.u32 %v27, 4294901760
  %1459 = vmatpush1.msra.mxu0 %v1458
  %1460 = vmatprep.subr.mxu0 0.0
  %v1461 = vand.u32 %v28, 4294901760
  %1462 = vmatpush1.msra.mxu0 %v1461
  %1463 = vmatprep.subr.mxu0 0.0
  %v1464 = vand.u32 %v29, 4294901760
  %1465 = vmatpush1.msra.mxu0 %v1464
  %1466 = vmatprep.subr.mxu0 0.0
  %1467 = vmatpush1.msra.mxu0 0.0
  %1468 = vmatprep.subr.mxu0 0.0
  %1469 = vmatpush1.msra.mxu0 0.0
  %1470 = vmatprep.subr.mxu0 0.0
  %1471 = vmatpush1.msra.mxu0 0.0
  %1472 = vmatprep.subr.mxu0 0.0
  %1473 = vmatpush1.msra.mxu0 0.0
  %1474 = vmatprep.subr.mxu0 0.0
  %1475 = vmatpush1.msra.mxu0 0.0
  %1476 = vmatprep.subr.mxu0 0.0
  %1477 = vmatpush1.msra.mxu0 0.0
  %1478 = vmatprep.subr.mxu0 0.0
  %1479 = vmatpush1.msra.mxu0 0.0
  %1480 = vmatprep.subr.mxu0 0.0
  %1481 = vmatpush1.msra.mxu0 0.0
  %1482 = vmatprep.subr.mxu0 0.0
  %1483 = vmatpush1.msra.mxu0 0.0
  %1484 = vmatprep.subr.mxu0 0.0
  %1485 = vmatpush1.msra.mxu0 0.0
  %1486 = vmatprep.subr.mxu0 0.0
  %1487 = vmatpush1.msra.mxu0 0.0
  %1488 = vmatprep.subr.mxu0 0.0
  %1489 = vmatpush1.msra.mxu0 0.0
  %1490 = vmatprep.subr.mxu0 0.0
  %1491 = vmatpush1.msra.mxu0 0.0
  %1492 = vmatprep.subr.mxu0 0.0
  %1493 = vmatpush1.msra.mxu0 0.0
  %1494 = vmatprep.subr.mxu0 0.0
  %1495 = vmatpush1.msra.mxu0 0.0
  %1496 = vmatprep.subr.mxu0 0.0
  %1497 = vmatpush1.msra.mxu0 0.0
  %1498 = vmatprep.subr.mxu0 0.0
  %1499 = vmatpush1.msra.mxu0 0.0
  %1500 = vmatprep.subr.mxu0 0.0
  %1501 = vmatpush1.msra.mxu0 0.0
  %1502 = vmatprep.subr.mxu0 0.0
  %1503 = vmatpush1.msra.mxu0 0.0
  %1504 = vmatprep.subr.mxu0 0.0
  %1505 = vmatpush1.msra.mxu0 0.0
  %1506 = vmatprep.subr.mxu0 0.0
  %1507 = vmatpush1.msra.mxu0 0.0
  %1508 = vmatprep.subr.mxu0 0.0
  %1509 = vmatpush1.msra.mxu0 0.0
  %1510 = vmatprep.subr.mxu0 0.0
  %1511 = vmatpush1.msra.mxu0 0.0
  %1512 = vmatprep.subr.mxu0 0.0
  %1513 = vmatpush1.msra.mxu0 0.0
  %1514 = vmatprep.subr.mxu0 0.0
  %1515 = vmatpush1.msra.mxu0 0.0
  %1516 = vmatprep.subr.mxu0 0.0
  %1517 = vmatpush1.msra.mxu0 0.0
  %1518 = vmatprep.subr.mxu0 0.0
  %1519 = vmatpush1.msra.mxu0 0.0
  %1520 = vmatprep.subr.mxu0 0.0
  %1521 = vmatpush1.msra.mxu0 0.0
  %1522 = vmatprep.mubr.f32.mxu0 0.0
  %v1523 = vand.u32 %v1042, 4294901760
  %1524 = vmatmul.mubr.f32.gmra.mrb[0].mxu0 %v1523
  %v1525 = vpop.f32.mrb[0].mxu0
  %v1526 = vadd.f32 %v1451, %v1525
  %v1527 = vpop.f32.mrb[0].mxu0
  %1528 = vdwg.mxu0
  %v1530 = vrot.slane %v1526, 7
  %v1532 = vadd.f32 %v540, %v1530
  %v1533 = vtanh.pop %v1532
  %v1535 = vrot.slane %v1533, 1
  %v1536 = vsel %vm550, %v1535, 0
  %1538 = vmatprep.subr.mxu0 0.0
  %v1539 = vand.u32 %v26, 4294901760
  %1540 = vmatpush1.msra.mxu0 %v1539
  %1541 = vmatprep.subr.mxu0 0.0
  %v1542 = vand.u32 %v27, 4294901760
  %1543 = vmatpush1.msra.mxu0 %v1542
  %1544 = vmatprep.subr.mxu0 0.0
  %v1545 = vand.u32 %v28, 4294901760
  %1546 = vmatpush1.msra.mxu0 %v1545
  %1547 = vmatprep.subr.mxu0 0.0
  %v1548 = vand.u32 %v29, 4294901760
  %1549 = vmatpush1.msra.mxu0 %v1548
  %1550 = vmatprep.subr.mxu0 0.0
  %1551 = vmatpush1.msra.mxu0 0.0
  %1552 = vmatprep.subr.mxu0 0.0
  %1553 = vmatpush1.msra.mxu0 0.0
  %1554 = vmatprep.subr.mxu0 0.0
  %1555 = vmatpush1.msra.mxu0 0.0
  %1556 = vmatprep.subr.mxu0 0.0
  %1557 = vmatpush1.msra.mxu0 0.0
  %1558 = vmatprep.subr.mxu0 0.0
  %1559 = vmatpush1.msra.mxu0 0.0
  %1560 = vmatprep.subr.mxu0 0.0
  %1561 = vmatpush1.msra.mxu0 0.0
  %1562 = vmatprep.subr.mxu0 0.0
  %1563 = vmatpush1.msra.mxu0 0.0
  %1564 = vmatprep.subr.mxu0 0.0
  %1565 = vmatpush1.msra.mxu0 0.0
  %1566 = vmatprep.subr.mxu0 0.0
  %1567 = vmatpush1.msra.mxu0 0.0
  %1568 = vmatprep.subr.mxu0 0.0
  %1569 = vmatpush1.msra.mxu0 0.0
  %1570 = vmatprep.subr.mxu0 0.0
  %1571 = vmatpush1.msra.mxu0 0.0
  %1572 = vmatprep.subr.mxu0 0.0
  %1573 = vmatpush1.msra.mxu0 0.0
  %1574 = vmatprep.subr.mxu0 0.0
  %1575 = vmatpush1.msra.mxu0 0.0
  %1576 = vmatprep.subr.mxu0 0.0
  %1577 = vmatpush1.msra.mxu0 0.0
  %1578 = vmatprep.subr.mxu0 0.0
  %1579 = vmatpush1.msra.mxu0 0.0
  %1580 = vmatprep.subr.mxu0 0.0
  %1581 = vmatpush1.msra.mxu0 0.0
  %1582 = vmatprep.subr.mxu0 0.0
  %1583 = vmatpush1.msra.mxu0 0.0
  %1584 = vmatprep.subr.mxu0 0.0
  %1585 = vmatpush1.msra.mxu0 0.0
  %1586 = vmatprep.subr.mxu0 0.0
  %1587 = vmatpush1.msra.mxu0 0.0
  %1588 = vmatprep.subr.mxu0 0.0
  %1589 = vmatpush1.msra.mxu0 0.0
  %1590 = vmatprep.subr.mxu0 0.0
  %1591 = vmatpush1.msra.mxu0 0.0
  %1592 = vmatprep.subr.mxu0 0.0
  %1593 = vmatpush1.msra.mxu0 0.0
  %1594 = vmatprep.subr.mxu0 0.0
  %1595 = vmatpush1.msra.mxu0 0.0
  %1596 = vmatprep.subr.mxu0 0.0
  %1597 = vmatpush1.msra.mxu0 0.0
  %1598 = vmatprep.subr.mxu0 0.0
  %1599 = vmatpush1.msra.mxu0 0.0
  %1600 = vmatprep.subr.mxu0 0.0
  %1601 = vmatpush1.msra.mxu0 0.0
  %1602 = vmatprep.subr.mxu0 0.0
  %1603 = vmatpush1.msra.mxu0 0.0
  %1604 = vmatprep.subr.mxu0 0.0
  %1605 = vmatpush1.msra.mxu0 0.0
  %1606 = vmatprep.mubr.f32.mxu0 0.0
  %v1607 = vand.u32 %v1536, 4294901760
  %v1608 = vsub.f32 %v1536, %v1607
  %v1609 = vand.u32 %v1608, 4294901760
  %v1610 = vsub.f32 %v1608, %v1609
  %v1611 = vand.u32 %v1610, 4294901760
  %1612 = vmatmul.mubr.f32.gmra.mrb[0].mxu0 %v1611
  %v1613 = vpop.f32.mrb[0].mxu0
  %v1614 = vadd.f32 0.0, %v1613
  %v1615 = vpop.f32.mrb[0].mxu0
  %1616 = vdwg.mxu0
  %1617 = vmatprep.subr.mxu0 0.0
  %v1618 = vand.u32 %v26, 4294901760
  %v1619 = vsub.f32 %v26, %v1618
  %v1620 = vand.u32 %v1619, 4294901760
  %v1621 = vsub.f32 %v1619, %v1620
  %v1622 = vand.u32 %v1621, 4294901760
  %1623 = vmatpush1.msra.mxu0 %v1622
  %1624 = vmatprep.subr.mxu0 0.0
  %v1625 = vand.u32 %v27, 4294901760
  %v1626 = vsub.f32 %v27, %v1625
  %v1627 = vand.u32 %v1626, 4294901760
  %v1628 = vsub.f32 %v1626, %v1627
  %v1629 = vand.u32 %v1628, 4294901760
  %1630 = vmatpush1.msra.mxu0 %v1629
  %1631 = vmatprep.subr.mxu0 0.0
  %v1632 = vand.u32 %v28, 4294901760
  %v1633 = vsub.f32 %v28, %v1632
  %v1634 = vand.u32 %v1633, 4294901760
  %v1635 = vsub.f32 %v1633, %v1634
  %v1636 = vand.u32 %v1635, 4294901760
  %1637 = vmatpush1.msra.mxu0 %v1636
  %1638 = vmatprep.subr.mxu0 0.0
  %v1639 = vand.u32 %v29, 4294901760
  %v1640 = vsub.f32 %v29, %v1639
  %v1641 = vand.u32 %v1640, 4294901760
  %v1642 = vsub.f32 %v1640, %v1641
  %v1643 = vand.u32 %v1642, 4294901760
  %1644 = vmatpush1.msra.mxu0 %v1643
  %1645 = vmatprep.subr.mxu0 0.0
  %1646 = vmatpush1.msra.mxu0 0.0
  %1647 = vmatprep.subr.mxu0 0.0
  %1648 = vmatpush1.msra.mxu0 0.0
  %1649 = vmatprep.subr.mxu0 0.0
  %1650 = vmatpush1.msra.mxu0 0.0
  %1651 = vmatprep.subr.mxu0 0.0
  %1652 = vmatpush1.msra.mxu0 0.0
  %1653 = vmatprep.subr.mxu0 0.0
  %1654 = vmatpush1.msra.mxu0 0.0
  %1655 = vmatprep.subr.mxu0 0.0
  %1656 = vmatpush1.msra.mxu0 0.0
  %1657 = vmatprep.subr.mxu0 0.0
  %1658 = vmatpush1.msra.mxu0 0.0
  %1659 = vmatprep.subr.mxu0 0.0
  %1660 = vmatpush1.msra.mxu0 0.0
  %1661 = vmatprep.subr.mxu0 0.0
  %1662 = vmatpush1.msra.mxu0 0.0
  %1663 = vmatprep.subr.mxu0 0.0
  %1664 = vmatpush1.msra.mxu0 0.0
  %1665 = vmatprep.subr.mxu0 0.0
  %1666 = vmatpush1.msra.mxu0 0.0
  %1667 = vmatprep.subr.mxu0 0.0
  %1668 = vmatpush1.msra.mxu0 0.0
  %1669 = vmatprep.subr.mxu0 0.0
  %1670 = vmatpush1.msra.mxu0 0.0
  %1671 = vmatprep.subr.mxu0 0.0
  %1672 = vmatpush1.msra.mxu0 0.0
  %1673 = vmatprep.subr.mxu0 0.0
  %1674 = vmatpush1.msra.mxu0 0.0
  %1675 = vmatprep.subr.mxu0 0.0
  %1676 = vmatpush1.msra.mxu0 0.0
  %1677 = vmatprep.subr.mxu0 0.0
  %1678 = vmatpush1.msra.mxu0 0.0
  %1679 = vmatprep.subr.mxu0 0.0
  %1680 = vmatpush1.msra.mxu0 0.0
  %1681 = vmatprep.subr.mxu0 0.0
  %1682 = vmatpush1.msra.mxu0 0.0
  %1683 = vmatprep.subr.mxu0 0.0
  %1684 = vmatpush1.msra.mxu0 0.0
  %1685 = vmatprep.subr.mxu0 0.0
  %1686 = vmatpush1.msra.mxu0 0.0
  %1687 = vmatprep.subr.mxu0 0.0
  %1688 = vmatpush1.msra.mxu0 0.0
  %1689 = vmatprep.subr.mxu0 0.0
  %1690 = vmatpush1.msra.mxu0 0.0
  %1691 = vmatprep.subr.mxu0 0.0
  %1692 = vmatpush1.msra.mxu0 0.0
  %1693 = vmatprep.subr.mxu0 0.0
  %1694 = vmatpush1.msra.mxu0 0.0
  %1695 = vmatprep.subr.mxu0 0.0
  %1696 = vmatpush1.msra.mxu0 0.0
  %1697 = vmatprep.subr.mxu0 0.0
  %1698 = vmatpush1.msra.mxu0 0.0
  %1699 = vmatprep.subr.mxu0 0.0
  %1700 = vmatpush1.msra.mxu0 0.0
  %1701 = vmatprep.mubr.f32.mxu0 0.0
  %v1702 = vand.u32 %v1536, 4294901760
  %1703 = vmatmul.mubr.f32.gmra.mrb[0].mxu0 %v1702
  %v1704 = vpop.f32.mrb[0].mxu0
  %v1705 = vadd.f32 %v1614, %v1704
  %v1706 = vpop.f32.mrb[0].mxu0
  %1707 = vdwg.mxu0
  %1708 = vmatprep.subr.mxu0 0.0
  %v1709 = vand.u32 %v26, 4294901760
  %v1710 = vsub.f32 %v26, %v1709
  %1711 = vmatpush1.msra.mxu0 %v1710
  %1712 = vmatprep.subr.mxu0 0.0
  %v1713 = vand.u32 %v27, 4294901760
  %v1714 = vsub.f32 %v27, %v1713
  %1715 = vmatpush1.msra.mxu0 %v1714
  %1716 = vmatprep.subr.mxu0 0.0
  %v1717 = vand.u32 %v28, 4294901760
  %v1718 = vsub.f32 %v28, %v1717
  %1719 = vmatpush1.msra.mxu0 %v1718
  %1720 = vmatprep.subr.mxu0 0.0
  %v1721 = vand.u32 %v29, 4294901760
  %v1722 = vsub.f32 %v29, %v1721
  %1723 = vmatpush1.msra.mxu0 %v1722
  %1724 = vmatprep.subr.mxu0 0.0
  %1725 = vmatpush1.msra.mxu0 0.0
  %1726 = vmatprep.subr.mxu0 0.0
  %1727 = vmatpush1.msra.mxu0 0.0
  %1728 = vmatprep.subr.mxu0 0.0
  %1729 = vmatpush1.msra.mxu0 0.0
  %1730 = vmatprep.subr.mxu0 0.0
  %1731 = vmatpush1.msra.mxu0 0.0
  %1732 = vmatprep.subr.mxu0 0.0
  %1733 = vmatpush1.msra.mxu0 0.0
  %1734 = vmatprep.subr.mxu0 0.0
  %1735 = vmatpush1.msra.mxu0 0.0
  %1736 = vmatprep.subr.mxu0 0.0
  %1737 = vmatpush1.msra.mxu0 0.0
  %1738 = vmatprep.subr.mxu0 0.0
  %1739 = vmatpush1.msra.mxu0 0.0
  %1740 = vmatprep.subr.mxu0 0.0
  %1741 = vmatpush1.msra.mxu0 0.0
  %1742 = vmatprep.subr.mxu0 0.0
  %1743 = vmatpush1.msra.mxu0 0.0
  %1744 = vmatprep.subr.mxu0 0.0
  %1745 = vmatpush1.msra.mxu0 0.0
  %1746 = vmatprep.subr.mxu0 0.0
  %1747 = vmatpush1.msra.mxu0 0.0
  %1748 = vmatprep.subr.mxu0 0.0
  %1749 = vmatpush1.msra.mxu0 0.0
  %1750 = vmatprep.subr.mxu0 0.0
  %1751 = vmatpush1.msra.mxu0 0.0
  %1752 = vmatprep.subr.mxu0 0.0
  %1753 = vmatpush1.msra.mxu0 0.0
  %1754 = vmatprep.subr.mxu0 0.0
  %1755 = vmatpush1.msra.mxu0 0.0
  %1756 = vmatprep.subr.mxu0 0.0
  %1757 = vmatpush1.msra.mxu0 0.0
  %1758 = vmatprep.subr.mxu0 0.0
  %1759 = vmatpush1.msra.mxu0 0.0
  %1760 = vmatprep.subr.mxu0 0.0
  %1761 = vmatpush1.msra.mxu0 0.0
  %1762 = vmatprep.subr.mxu0 0.0
  %1763 = vmatpush1.msra.mxu0 0.0
  %1764 = vmatprep.subr.mxu0 0.0
  %1765 = vmatpush1.msra.mxu0 0.0
  %1766 = vmatprep.subr.mxu0 0.0
  %1767 = vmatpush1.msra.mxu0 0.0
  %1768 = vmatprep.subr.mxu0 0.0
  %1769 = vmatpush1.msra.mxu0 0.0
  %1770 = vmatprep.subr.mxu0 0.0
  %1771 = vmatpush1.msra.mxu0 0.0
  %1772 = vmatprep.subr.mxu0 0.0
  %1773 = vmatpush1.msra.mxu0 0.0
  %1774 = vmatprep.subr.mxu0 0.0
  %1775 = vmatpush1.msra.mxu0 0.0
  %1776 = vmatprep.subr.mxu0 0.0
  %1777 = vmatpush1.msra.mxu0 0.0
  %1778 = vmatprep.subr.mxu0 0.0
  %1779 = vmatpush1.msra.mxu0 0.0
  %1780 = vmatprep.mubr.f32.mxu0 0.0
  %v1781 = vand.u32 %v1536, 4294901760
  %v1782 = vsub.f32 %v1536, %v1781
  %1783 = vmatmul.mubr.f32.gmra.mrb[0].mxu0 %v1782
  %v1784 = vpop.f32.mrb[0].mxu0
  %v1785 = vadd.f32 %v1705, %v1784
  %v1786 = vpop.f32.mrb[0].mxu0
  %1787 = vdwg.mxu0
  %1788 = vmatprep.subr.mxu0 0.0
  %v1789 = vand.u32 %v26, 4294901760
  %1790 = vmatpush1.msra.mxu0 %v1789
  %1791 = vmatprep.subr.mxu0 0.0
  %v1792 = vand.u32 %v27, 4294901760
  %1793 = vmatpush1.msra.mxu0 %v1792
  %1794 = vmatprep.subr.mxu0 0.0
  %v1795 = vand.u32 %v28, 4294901760
  %1796 = vmatpush1.msra.mxu0 %v1795
  %1797 = vmatprep.subr.mxu0 0.0
  %v1798 = vand.u32 %v29, 4294901760
  %1799 = vmatpush1.msra.mxu0 %v1798
  %1800 = vmatprep.subr.mxu0 0.0
  %1801 = vmatpush1.msra.mxu0 0.0
  %1802 = vmatprep.subr.mxu0 0.0
  %1803 = vmatpush1.msra.mxu0 0.0
  %1804 = vmatprep.subr.mxu0 0.0
  %1805 = vmatpush1.msra.mxu0 0.0
  %1806 = vmatprep.subr.mxu0 0.0
  %1807 = vmatpush1.msra.mxu0 0.0
  %1808 = vmatprep.subr.mxu0 0.0
  %1809 = vmatpush1.msra.mxu0 0.0
  %1810 = vmatprep.subr.mxu0 0.0
  %1811 = vmatpush1.msra.mxu0 0.0
  %1812 = vmatprep.subr.mxu0 0.0
  %1813 = vmatpush1.msra.mxu0 0.0
  %1814 = vmatprep.subr.mxu0 0.0
  %1815 = vmatpush1.msra.mxu0 0.0
  %1816 = vmatprep.subr.mxu0 0.0
  %1817 = vmatpush1.msra.mxu0 0.0
  %1818 = vmatprep.subr.mxu0 0.0
  %1819 = vmatpush1.msra.mxu0 0.0
  %1820 = vmatprep.subr.mxu0 0.0
  %1821 = vmatpush1.msra.mxu0 0.0
  %1822 = vmatprep.subr.mxu0 0.0
  %1823 = vmatpush1.msra.mxu0 0.0
  %1824 = vmatprep.subr.mxu0 0.0
  %1825 = vmatpush1.msra.mxu0 0.0
  %1826 = vmatprep.subr.mxu0 0.0
  %1827 = vmatpush1.msra.mxu0 0.0
  %1828 = vmatprep.subr.mxu0 0.0
  %1829 = vmatpush1.msra.mxu0 0.0
  %1830 = vmatprep.subr.mxu0 0.0
  %1831 = vmatpush1.msra.mxu0 0.0
  %1832 = vmatprep.subr.mxu0 0.0
  %1833 = vmatpush1.msra.mxu0 0.0
  %1834 = vmatprep.subr.mxu0 0.0
  %1835 = vmatpush1.msra.mxu0 0.0
  %1836 = vmatprep.subr.mxu0 0.0
  %1837 = vmatpush1.msra.mxu0 0.0
  %1838 = vmatprep.subr.mxu0 0.0
  %1839 = vmatpush1.msra.mxu0 0.0
  %1840 = vmatprep.subr.mxu0 0.0
  %1841 = vmatpush1.msra.mxu0 0.0
  %1842 = vmatprep.subr.mxu0 0.0
  %1843 = vmatpush1.msra.mxu0 0.0
  %1844 = vmatprep.subr.mxu0 0.0
  %1845 = vmatpush1.msra.mxu0 0.0
  %1846 = vmatprep.subr.mxu0 0.0
  %1847 = vmatpush1.msra.mxu0 0.0
  %1848 = vmatprep.subr.mxu0 0.0
  %1849 = vmatpush1.msra.mxu0 0.0
  %1850 = vmatprep.subr.mxu0 0.0
  %1851 = vmatpush1.msra.mxu0 0.0
  %1852 = vmatprep.subr.mxu0 0.0
  %1853 = vmatpush1.msra.mxu0 0.0
  %1854 = vmatprep.subr.mxu0 0.0
  %1855 = vmatpush1.msra.mxu0 0.0
  %1856 = vmatprep.mubr.f32.mxu0 0.0
  %v1857 = vand.u32 %v1536, 4294901760
  %v1858 = vsub.f32 %v1536, %v1857
  %v1859 = vand.u32 %v1858, 4294901760
  %1860 = vmatmul.mubr.f32.gmra.mrb[0].mxu0 %v1859
  %v1861 = vpop.f32.mrb[0].mxu0
  %v1862 = vadd.f32 %v1785, %v1861
  %v1863 = vpop.f32.mrb[0].mxu0
  %1864 = vdwg.mxu0
  %1865 = vmatprep.subr.mxu0 0.0
  %v1866 = vand.u32 %v26, 4294901760
  %v1867 = vsub.f32 %v26, %v1866
  %v1868 = vand.u32 %v1867, 4294901760
  %1869 = vmatpush1.msra.mxu0 %v1868
  %1870 = vmatprep.subr.mxu0 0.0
  %v1871 = vand.u32 %v27, 4294901760
  %v1872 = vsub.f32 %v27, %v1871
  %v1873 = vand.u32 %v1872, 4294901760
  %1874 = vmatpush1.msra.mxu0 %v1873
  %1875 = vmatprep.subr.mxu0 0.0
  %v1876 = vand.u32 %v28, 4294901760
  %v1877 = vsub.f32 %v28, %v1876
  %v1878 = vand.u32 %v1877, 4294901760
  %1879 = vmatpush1.msra.mxu0 %v1878
  %1880 = vmatprep.subr.mxu0 0.0
  %v1881 = vand.u32 %v29, 4294901760
  %v1882 = vsub.f32 %v29, %v1881
  %v1883 = vand.u32 %v1882, 4294901760
  %1884 = vmatpush1.msra.mxu0 %v1883
  %1885 = vmatprep.subr.mxu0 0.0
  %1886 = vmatpush1.msra.mxu0 0.0
  %1887 = vmatprep.subr.mxu0 0.0
  %1888 = vmatpush1.msra.mxu0 0.0
  %1889 = vmatprep.subr.mxu0 0.0
  %1890 = vmatpush1.msra.mxu0 0.0
  %1891 = vmatprep.subr.mxu0 0.0
  %1892 = vmatpush1.msra.mxu0 0.0
  %1893 = vmatprep.subr.mxu0 0.0
  %1894 = vmatpush1.msra.mxu0 0.0
  %1895 = vmatprep.subr.mxu0 0.0
  %1896 = vmatpush1.msra.mxu0 0.0
  %1897 = vmatprep.subr.mxu0 0.0
  %1898 = vmatpush1.msra.mxu0 0.0
  %1899 = vmatprep.subr.mxu0 0.0
  %1900 = vmatpush1.msra.mxu0 0.0
  %1901 = vmatprep.subr.mxu0 0.0
  %1902 = vmatpush1.msra.mxu0 0.0
  %1903 = vmatprep.subr.mxu0 0.0
  %1904 = vmatpush1.msra.mxu0 0.0
  %1905 = vmatprep.subr.mxu0 0.0
  %1906 = vmatpush1.msra.mxu0 0.0
  %1907 = vmatprep.subr.mxu0 0.0
  %1908 = vmatpush1.msra.mxu0 0.0
  %1909 = vmatprep.subr.mxu0 0.0
  %1910 = vmatpush1.msra.mxu0 0.0
  %1911 = vmatprep.subr.mxu0 0.0
  %1912 = vmatpush1.msra.mxu0 0.0
  %1913 = vmatprep.subr.mxu0 0.0
  %1914 = vmatpush1.msra.mxu0 0.0
  %1915 = vmatprep.subr.mxu0 0.0
  %1916 = vmatpush1.msra.mxu0 0.0
  %1917 = vmatprep.subr.mxu0 0.0
  %1918 = vmatpush1.msra.mxu0 0.0
  %1919 = vmatprep.subr.mxu0 0.0
  %1920 = vmatpush1.msra.mxu0 0.0
  %1921 = vmatprep.subr.mxu0 0.0
  %1922 = vmatpush1.msra.mxu0 0.0
  %1923 = vmatprep.subr.mxu0 0.0
  %1924 = vmatpush1.msra.mxu0 0.0
  %1925 = vmatprep.subr.mxu0 0.0
  %1926 = vmatpush1.msra.mxu0 0.0
  %1927 = vmatprep.subr.mxu0 0.0
  %1928 = vmatpush1.msra.mxu0 0.0
  %1929 = vmatprep.subr.mxu0 0.0
  %1930 = vmatpush1.msra.mxu0 0.0
  %1931 = vmatprep.subr.mxu0 0.0
  %1932 = vmatpush1.msra.mxu0 0.0
  %1933 = vmatprep.subr.mxu0 0.0
  %1934 = vmatpush1.msra.mxu0 0.0
  %1935 = vmatprep.subr.mxu0 0.0
  %1936 = vmatpush1.msra.mxu0 0.0
  %1937 = vmatprep.subr.mxu0 0.0
  %1938 = vmatpush1.msra.mxu0 0.0
  %1939 = vmatprep.subr.mxu0 0.0
  %1940 = vmatpush1.msra.mxu0 0.0
  %1941 = vmatprep.mubr.f32.mxu0 0.0
  %v1942 = vand.u32 %v1536, 4294901760
  %1943 = vmatmul.mubr.f32.gmra.mrb[0].mxu0 %v1942
  %v1944 = vpop.f32.mrb[0].mxu0
  %v1945 = vadd.f32 %v1862, %v1944
  %v1946 = vpop.f32.mrb[0].mxu0
  %1947 = vdwg.mxu0
  %1948 = vmatprep.subr.mxu0 0.0
  %v1949 = vand.u32 %v26, 4294901760
  %1950 = vmatpush1.msra.mxu0 %v1949
  %1951 = vmatprep.subr.mxu0 0.0
  %v1952 = vand.u32 %v27, 4294901760
  %1953 = vmatpush1.msra.mxu0 %v1952
  %1954 = vmatprep.subr.mxu0 0.0
  %v1955 = vand.u32 %v28, 4294901760
  %1956 = vmatpush1.msra.mxu0 %v1955
  %1957 = vmatprep.subr.mxu0 0.0
  %v1958 = vand.u32 %v29, 4294901760
  %1959 = vmatpush1.msra.mxu0 %v1958
  %1960 = vmatprep.subr.mxu0 0.0
  %1961 = vmatpush1.msra.mxu0 0.0
  %1962 = vmatprep.subr.mxu0 0.0
  %1963 = vmatpush1.msra.mxu0 0.0
  %1964 = vmatprep.subr.mxu0 0.0
  %1965 = vmatpush1.msra.mxu0 0.0
  %1966 = vmatprep.subr.mxu0 0.0
  %1967 = vmatpush1.msra.mxu0 0.0
  %1968 = vmatprep.subr.mxu0 0.0
  %1969 = vmatpush1.msra.mxu0 0.0
  %1970 = vmatprep.subr.mxu0 0.0
  %1971 = vmatpush1.msra.mxu0 0.0
  %1972 = vmatprep.subr.mxu0 0.0
  %1973 = vmatpush1.msra.mxu0 0.0
  %1974 = vmatprep.subr.mxu0 0.0
  %1975 = vmatpush1.msra.mxu0 0.0
  %1976 = vmatprep.subr.mxu0 0.0
  %1977 = vmatpush1.msra.mxu0 0.0
  %1978 = vmatprep.subr.mxu0 0.0
  %1979 = vmatpush1.msra.mxu0 0.0
  %1980 = vmatprep.subr.mxu0 0.0
  %1981 = vmatpush1.msra.mxu0 0.0
  %1982 = vmatprep.subr.mxu0 0.0
  %1983 = vmatpush1.msra.mxu0 0.0
  %1984 = vmatprep.subr.mxu0 0.0
  %1985 = vmatpush1.msra.mxu0 0.0
  %1986 = vmatprep.subr.mxu0 0.0
  %1987 = vmatpush1.msra.mxu0 0.0
  %1988 = vmatprep.subr.mxu0 0.0
  %1989 = vmatpush1.msra.mxu0 0.0
  %1990 = vmatprep.subr.mxu0 0.0
  %1991 = vmatpush1.msra.mxu0 0.0
  %1992 = vmatprep.subr.mxu0 0.0
  %1993 = vmatpush1.msra.mxu0 0.0
  %1994 = vmatprep.subr.mxu0 0.0
  %1995 = vmatpush1.msra.mxu0 0.0
  %1996 = vmatprep.subr.mxu0 0.0
  %1997 = vmatpush1.msra.mxu0 0.0
  %1998 = vmatprep.subr.mxu0 0.0
  %1999 = vmatpush1.msra.mxu0 0.0
  %2000 = vmatprep.subr.mxu0 0.0
  %2001 = vmatpush1.msra.mxu0 0.0
  %2002 = vmatprep.subr.mxu0 0.0
  %2003 = vmatpush1.msra.mxu0 0.0
  %2004 = vmatprep.subr.mxu0 0.0
  %2005 = vmatpush1.msra.mxu0 0.0
  %2006 = vmatprep.subr.mxu0 0.0
  %2007 = vmatpush1.msra.mxu0 0.0
  %2008 = vmatprep.subr.mxu0 0.0
  %2009 = vmatpush1.msra.mxu0 0.0
  %2010 = vmatprep.subr.mxu0 0.0
  %2011 = vmatpush1.msra.mxu0 0.0
  %2012 = vmatprep.subr.mxu0 0.0
  %2013 = vmatpush1.msra.mxu0 0.0
  %2014 = vmatprep.subr.mxu0 0.0
  %2015 = vmatpush1.msra.mxu0 0.0
  %2016 = vmatprep.mubr.f32.mxu0 0.0
  %v2017 = vand.u32 %v1536, 4294901760
  %2018 = vmatmul.mubr.f32.gmra.mrb[0].mxu0 %v2017
  %v2019 = vpop.f32.mrb[0].mxu0
  %v2020 = vadd.f32 %v1945, %v2019
  %v2021 = vpop.f32.mrb[0].mxu0
  %2022 = vdwg.mxu0
  %v2024 = vrot.slane %v2020, 6
  %v2026 = vadd.f32 %v540, %v2024
  %v2027 = vtanh.pop %v2026
  %v2029 = vrot.slane %v2027, 2
  %v2030 = vsel %vm550, %v2029, 0
  %2032 = vmatprep.subr.mxu0 0.0
  %v2033 = vand.u32 %v26, 4294901760
  %2034 = vmatpush1.msra.mxu0 %v2033
  %2035 = vmatprep.subr.mxu0 0.0
  %v2036 = vand.u32 %v27, 4294901760
  %2037 = vmatpush1.msra.mxu0 %v2036
  %2038 = vmatprep.subr.mxu0 0.0
  %v2039 = vand.u32 %v28, 4294901760
  %2040 = vmatpush1.msra.mxu0 %v2039
  %2041 = vmatprep.subr.mxu0 0.0
  %v2042 = vand.u32 %v29, 4294901760
  %2043 = vmatpush1.msra.mxu0 %v2042
  %2044 = vmatprep.subr.mxu0 0.0
  %2045 = vmatpush1.msra.mxu0 0.0
  %2046 = vmatprep.subr.mxu0 0.0
  %2047 = vmatpush1.msra.mxu0 0.0
  %2048 = vmatprep.subr.mxu0 0.0
  %2049 = vmatpush1.msra.mxu0 0.0
  %2050 = vmatprep.subr.mxu0 0.0
  %2051 = vmatpush1.msra.mxu0 0.0
  %2052 = vmatprep.subr.mxu0 0.0
  %2053 = vmatpush1.msra.mxu0 0.0
  %2054 = vmatprep.subr.mxu0 0.0
  %2055 = vmatpush1.msra.mxu0 0.0
  %2056 = vmatprep.subr.mxu0 0.0
  %2057 = vmatpush1.msra.mxu0 0.0
  %2058 = vmatprep.subr.mxu0 0.0
  %2059 = vmatpush1.msra.mxu0 0.0
  %2060 = vmatprep.subr.mxu0 0.0
  %2061 = vmatpush1.msra.mxu0 0.0
  %2062 = vmatprep.subr.mxu0 0.0
  %2063 = vmatpush1.msra.mxu0 0.0
  %2064 = vmatprep.subr.mxu0 0.0
  %2065 = vmatpush1.msra.mxu0 0.0
  %2066 = vmatprep.subr.mxu0 0.0
  %2067 = vmatpush1.msra.mxu0 0.0
  %2068 = vmatprep.subr.mxu0 0.0
  %2069 = vmatpush1.msra.mxu0 0.0
  %2070 = vmatprep.subr.mxu0 0.0
  %2071 = vmatpush1.msra.mxu0 0.0
  %2072 = vmatprep.subr.mxu0 0.0
  %2073 = vmatpush1.msra.mxu0 0.0
  %2074 = vmatprep.subr.mxu0 0.0
  %2075 = vmatpush1.msra.mxu0 0.0
  %2076 = vmatprep.subr.mxu0 0.0
  %2077 = vmatpush1.msra.mxu0 0.0
  %2078 = vmatprep.subr.mxu0 0.0
  %2079 = vmatpush1.msra.mxu0 0.0
  %2080 = vmatprep.subr.mxu0 0.0
  %2081 = vmatpush1.msra.mxu0 0.0
  %2082 = vmatprep.subr.mxu0 0.0
  %2083 = vmatpush1.msra.mxu0 0.0
  %2084 = vmatprep.subr.mxu0 0.0
  %2085 = vmatpush1.msra.mxu0 0.0
  %2086 = vmatprep.subr.mxu0 0.0
  %2087 = vmatpush1.msra.mxu0 0.0
  %2088 = vmatprep.subr.mxu0 0.0
  %2089 = vmatpush1.msra.mxu0 0.0
  %2090 = vmatprep.subr.mxu0 0.0
  %2091 = vmatpush1.msra.mxu0 0.0
  %2092 = vmatprep.subr.mxu0 0.0
  %2093 = vmatpush1.msra.mxu0 0.0
  %2094 = vmatprep.subr.mxu0 0.0
  %2095 = vmatpush1.msra.mxu0 0.0
  %2096 = vmatprep.subr.mxu0 0.0
  %2097 = vmatpush1.msra.mxu0 0.0
  %2098 = vmatprep.subr.mxu0 0.0
  %2099 = vmatpush1.msra.mxu0 0.0
  %2100 = vmatprep.mubr.f32.mxu0 0.0
  %v2101 = vand.u32 %v2030, 4294901760
  %v2102 = vsub.f32 %v2030, %v2101
  %v2103 = vand.u32 %v2102, 4294901760
  %v2104 = vsub.f32 %v2102, %v2103
  %v2105 = vand.u32 %v2104, 4294901760
  %2106 = vmatmul.mubr.f32.gmra.mrb[0].mxu0 %v2105
  %v2107 = vpop.f32.mrb[0].mxu0
  %v2108 = vadd.f32 0.0, %v2107
  %v2109 = vpop.f32.mrb[0].mxu0
  %2110 = vdwg.mxu0
  %2111 = vmatprep.subr.mxu0 0.0
  %v2112 = vand.u32 %v26, 4294901760
  %v2113 = vsub.f32 %v26, %v2112
  %v2114 = vand.u32 %v2113, 4294901760
  %v2115 = vsub.f32 %v2113, %v2114
  %v2116 = vand.u32 %v2115, 4294901760
  %2117 = vmatpush1.msra.mxu0 %v2116
  %2118 = vmatprep.subr.mxu0 0.0
  %v2119 = vand.u32 %v27, 4294901760
  %v2120 = vsub.f32 %v27, %v2119
  %v2121 = vand.u32 %v2120, 4294901760
  %v2122 = vsub.f32 %v2120, %v2121
  %v2123 = vand.u32 %v2122, 4294901760
  %2124 = vmatpush1.msra.mxu0 %v2123
  %2125 = vmatprep.subr.mxu0 0.0
  %v2126 = vand.u32 %v28, 4294901760
  %v2127 = vsub.f32 %v28, %v2126
  %v2128 = vand.u32 %v2127, 4294901760
  %v2129 = vsub.f32 %v2127, %v2128
  %v2130 = vand.u32 %v2129, 4294901760
  %2131 = vmatpush1.msra.mxu0 %v2130
  %2132 = vmatprep.subr.mxu0 0.0
  %v2133 = vand.u32 %v29, 4294901760
  %v2134 = vsub.f32 %v29, %v2133
  %v2135 = vand.u32 %v2134, 4294901760
  %v2136 = vsub.f32 %v2134, %v2135
  %v2137 = vand.u32 %v2136, 4294901760
  %2138 = vmatpush1.msra.mxu0 %v2137
  %2139 = vmatprep.subr.mxu0 0.0
  %2140 = vmatpush1.msra.mxu0 0.0
  %2141 = vmatprep.subr.mxu0 0.0
  %2142 = vmatpush1.msra.mxu0 0.0
  %2143 = vmatprep.subr.mxu0 0.0
  %2144 = vmatpush1.msra.mxu0 0.0
  %2145 = vmatprep.subr.mxu0 0.0
  %2146 = vmatpush1.msra.mxu0 0.0
  %2147 = vmatprep.subr.mxu0 0.0
  %2148 = vmatpush1.msra.mxu0 0.0
  %2149 = vmatprep.subr.mxu0 0.0
  %2150 = vmatpush1.msra.mxu0 0.0
  %2151 = vmatprep.subr.mxu0 0.0
  %2152 = vmatpush1.msra.mxu0 0.0
  %2153 = vmatprep.subr.mxu0 0.0
  %2154 = vmatpush1.msra.mxu0 0.0
  %2155 = vmatprep.subr.mxu0 0.0
  %2156 = vmatpush1.msra.mxu0 0.0
  %2157 = vmatprep.subr.mxu0 0.0
  %2158 = vmatpush1.msra.mxu0 0.0
  %2159 = vmatprep.subr.mxu0 0.0
  %2160 = vmatpush1.msra.mxu0 0.0
  %2161 = vmatprep.subr.mxu0 0.0
  %2162 = vmatpush1.msra.mxu0 0.0
  %2163 = vmatprep.subr.mxu0 0.0
  %2164 = vmatpush1.msra.mxu0 0.0
  %2165 = vmatprep.subr.mxu0 0.0
  %2166 = vmatpush1.msra.mxu0 0.0
  %2167 = vmatprep.subr.mxu0 0.0
  %2168 = vmatpush1.msra.mxu0 0.0
  %2169 = vmatprep.subr.mxu0 0.0
  %2170 = vmatpush1.msra.mxu0 0.0
  %2171 = vmatprep.subr.mxu0 0.0
  %2172 = vmatpush1.msra.mxu0 0.0
  %2173 = vmatprep.subr.mxu0 0.0
  %2174 = vmatpush1.msra.mxu0 0.0
  %2175 = vmatprep.subr.mxu0 0.0
  %2176 = vmatpush1.msra.mxu0 0.0
  %2177 = vmatprep.subr.mxu0 0.0
  %2178 = vmatpush1.msra.mxu0 0.0
  %2179 = vmatprep.subr.mxu0 0.0
  %2180 = vmatpush1.msra.mxu0 0.0
  %2181 = vmatprep.subr.mxu0 0.0
  %2182 = vmatpush1.msra.mxu0 0.0
  %2183 = vmatprep.subr.mxu0 0.0
  %2184 = vmatpush1.msra.mxu0 0.0
  %2185 = vmatprep.subr.mxu0 0.0
  %2186 = vmatpush1.msra.mxu0 0.0
  %2187 = vmatprep.subr.mxu0 0.0
  %2188 = vmatpush1.msra.mxu0 0.0
  %2189 = vmatprep.subr.mxu0 0.0
  %2190 = vmatpush1.msra.mxu0 0.0
  %2191 = vmatprep.subr.mxu0 0.0
  %2192 = vmatpush1.msra.mxu0 0.0
  %2193 = vmatprep.subr.mxu0 0.0
  %2194 = vmatpush1.msra.mxu0 0.0
  %2195 = vmatprep.mubr.f32.mxu0 0.0
  %v2196 = vand.u32 %v2030, 4294901760
  %2197 = vmatmul.mubr.f32.gmra.mrb[0].mxu0 %v2196
  %v2198 = vpop.f32.mrb[0].mxu0
  %v2199 = vadd.f32 %v2108, %v2198
  %v2200 = vpop.f32.mrb[0].mxu0
  %2201 = vdwg.mxu0
  %2202 = vmatprep.subr.mxu0 0.0
  %v2203 = vand.u32 %v26, 4294901760
  %v2204 = vsub.f32 %v26, %v2203
  %2205 = vmatpush1.msra.mxu0 %v2204
  %2206 = vmatprep.subr.mxu0 0.0
  %v2207 = vand.u32 %v27, 4294901760
  %v2208 = vsub.f32 %v27, %v2207
  %2209 = vmatpush1.msra.mxu0 %v2208
  %2210 = vmatprep.subr.mxu0 0.0
  %v2211 = vand.u32 %v28, 4294901760
  %v2212 = vsub.f32 %v28, %v2211
  %2213 = vmatpush1.msra.mxu0 %v2212
  %2214 = vmatprep.subr.mxu0 0.0
  %v2215 = vand.u32 %v29, 4294901760
  %v2216 = vsub.f32 %v29, %v2215
  %2217 = vmatpush1.msra.mxu0 %v2216
  %2218 = vmatprep.subr.mxu0 0.0
  %2219 = vmatpush1.msra.mxu0 0.0
  %2220 = vmatprep.subr.mxu0 0.0
  %2221 = vmatpush1.msra.mxu0 0.0
  %2222 = vmatprep.subr.mxu0 0.0
  %2223 = vmatpush1.msra.mxu0 0.0
  %2224 = vmatprep.subr.mxu0 0.0
  %2225 = vmatpush1.msra.mxu0 0.0
  %2226 = vmatprep.subr.mxu0 0.0
  %2227 = vmatpush1.msra.mxu0 0.0
  %2228 = vmatprep.subr.mxu0 0.0
  %2229 = vmatpush1.msra.mxu0 0.0
  %2230 = vmatprep.subr.mxu0 0.0
  %2231 = vmatpush1.msra.mxu0 0.0
  %2232 = vmatprep.subr.mxu0 0.0
  %2233 = vmatpush1.msra.mxu0 0.0
  %2234 = vmatprep.subr.mxu0 0.0
  %2235 = vmatpush1.msra.mxu0 0.0
  %2236 = vmatprep.subr.mxu0 0.0
  %2237 = vmatpush1.msra.mxu0 0.0
  %2238 = vmatprep.subr.mxu0 0.0
  %2239 = vmatpush1.msra.mxu0 0.0
  %2240 = vmatprep.subr.mxu0 0.0
  %2241 = vmatpush1.msra.mxu0 0.0
  %2242 = vmatprep.subr.mxu0 0.0
  %2243 = vmatpush1.msra.mxu0 0.0
  %2244 = vmatprep.subr.mxu0 0.0
  %2245 = vmatpush1.msra.mxu0 0.0
  %2246 = vmatprep.subr.mxu0 0.0
  %2247 = vmatpush1.msra.mxu0 0.0
  %2248 = vmatprep.subr.mxu0 0.0
  %2249 = vmatpush1.msra.mxu0 0.0
  %2250 = vmatprep.subr.mxu0 0.0
  %2251 = vmatpush1.msra.mxu0 0.0
  %2252 = vmatprep.subr.mxu0 0.0
  %2253 = vmatpush1.msra.mxu0 0.0
  %2254 = vmatprep.subr.mxu0 0.0
  %2255 = vmatpush1.msra.mxu0 0.0
  %2256 = vmatprep.subr.mxu0 0.0
  %2257 = vmatpush1.msra.mxu0 0.0
  %2258 = vmatprep.subr.mxu0 0.0
  %2259 = vmatpush1.msra.mxu0 0.0
  %2260 = vmatprep.subr.mxu0 0.0
  %2261 = vmatpush1.msra.mxu0 0.0
  %2262 = vmatprep.subr.mxu0 0.0
  %2263 = vmatpush1.msra.mxu0 0.0
  %2264 = vmatprep.subr.mxu0 0.0
  %2265 = vmatpush1.msra.mxu0 0.0
  %2266 = vmatprep.subr.mxu0 0.0
  %2267 = vmatpush1.msra.mxu0 0.0
  %2268 = vmatprep.subr.mxu0 0.0
  %2269 = vmatpush1.msra.mxu0 0.0
  %2270 = vmatprep.subr.mxu0 0.0
  %2271 = vmatpush1.msra.mxu0 0.0
  %2272 = vmatprep.subr.mxu0 0.0
  %2273 = vmatpush1.msra.mxu0 0.0
  %2274 = vmatprep.mubr.f32.mxu0 0.0
  %v2275 = vand.u32 %v2030, 4294901760
  %v2276 = vsub.f32 %v2030, %v2275
  %2277 = vmatmul.mubr.f32.gmra.mrb[0].mxu0 %v2276
  %v2278 = vpop.f32.mrb[0].mxu0
  %v2279 = vadd.f32 %v2199, %v2278
  %v2280 = vpop.f32.mrb[0].mxu0
  %2281 = vdwg.mxu0
  %2282 = vmatprep.subr.mxu0 0.0
  %v2283 = vand.u32 %v26, 4294901760
  %2284 = vmatpush1.msra.mxu0 %v2283
  %2285 = vmatprep.subr.mxu0 0.0
  %v2286 = vand.u32 %v27, 4294901760
  %2287 = vmatpush1.msra.mxu0 %v2286
  %2288 = vmatprep.subr.mxu0 0.0
  %v2289 = vand.u32 %v28, 4294901760
  %2290 = vmatpush1.msra.mxu0 %v2289
  %2291 = vmatprep.subr.mxu0 0.0
  %v2292 = vand.u32 %v29, 4294901760
  %2293 = vmatpush1.msra.mxu0 %v2292
  %2294 = vmatprep.subr.mxu0 0.0
  %2295 = vmatpush1.msra.mxu0 0.0
  %2296 = vmatprep.subr.mxu0 0.0
  %2297 = vmatpush1.msra.mxu0 0.0
  %2298 = vmatprep.subr.mxu0 0.0
  %2299 = vmatpush1.msra.mxu0 0.0
  %2300 = vmatprep.subr.mxu0 0.0
  %2301 = vmatpush1.msra.mxu0 0.0
  %2302 = vmatprep.subr.mxu0 0.0
  %2303 = vmatpush1.msra.mxu0 0.0
  %2304 = vmatprep.subr.mxu0 0.0
  %2305 = vmatpush1.msra.mxu0 0.0
  %2306 = vmatprep.subr.mxu0 0.0
  %2307 = vmatpush1.msra.mxu0 0.0
  %2308 = vmatprep.subr.mxu0 0.0
  %2309 = vmatpush1.msra.mxu0 0.0
  %2310 = vmatprep.subr.mxu0 0.0
  %2311 = vmatpush1.msra.mxu0 0.0
  %2312 = vmatprep.subr.mxu0 0.0
  %2313 = vmatpush1.msra.mxu0 0.0
  %2314 = vmatprep.subr.mxu0 0.0
  %2315 = vmatpush1.msra.mxu0 0.0
  %2316 = vmatprep.subr.mxu0 0.0
  %2317 = vmatpush1.msra.mxu0 0.0
  %2318 = vmatprep.subr.mxu0 0.0
  %2319 = vmatpush1.msra.mxu0 0.0
  %2320 = vmatprep.subr.mxu0 0.0
  %2321 = vmatpush1.msra.mxu0 0.0
  %2322 = vmatprep.subr.mxu0 0.0
  %2323 = vmatpush1.msra.mxu0 0.0
  %2324 = vmatprep.subr.mxu0 0.0
  %2325 = vmatpush1.msra.mxu0 0.0
  %2326 = vmatprep.subr.mxu0 0.0
  %2327 = vmatpush1.msra.mxu0 0.0
  %2328 = vmatprep.subr.mxu0 0.0
  %2329 = vmatpush1.msra.mxu0 0.0
  %2330 = vmatprep.subr.mxu0 0.0
  %2331 = vmatpush1.msra.mxu0 0.0
  %2332 = vmatprep.subr.mxu0 0.0
  %2333 = vmatpush1.msra.mxu0 0.0
  %2334 = vmatprep.subr.mxu0 0.0
  %2335 = vmatpush1.msra.mxu0 0.0
  %2336 = vmatprep.subr.mxu0 0.0
  %2337 = vmatpush1.msra.mxu0 0.0
  %2338 = vmatprep.subr.mxu0 0.0
  %2339 = vmatpush1.msra.mxu0 0.0
  %2340 = vmatprep.subr.mxu0 0.0
  %2341 = vmatpush1.msra.mxu0 0.0
  %2342 = vmatprep.subr.mxu0 0.0
  %2343 = vmatpush1.msra.mxu0 0.0
  %2344 = vmatprep.subr.mxu0 0.0
  %2345 = vmatpush1.msra.mxu0 0.0
  %2346 = vmatprep.subr.mxu0 0.0
  %2347 = vmatpush1.msra.mxu0 0.0
  %2348 = vmatprep.subr.mxu0 0.0
  %2349 = vmatpush1.msra.mxu0 0.0
  %2350 = vmatprep.mubr.f32.mxu0 0.0
  %v2351 = vand.u32 %v2030, 4294901760
  %v2352 = vsub.f32 %v2030, %v2351
  %v2353 = vand.u32 %v2352, 4294901760
  %2354 = vmatmul.mubr.f32.gmra.mrb[0].mxu0 %v2353
  %v2355 = vpop.f32.mrb[0].mxu0
  %v2356 = vadd.f32 %v2279, %v2355
  %v2357 = vpop.f32.mrb[0].mxu0
  %2358 = vdwg.mxu0
  %2359 = vmatprep.subr.mxu0 0.0
  %v2360 = vand.u32 %v26, 4294901760
  %v2361 = vsub.f32 %v26, %v2360
  %v2362 = vand.u32 %v2361, 4294901760
  %2363 = vmatpush1.msra.mxu0 %v2362
  %2364 = vmatprep.subr.mxu0 0.0
  %v2365 = vand.u32 %v27, 4294901760
  %v2366 = vsub.f32 %v27, %v2365
  %v2367 = vand.u32 %v2366, 4294901760
  %2368 = vmatpush1.msra.mxu0 %v2367
  %2369 = vmatprep.subr.mxu0 0.0
  %v2370 = vand.u32 %v28, 4294901760
  %v2371 = vsub.f32 %v28, %v2370
  %v2372 = vand.u32 %v2371, 4294901760
  %2373 = vmatpush1.msra.mxu0 %v2372
  %2374 = vmatprep.subr.mxu0 0.0
  %v2375 = vand.u32 %v29, 4294901760
  %v2376 = vsub.f32 %v29, %v2375
  %v2377 = vand.u32 %v2376, 4294901760
  %2378 = vmatpush1.msra.mxu0 %v2377
  %2379 = vmatprep.subr.mxu0 0.0
  %2380 = vmatpush1.msra.mxu0 0.0
  %2381 = vmatprep.subr.mxu0 0.0
  %2382 = vmatpush1.msra.mxu0 0.0
  %2383 = vmatprep.subr.mxu0 0.0
  %2384 = vmatpush1.msra.mxu0 0.0
  %2385 = vmatprep.subr.mxu0 0.0
  %2386 = vmatpush1.msra.mxu0 0.0
  %2387 = vmatprep.subr.mxu0 0.0
  %2388 = vmatpush1.msra.mxu0 0.0
  %2389 = vmatprep.subr.mxu0 0.0
  %2390 = vmatpush1.msra.mxu0 0.0
  %2391 = vmatprep.subr.mxu0 0.0
  %2392 = vmatpush1.msra.mxu0 0.0
  %2393 = vmatprep.subr.mxu0 0.0
  %2394 = vmatpush1.msra.mxu0 0.0
  %2395 = vmatprep.subr.mxu0 0.0
  %2396 = vmatpush1.msra.mxu0 0.0
  %2397 = vmatprep.subr.mxu0 0.0
  %2398 = vmatpush1.msra.mxu0 0.0
  %2399 = vmatprep.subr.mxu0 0.0
  %2400 = vmatpush1.msra.mxu0 0.0
  %2401 = vmatprep.subr.mxu0 0.0
  %2402 = vmatpush1.msra.mxu0 0.0
  %2403 = vmatprep.subr.mxu0 0.0
  %2404 = vmatpush1.msra.mxu0 0.0
  %2405 = vmatprep.subr.mxu0 0.0
  %2406 = vmatpush1.msra.mxu0 0.0
  %2407 = vmatprep.subr.mxu0 0.0
  %2408 = vmatpush1.msra.mxu0 0.0
  %2409 = vmatprep.subr.mxu0 0.0
  %2410 = vmatpush1.msra.mxu0 0.0
  %2411 = vmatprep.subr.mxu0 0.0
  %2412 = vmatpush1.msra.mxu0 0.0
  %2413 = vmatprep.subr.mxu0 0.0
  %2414 = vmatpush1.msra.mxu0 0.0
  %2415 = vmatprep.subr.mxu0 0.0
  %2416 = vmatpush1.msra.mxu0 0.0
  %2417 = vmatprep.subr.mxu0 0.0
  %2418 = vmatpush1.msra.mxu0 0.0
  %2419 = vmatprep.subr.mxu0 0.0
  %2420 = vmatpush1.msra.mxu0 0.0
  %2421 = vmatprep.subr.mxu0 0.0
  %2422 = vmatpush1.msra.mxu0 0.0
  %2423 = vmatprep.subr.mxu0 0.0
  %2424 = vmatpush1.msra.mxu0 0.0
  %2425 = vmatprep.subr.mxu0 0.0
  %2426 = vmatpush1.msra.mxu0 0.0
  %2427 = vmatprep.subr.mxu0 0.0
  %2428 = vmatpush1.msra.mxu0 0.0
  %2429 = vmatprep.subr.mxu0 0.0
  %2430 = vmatpush1.msra.mxu0 0.0
  %2431 = vmatprep.subr.mxu0 0.0
  %2432 = vmatpush1.msra.mxu0 0.0
  %2433 = vmatprep.subr.mxu0 0.0
  %2434 = vmatpush1.msra.mxu0 0.0
  %2435 = vmatprep.mubr.f32.mxu0 0.0
  %v2436 = vand.u32 %v2030, 4294901760
  %2437 = vmatmul.mubr.f32.gmra.mrb[0].mxu0 %v2436
  %v2438 = vpop.f32.mrb[0].mxu0
  %v2439 = vadd.f32 %v2356, %v2438
  %v2440 = vpop.f32.mrb[0].mxu0
  %2441 = vdwg.mxu0
  %2442 = vmatprep.subr.mxu0 0.0
  %v2443 = vand.u32 %v26, 4294901760
  %2444 = vmatpush1.msra.mxu0 %v2443
  %2445 = vmatprep.subr.mxu0 0.0
  %v2446 = vand.u32 %v27, 4294901760
  %2447 = vmatpush1.msra.mxu0 %v2446
  %2448 = vmatprep.subr.mxu0 0.0
  %v2449 = vand.u32 %v28, 4294901760
  %2450 = vmatpush1.msra.mxu0 %v2449
  %2451 = vmatprep.subr.mxu0 0.0
  %v2452 = vand.u32 %v29, 4294901760
  %2453 = vmatpush1.msra.mxu0 %v2452
  %2454 = vmatprep.subr.mxu0 0.0
  %2455 = vmatpush1.msra.mxu0 0.0
  %2456 = vmatprep.subr.mxu0 0.0
  %2457 = vmatpush1.msra.mxu0 0.0
  %2458 = vmatprep.subr.mxu0 0.0
  %2459 = vmatpush1.msra.mxu0 0.0
  %2460 = vmatprep.subr.mxu0 0.0
  %2461 = vmatpush1.msra.mxu0 0.0
  %2462 = vmatprep.subr.mxu0 0.0
  %2463 = vmatpush1.msra.mxu0 0.0
  %2464 = vmatprep.subr.mxu0 0.0
  %2465 = vmatpush1.msra.mxu0 0.0
  %2466 = vmatprep.subr.mxu0 0.0
  %2467 = vmatpush1.msra.mxu0 0.0
  %2468 = vmatprep.subr.mxu0 0.0
  %2469 = vmatpush1.msra.mxu0 0.0
  %2470 = vmatprep.subr.mxu0 0.0
  %2471 = vmatpush1.msra.mxu0 0.0
  %2472 = vmatprep.subr.mxu0 0.0
  %2473 = vmatpush1.msra.mxu0 0.0
  %2474 = vmatprep.subr.mxu0 0.0
  %2475 = vmatpush1.msra.mxu0 0.0
  %2476 = vmatprep.subr.mxu0 0.0
  %2477 = vmatpush1.msra.mxu0 0.0
  %2478 = vmatprep.subr.mxu0 0.0
  %2479 = vmatpush1.msra.mxu0 0.0
  %2480 = vmatprep.subr.mxu0 0.0
  %2481 = vmatpush1.msra.mxu0 0.0
  %2482 = vmatprep.subr.mxu0 0.0
  %2483 = vmatpush1.msra.mxu0 0.0
  %2484 = vmatprep.subr.mxu0 0.0
  %2485 = vmatpush1.msra.mxu0 0.0
  %2486 = vmatprep.subr.mxu0 0.0
  %2487 = vmatpush1.msra.mxu0 0.0
  %2488 = vmatprep.subr.mxu0 0.0
  %2489 = vmatpush1.msra.mxu0 0.0
  %2490 = vmatprep.subr.mxu0 0.0
  %2491 = vmatpush1.msra.mxu0 0.0
  %2492 = vmatprep.subr.mxu0 0.0
  %2493 = vmatpush1.msra.mxu0 0.0
  %2494 = vmatprep.subr.mxu0 0.0
  %2495 = vmatpush1.msra.mxu0 0.0
  %2496 = vmatprep.subr.mxu0 0.0
  %2497 = vmatpush1.msra.mxu0 0.0
  %2498 = vmatprep.subr.mxu0 0.0
  %2499 = vmatpush1.msra.mxu0 0.0
  %2500 = vmatprep.subr.mxu0 0.0
  %2501 = vmatpush1.msra.mxu0 0.0
  %2502 = vmatprep.subr.mxu0 0.0
  %2503 = vmatpush1.msra.mxu0 0.0
  %2504 = vmatprep.subr.mxu0 0.0
  %2505 = vmatpush1.msra.mxu0 0.0
  %2506 = vmatprep.subr.mxu0 0.0
  %2507 = vmatpush1.msra.mxu0 0.0
  %2508 = vmatprep.subr.mxu0 0.0
  %2509 = vmatpush1.msra.mxu0 0.0
  %2510 = vmatprep.mubr.f32.mxu0 0.0
  %v2511 = vand.u32 %v2030, 4294901760
  %2512 = vmatmul.mubr.f32.gmra.mrb[0].mxu0 %v2511
  %v2513 = vpop.f32.mrb[0].mxu0
  %v2514 = vadd.f32 %v2439, %v2513
  %v2515 = vpop.f32.mrb[0].mxu0
  %2516 = vdwg.mxu0
  %v2518 = vrot.slane %v2514, 5
  %v2520 = vadd.f32 %v540, %v2518
  %v2521 = vtanh.pop %v2520
  %v2523 = vrot.slane %v2521, 3
  %v2524 = vsel %vm550, %v2523, 0
  %2526 = vmatprep.subr.mxu0 0.0
  %v2527 = vand.u32 %v26, 4294901760
  %2528 = vmatpush1.msra.mxu0 %v2527
  %2529 = vmatprep.subr.mxu0 0.0
  %v2530 = vand.u32 %v27, 4294901760
  %2531 = vmatpush1.msra.mxu0 %v2530
  %2532 = vmatprep.subr.mxu0 0.0
  %v2533 = vand.u32 %v28, 4294901760
  %2534 = vmatpush1.msra.mxu0 %v2533
  %2535 = vmatprep.subr.mxu0 0.0
  %v2536 = vand.u32 %v29, 4294901760
  %2537 = vmatpush1.msra.mxu0 %v2536
  %2538 = vmatprep.subr.mxu0 0.0
  %2539 = vmatpush1.msra.mxu0 0.0
  %2540 = vmatprep.subr.mxu0 0.0
  %2541 = vmatpush1.msra.mxu0 0.0
  %2542 = vmatprep.subr.mxu0 0.0
  %2543 = vmatpush1.msra.mxu0 0.0
  %2544 = vmatprep.subr.mxu0 0.0
  %2545 = vmatpush1.msra.mxu0 0.0
  %2546 = vmatprep.subr.mxu0 0.0
  %2547 = vmatpush1.msra.mxu0 0.0
  %2548 = vmatprep.subr.mxu0 0.0
  %2549 = vmatpush1.msra.mxu0 0.0
  %2550 = vmatprep.subr.mxu0 0.0
  %2551 = vmatpush1.msra.mxu0 0.0
  %2552 = vmatprep.subr.mxu0 0.0
  %2553 = vmatpush1.msra.mxu0 0.0
  %2554 = vmatprep.subr.mxu0 0.0
  %2555 = vmatpush1.msra.mxu0 0.0
  %2556 = vmatprep.subr.mxu0 0.0
  %2557 = vmatpush1.msra.mxu0 0.0
  %2558 = vmatprep.subr.mxu0 0.0
  %2559 = vmatpush1.msra.mxu0 0.0
  %2560 = vmatprep.subr.mxu0 0.0
  %2561 = vmatpush1.msra.mxu0 0.0
  %2562 = vmatprep.subr.mxu0 0.0
  %2563 = vmatpush1.msra.mxu0 0.0
  %2564 = vmatprep.subr.mxu0 0.0
  %2565 = vmatpush1.msra.mxu0 0.0
  %2566 = vmatprep.subr.mxu0 0.0
  %2567 = vmatpush1.msra.mxu0 0.0
  %2568 = vmatprep.subr.mxu0 0.0
  %2569 = vmatpush1.msra.mxu0 0.0
  %2570 = vmatprep.subr.mxu0 0.0
  %2571 = vmatpush1.msra.mxu0 0.0
  %2572 = vmatprep.subr.mxu0 0.0
  %2573 = vmatpush1.msra.mxu0 0.0
  %2574 = vmatprep.subr.mxu0 0.0
  %2575 = vmatpush1.msra.mxu0 0.0
  %2576 = vmatprep.subr.mxu0 0.0
  %2577 = vmatpush1.msra.mxu0 0.0
  %2578 = vmatprep.subr.mxu0 0.0
  %2579 = vmatpush1.msra.mxu0 0.0
  %2580 = vmatprep.subr.mxu0 0.0
  %2581 = vmatpush1.msra.mxu0 0.0
  %2582 = vmatprep.subr.mxu0 0.0
  %2583 = vmatpush1.msra.mxu0 0.0
  %2584 = vmatprep.subr.mxu0 0.0
  %2585 = vmatpush1.msra.mxu0 0.0
  %2586 = vmatprep.subr.mxu0 0.0
  %2587 = vmatpush1.msra.mxu0 0.0
  %2588 = vmatprep.subr.mxu0 0.0
  %2589 = vmatpush1.msra.mxu0 0.0
  %2590 = vmatprep.subr.mxu0 0.0
  %2591 = vmatpush1.msra.mxu0 0.0
  %2592 = vmatprep.subr.mxu0 0.0
  %2593 = vmatpush1.msra.mxu0 0.0
  %2594 = vmatprep.mubr.f32.mxu0 0.0
  %v2595 = vand.u32 %v2524, 4294901760
  %v2596 = vsub.f32 %v2524, %v2595
  %v2597 = vand.u32 %v2596, 4294901760
  %v2598 = vsub.f32 %v2596, %v2597
  %v2599 = vand.u32 %v2598, 4294901760
  %2600 = vmatmul.mubr.f32.gmra.mrb[0].mxu0 %v2599
  %v2601 = vpop.f32.mrb[0].mxu0
  %v2602 = vadd.f32 0.0, %v2601
  %v2603 = vpop.f32.mrb[0].mxu0
  %2604 = vdwg.mxu0
  %2605 = vmatprep.subr.mxu0 0.0
  %v2606 = vand.u32 %v26, 4294901760
  %v2607 = vsub.f32 %v26, %v2606
  %v2608 = vand.u32 %v2607, 4294901760
  %v2609 = vsub.f32 %v2607, %v2608
  %v2610 = vand.u32 %v2609, 4294901760
  %2611 = vmatpush1.msra.mxu0 %v2610
  %2612 = vmatprep.subr.mxu0 0.0
  %v2613 = vand.u32 %v27, 4294901760
  %v2614 = vsub.f32 %v27, %v2613
  %v2615 = vand.u32 %v2614, 4294901760
  %v2616 = vsub.f32 %v2614, %v2615
  %v2617 = vand.u32 %v2616, 4294901760
  %2618 = vmatpush1.msra.mxu0 %v2617
  %2619 = vmatprep.subr.mxu0 0.0
  %v2620 = vand.u32 %v28, 4294901760
  %v2621 = vsub.f32 %v28, %v2620
  %v2622 = vand.u32 %v2621, 4294901760
  %v2623 = vsub.f32 %v2621, %v2622
  %v2624 = vand.u32 %v2623, 4294901760
  %2625 = vmatpush1.msra.mxu0 %v2624
  %2626 = vmatprep.subr.mxu0 0.0
  %v2627 = vand.u32 %v29, 4294901760
  %v2628 = vsub.f32 %v29, %v2627
  %v2629 = vand.u32 %v2628, 4294901760
  %v2630 = vsub.f32 %v2628, %v2629
  %v2631 = vand.u32 %v2630, 4294901760
  %2632 = vmatpush1.msra.mxu0 %v2631
  %2633 = vmatprep.subr.mxu0 0.0
  %2634 = vmatpush1.msra.mxu0 0.0
  %2635 = vmatprep.subr.mxu0 0.0
  %2636 = vmatpush1.msra.mxu0 0.0
  %2637 = vmatprep.subr.mxu0 0.0
  %2638 = vmatpush1.msra.mxu0 0.0
  %2639 = vmatprep.subr.mxu0 0.0
  %2640 = vmatpush1.msra.mxu0 0.0
  %2641 = vmatprep.subr.mxu0 0.0
  %2642 = vmatpush1.msra.mxu0 0.0
  %2643 = vmatprep.subr.mxu0 0.0
  %2644 = vmatpush1.msra.mxu0 0.0
  %2645 = vmatprep.subr.mxu0 0.0
  %2646 = vmatpush1.msra.mxu0 0.0
  %2647 = vmatprep.subr.mxu0 0.0
  %2648 = vmatpush1.msra.mxu0 0.0
  %2649 = vmatprep.subr.mxu0 0.0
  %2650 = vmatpush1.msra.mxu0 0.0
  %2651 = vmatprep.subr.mxu0 0.0
  %2652 = vmatpush1.msra.mxu0 0.0
  %2653 = vmatprep.subr.mxu0 0.0
  %2654 = vmatpush1.msra.mxu0 0.0
  %2655 = vmatprep.subr.mxu0 0.0
  %2656 = vmatpush1.msra.mxu0 0.0
  %2657 = vmatprep.subr.mxu0 0.0
  %2658 = vmatpush1.msra.mxu0 0.0
  %2659 = vmatprep.subr.mxu0 0.0
  %2660 = vmatpush1.msra.mxu0 0.0
  %2661 = vmatprep.subr.mxu0 0.0
  %2662 = vmatpush1.msra.mxu0 0.0
  %2663 = vmatprep.subr.mxu0 0.0
  %2664 = vmatpush1.msra.mxu0 0.0
  %2665 = vmatprep.subr.mxu0 0.0
  %2666 = vmatpush1.msra.mxu0 0.0
  %2667 = vmatprep.subr.mxu0 0.0
  %2668 = vmatpush1.msra.mxu0 0.0
  %2669 = vmatprep.subr.mxu0 0.0
  %2670 = vmatpush1.msra.mxu0 0.0
  %2671 = vmatprep.subr.mxu0 0.0
  %2672 = vmatpush1.msra.mxu0 0.0
  %2673 = vmatprep.subr.mxu0 0.0
  %2674 = vmatpush1.msra.mxu0 0.0
  %2675 = vmatprep.subr.mxu0 0.0
  %2676 = vmatpush1.msra.mxu0 0.0
  %2677 = vmatprep.subr.mxu0 0.0
  %2678 = vmatpush1.msra.mxu0 0.0
  %2679 = vmatprep.subr.mxu0 0.0
  %2680 = vmatpush1.msra.mxu0 0.0
  %2681 = vmatprep.subr.mxu0 0.0
  %2682 = vmatpush1.msra.mxu0 0.0
  %2683 = vmatprep.subr.mxu0 0.0
  %2684 = vmatpush1.msra.mxu0 0.0
  %2685 = vmatprep.subr.mxu0 0.0
  %2686 = vmatpush1.msra.mxu0 0.0
  %2687 = vmatprep.subr.mxu0 0.0
  %2688 = vmatpush1.msra.mxu0 0.0
  %2689 = vmatprep.mubr.f32.mxu0 0.0
  %v2690 = vand.u32 %v2524, 4294901760
  %2691 = vmatmul.mubr.f32.gmra.mrb[0].mxu0 %v2690
  %v2692 = vpop.f32.mrb[0].mxu0
  %v2693 = vadd.f32 %v2602, %v2692
  %v2694 = vpop.f32.mrb[0].mxu0
  %2695 = vdwg.mxu0
  %2696 = vmatprep.subr.mxu0 0.0
  %v2697 = vand.u32 %v26, 4294901760
  %v2698 = vsub.f32 %v26, %v2697
  %2699 = vmatpush1.msra.mxu0 %v2698
  %2700 = vmatprep.subr.mxu0 0.0
  %v2701 = vand.u32 %v27, 4294901760
  %v2702 = vsub.f32 %v27, %v2701
  %2703 = vmatpush1.msra.mxu0 %v2702
  %2704 = vmatprep.subr.mxu0 0.0
  %v2705 = vand.u32 %v28, 4294901760
  %v2706 = vsub.f32 %v28, %v2705
  %2707 = vmatpush1.msra.mxu0 %v2706
  %2708 = vmatprep.subr.mxu0 0.0
  %v2709 = vand.u32 %v29, 4294901760
  %v2710 = vsub.f32 %v29, %v2709
  %2711 = vmatpush1.msra.mxu0 %v2710
  %2712 = vmatprep.subr.mxu0 0.0
  %2713 = vmatpush1.msra.mxu0 0.0
  %2714 = vmatprep.subr.mxu0 0.0
  %2715 = vmatpush1.msra.mxu0 0.0
  %2716 = vmatprep.subr.mxu0 0.0
  %2717 = vmatpush1.msra.mxu0 0.0
  %2718 = vmatprep.subr.mxu0 0.0
  %2719 = vmatpush1.msra.mxu0 0.0
  %2720 = vmatprep.subr.mxu0 0.0
  %2721 = vmatpush1.msra.mxu0 0.0
  %2722 = vmatprep.subr.mxu0 0.0
  %2723 = vmatpush1.msra.mxu0 0.0
  %2724 = vmatprep.subr.mxu0 0.0
  %2725 = vmatpush1.msra.mxu0 0.0
  %2726 = vmatprep.subr.mxu0 0.0
  %2727 = vmatpush1.msra.mxu0 0.0
  %2728 = vmatprep.subr.mxu0 0.0
  %2729 = vmatpush1.msra.mxu0 0.0
  %2730 = vmatprep.subr.mxu0 0.0
  %2731 = vmatpush1.msra.mxu0 0.0
  %2732 = vmatprep.subr.mxu0 0.0
  %2733 = vmatpush1.msra.mxu0 0.0
  %2734 = vmatprep.subr.mxu0 0.0
  %2735 = vmatpush1.msra.mxu0 0.0
  %2736 = vmatprep.subr.mxu0 0.0
  %2737 = vmatpush1.msra.mxu0 0.0
  %2738 = vmatprep.subr.mxu0 0.0
  %2739 = vmatpush1.msra.mxu0 0.0
  %2740 = vmatprep.subr.mxu0 0.0
  %2741 = vmatpush1.msra.mxu0 0.0
  %2742 = vmatprep.subr.mxu0 0.0
  %2743 = vmatpush1.msra.mxu0 0.0
  %2744 = vmatprep.subr.mxu0 0.0
  %2745 = vmatpush1.msra.mxu0 0.0
  %2746 = vmatprep.subr.mxu0 0.0
  %2747 = vmatpush1.msra.mxu0 0.0
  %2748 = vmatprep.subr.mxu0 0.0
  %2749 = vmatpush1.msra.mxu0 0.0
  %2750 = vmatprep.subr.mxu0 0.0
  %2751 = vmatpush1.msra.mxu0 0.0
  %2752 = vmatprep.subr.mxu0 0.0
  %2753 = vmatpush1.msra.mxu0 0.0
  %2754 = vmatprep.subr.mxu0 0.0
  %2755 = vmatpush1.msra.mxu0 0.0
  %2756 = vmatprep.subr.mxu0 0.0
  %2757 = vmatpush1.msra.mxu0 0.0
  %2758 = vmatprep.subr.mxu0 0.0
  %2759 = vmatpush1.msra.mxu0 0.0
  %2760 = vmatprep.subr.mxu0 0.0
  %2761 = vmatpush1.msra.mxu0 0.0
  %2762 = vmatprep.subr.mxu0 0.0
  %2763 = vmatpush1.msra.mxu0 0.0
  %2764 = vmatprep.subr.mxu0 0.0
  %2765 = vmatpush1.msra.mxu0 0.0
  %2766 = vmatprep.subr.mxu0 0.0
  %2767 = vmatpush1.msra.mxu0 0.0
  %2768 = vmatprep.mubr.f32.mxu0 0.0
  %v2769 = vand.u32 %v2524, 4294901760
  %v2770 = vsub.f32 %v2524, %v2769
  %2771 = vmatmul.mubr.f32.gmra.mrb[0].mxu0 %v2770
  %v2772 = vpop.f32.mrb[0].mxu0
  %v2773 = vadd.f32 %v2693, %v2772
  %v2774 = vpop.f32.mrb[0].mxu0
  %2775 = vdwg.mxu0
  %2776 = vmatprep.subr.mxu0 0.0
  %v2777 = vand.u32 %v26, 4294901760
  %2778 = vmatpush1.msra.mxu0 %v2777
  %2779 = vmatprep.subr.mxu0 0.0
  %v2780 = vand.u32 %v27, 4294901760
  %2781 = vmatpush1.msra.mxu0 %v2780
  %2782 = vmatprep.subr.mxu0 0.0
  %v2783 = vand.u32 %v28, 4294901760
  %2784 = vmatpush1.msra.mxu0 %v2783
  %2785 = vmatprep.subr.mxu0 0.0
  %v2786 = vand.u32 %v29, 4294901760
  %2787 = vmatpush1.msra.mxu0 %v2786
  %2788 = vmatprep.subr.mxu0 0.0
  %2789 = vmatpush1.msra.mxu0 0.0
  %2790 = vmatprep.subr.mxu0 0.0
  %2791 = vmatpush1.msra.mxu0 0.0
  %2792 = vmatprep.subr.mxu0 0.0
  %2793 = vmatpush1.msra.mxu0 0.0
  %2794 = vmatprep.subr.mxu0 0.0
  %2795 = vmatpush1.msra.mxu0 0.0
  %2796 = vmatprep.subr.mxu0 0.0
  %2797 = vmatpush1.msra.mxu0 0.0
  %2798 = vmatprep.subr.mxu0 0.0
  %2799 = vmatpush1.msra.mxu0 0.0
  %2800 = vmatprep.subr.mxu0 0.0
  %2801 = vmatpush1.msra.mxu0 0.0
  %2802 = vmatprep.subr.mxu0 0.0
  %2803 = vmatpush1.msra.mxu0 0.0
  %2804 = vmatprep.subr.mxu0 0.0
  %2805 = vmatpush1.msra.mxu0 0.0
  %2806 = vmatprep.subr.mxu0 0.0
  %2807 = vmatpush1.msra.mxu0 0.0
  %2808 = vmatprep.subr.mxu0 0.0
  %2809 = vmatpush1.msra.mxu0 0.0
  %2810 = vmatprep.subr.mxu0 0.0
  %2811 = vmatpush1.msra.mxu0 0.0
  %2812 = vmatprep.subr.mxu0 0.0
  %2813 = vmatpush1.msra.mxu0 0.0
  %2814 = vmatprep.subr.mxu0 0.0
  %2815 = vmatpush1.msra.mxu0 0.0
  %2816 = vmatprep.subr.mxu0 0.0
  %2817 = vmatpush1.msra.mxu0 0.0
  %2818 = vmatprep.subr.mxu0 0.0
  %2819 = vmatpush1.msra.mxu0 0.0
  %2820 = vmatprep.subr.mxu0 0.0
  %2821 = vmatpush1.msra.mxu0 0.0
  %2822 = vmatprep.subr.mxu0 0.0
  %2823 = vmatpush1.msra.mxu0 0.0
  %2824 = vmatprep.subr.mxu0 0.0
  %2825 = vmatpush1.msra.mxu0 0.0
  %2826 = vmatprep.subr.mxu0 0.0
  %2827 = vmatpush1.msra.mxu0 0.0
  %2828 = vmatprep.subr.mxu0 0.0
  %2829 = vmatpush1.msra.mxu0 0.0
  %2830 = vmatprep.subr.mxu0 0.0
  %2831 = vmatpush1.msra.mxu0 0.0
  %2832 = vmatprep.subr.mxu0 0.0
  %2833 = vmatpush1.msra.mxu0 0.0
  %2834 = vmatprep.subr.mxu0 0.0
  %2835 = vmatpush1.msra.mxu0 0.0
  %2836 = vmatprep.subr.mxu0 0.0
  %2837 = vmatpush1.msra.mxu0 0.0
  %2838 = vmatprep.subr.mxu0 0.0
  %2839 = vmatpush1.msra.mxu0 0.0
  %2840 = vmatprep.subr.mxu0 0.0
  %2841 = vmatpush1.msra.mxu0 0.0
  %2842 = vmatprep.subr.mxu0 0.0
  %2843 = vmatpush1.msra.mxu0 0.0
  %2844 = vmatprep.mubr.f32.mxu0 0.0
  %v2845 = vand.u32 %v2524, 4294901760
  %v2846 = vsub.f32 %v2524, %v2845
  %v2847 = vand.u32 %v2846, 4294901760
  %2848 = vmatmul.mubr.f32.gmra.mrb[0].mxu0 %v2847
  %v2849 = vpop.f32.mrb[0].mxu0
  %v2850 = vadd.f32 %v2773, %v2849
  %v2851 = vpop.f32.mrb[0].mxu0
  %2852 = vdwg.mxu0
  %2853 = vmatprep.subr.mxu0 0.0
  %v2854 = vand.u32 %v26, 4294901760
  %v2855 = vsub.f32 %v26, %v2854
  %v2856 = vand.u32 %v2855, 4294901760
  %2857 = vmatpush1.msra.mxu0 %v2856
  %2858 = vmatprep.subr.mxu0 0.0
  %v2859 = vand.u32 %v27, 4294901760
  %v2860 = vsub.f32 %v27, %v2859
  %v2861 = vand.u32 %v2860, 4294901760
  %2862 = vmatpush1.msra.mxu0 %v2861
  %2863 = vmatprep.subr.mxu0 0.0
  %v2864 = vand.u32 %v28, 4294901760
  %v2865 = vsub.f32 %v28, %v2864
  %v2866 = vand.u32 %v2865, 4294901760
  %2867 = vmatpush1.msra.mxu0 %v2866
  %2868 = vmatprep.subr.mxu0 0.0
  %v2869 = vand.u32 %v29, 4294901760
  %v2870 = vsub.f32 %v29, %v2869
  %v2871 = vand.u32 %v2870, 4294901760
  %2872 = vmatpush1.msra.mxu0 %v2871
  %2873 = vmatprep.subr.mxu0 0.0
  %2874 = vmatpush1.msra.mxu0 0.0
  %2875 = vmatprep.subr.mxu0 0.0
  %2876 = vmatpush1.msra.mxu0 0.0
  %2877 = vmatprep.subr.mxu0 0.0
  %2878 = vmatpush1.msra.mxu0 0.0
  %2879 = vmatprep.subr.mxu0 0.0
  %2880 = vmatpush1.msra.mxu0 0.0
  %2881 = vmatprep.subr.mxu0 0.0
  %2882 = vmatpush1.msra.mxu0 0.0
  %2883 = vmatprep.subr.mxu0 0.0
  %2884 = vmatpush1.msra.mxu0 0.0
  %2885 = vmatprep.subr.mxu0 0.0
  %2886 = vmatpush1.msra.mxu0 0.0
  %2887 = vmatprep.subr.mxu0 0.0
  %2888 = vmatpush1.msra.mxu0 0.0
  %2889 = vmatprep.subr.mxu0 0.0
  %2890 = vmatpush1.msra.mxu0 0.0
  %2891 = vmatprep.subr.mxu0 0.0
  %2892 = vmatpush1.msra.mxu0 0.0
  %2893 = vmatprep.subr.mxu0 0.0
  %2894 = vmatpush1.msra.mxu0 0.0
  %2895 = vmatprep.subr.mxu0 0.0
  %2896 = vmatpush1.msra.mxu0 0.0
  %2897 = vmatprep.subr.mxu0 0.0
  %2898 = vmatpush1.msra.mxu0 0.0
  %2899 = vmatprep.subr.mxu0 0.0
  %2900 = vmatpush1.msra.mxu0 0.0
  %2901 = vmatprep.subr.mxu0 0.0
  %2902 = vmatpush1.msra.mxu0 0.0
  %2903 = vmatprep.subr.mxu0 0.0
  %2904 = vmatpush1.msra.mxu0 0.0
  %2905 = vmatprep.subr.mxu0 0.0
  %2906 = vmatpush1.msra.mxu0 0.0
  %2907 = vmatprep.subr.mxu0 0.0
  %2908 = vmatpush1.msra.mxu0 0.0
  %2909 = vmatprep.subr.mxu0 0.0
  %2910 = vmatpush1.msra.mxu0 0.0
  %2911 = vmatprep.subr.mxu0 0.0
  %2912 = vmatpush1.msra.mxu0 0.0
  %2913 = vmatprep.subr.mxu0 0.0
  %2914 = vmatpush1.msra.mxu0 0.0
  %2915 = vmatprep.subr.mxu0 0.0
  %2916 = vmatpush1.msra.mxu0 0.0
  %2917 = vmatprep.subr.mxu0 0.0
  %2918 = vmatpush1.msra.mxu0 0.0
  %2919 = vmatprep.subr.mxu0 0.0
  %2920 = vmatpush1.msra.mxu0 0.0
  %2921 = vmatprep.subr.mxu0 0.0
  %2922 = vmatpush1.msra.mxu0 0.0
  %2923 = vmatprep.subr.mxu0 0.0
  %2924 = vmatpush1.msra.mxu0 0.0
  %2925 = vmatprep.subr.mxu0 0.0
  %2926 = vmatpush1.msra.mxu0 0.0
  %2927 = vmatprep.subr.mxu0 0.0
  %2928 = vmatpush1.msra.mxu0 0.0
  %2929 = vmatprep.mubr.f32.mxu0 0.0
  %v2930 = vand.u32 %v2524, 4294901760
  %2931 = vmatmul.mubr.f32.gmra.mrb[0].mxu0 %v2930
  %v2932 = vpop.f32.mrb[0].mxu0
  %v2933 = vadd.f32 %v2850, %v2932
  %v2934 = vpop.f32.mrb[0].mxu0
  %2935 = vdwg.mxu0
  %2936 = vmatprep.subr.mxu0 0.0
  %v2937 = vand.u32 %v26, 4294901760
  %2938 = vmatpush1.msra.mxu0 %v2937
  %2939 = vmatprep.subr.mxu0 0.0
  %v2940 = vand.u32 %v27, 4294901760
  %2941 = vmatpush1.msra.mxu0 %v2940
  %2942 = vmatprep.subr.mxu0 0.0
  %v2943 = vand.u32 %v28, 4294901760
  %2944 = vmatpush1.msra.mxu0 %v2943
  %2945 = vmatprep.subr.mxu0 0.0
  %v2946 = vand.u32 %v29, 4294901760
  %2947 = vmatpush1.msra.mxu0 %v2946
  %2948 = vmatprep.subr.mxu0 0.0
  %2949 = vmatpush1.msra.mxu0 0.0
  %2950 = vmatprep.subr.mxu0 0.0
  %2951 = vmatpush1.msra.mxu0 0.0
  %2952 = vmatprep.subr.mxu0 0.0
  %2953 = vmatpush1.msra.mxu0 0.0
  %2954 = vmatprep.subr.mxu0 0.0
  %2955 = vmatpush1.msra.mxu0 0.0
  %2956 = vmatprep.subr.mxu0 0.0
  %2957 = vmatpush1.msra.mxu0 0.0
  %2958 = vmatprep.subr.mxu0 0.0
  %2959 = vmatpush1.msra.mxu0 0.0
  %2960 = vmatprep.subr.mxu0 0.0
  %2961 = vmatpush1.msra.mxu0 0.0
  %2962 = vmatprep.subr.mxu0 0.0
  %2963 = vmatpush1.msra.mxu0 0.0
  %2964 = vmatprep.subr.mxu0 0.0
  %2965 = vmatpush1.msra.mxu0 0.0
  %2966 = vmatprep.subr.mxu0 0.0
  %2967 = vmatpush1.msra.mxu0 0.0
  %2968 = vmatprep.subr.mxu0 0.0
  %2969 = vmatpush1.msra.mxu0 0.0
  %2970 = vmatprep.subr.mxu0 0.0
  %2971 = vmatpush1.msra.mxu0 0.0
  %2972 = vmatprep.subr.mxu0 0.0
  %2973 = vmatpush1.msra.mxu0 0.0
  %2974 = vmatprep.subr.mxu0 0.0
  %2975 = vmatpush1.msra.mxu0 0.0
  %2976 = vmatprep.subr.mxu0 0.0
  %2977 = vmatpush1.msra.mxu0 0.0
  %2978 = vmatprep.subr.mxu0 0.0
  %2979 = vmatpush1.msra.mxu0 0.0
  %2980 = vmatprep.subr.mxu0 0.0
  %2981 = vmatpush1.msra.mxu0 0.0
  %2982 = vmatprep.subr.mxu0 0.0
  %2983 = vmatpush1.msra.mxu0 0.0
  %2984 = vmatprep.subr.mxu0 0.0
  %2985 = vmatpush1.msra.mxu0 0.0
  %2986 = vmatprep.subr.mxu0 0.0
  %2987 = vmatpush1.msra.mxu0 0.0
  %2988 = vmatprep.subr.mxu0 0.0
  %2989 = vmatpush1.msra.mxu0 0.0
  %2990 = vmatprep.subr.mxu0 0.0
  %2991 = vmatpush1.msra.mxu0 0.0
  %2992 = vmatprep.subr.mxu0 0.0
  %2993 = vmatpush1.msra.mxu0 0.0
  %2994 = vmatprep.subr.mxu0 0.0
  %2995 = vmatpush1.msra.mxu0 0.0
  %2996 = vmatprep.subr.mxu0 0.0
  %2997 = vmatpush1.msra.mxu0 0.0
  %2998 = vmatprep.subr.mxu0 0.0
  %2999 = vmatpush1.msra.mxu0 0.0
  %3000 = vmatprep.subr.mxu0 0.0
  %3001 = vmatpush1.msra.mxu0 0.0
  %3002 = vmatprep.subr.mxu0 0.0
  %3003 = vmatpush1.msra.mxu0 0.0
  %3004 = vmatprep.mubr.f32.mxu0 0.0
  %v3005 = vand.u32 %v2524, 4294901760
  %3006 = vmatmul.mubr.f32.gmra.mrb[0].mxu0 %v3005
  %v3007 = vpop.f32.mrb[0].mxu0
  %v3008 = vadd.f32 %v2933, %v3007
  %v3009 = vpop.f32.mrb[0].mxu0
  %3010 = vdwg.mxu0
  %v3012 = vrot.slane %v3008, 4
  %v3014 = vadd.f32 %v540, %v3012
  %v3015 = vtanh.pop %v3014
  %v3017 = vrot.slane %v3015, 4
  %v3018 = vsel %vm550, %v3017, 0
  %3020 = vmatprep.subr.mxu0 0.0
  %v3021 = vand.u32 %v26, 4294901760
  %3022 = vmatpush1.msra.mxu0 %v3021
  %3023 = vmatprep.subr.mxu0 0.0
  %v3024 = vand.u32 %v27, 4294901760
  %3025 = vmatpush1.msra.mxu0 %v3024
  %3026 = vmatprep.subr.mxu0 0.0
  %v3027 = vand.u32 %v28, 4294901760
  %3028 = vmatpush1.msra.mxu0 %v3027
  %3029 = vmatprep.subr.mxu0 0.0
  %v3030 = vand.u32 %v29, 4294901760
  %3031 = vmatpush1.msra.mxu0 %v3030
  %3032 = vmatprep.subr.mxu0 0.0
  %3033 = vmatpush1.msra.mxu0 0.0
  %3034 = vmatprep.subr.mxu0 0.0
  %3035 = vmatpush1.msra.mxu0 0.0
  %3036 = vmatprep.subr.mxu0 0.0
  %3037 = vmatpush1.msra.mxu0 0.0
  %3038 = vmatprep.subr.mxu0 0.0
  %3039 = vmatpush1.msra.mxu0 0.0
  %3040 = vmatprep.subr.mxu0 0.0
  %3041 = vmatpush1.msra.mxu0 0.0
  %3042 = vmatprep.subr.mxu0 0.0
  %3043 = vmatpush1.msra.mxu0 0.0
  %3044 = vmatprep.subr.mxu0 0.0
  %3045 = vmatpush1.msra.mxu0 0.0
  %3046 = vmatprep.subr.mxu0 0.0
  %3047 = vmatpush1.msra.mxu0 0.0
  %3048 = vmatprep.subr.mxu0 0.0
  %3049 = vmatpush1.msra.mxu0 0.0
  %3050 = vmatprep.subr.mxu0 0.0
  %3051 = vmatpush1.msra.mxu0 0.0
  %3052 = vmatprep.subr.mxu0 0.0
  %3053 = vmatpush1.msra.mxu0 0.0
  %3054 = vmatprep.subr.mxu0 0.0
  %3055 = vmatpush1.msra.mxu0 0.0
  %3056 = vmatprep.subr.mxu0 0.0
  %3057 = vmatpush1.msra.mxu0 0.0
  %3058 = vmatprep.subr.mxu0 0.0
  %3059 = vmatpush1.msra.mxu0 0.0
  %3060 = vmatprep.subr.mxu0 0.0
  %3061 = vmatpush1.msra.mxu0 0.0
  %3062 = vmatprep.subr.mxu0 0.0
  %3063 = vmatpush1.msra.mxu0 0.0
  %3064 = vmatprep.subr.mxu0 0.0
  %3065 = vmatpush1.msra.mxu0 0.0
  %3066 = vmatprep.subr.mxu0 0.0
  %3067 = vmatpush1.msra.mxu0 0.0
  %3068 = vmatprep.subr.mxu0 0.0
  %3069 = vmatpush1.msra.mxu0 0.0
  %3070 = vmatprep.subr.mxu0 0.0
  %3071 = vmatpush1.msra.mxu0 0.0
  %3072 = vmatprep.subr.mxu0 0.0
  %3073 = vmatpush1.msra.mxu0 0.0
  %3074 = vmatprep.subr.mxu0 0.0
  %3075 = vmatpush1.msra.mxu0 0.0
  %3076 = vmatprep.subr.mxu0 0.0
  %3077 = vmatpush1.msra.mxu0 0.0
  %3078 = vmatprep.subr.mxu0 0.0
  %3079 = vmatpush1.msra.mxu0 0.0
  %3080 = vmatprep.subr.mxu0 0.0
  %3081 = vmatpush1.msra.mxu0 0.0
  %3082 = vmatprep.subr.mxu0 0.0
  %3083 = vmatpush1.msra.mxu0 0.0
  %3084 = vmatprep.subr.mxu0 0.0
  %3085 = vmatpush1.msra.mxu0 0.0
  %3086 = vmatprep.subr.mxu0 0.0
  %3087 = vmatpush1.msra.mxu0 0.0
  %3088 = vmatprep.mubr.f32.mxu0 0.0
  %v3089 = vand.u32 %v3018, 4294901760
  %v3090 = vsub.f32 %v3018, %v3089
  %v3091 = vand.u32 %v3090, 4294901760
  %v3092 = vsub.f32 %v3090, %v3091
  %v3093 = vand.u32 %v3092, 4294901760
  %3094 = vmatmul.mubr.f32.gmra.mrb[0].mxu0 %v3093
  %v3095 = vpop.f32.mrb[0].mxu0
  %v3096 = vadd.f32 0.0, %v3095
  %v3097 = vpop.f32.mrb[0].mxu0
  %3098 = vdwg.mxu0
  %3099 = vmatprep.subr.mxu0 0.0
  %v3100 = vand.u32 %v26, 4294901760
  %v3101 = vsub.f32 %v26, %v3100
  %v3102 = vand.u32 %v3101, 4294901760
  %v3103 = vsub.f32 %v3101, %v3102
  %v3104 = vand.u32 %v3103, 4294901760
  %3105 = vmatpush1.msra.mxu0 %v3104
  %3106 = vmatprep.subr.mxu0 0.0
  %v3107 = vand.u32 %v27, 4294901760
  %v3108 = vsub.f32 %v27, %v3107
  %v3109 = vand.u32 %v3108, 4294901760
  %v3110 = vsub.f32 %v3108, %v3109
  %v3111 = vand.u32 %v3110, 4294901760
  %3112 = vmatpush1.msra.mxu0 %v3111
  %3113 = vmatprep.subr.mxu0 0.0
  %v3114 = vand.u32 %v28, 4294901760
  %v3115 = vsub.f32 %v28, %v3114
  %v3116 = vand.u32 %v3115, 4294901760
  %v3117 = vsub.f32 %v3115, %v3116
  %v3118 = vand.u32 %v3117, 4294901760
  %3119 = vmatpush1.msra.mxu0 %v3118
  %3120 = vmatprep.subr.mxu0 0.0
  %v3121 = vand.u32 %v29, 4294901760
  %v3122 = vsub.f32 %v29, %v3121
  %v3123 = vand.u32 %v3122, 4294901760
  %v3124 = vsub.f32 %v3122, %v3123
  %v3125 = vand.u32 %v3124, 4294901760
  %3126 = vmatpush1.msra.mxu0 %v3125
  %3127 = vmatprep.subr.mxu0 0.0
  %3128 = vmatpush1.msra.mxu0 0.0
  %3129 = vmatprep.subr.mxu0 0.0
  %3130 = vmatpush1.msra.mxu0 0.0
  %3131 = vmatprep.subr.mxu0 0.0
  %3132 = vmatpush1.msra.mxu0 0.0
  %3133 = vmatprep.subr.mxu0 0.0
  %3134 = vmatpush1.msra.mxu0 0.0
  %3135 = vmatprep.subr.mxu0 0.0
  %3136 = vmatpush1.msra.mxu0 0.0
  %3137 = vmatprep.subr.mxu0 0.0
  %3138 = vmatpush1.msra.mxu0 0.0
  %3139 = vmatprep.subr.mxu0 0.0
  %3140 = vmatpush1.msra.mxu0 0.0
  %3141 = vmatprep.subr.mxu0 0.0
  %3142 = vmatpush1.msra.mxu0 0.0
  %3143 = vmatprep.subr.mxu0 0.0
  %3144 = vmatpush1.msra.mxu0 0.0
  %3145 = vmatprep.subr.mxu0 0.0
  %3146 = vmatpush1.msra.mxu0 0.0
  %3147 = vmatprep.subr.mxu0 0.0
  %3148 = vmatpush1.msra.mxu0 0.0
  %3149 = vmatprep.subr.mxu0 0.0
  %3150 = vmatpush1.msra.mxu0 0.0
  %3151 = vmatprep.subr.mxu0 0.0
  %3152 = vmatpush1.msra.mxu0 0.0
  %3153 = vmatprep.subr.mxu0 0.0
  %3154 = vmatpush1.msra.mxu0 0.0
  %3155 = vmatprep.subr.mxu0 0.0
  %3156 = vmatpush1.msra.mxu0 0.0
  %3157 = vmatprep.subr.mxu0 0.0
  %3158 = vmatpush1.msra.mxu0 0.0
  %3159 = vmatprep.subr.mxu0 0.0
  %3160 = vmatpush1.msra.mxu0 0.0
  %3161 = vmatprep.subr.mxu0 0.0
  %3162 = vmatpush1.msra.mxu0 0.0
  %3163 = vmatprep.subr.mxu0 0.0
  %3164 = vmatpush1.msra.mxu0 0.0
  %3165 = vmatprep.subr.mxu0 0.0
  %3166 = vmatpush1.msra.mxu0 0.0
  %3167 = vmatprep.subr.mxu0 0.0
  %3168 = vmatpush1.msra.mxu0 0.0
  %3169 = vmatprep.subr.mxu0 0.0
  %3170 = vmatpush1.msra.mxu0 0.0
  %3171 = vmatprep.subr.mxu0 0.0
  %3172 = vmatpush1.msra.mxu0 0.0
  %3173 = vmatprep.subr.mxu0 0.0
  %3174 = vmatpush1.msra.mxu0 0.0
  %3175 = vmatprep.subr.mxu0 0.0
  %3176 = vmatpush1.msra.mxu0 0.0
  %3177 = vmatprep.subr.mxu0 0.0
  %3178 = vmatpush1.msra.mxu0 0.0
  %3179 = vmatprep.subr.mxu0 0.0
  %3180 = vmatpush1.msra.mxu0 0.0
  %3181 = vmatprep.subr.mxu0 0.0
  %3182 = vmatpush1.msra.mxu0 0.0
  %3183 = vmatprep.mubr.f32.mxu0 0.0
  %v3184 = vand.u32 %v3018, 4294901760
  %3185 = vmatmul.mubr.f32.gmra.mrb[0].mxu0 %v3184
  %v3186 = vpop.f32.mrb[0].mxu0
  %v3187 = vadd.f32 %v3096, %v3186
  %v3188 = vpop.f32.mrb[0].mxu0
  %3189 = vdwg.mxu0
  %3190 = vmatprep.subr.mxu0 0.0
  %v3191 = vand.u32 %v26, 4294901760
  %v3192 = vsub.f32 %v26, %v3191
  %3193 = vmatpush1.msra.mxu0 %v3192
  %3194 = vmatprep.subr.mxu0 0.0
  %v3195 = vand.u32 %v27, 4294901760
  %v3196 = vsub.f32 %v27, %v3195
  %3197 = vmatpush1.msra.mxu0 %v3196
  %3198 = vmatprep.subr.mxu0 0.0
  %v3199 = vand.u32 %v28, 4294901760
  %v3200 = vsub.f32 %v28, %v3199
  %3201 = vmatpush1.msra.mxu0 %v3200
  %3202 = vmatprep.subr.mxu0 0.0
  %v3203 = vand.u32 %v29, 4294901760
  %v3204 = vsub.f32 %v29, %v3203
  %3205 = vmatpush1.msra.mxu0 %v3204
  %3206 = vmatprep.subr.mxu0 0.0
  %3207 = vmatpush1.msra.mxu0 0.0
  %3208 = vmatprep.subr.mxu0 0.0
  %3209 = vmatpush1.msra.mxu0 0.0
  %3210 = vmatprep.subr.mxu0 0.0
  %3211 = vmatpush1.msra.mxu0 0.0
  %3212 = vmatprep.subr.mxu0 0.0
  %3213 = vmatpush1.msra.mxu0 0.0
  %3214 = vmatprep.subr.mxu0 0.0
  %3215 = vmatpush1.msra.mxu0 0.0
  %3216 = vmatprep.subr.mxu0 0.0
  %3217 = vmatpush1.msra.mxu0 0.0
  %3218 = vmatprep.subr.mxu0 0.0
  %3219 = vmatpush1.msra.mxu0 0.0
  %3220 = vmatprep.subr.mxu0 0.0
  %3221 = vmatpush1.msra.mxu0 0.0
  %3222 = vmatprep.subr.mxu0 0.0
  %3223 = vmatpush1.msra.mxu0 0.0
  %3224 = vmatprep.subr.mxu0 0.0
  %3225 = vmatpush1.msra.mxu0 0.0
  %3226 = vmatprep.subr.mxu0 0.0
  %3227 = vmatpush1.msra.mxu0 0.0
  %3228 = vmatprep.subr.mxu0 0.0
  %3229 = vmatpush1.msra.mxu0 0.0
  %3230 = vmatprep.subr.mxu0 0.0
  %3231 = vmatpush1.msra.mxu0 0.0
  %3232 = vmatprep.subr.mxu0 0.0
  %3233 = vmatpush1.msra.mxu0 0.0
  %3234 = vmatprep.subr.mxu0 0.0
  %3235 = vmatpush1.msra.mxu0 0.0
  %3236 = vmatprep.subr.mxu0 0.0
  %3237 = vmatpush1.msra.mxu0 0.0
  %3238 = vmatprep.subr.mxu0 0.0
  %3239 = vmatpush1.msra.mxu0 0.0
  %3240 = vmatprep.subr.mxu0 0.0
  %3241 = vmatpush1.msra.mxu0 0.0
  %3242 = vmatprep.subr.mxu0 0.0
  %3243 = vmatpush1.msra.mxu0 0.0
  %3244 = vmatprep.subr.mxu0 0.0
  %3245 = vmatpush1.msra.mxu0 0.0
  %3246 = vmatprep.subr.mxu0 0.0
  %3247 = vmatpush1.msra.mxu0 0.0
  %3248 = vmatprep.subr.mxu0 0.0
  %3249 = vmatpush1.msra.mxu0 0.0
  %3250 = vmatprep.subr.mxu0 0.0
  %3251 = vmatpush1.msra.mxu0 0.0
  %3252 = vmatprep.subr.mxu0 0.0
  %3253 = vmatpush1.msra.mxu0 0.0
  %3254 = vmatprep.subr.mxu0 0.0
  %3255 = vmatpush1.msra.mxu0 0.0
  %3256 = vmatprep.subr.mxu0 0.0
  %3257 = vmatpush1.msra.mxu0 0.0
  %3258 = vmatprep.subr.mxu0 0.0
  %3259 = vmatpush1.msra.mxu0 0.0
  %3260 = vmatprep.subr.mxu0 0.0
  %3261 = vmatpush1.msra.mxu0 0.0
  %3262 = vmatprep.mubr.f32.mxu0 0.0
  %v3263 = vand.u32 %v3018, 4294901760
  %v3264 = vsub.f32 %v3018, %v3263
  %3265 = vmatmul.mubr.f32.gmra.mrb[0].mxu0 %v3264
  %v3266 = vpop.f32.mrb[0].mxu0
  %v3267 = vadd.f32 %v3187, %v3266
  %v3268 = vpop.f32.mrb[0].mxu0
  %3269 = vdwg.mxu0
  %3270 = vmatprep.subr.mxu0 0.0
  %v3271 = vand.u32 %v26, 4294901760
  %3272 = vmatpush1.msra.mxu0 %v3271
  %3273 = vmatprep.subr.mxu0 0.0
  %v3274 = vand.u32 %v27, 4294901760
  %3275 = vmatpush1.msra.mxu0 %v3274
  %3276 = vmatprep.subr.mxu0 0.0
  %v3277 = vand.u32 %v28, 4294901760
  %3278 = vmatpush1.msra.mxu0 %v3277
  %3279 = vmatprep.subr.mxu0 0.0
  %v3280 = vand.u32 %v29, 4294901760
  %3281 = vmatpush1.msra.mxu0 %v3280
  %3282 = vmatprep.subr.mxu0 0.0
  %3283 = vmatpush1.msra.mxu0 0.0
  %3284 = vmatprep.subr.mxu0 0.0
  %3285 = vmatpush1.msra.mxu0 0.0
  %3286 = vmatprep.subr.mxu0 0.0
  %3287 = vmatpush1.msra.mxu0 0.0
  %3288 = vmatprep.subr.mxu0 0.0
  %3289 = vmatpush1.msra.mxu0 0.0
  %3290 = vmatprep.subr.mxu0 0.0
  %3291 = vmatpush1.msra.mxu0 0.0
  %3292 = vmatprep.subr.mxu0 0.0
  %3293 = vmatpush1.msra.mxu0 0.0
  %3294 = vmatprep.subr.mxu0 0.0
  %3295 = vmatpush1.msra.mxu0 0.0
  %3296 = vmatprep.subr.mxu0 0.0
  %3297 = vmatpush1.msra.mxu0 0.0
  %3298 = vmatprep.subr.mxu0 0.0
  %3299 = vmatpush1.msra.mxu0 0.0
  %3300 = vmatprep.subr.mxu0 0.0
  %3301 = vmatpush1.msra.mxu0 0.0
  %3302 = vmatprep.subr.mxu0 0.0
  %3303 = vmatpush1.msra.mxu0 0.0
  %3304 = vmatprep.subr.mxu0 0.0
  %3305 = vmatpush1.msra.mxu0 0.0
  %3306 = vmatprep.subr.mxu0 0.0
  %3307 = vmatpush1.msra.mxu0 0.0
  %3308 = vmatprep.subr.mxu0 0.0
  %3309 = vmatpush1.msra.mxu0 0.0
  %3310 = vmatprep.subr.mxu0 0.0
  %3311 = vmatpush1.msra.mxu0 0.0
  %3312 = vmatprep.subr.mxu0 0.0
  %3313 = vmatpush1.msra.mxu0 0.0
  %3314 = vmatprep.subr.mxu0 0.0
  %3315 = vmatpush1.msra.mxu0 0.0
  %3316 = vmatprep.subr.mxu0 0.0
  %3317 = vmatpush1.msra.mxu0 0.0
  %3318 = vmatprep.subr.mxu0 0.0
  %3319 = vmatpush1.msra.mxu0 0.0
  %3320 = vmatprep.subr.mxu0 0.0
  %3321 = vmatpush1.msra.mxu0 0.0
  %3322 = vmatprep.subr.mxu0 0.0
  %3323 = vmatpush1.msra.mxu0 0.0
  %3324 = vmatprep.subr.mxu0 0.0
  %3325 = vmatpush1.msra.mxu0 0.0
  %3326 = vmatprep.subr.mxu0 0.0
  %3327 = vmatpush1.msra.mxu0 0.0
  %3328 = vmatprep.subr.mxu0 0.0
  %3329 = vmatpush1.msra.mxu0 0.0
  %3330 = vmatprep.subr.mxu0 0.0
  %3331 = vmatpush1.msra.mxu0 0.0
  %3332 = vmatprep.subr.mxu0 0.0
  %3333 = vmatpush1.msra.mxu0 0.0
  %3334 = vmatprep.subr.mxu0 0.0
  %3335 = vmatpush1.msra.mxu0 0.0
  %3336 = vmatprep.subr.mxu0 0.0
  %3337 = vmatpush1.msra.mxu0 0.0
  %3338 = vmatprep.mubr.f32.mxu0 0.0
  %v3339 = vand.u32 %v3018, 4294901760
  %v3340 = vsub.f32 %v3018, %v3339
  %v3341 = vand.u32 %v3340, 4294901760
  %3342 = vmatmul.mubr.f32.gmra.mrb[0].mxu0 %v3341
  %v3343 = vpop.f32.mrb[0].mxu0
  %v3344 = vadd.f32 %v3267, %v3343
  %v3345 = vpop.f32.mrb[0].mxu0
  %3346 = vdwg.mxu0
  %3347 = vmatprep.subr.mxu0 0.0
  %v3348 = vand.u32 %v26, 4294901760
  %v3349 = vsub.f32 %v26, %v3348
  %v3350 = vand.u32 %v3349, 4294901760
  %3351 = vmatpush1.msra.mxu0 %v3350
  %3352 = vmatprep.subr.mxu0 0.0
  %v3353 = vand.u32 %v27, 4294901760
  %v3354 = vsub.f32 %v27, %v3353
  %v3355 = vand.u32 %v3354, 4294901760
  %3356 = vmatpush1.msra.mxu0 %v3355
  %3357 = vmatprep.subr.mxu0 0.0
  %v3358 = vand.u32 %v28, 4294901760
  %v3359 = vsub.f32 %v28, %v3358
  %v3360 = vand.u32 %v3359, 4294901760
  %3361 = vmatpush1.msra.mxu0 %v3360
  %3362 = vmatprep.subr.mxu0 0.0
  %v3363 = vand.u32 %v29, 4294901760
  %v3364 = vsub.f32 %v29, %v3363
  %v3365 = vand.u32 %v3364, 4294901760
  %3366 = vmatpush1.msra.mxu0 %v3365
  %3367 = vmatprep.subr.mxu0 0.0
  %3368 = vmatpush1.msra.mxu0 0.0
  %3369 = vmatprep.subr.mxu0 0.0
  %3370 = vmatpush1.msra.mxu0 0.0
  %3371 = vmatprep.subr.mxu0 0.0
  %3372 = vmatpush1.msra.mxu0 0.0
  %3373 = vmatprep.subr.mxu0 0.0
  %3374 = vmatpush1.msra.mxu0 0.0
  %3375 = vmatprep.subr.mxu0 0.0
  %3376 = vmatpush1.msra.mxu0 0.0
  %3377 = vmatprep.subr.mxu0 0.0
  %3378 = vmatpush1.msra.mxu0 0.0
  %3379 = vmatprep.subr.mxu0 0.0
  %3380 = vmatpush1.msra.mxu0 0.0
  %3381 = vmatprep.subr.mxu0 0.0
  %3382 = vmatpush1.msra.mxu0 0.0
  %3383 = vmatprep.subr.mxu0 0.0
  %3384 = vmatpush1.msra.mxu0 0.0
  %3385 = vmatprep.subr.mxu0 0.0
  %3386 = vmatpush1.msra.mxu0 0.0
  %3387 = vmatprep.subr.mxu0 0.0
  %3388 = vmatpush1.msra.mxu0 0.0
  %3389 = vmatprep.subr.mxu0 0.0
  %3390 = vmatpush1.msra.mxu0 0.0
  %3391 = vmatprep.subr.mxu0 0.0
  %3392 = vmatpush1.msra.mxu0 0.0
  %3393 = vmatprep.subr.mxu0 0.0
  %3394 = vmatpush1.msra.mxu0 0.0
  %3395 = vmatprep.subr.mxu0 0.0
  %3396 = vmatpush1.msra.mxu0 0.0
  %3397 = vmatprep.subr.mxu0 0.0
  %3398 = vmatpush1.msra.mxu0 0.0
  %3399 = vmatprep.subr.mxu0 0.0
  %3400 = vmatpush1.msra.mxu0 0.0
  %3401 = vmatprep.subr.mxu0 0.0
  %3402 = vmatpush1.msra.mxu0 0.0
  %3403 = vmatprep.subr.mxu0 0.0
  %3404 = vmatpush1.msra.mxu0 0.0
  %3405 = vmatprep.subr.mxu0 0.0
  %3406 = vmatpush1.msra.mxu0 0.0
  %3407 = vmatprep.subr.mxu0 0.0
  %3408 = vmatpush1.msra.mxu0 0.0
  %3409 = vmatprep.subr.mxu0 0.0
  %3410 = vmatpush1.msra.mxu0 0.0
  %3411 = vmatprep.subr.mxu0 0.0
  %3412 = vmatpush1.msra.mxu0 0.0
  %3413 = vmatprep.subr.mxu0 0.0
  %3414 = vmatpush1.msra.mxu0 0.0
  %3415 = vmatprep.subr.mxu0 0.0
  %3416 = vmatpush1.msra.mxu0 0.0
  %3417 = vmatprep.subr.mxu0 0.0
  %3418 = vmatpush1.msra.mxu0 0.0
  %3419 = vmatprep.subr.mxu0 0.0
  %3420 = vmatpush1.msra.mxu0 0.0
  %3421 = vmatprep.subr.mxu0 0.0
  %3422 = vmatpush1.msra.mxu0 0.0
  %3423 = vmatprep.mubr.f32.mxu0 0.0
  %v3424 = vand.u32 %v3018, 4294901760
  %3425 = vmatmul.mubr.f32.gmra.mrb[0].mxu0 %v3424
  %v3426 = vpop.f32.mrb[0].mxu0
  %v3427 = vadd.f32 %v3344, %v3426
  %v3428 = vpop.f32.mrb[0].mxu0
  %3429 = vdwg.mxu0
  %3430 = vmatprep.subr.mxu0 0.0
  %v3431 = vand.u32 %v26, 4294901760
  %3432 = vmatpush1.msra.mxu0 %v3431
  %3433 = vmatprep.subr.mxu0 0.0
  %v3434 = vand.u32 %v27, 4294901760
  %3435 = vmatpush1.msra.mxu0 %v3434
  %3436 = vmatprep.subr.mxu0 0.0
  %v3437 = vand.u32 %v28, 4294901760
  %3438 = vmatpush1.msra.mxu0 %v3437
  %3439 = vmatprep.subr.mxu0 0.0
  %v3440 = vand.u32 %v29, 4294901760
  %3441 = vmatpush1.msra.mxu0 %v3440
  %3442 = vmatprep.subr.mxu0 0.0
  %3443 = vmatpush1.msra.mxu0 0.0
  %3444 = vmatprep.subr.mxu0 0.0
  %3445 = vmatpush1.msra.mxu0 0.0
  %3446 = vmatprep.subr.mxu0 0.0
  %3447 = vmatpush1.msra.mxu0 0.0
  %3448 = vmatprep.subr.mxu0 0.0
  %3449 = vmatpush1.msra.mxu0 0.0
  %3450 = vmatprep.subr.mxu0 0.0
  %3451 = vmatpush1.msra.mxu0 0.0
  %3452 = vmatprep.subr.mxu0 0.0
  %3453 = vmatpush1.msra.mxu0 0.0
  %3454 = vmatprep.subr.mxu0 0.0
  %3455 = vmatpush1.msra.mxu0 0.0
  %3456 = vmatprep.subr.mxu0 0.0
  %3457 = vmatpush1.msra.mxu0 0.0
  %3458 = vmatprep.subr.mxu0 0.0
  %3459 = vmatpush1.msra.mxu0 0.0
  %3460 = vmatprep.subr.mxu0 0.0
  %3461 = vmatpush1.msra.mxu0 0.0
  %3462 = vmatprep.subr.mxu0 0.0
  %3463 = vmatpush1.msra.mxu0 0.0
  %3464 = vmatprep.subr.mxu0 0.0
  %3465 = vmatpush1.msra.mxu0 0.0
  %3466 = vmatprep.subr.mxu0 0.0
  %3467 = vmatpush1.msra.mxu0 0.0
  %3468 = vmatprep.subr.mxu0 0.0
  %3469 = vmatpush1.msra.mxu0 0.0
  %3470 = vmatprep.subr.mxu0 0.0
  %3471 = vmatpush1.msra.mxu0 0.0
  %3472 = vmatprep.subr.mxu0 0.0
  %3473 = vmatpush1.msra.mxu0 0.0
  %3474 = vmatprep.subr.mxu0 0.0
  %3475 = vmatpush1.msra.mxu0 0.0
  %3476 = vmatprep.subr.mxu0 0.0
  %3477 = vmatpush1.msra.mxu0 0.0
  %3478 = vmatprep.subr.mxu0 0.0
  %3479 = vmatpush1.msra.mxu0 0.0
  %3480 = vmatprep.subr.mxu0 0.0
  %3481 = vmatpush1.msra.mxu0 0.0
  %3482 = vmatprep.subr.mxu0 0.0
  %3483 = vmatpush1.msra.mxu0 0.0
  %3484 = vmatprep.subr.mxu0 0.0
  %3485 = vmatpush1.msra.mxu0 0.0
  %3486 = vmatprep.subr.mxu0 0.0
  %3487 = vmatpush1.msra.mxu0 0.0
  %3488 = vmatprep.subr.mxu0 0.0
  %3489 = vmatpush1.msra.mxu0 0.0
  %3490 = vmatprep.subr.mxu0 0.0
  %3491 = vmatpush1.msra.mxu0 0.0
  %3492 = vmatprep.subr.mxu0 0.0
  %3493 = vmatpush1.msra.mxu0 0.0
  %3494 = vmatprep.subr.mxu0 0.0
  %3495 = vmatpush1.msra.mxu0 0.0
  %3496 = vmatprep.subr.mxu0 0.0
  %3497 = vmatpush1.msra.mxu0 0.0
  %3498 = vmatprep.mubr.f32.mxu0 0.0
  %v3499 = vand.u32 %v3018, 4294901760
  %3500 = vmatmul.mubr.f32.gmra.mrb[0].mxu0 %v3499
  %v3501 = vpop.f32.mrb[0].mxu0
  %v3502 = vadd.f32 %v3427, %v3501
  %v3503 = vpop.f32.mrb[0].mxu0
  %3504 = vdwg.mxu0
  %v3506 = vrot.slane %v3502, 3
  %v3508 = vadd.f32 %v540, %v3506
  %v3509 = vtanh.pop %v3508
  %v3511 = vrot.slane %v3509, 5
  %v3512 = vsel %vm550, %v3511, 0
  %3514 = vmatprep.subr.mxu0 0.0
  %v3515 = vand.u32 %v26, 4294901760
  %3516 = vmatpush1.msra.mxu0 %v3515
  %3517 = vmatprep.subr.mxu0 0.0
  %v3518 = vand.u32 %v27, 4294901760
  %3519 = vmatpush1.msra.mxu0 %v3518
  %3520 = vmatprep.subr.mxu0 0.0
  %v3521 = vand.u32 %v28, 4294901760
  %3522 = vmatpush1.msra.mxu0 %v3521
  %3523 = vmatprep.subr.mxu0 0.0
  %v3524 = vand.u32 %v29, 4294901760
  %3525 = vmatpush1.msra.mxu0 %v3524
  %3526 = vmatprep.subr.mxu0 0.0
  %3527 = vmatpush1.msra.mxu0 0.0
  %3528 = vmatprep.subr.mxu0 0.0
  %3529 = vmatpush1.msra.mxu0 0.0
  %3530 = vmatprep.subr.mxu0 0.0
  %3531 = vmatpush1.msra.mxu0 0.0
  %3532 = vmatprep.subr.mxu0 0.0
  %3533 = vmatpush1.msra.mxu0 0.0
  %3534 = vmatprep.subr.mxu0 0.0
  %3535 = vmatpush1.msra.mxu0 0.0
  %3536 = vmatprep.subr.mxu0 0.0
  %3537 = vmatpush1.msra.mxu0 0.0
  %3538 = vmatprep.subr.mxu0 0.0
  %3539 = vmatpush1.msra.mxu0 0.0
  %3540 = vmatprep.subr.mxu0 0.0
  %3541 = vmatpush1.msra.mxu0 0.0
  %3542 = vmatprep.subr.mxu0 0.0
  %3543 = vmatpush1.msra.mxu0 0.0
  %3544 = vmatprep.subr.mxu0 0.0
  %3545 = vmatpush1.msra.mxu0 0.0
  %3546 = vmatprep.subr.mxu0 0.0
  %3547 = vmatpush1.msra.mxu0 0.0
  %3548 = vmatprep.subr.mxu0 0.0
  %3549 = vmatpush1.msra.mxu0 0.0
  %3550 = vmatprep.subr.mxu0 0.0
  %3551 = vmatpush1.msra.mxu0 0.0
  %3552 = vmatprep.subr.mxu0 0.0
  %3553 = vmatpush1.msra.mxu0 0.0
  %3554 = vmatprep.subr.mxu0 0.0
  %3555 = vmatpush1.msra.mxu0 0.0
  %3556 = vmatprep.subr.mxu0 0.0
  %3557 = vmatpush1.msra.mxu0 0.0
  %3558 = vmatprep.subr.mxu0 0.0
  %3559 = vmatpush1.msra.mxu0 0.0
  %3560 = vmatprep.subr.mxu0 0.0
  %3561 = vmatpush1.msra.mxu0 0.0
  %3562 = vmatprep.subr.mxu0 0.0
  %3563 = vmatpush1.msra.mxu0 0.0
  %3564 = vmatprep.subr.mxu0 0.0
  %3565 = vmatpush1.msra.mxu0 0.0
  %3566 = vmatprep.subr.mxu0 0.0
  %3567 = vmatpush1.msra.mxu0 0.0
  %3568 = vmatprep.subr.mxu0 0.0
  %3569 = vmatpush1.msra.mxu0 0.0
  %3570 = vmatprep.subr.mxu0 0.0
  %3571 = vmatpush1.msra.mxu0 0.0
  %3572 = vmatprep.subr.mxu0 0.0
  %3573 = vmatpush1.msra.mxu0 0.0
  %3574 = vmatprep.subr.mxu0 0.0
  %3575 = vmatpush1.msra.mxu0 0.0
  %3576 = vmatprep.subr.mxu0 0.0
  %3577 = vmatpush1.msra.mxu0 0.0
  %3578 = vmatprep.subr.mxu0 0.0
  %3579 = vmatpush1.msra.mxu0 0.0
  %3580 = vmatprep.subr.mxu0 0.0
  %3581 = vmatpush1.msra.mxu0 0.0
  %3582 = vmatprep.mubr.f32.mxu0 0.0
  %v3583 = vand.u32 %v3512, 4294901760
  %v3584 = vsub.f32 %v3512, %v3583
  %v3585 = vand.u32 %v3584, 4294901760
  %v3586 = vsub.f32 %v3584, %v3585
  %v3587 = vand.u32 %v3586, 4294901760
  %3588 = vmatmul.mubr.f32.gmra.mrb[0].mxu0 %v3587
  %v3589 = vpop.f32.mrb[0].mxu0
  %v3590 = vadd.f32 0.0, %v3589
  %v3591 = vpop.f32.mrb[0].mxu0
  %3592 = vdwg.mxu0
  %3593 = vmatprep.subr.mxu0 0.0
  %v3594 = vand.u32 %v26, 4294901760
  %v3595 = vsub.f32 %v26, %v3594
  %v3596 = vand.u32 %v3595, 4294901760
  %v3597 = vsub.f32 %v3595, %v3596
  %v3598 = vand.u32 %v3597, 4294901760
  %3599 = vmatpush1.msra.mxu0 %v3598
  %3600 = vmatprep.subr.mxu0 0.0
  %v3601 = vand.u32 %v27, 4294901760
  %v3602 = vsub.f32 %v27, %v3601
  %v3603 = vand.u32 %v3602, 4294901760
  %v3604 = vsub.f32 %v3602, %v3603
  %v3605 = vand.u32 %v3604, 4294901760
  %3606 = vmatpush1.msra.mxu0 %v3605
  %3607 = vmatprep.subr.mxu0 0.0
  %v3608 = vand.u32 %v28, 4294901760
  %v3609 = vsub.f32 %v28, %v3608
  %v3610 = vand.u32 %v3609, 4294901760
  %v3611 = vsub.f32 %v3609, %v3610
  %v3612 = vand.u32 %v3611, 4294901760
  %3613 = vmatpush1.msra.mxu0 %v3612
  %3614 = vmatprep.subr.mxu0 0.0
  %v3615 = vand.u32 %v29, 4294901760
  %v3616 = vsub.f32 %v29, %v3615
  %v3617 = vand.u32 %v3616, 4294901760
  %v3618 = vsub.f32 %v3616, %v3617
  %v3619 = vand.u32 %v3618, 4294901760
  %3620 = vmatpush1.msra.mxu0 %v3619
  %3621 = vmatprep.subr.mxu0 0.0
  %3622 = vmatpush1.msra.mxu0 0.0
  %3623 = vmatprep.subr.mxu0 0.0
  %3624 = vmatpush1.msra.mxu0 0.0
  %3625 = vmatprep.subr.mxu0 0.0
  %3626 = vmatpush1.msra.mxu0 0.0
  %3627 = vmatprep.subr.mxu0 0.0
  %3628 = vmatpush1.msra.mxu0 0.0
  %3629 = vmatprep.subr.mxu0 0.0
  %3630 = vmatpush1.msra.mxu0 0.0
  %3631 = vmatprep.subr.mxu0 0.0
  %3632 = vmatpush1.msra.mxu0 0.0
  %3633 = vmatprep.subr.mxu0 0.0
  %3634 = vmatpush1.msra.mxu0 0.0
  %3635 = vmatprep.subr.mxu0 0.0
  %3636 = vmatpush1.msra.mxu0 0.0
  %3637 = vmatprep.subr.mxu0 0.0
  %3638 = vmatpush1.msra.mxu0 0.0
  %3639 = vmatprep.subr.mxu0 0.0
  %3640 = vmatpush1.msra.mxu0 0.0
  %3641 = vmatprep.subr.mxu0 0.0
  %3642 = vmatpush1.msra.mxu0 0.0
  %3643 = vmatprep.subr.mxu0 0.0
  %3644 = vmatpush1.msra.mxu0 0.0
  %3645 = vmatprep.subr.mxu0 0.0
  %3646 = vmatpush1.msra.mxu0 0.0
  %3647 = vmatprep.subr.mxu0 0.0
  %3648 = vmatpush1.msra.mxu0 0.0
  %3649 = vmatprep.subr.mxu0 0.0
  %3650 = vmatpush1.msra.mxu0 0.0
  %3651 = vmatprep.subr.mxu0 0.0
  %3652 = vmatpush1.msra.mxu0 0.0
  %3653 = vmatprep.subr.mxu0 0.0
  %3654 = vmatpush1.msra.mxu0 0.0
  %3655 = vmatprep.subr.mxu0 0.0
  %3656 = vmatpush1.msra.mxu0 0.0
  %3657 = vmatprep.subr.mxu0 0.0
  %3658 = vmatpush1.msra.mxu0 0.0
  %3659 = vmatprep.subr.mxu0 0.0
  %3660 = vmatpush1.msra.mxu0 0.0
  %3661 = vmatprep.subr.mxu0 0.0
  %3662 = vmatpush1.msra.mxu0 0.0
  %3663 = vmatprep.subr.mxu0 0.0
  %3664 = vmatpush1.msra.mxu0 0.0
  %3665 = vmatprep.subr.mxu0 0.0
  %3666 = vmatpush1.msra.mxu0 0.0
  %3667 = vmatprep.subr.mxu0 0.0
  %3668 = vmatpush1.msra.mxu0 0.0
  %3669 = vmatprep.subr.mxu0 0.0
  %3670 = vmatpush1.msra.mxu0 0.0
  %3671 = vmatprep.subr.mxu0 0.0
  %3672 = vmatpush1.msra.mxu0 0.0
  %3673 = vmatprep.subr.mxu0 0.0
  %3674 = vmatpush1.msra.mxu0 0.0
  %3675 = vmatprep.subr.mxu0 0.0
  %3676 = vmatpush1.msra.mxu0 0.0
  %3677 = vmatprep.mubr.f32.mxu0 0.0
  %v3678 = vand.u32 %v3512, 4294901760
  %3679 = vmatmul.mubr.f32.gmra.mrb[0].mxu0 %v3678
  %v3680 = vpop.f32.mrb[0].mxu0
  %v3681 = vadd.f32 %v3590, %v3680
  %v3682 = vpop.f32.mrb[0].mxu0
  %3683 = vdwg.mxu0
  %3684 = vmatprep.subr.mxu0 0.0
  %v3685 = vand.u32 %v26, 4294901760
  %v3686 = vsub.f32 %v26, %v3685
  %3687 = vmatpush1.msra.mxu0 %v3686
  %3688 = vmatprep.subr.mxu0 0.0
  %v3689 = vand.u32 %v27, 4294901760
  %v3690 = vsub.f32 %v27, %v3689
  %3691 = vmatpush1.msra.mxu0 %v3690
  %3692 = vmatprep.subr.mxu0 0.0
  %v3693 = vand.u32 %v28, 4294901760
  %v3694 = vsub.f32 %v28, %v3693
  %3695 = vmatpush1.msra.mxu0 %v3694
  %3696 = vmatprep.subr.mxu0 0.0
  %v3697 = vand.u32 %v29, 4294901760
  %v3698 = vsub.f32 %v29, %v3697
  %3699 = vmatpush1.msra.mxu0 %v3698
  %3700 = vmatprep.subr.mxu0 0.0
  %3701 = vmatpush1.msra.mxu0 0.0
  %3702 = vmatprep.subr.mxu0 0.0
  %3703 = vmatpush1.msra.mxu0 0.0
  %3704 = vmatprep.subr.mxu0 0.0
  %3705 = vmatpush1.msra.mxu0 0.0
  %3706 = vmatprep.subr.mxu0 0.0
  %3707 = vmatpush1.msra.mxu0 0.0
  %3708 = vmatprep.subr.mxu0 0.0
  %3709 = vmatpush1.msra.mxu0 0.0
  %3710 = vmatprep.subr.mxu0 0.0
  %3711 = vmatpush1.msra.mxu0 0.0
  %3712 = vmatprep.subr.mxu0 0.0
  %3713 = vmatpush1.msra.mxu0 0.0
  %3714 = vmatprep.subr.mxu0 0.0
  %3715 = vmatpush1.msra.mxu0 0.0
  %3716 = vmatprep.subr.mxu0 0.0
  %3717 = vmatpush1.msra.mxu0 0.0
  %3718 = vmatprep.subr.mxu0 0.0
  %3719 = vmatpush1.msra.mxu0 0.0
  %3720 = vmatprep.subr.mxu0 0.0
  %3721 = vmatpush1.msra.mxu0 0.0
  %3722 = vmatprep.subr.mxu0 0.0
  %3723 = vmatpush1.msra.mxu0 0.0
  %3724 = vmatprep.subr.mxu0 0.0
  %3725 = vmatpush1.msra.mxu0 0.0
  %3726 = vmatprep.subr.mxu0 0.0
  %3727 = vmatpush1.msra.mxu0 0.0
  %3728 = vmatprep.subr.mxu0 0.0
  %3729 = vmatpush1.msra.mxu0 0.0
  %3730 = vmatprep.subr.mxu0 0.0
  %3731 = vmatpush1.msra.mxu0 0.0
  %3732 = vmatprep.subr.mxu0 0.0
  %3733 = vmatpush1.msra.mxu0 0.0
  %3734 = vmatprep.subr.mxu0 0.0
  %3735 = vmatpush1.msra.mxu0 0.0
  %3736 = vmatprep.subr.mxu0 0.0
  %3737 = vmatpush1.msra.mxu0 0.0
  %3738 = vmatprep.subr.mxu0 0.0
  %3739 = vmatpush1.msra.mxu0 0.0
  %3740 = vmatprep.subr.mxu0 0.0
  %3741 = vmatpush1.msra.mxu0 0.0
  %3742 = vmatprep.subr.mxu0 0.0
  %3743 = vmatpush1.msra.mxu0 0.0
  %3744 = vmatprep.subr.mxu0 0.0
  %3745 = vmatpush1.msra.mxu0 0.0
  %3746 = vmatprep.subr.mxu0 0.0
  %3747 = vmatpush1.msra.mxu0 0.0
  %3748 = vmatprep.subr.mxu0 0.0
  %3749 = vmatpush1.msra.mxu0 0.0
  %3750 = vmatprep.subr.mxu0 0.0
  %3751 = vmatpush1.msra.mxu0 0.0
  %3752 = vmatprep.subr.mxu0 0.0
  %3753 = vmatpush1.msra.mxu0 0.0
  %3754 = vmatprep.subr.mxu0 0.0
  %3755 = vmatpush1.msra.mxu0 0.0
  %3756 = vmatprep.mubr.f32.mxu0 0.0
  %v3757 = vand.u32 %v3512, 4294901760
  %v3758 = vsub.f32 %v3512, %v3757
  %3759 = vmatmul.mubr.f32.gmra.mrb[0].mxu0 %v3758
  %v3760 = vpop.f32.mrb[0].mxu0
  %v3761 = vadd.f32 %v3681, %v3760
  %v3762 = vpop.f32.mrb[0].mxu0
  %3763 = vdwg.mxu0
  %3764 = vmatprep.subr.mxu0 0.0
  %v3765 = vand.u32 %v26, 4294901760
  %3766 = vmatpush1.msra.mxu0 %v3765
  %3767 = vmatprep.subr.mxu0 0.0
  %v3768 = vand.u32 %v27, 4294901760
  %3769 = vmatpush1.msra.mxu0 %v3768
  %3770 = vmatprep.subr.mxu0 0.0
  %v3771 = vand.u32 %v28, 4294901760
  %3772 = vmatpush1.msra.mxu0 %v3771
  %3773 = vmatprep.subr.mxu0 0.0
  %v3774 = vand.u32 %v29, 4294901760
  %3775 = vmatpush1.msra.mxu0 %v3774
  %3776 = vmatprep.subr.mxu0 0.0
  %3777 = vmatpush1.msra.mxu0 0.0
  %3778 = vmatprep.subr.mxu0 0.0
  %3779 = vmatpush1.msra.mxu0 0.0
  %3780 = vmatprep.subr.mxu0 0.0
  %3781 = vmatpush1.msra.mxu0 0.0
  %3782 = vmatprep.subr.mxu0 0.0
  %3783 = vmatpush1.msra.mxu0 0.0
  %3784 = vmatprep.subr.mxu0 0.0
  %3785 = vmatpush1.msra.mxu0 0.0
  %3786 = vmatprep.subr.mxu0 0.0
  %3787 = vmatpush1.msra.mxu0 0.0
  %3788 = vmatprep.subr.mxu0 0.0
  %3789 = vmatpush1.msra.mxu0 0.0
  %3790 = vmatprep.subr.mxu0 0.0
  %3791 = vmatpush1.msra.mxu0 0.0
  %3792 = vmatprep.subr.mxu0 0.0
  %3793 = vmatpush1.msra.mxu0 0.0
  %3794 = vmatprep.subr.mxu0 0.0
  %3795 = vmatpush1.msra.mxu0 0.0
  %3796 = vmatprep.subr.mxu0 0.0
  %3797 = vmatpush1.msra.mxu0 0.0
  %3798 = vmatprep.subr.mxu0 0.0
  %3799 = vmatpush1.msra.mxu0 0.0
  %3800 = vmatprep.subr.mxu0 0.0
  %3801 = vmatpush1.msra.mxu0 0.0
  %3802 = vmatprep.subr.mxu0 0.0
  %3803 = vmatpush1.msra.mxu0 0.0
  %3804 = vmatprep.subr.mxu0 0.0
  %3805 = vmatpush1.msra.mxu0 0.0
  %3806 = vmatprep.subr.mxu0 0.0
  %3807 = vmatpush1.msra.mxu0 0.0
  %3808 = vmatprep.subr.mxu0 0.0
  %3809 = vmatpush1.msra.mxu0 0.0
  %3810 = vmatprep.subr.mxu0 0.0
  %3811 = vmatpush1.msra.mxu0 0.0
  %3812 = vmatprep.subr.mxu0 0.0
  %3813 = vmatpush1.msra.mxu0 0.0
  %3814 = vmatprep.subr.mxu0 0.0
  %3815 = vmatpush1.msra.mxu0 0.0
  %3816 = vmatprep.subr.mxu0 0.0
  %3817 = vmatpush1.msra.mxu0 0.0
  %3818 = vmatprep.subr.mxu0 0.0
  %3819 = vmatpush1.msra.mxu0 0.0
  %3820 = vmatprep.subr.mxu0 0.0
  %3821 = vmatpush1.msra.mxu0 0.0
  %3822 = vmatprep.subr.mxu0 0.0
  %3823 = vmatpush1.msra.mxu0 0.0
  %3824 = vmatprep.subr.mxu0 0.0
  %3825 = vmatpush1.msra.mxu0 0.0
  %3826 = vmatprep.subr.mxu0 0.0
  %3827 = vmatpush1.msra.mxu0 0.0
  %3828 = vmatprep.subr.mxu0 0.0
  %3829 = vmatpush1.msra.mxu0 0.0
  %3830 = vmatprep.subr.mxu0 0.0
  %3831 = vmatpush1.msra.mxu0 0.0
  %3832 = vmatprep.mubr.f32.mxu0 0.0
  %v3833 = vand.u32 %v3512, 4294901760
  %v3834 = vsub.f32 %v3512, %v3833
  %v3835 = vand.u32 %v3834, 4294901760
  %3836 = vmatmul.mubr.f32.gmra.mrb[0].mxu0 %v3835
  %v3837 = vpop.f32.mrb[0].mxu0
  %v3838 = vadd.f32 %v3761, %v3837
  %v3839 = vpop.f32.mrb[0].mxu0
  %3840 = vdwg.mxu0
  %3841 = vmatprep.subr.mxu0 0.0
  %v3842 = vand.u32 %v26, 4294901760
  %v3843 = vsub.f32 %v26, %v3842
  %v3844 = vand.u32 %v3843, 4294901760
  %3845 = vmatpush1.msra.mxu0 %v3844
  %3846 = vmatprep.subr.mxu0 0.0
  %v3847 = vand.u32 %v27, 4294901760
  %v3848 = vsub.f32 %v27, %v3847
  %v3849 = vand.u32 %v3848, 4294901760
  %3850 = vmatpush1.msra.mxu0 %v3849
  %3851 = vmatprep.subr.mxu0 0.0
  %v3852 = vand.u32 %v28, 4294901760
  %v3853 = vsub.f32 %v28, %v3852
  %v3854 = vand.u32 %v3853, 4294901760
  %3855 = vmatpush1.msra.mxu0 %v3854
  %3856 = vmatprep.subr.mxu0 0.0
  %v3857 = vand.u32 %v29, 4294901760
  %v3858 = vsub.f32 %v29, %v3857
  %v3859 = vand.u32 %v3858, 4294901760
  %3860 = vmatpush1.msra.mxu0 %v3859
  %3861 = vmatprep.subr.mxu0 0.0
  %3862 = vmatpush1.msra.mxu0 0.0
  %3863 = vmatprep.subr.mxu0 0.0
  %3864 = vmatpush1.msra.mxu0 0.0
  %3865 = vmatprep.subr.mxu0 0.0
  %3866 = vmatpush1.msra.mxu0 0.0
  %3867 = vmatprep.subr.mxu0 0.0
  %3868 = vmatpush1.msra.mxu0 0.0
  %3869 = vmatprep.subr.mxu0 0.0
  %3870 = vmatpush1.msra.mxu0 0.0
  %3871 = vmatprep.subr.mxu0 0.0
  %3872 = vmatpush1.msra.mxu0 0.0
  %3873 = vmatprep.subr.mxu0 0.0
  %3874 = vmatpush1.msra.mxu0 0.0
  %3875 = vmatprep.subr.mxu0 0.0
  %3876 = vmatpush1.msra.mxu0 0.0
  %3877 = vmatprep.subr.mxu0 0.0
  %3878 = vmatpush1.msra.mxu0 0.0
  %3879 = vmatprep.subr.mxu0 0.0
  %3880 = vmatpush1.msra.mxu0 0.0
  %3881 = vmatprep.subr.mxu0 0.0
  %3882 = vmatpush1.msra.mxu0 0.0
  %3883 = vmatprep.subr.mxu0 0.0
  %3884 = vmatpush1.msra.mxu0 0.0
  %3885 = vmatprep.subr.mxu0 0.0
  %3886 = vmatpush1.msra.mxu0 0.0
  %3887 = vmatprep.subr.mxu0 0.0
  %3888 = vmatpush1.msra.mxu0 0.0
  %3889 = vmatprep.subr.mxu0 0.0
  %3890 = vmatpush1.msra.mxu0 0.0
  %3891 = vmatprep.subr.mxu0 0.0
  %3892 = vmatpush1.msra.mxu0 0.0
  %3893 = vmatprep.subr.mxu0 0.0
  %3894 = vmatpush1.msra.mxu0 0.0
  %3895 = vmatprep.subr.mxu0 0.0
  %3896 = vmatpush1.msra.mxu0 0.0
  %3897 = vmatprep.subr.mxu0 0.0
  %3898 = vmatpush1.msra.mxu0 0.0
  %3899 = vmatprep.subr.mxu0 0.0
  %3900 = vmatpush1.msra.mxu0 0.0
  %3901 = vmatprep.subr.mxu0 0.0
  %3902 = vmatpush1.msra.mxu0 0.0
  %3903 = vmatprep.subr.mxu0 0.0
  %3904 = vmatpush1.msra.mxu0 0.0
  %3905 = vmatprep.subr.mxu0 0.0
  %3906 = vmatpush1.msra.mxu0 0.0
  %3907 = vmatprep.subr.mxu0 0.0
  %3908 = vmatpush1.msra.mxu0 0.0
  %3909 = vmatprep.subr.mxu0 0.0
  %3910 = vmatpush1.msra.mxu0 0.0
  %3911 = vmatprep.subr.mxu0 0.0
  %3912 = vmatpush1.msra.mxu0 0.0
  %3913 = vmatprep.subr.mxu0 0.0
  %3914 = vmatpush1.msra.mxu0 0.0
  %3915 = vmatprep.subr.mxu0 0.0
  %3916 = vmatpush1.msra.mxu0 0.0
  %3917 = vmatprep.mubr.f32.mxu0 0.0
  %v3918 = vand.u32 %v3512, 4294901760
  %3919 = vmatmul.mubr.f32.gmra.mrb[0].mxu0 %v3918
  %v3920 = vpop.f32.mrb[0].mxu0
  %v3921 = vadd.f32 %v3838, %v3920
  %v3922 = vpop.f32.mrb[0].mxu0
  %3923 = vdwg.mxu0
  %3924 = vmatprep.subr.mxu0 0.0
  %v3925 = vand.u32 %v26, 4294901760
  %3926 = vmatpush1.msra.mxu0 %v3925
  %3927 = vmatprep.subr.mxu0 0.0
  %v3928 = vand.u32 %v27, 4294901760
  %3929 = vmatpush1.msra.mxu0 %v3928
  %3930 = vmatprep.subr.mxu0 0.0
  %v3931 = vand.u32 %v28, 4294901760
  %3932 = vmatpush1.msra.mxu0 %v3931
  %3933 = vmatprep.subr.mxu0 0.0
  %v3934 = vand.u32 %v29, 4294901760
  %3935 = vmatpush1.msra.mxu0 %v3934
  %3936 = vmatprep.subr.mxu0 0.0
  %3937 = vmatpush1.msra.mxu0 0.0
  %3938 = vmatprep.subr.mxu0 0.0
  %3939 = vmatpush1.msra.mxu0 0.0
  %3940 = vmatprep.subr.mxu0 0.0
  %3941 = vmatpush1.msra.mxu0 0.0
  %3942 = vmatprep.subr.mxu0 0.0
  %3943 = vmatpush1.msra.mxu0 0.0
  %3944 = vmatprep.subr.mxu0 0.0
  %3945 = vmatpush1.msra.mxu0 0.0
  %3946 = vmatprep.subr.mxu0 0.0
  %3947 = vmatpush1.msra.mxu0 0.0
  %3948 = vmatprep.subr.mxu0 0.0
  %3949 = vmatpush1.msra.mxu0 0.0
  %3950 = vmatprep.subr.mxu0 0.0
  %3951 = vmatpush1.msra.mxu0 0.0
  %3952 = vmatprep.subr.mxu0 0.0
  %3953 = vmatpush1.msra.mxu0 0.0
  %3954 = vmatprep.subr.mxu0 0.0
  %3955 = vmatpush1.msra.mxu0 0.0
  %3956 = vmatprep.subr.mxu0 0.0
  %3957 = vmatpush1.msra.mxu0 0.0
  %3958 = vmatprep.subr.mxu0 0.0
  %3959 = vmatpush1.msra.mxu0 0.0
  %3960 = vmatprep.subr.mxu0 0.0
  %3961 = vmatpush1.msra.mxu0 0.0
  %3962 = vmatprep.subr.mxu0 0.0
  %3963 = vmatpush1.msra.mxu0 0.0
  %3964 = vmatprep.subr.mxu0 0.0
  %3965 = vmatpush1.msra.mxu0 0.0
  %3966 = vmatprep.subr.mxu0 0.0
  %3967 = vmatpush1.msra.mxu0 0.0
  %3968 = vmatprep.subr.mxu0 0.0
  %3969 = vmatpush1.msra.mxu0 0.0
  %3970 = vmatprep.subr.mxu0 0.0
  %3971 = vmatpush1.msra.mxu0 0.0
  %3972 = vmatprep.subr.mxu0 0.0
  %3973 = vmatpush1.msra.mxu0 0.0
  %3974 = vmatprep.subr.mxu0 0.0
  %3975 = vmatpush1.msra.mxu0 0.0
  %3976 = vmatprep.subr.mxu0 0.0
  %3977 = vmatpush1.msra.mxu0 0.0
  %3978 = vmatprep.subr.mxu0 0.0
  %3979 = vmatpush1.msra.mxu0 0.0
  %3980 = vmatprep.subr.mxu0 0.0
  %3981 = vmatpush1.msra.mxu0 0.0
  %3982 = vmatprep.subr.mxu0 0.0
  %3983 = vmatpush1.msra.mxu0 0.0
  %3984 = vmatprep.subr.mxu0 0.0
  %3985 = vmatpush1.msra.mxu0 0.0
  %3986 = vmatprep.subr.mxu0 0.0
  %3987 = vmatpush1.msra.mxu0 0.0
  %3988 = vmatprep.subr.mxu0 0.0
  %3989 = vmatpush1.msra.mxu0 0.0
  %3990 = vmatprep.subr.mxu0 0.0
  %3991 = vmatpush1.msra.mxu0 0.0
  %3992 = vmatprep.mubr.f32.mxu0 0.0
  %v3993 = vand.u32 %v3512, 4294901760
  %3994 = vmatmul.mubr.f32.gmra.mrb[0].mxu0 %v3993
  %v3995 = vpop.f32.mrb[0].mxu0
  %v3996 = vadd.f32 %v3921, %v3995
  %v3997 = vpop.f32.mrb[0].mxu0
  %3998 = vdwg.mxu0
  %v4000 = vrot.slane %v3996, 2
  %v4002 = vadd.f32 %v540, %v4000
  %v4003 = vtanh.pop %v4002
  %v4005 = vrot.slane %v4003, 6
  %v4006 = vsel %vm550, %v4005, 0
  %4008 = vmatprep.subr.mxu0 0.0
  %v4009 = vand.u32 %v26, 4294901760
  %4010 = vmatpush1.msra.mxu0 %v4009
  %4011 = vmatprep.subr.mxu0 0.0
  %v4012 = vand.u32 %v27, 4294901760
  %4013 = vmatpush1.msra.mxu0 %v4012
  %4014 = vmatprep.subr.mxu0 0.0
  %v4015 = vand.u32 %v28, 4294901760
  %4016 = vmatpush1.msra.mxu0 %v4015
  %4017 = vmatprep.subr.mxu0 0.0
  %v4018 = vand.u32 %v29, 4294901760
  %4019 = vmatpush1.msra.mxu0 %v4018
  %4020 = vmatprep.subr.mxu0 0.0
  %4021 = vmatpush1.msra.mxu0 0.0
  %4022 = vmatprep.subr.mxu0 0.0
  %4023 = vmatpush1.msra.mxu0 0.0
  %4024 = vmatprep.subr.mxu0 0.0
  %4025 = vmatpush1.msra.mxu0 0.0
  %4026 = vmatprep.subr.mxu0 0.0
  %4027 = vmatpush1.msra.mxu0 0.0
  %4028 = vmatprep.subr.mxu0 0.0
  %4029 = vmatpush1.msra.mxu0 0.0
  %4030 = vmatprep.subr.mxu0 0.0
  %4031 = vmatpush1.msra.mxu0 0.0
  %4032 = vmatprep.subr.mxu0 0.0
  %4033 = vmatpush1.msra.mxu0 0.0
  %4034 = vmatprep.subr.mxu0 0.0
  %4035 = vmatpush1.msra.mxu0 0.0
  %4036 = vmatprep.subr.mxu0 0.0
  %4037 = vmatpush1.msra.mxu0 0.0
  %4038 = vmatprep.subr.mxu0 0.0
  %4039 = vmatpush1.msra.mxu0 0.0
  %4040 = vmatprep.subr.mxu0 0.0
  %4041 = vmatpush1.msra.mxu0 0.0
  %4042 = vmatprep.subr.mxu0 0.0
  %4043 = vmatpush1.msra.mxu0 0.0
  %4044 = vmatprep.subr.mxu0 0.0
  %4045 = vmatpush1.msra.mxu0 0.0
  %4046 = vmatprep.subr.mxu0 0.0
  %4047 = vmatpush1.msra.mxu0 0.0
  %4048 = vmatprep.subr.mxu0 0.0
  %4049 = vmatpush1.msra.mxu0 0.0
  %4050 = vmatprep.subr.mxu0 0.0
  %4051 = vmatpush1.msra.mxu0 0.0
  %4052 = vmatprep.subr.mxu0 0.0
  %4053 = vmatpush1.msra.mxu0 0.0
  %4054 = vmatprep.subr.mxu0 0.0
  %4055 = vmatpush1.msra.mxu0 0.0
  %4056 = vmatprep.subr.mxu0 0.0
  %4057 = vmatpush1.msra.mxu0 0.0
  %4058 = vmatprep.subr.mxu0 0.0
  %4059 = vmatpush1.msra.mxu0 0.0
  %4060 = vmatprep.subr.mxu0 0.0
  %4061 = vmatpush1.msra.mxu0 0.0
  %4062 = vmatprep.subr.mxu0 0.0
  %4063 = vmatpush1.msra.mxu0 0.0
  %4064 = vmatprep.subr.mxu0 0.0
  %4065 = vmatpush1.msra.mxu0 0.0
  %4066 = vmatprep.subr.mxu0 0.0
  %4067 = vmatpush1.msra.mxu0 0.0
  %4068 = vmatprep.subr.mxu0 0.0
  %4069 = vmatpush1.msra.mxu0 0.0
  %4070 = vmatprep.subr.mxu0 0.0
  %4071 = vmatpush1.msra.mxu0 0.0
  %4072 = vmatprep.subr.mxu0 0.0
  %4073 = vmatpush1.msra.mxu0 0.0
  %4074 = vmatprep.subr.mxu0 0.0
  %4075 = vmatpush1.msra.mxu0 0.0
  %4076 = vmatprep.mubr.f32.mxu0 0.0
  %v4077 = vand.u32 %v4006, 4294901760
  %v4078 = vsub.f32 %v4006, %v4077
  %v4079 = vand.u32 %v4078, 4294901760
  %v4080 = vsub.f32 %v4078, %v4079
  %v4081 = vand.u32 %v4080, 4294901760
  %4082 = vmatmul.mubr.f32.gmra.mrb[0].mxu0 %v4081
  %v4083 = vpop.f32.mrb[0].mxu0
  %v4084 = vadd.f32 0.0, %v4083
  %v4085 = vpop.f32.mrb[0].mxu0
  %4086 = vdwg.mxu0
  %4087 = vmatprep.subr.mxu0 0.0
  %v4088 = vand.u32 %v26, 4294901760
  %v4089 = vsub.f32 %v26, %v4088
  %v4090 = vand.u32 %v4089, 4294901760
  %v4091 = vsub.f32 %v4089, %v4090
  %v4092 = vand.u32 %v4091, 4294901760
  %4093 = vmatpush1.msra.mxu0 %v4092
  %4094 = vmatprep.subr.mxu0 0.0
  %v4095 = vand.u32 %v27, 4294901760
  %v4096 = vsub.f32 %v27, %v4095
  %v4097 = vand.u32 %v4096, 4294901760
  %v4098 = vsub.f32 %v4096, %v4097
  %v4099 = vand.u32 %v4098, 4294901760
  %4100 = vmatpush1.msra.mxu0 %v4099
  %4101 = vmatprep.subr.mxu0 0.0
  %v4102 = vand.u32 %v28, 4294901760
  %v4103 = vsub.f32 %v28, %v4102
  %v4104 = vand.u32 %v4103, 4294901760
  %v4105 = vsub.f32 %v4103, %v4104
  %v4106 = vand.u32 %v4105, 4294901760
  %4107 = vmatpush1.msra.mxu0 %v4106
  %4108 = vmatprep.subr.mxu0 0.0
  %v4109 = vand.u32 %v29, 4294901760
  %v4110 = vsub.f32 %v29, %v4109
  %v4111 = vand.u32 %v4110, 4294901760
  %v4112 = vsub.f32 %v4110, %v4111
  %v4113 = vand.u32 %v4112, 4294901760
  %4114 = vmatpush1.msra.mxu0 %v4113
  %4115 = vmatprep.subr.mxu0 0.0
  %4116 = vmatpush1.msra.mxu0 0.0
  %4117 = vmatprep.subr.mxu0 0.0
  %4118 = vmatpush1.msra.mxu0 0.0
  %4119 = vmatprep.subr.mxu0 0.0
  %4120 = vmatpush1.msra.mxu0 0.0
  %4121 = vmatprep.subr.mxu0 0.0
  %4122 = vmatpush1.msra.mxu0 0.0
  %4123 = vmatprep.subr.mxu0 0.0
  %4124 = vmatpush1.msra.mxu0 0.0
  %4125 = vmatprep.subr.mxu0 0.0
  %4126 = vmatpush1.msra.mxu0 0.0
  %4127 = vmatprep.subr.mxu0 0.0
  %4128 = vmatpush1.msra.mxu0 0.0
  %4129 = vmatprep.subr.mxu0 0.0
  %4130 = vmatpush1.msra.mxu0 0.0
  %4131 = vmatprep.subr.mxu0 0.0
  %4132 = vmatpush1.msra.mxu0 0.0
  %4133 = vmatprep.subr.mxu0 0.0
  %4134 = vmatpush1.msra.mxu0 0.0
  %4135 = vmatprep.subr.mxu0 0.0
  %4136 = vmatpush1.msra.mxu0 0.0
  %4137 = vmatprep.subr.mxu0 0.0
  %4138 = vmatpush1.msra.mxu0 0.0
  %4139 = vmatprep.subr.mxu0 0.0
  %4140 = vmatpush1.msra.mxu0 0.0
  %4141 = vmatprep.subr.mxu0 0.0
  %4142 = vmatpush1.msra.mxu0 0.0
  %4143 = vmatprep.subr.mxu0 0.0
  %4144 = vmatpush1.msra.mxu0 0.0
  %4145 = vmatprep.subr.mxu0 0.0
  %4146 = vmatpush1.msra.mxu0 0.0
  %4147 = vmatprep.subr.mxu0 0.0
  %4148 = vmatpush1.msra.mxu0 0.0
  %4149 = vmatprep.subr.mxu0 0.0
  %4150 = vmatpush1.msra.mxu0 0.0
  %4151 = vmatprep.subr.mxu0 0.0
  %4152 = vmatpush1.msra.mxu0 0.0
  %4153 = vmatprep.subr.mxu0 0.0
  %4154 = vmatpush1.msra.mxu0 0.0
  %4155 = vmatprep.subr.mxu0 0.0
  %4156 = vmatpush1.msra.mxu0 0.0
  %4157 = vmatprep.subr.mxu0 0.0
  %4158 = vmatpush1.msra.mxu0 0.0
  %4159 = vmatprep.subr.mxu0 0.0
  %4160 = vmatpush1.msra.mxu0 0.0
  %4161 = vmatprep.subr.mxu0 0.0
  %4162 = vmatpush1.msra.mxu0 0.0
  %4163 = vmatprep.subr.mxu0 0.0
  %4164 = vmatpush1.msra.mxu0 0.0
  %4165 = vmatprep.subr.mxu0 0.0
  %4166 = vmatpush1.msra.mxu0 0.0
  %4167 = vmatprep.subr.mxu0 0.0
  %4168 = vmatpush1.msra.mxu0 0.0
  %4169 = vmatprep.subr.mxu0 0.0
  %4170 = vmatpush1.msra.mxu0 0.0
  %4171 = vmatprep.mubr.f32.mxu0 0.0
  %v4172 = vand.u32 %v4006, 4294901760
  %4173 = vmatmul.mubr.f32.gmra.mrb[0].mxu0 %v4172
  %v4174 = vpop.f32.mrb[0].mxu0
  %v4175 = vadd.f32 %v4084, %v4174
  %v4176 = vpop.f32.mrb[0].mxu0
  %4177 = vdwg.mxu0
  %4178 = vmatprep.subr.mxu0 0.0
  %v4179 = vand.u32 %v26, 4294901760
  %v4180 = vsub.f32 %v26, %v4179
  %4181 = vmatpush1.msra.mxu0 %v4180
  %4182 = vmatprep.subr.mxu0 0.0
  %v4183 = vand.u32 %v27, 4294901760
  %v4184 = vsub.f32 %v27, %v4183
  %4185 = vmatpush1.msra.mxu0 %v4184
  %4186 = vmatprep.subr.mxu0 0.0
  %v4187 = vand.u32 %v28, 4294901760
  %v4188 = vsub.f32 %v28, %v4187
  %4189 = vmatpush1.msra.mxu0 %v4188
  %4190 = vmatprep.subr.mxu0 0.0
  %v4191 = vand.u32 %v29, 4294901760
  %v4192 = vsub.f32 %v29, %v4191
  %4193 = vmatpush1.msra.mxu0 %v4192
  %4194 = vmatprep.subr.mxu0 0.0
  %4195 = vmatpush1.msra.mxu0 0.0
  %4196 = vmatprep.subr.mxu0 0.0
  %4197 = vmatpush1.msra.mxu0 0.0
  %4198 = vmatprep.subr.mxu0 0.0
  %4199 = vmatpush1.msra.mxu0 0.0
  %4200 = vmatprep.subr.mxu0 0.0
  %4201 = vmatpush1.msra.mxu0 0.0
  %4202 = vmatprep.subr.mxu0 0.0
  %4203 = vmatpush1.msra.mxu0 0.0
  %4204 = vmatprep.subr.mxu0 0.0
  %4205 = vmatpush1.msra.mxu0 0.0
  %4206 = vmatprep.subr.mxu0 0.0
  %4207 = vmatpush1.msra.mxu0 0.0
  %4208 = vmatprep.subr.mxu0 0.0
  %4209 = vmatpush1.msra.mxu0 0.0
  %4210 = vmatprep.subr.mxu0 0.0
  %4211 = vmatpush1.msra.mxu0 0.0
  %4212 = vmatprep.subr.mxu0 0.0
  %4213 = vmatpush1.msra.mxu0 0.0
  %4214 = vmatprep.subr.mxu0 0.0
  %4215 = vmatpush1.msra.mxu0 0.0
  %4216 = vmatprep.subr.mxu0 0.0
  %4217 = vmatpush1.msra.mxu0 0.0
  %4218 = vmatprep.subr.mxu0 0.0
  %4219 = vmatpush1.msra.mxu0 0.0
  %4220 = vmatprep.subr.mxu0 0.0
  %4221 = vmatpush1.msra.mxu0 0.0
  %4222 = vmatprep.subr.mxu0 0.0
  %4223 = vmatpush1.msra.mxu0 0.0
  %4224 = vmatprep.subr.mxu0 0.0
  %4225 = vmatpush1.msra.mxu0 0.0
  %4226 = vmatprep.subr.mxu0 0.0
  %4227 = vmatpush1.msra.mxu0 0.0
  %4228 = vmatprep.subr.mxu0 0.0
  %4229 = vmatpush1.msra.mxu0 0.0
  %4230 = vmatprep.subr.mxu0 0.0
  %4231 = vmatpush1.msra.mxu0 0.0
  %4232 = vmatprep.subr.mxu0 0.0
  %4233 = vmatpush1.msra.mxu0 0.0
  %4234 = vmatprep.subr.mxu0 0.0
  %4235 = vmatpush1.msra.mxu0 0.0
  %4236 = vmatprep.subr.mxu0 0.0
  %4237 = vmatpush1.msra.mxu0 0.0
  %4238 = vmatprep.subr.mxu0 0.0
  %4239 = vmatpush1.msra.mxu0 0.0
  %4240 = vmatprep.subr.mxu0 0.0
  %4241 = vmatpush1.msra.mxu0 0.0
  %4242 = vmatprep.subr.mxu0 0.0
  %4243 = vmatpush1.msra.mxu0 0.0
  %4244 = vmatprep.subr.mxu0 0.0
  %4245 = vmatpush1.msra.mxu0 0.0
  %4246 = vmatprep.subr.mxu0 0.0
  %4247 = vmatpush1.msra.mxu0 0.0
  %4248 = vmatprep.subr.mxu0 0.0
  %4249 = vmatpush1.msra.mxu0 0.0
  %4250 = vmatprep.mubr.f32.mxu0 0.0
  %v4251 = vand.u32 %v4006, 4294901760
  %v4252 = vsub.f32 %v4006, %v4251
  %4253 = vmatmul.mubr.f32.gmra.mrb[0].mxu0 %v4252
  %v4254 = vpop.f32.mrb[0].mxu0
  %v4255 = vadd.f32 %v4175, %v4254
  %v4256 = vpop.f32.mrb[0].mxu0
  %4257 = vdwg.mxu0
  %4258 = vmatprep.subr.mxu0 0.0
  %v4259 = vand.u32 %v26, 4294901760
  %4260 = vmatpush1.msra.mxu0 %v4259
  %4261 = vmatprep.subr.mxu0 0.0
  %v4262 = vand.u32 %v27, 4294901760
  %4263 = vmatpush1.msra.mxu0 %v4262
  %4264 = vmatprep.subr.mxu0 0.0
  %v4265 = vand.u32 %v28, 4294901760
  %4266 = vmatpush1.msra.mxu0 %v4265
  %4267 = vmatprep.subr.mxu0 0.0
  %v4268 = vand.u32 %v29, 4294901760
  %4269 = vmatpush1.msra.mxu0 %v4268
  %4270 = vmatprep.subr.mxu0 0.0
  %4271 = vmatpush1.msra.mxu0 0.0
  %4272 = vmatprep.subr.mxu0 0.0
  %4273 = vmatpush1.msra.mxu0 0.0
  %4274 = vmatprep.subr.mxu0 0.0
  %4275 = vmatpush1.msra.mxu0 0.0
  %4276 = vmatprep.subr.mxu0 0.0
  %4277 = vmatpush1.msra.mxu0 0.0
  %4278 = vmatprep.subr.mxu0 0.0
  %4279 = vmatpush1.msra.mxu0 0.0
  %4280 = vmatprep.subr.mxu0 0.0
  %4281 = vmatpush1.msra.mxu0 0.0
  %4282 = vmatprep.subr.mxu0 0.0
  %4283 = vmatpush1.msra.mxu0 0.0
  %4284 = vmatprep.subr.mxu0 0.0
  %4285 = vmatpush1.msra.mxu0 0.0
  %4286 = vmatprep.subr.mxu0 0.0
  %4287 = vmatpush1.msra.mxu0 0.0
  %4288 = vmatprep.subr.mxu0 0.0
  %4289 = vmatpush1.msra.mxu0 0.0
  %4290 = vmatprep.subr.mxu0 0.0
  %4291 = vmatpush1.msra.mxu0 0.0
  %4292 = vmatprep.subr.mxu0 0.0
  %4293 = vmatpush1.msra.mxu0 0.0
  %4294 = vmatprep.subr.mxu0 0.0
  %4295 = vmatpush1.msra.mxu0 0.0
  %4296 = vmatprep.subr.mxu0 0.0
  %4297 = vmatpush1.msra.mxu0 0.0
  %4298 = vmatprep.subr.mxu0 0.0
  %4299 = vmatpush1.msra.mxu0 0.0
  %4300 = vmatprep.subr.mxu0 0.0
  %4301 = vmatpush1.msra.mxu0 0.0
  %4302 = vmatprep.subr.mxu0 0.0
  %4303 = vmatpush1.msra.mxu0 0.0
  %4304 = vmatprep.subr.mxu0 0.0
  %4305 = vmatpush1.msra.mxu0 0.0
  %4306 = vmatprep.subr.mxu0 0.0
  %4307 = vmatpush1.msra.mxu0 0.0
  %4308 = vmatprep.subr.mxu0 0.0
  %4309 = vmatpush1.msra.mxu0 0.0
  %4310 = vmatprep.subr.mxu0 0.0
  %4311 = vmatpush1.msra.mxu0 0.0
  %4312 = vmatprep.subr.mxu0 0.0
  %4313 = vmatpush1.msra.mxu0 0.0
  %4314 = vmatprep.subr.mxu0 0.0
  %4315 = vmatpush1.msra.mxu0 0.0
  %4316 = vmatprep.subr.mxu0 0.0
  %4317 = vmatpush1.msra.mxu0 0.0
  %4318 = vmatprep.subr.mxu0 0.0
  %4319 = vmatpush1.msra.mxu0 0.0
  %4320 = vmatprep.subr.mxu0 0.0
  %4321 = vmatpush1.msra.mxu0 0.0
  %4322 = vmatprep.subr.mxu0 0.0
  %4323 = vmatpush1.msra.mxu0 0.0
  %4324 = vmatprep.subr.mxu0 0.0
  %4325 = vmatpush1.msra.mxu0 0.0
  %4326 = vmatprep.mubr.f32.mxu0 0.0
  %v4327 = vand.u32 %v4006, 4294901760
  %v4328 = vsub.f32 %v4006, %v4327
  %v4329 = vand.u32 %v4328, 4294901760
  %4330 = vmatmul.mubr.f32.gmra.mrb[0].mxu0 %v4329
  %v4331 = vpop.f32.mrb[0].mxu0
  %v4332 = vadd.f32 %v4255, %v4331
  %v4333 = vpop.f32.mrb[0].mxu0
  %4334 = vdwg.mxu0
  %4335 = vmatprep.subr.mxu0 0.0
  %v4336 = vand.u32 %v26, 4294901760
  %v4337 = vsub.f32 %v26, %v4336
  %v4338 = vand.u32 %v4337, 4294901760
  %4339 = vmatpush1.msra.mxu0 %v4338
  %4340 = vmatprep.subr.mxu0 0.0
  %v4341 = vand.u32 %v27, 4294901760
  %v4342 = vsub.f32 %v27, %v4341
  %v4343 = vand.u32 %v4342, 4294901760
  %4344 = vmatpush1.msra.mxu0 %v4343
  %4345 = vmatprep.subr.mxu0 0.0
  %v4346 = vand.u32 %v28, 4294901760
  %v4347 = vsub.f32 %v28, %v4346
  %v4348 = vand.u32 %v4347, 4294901760
  %4349 = vmatpush1.msra.mxu0 %v4348
  %4350 = vmatprep.subr.mxu0 0.0
  %v4351 = vand.u32 %v29, 4294901760
  %v4352 = vsub.f32 %v29, %v4351
  %v4353 = vand.u32 %v4352, 4294901760
  %4354 = vmatpush1.msra.mxu0 %v4353
  %4355 = vmatprep.subr.mxu0 0.0
  %4356 = vmatpush1.msra.mxu0 0.0
  %4357 = vmatprep.subr.mxu0 0.0
  %4358 = vmatpush1.msra.mxu0 0.0
  %4359 = vmatprep.subr.mxu0 0.0
  %4360 = vmatpush1.msra.mxu0 0.0
  %4361 = vmatprep.subr.mxu0 0.0
  %4362 = vmatpush1.msra.mxu0 0.0
  %4363 = vmatprep.subr.mxu0 0.0
  %4364 = vmatpush1.msra.mxu0 0.0
  %4365 = vmatprep.subr.mxu0 0.0
  %4366 = vmatpush1.msra.mxu0 0.0
  %4367 = vmatprep.subr.mxu0 0.0
  %4368 = vmatpush1.msra.mxu0 0.0
  %4369 = vmatprep.subr.mxu0 0.0
  %4370 = vmatpush1.msra.mxu0 0.0
  %4371 = vmatprep.subr.mxu0 0.0
  %4372 = vmatpush1.msra.mxu0 0.0
  %4373 = vmatprep.subr.mxu0 0.0
  %4374 = vmatpush1.msra.mxu0 0.0
  %4375 = vmatprep.subr.mxu0 0.0
  %4376 = vmatpush1.msra.mxu0 0.0
  %4377 = vmatprep.subr.mxu0 0.0
  %4378 = vmatpush1.msra.mxu0 0.0
  %4379 = vmatprep.subr.mxu0 0.0
  %4380 = vmatpush1.msra.mxu0 0.0
  %4381 = vmatprep.subr.mxu0 0.0
  %4382 = vmatpush1.msra.mxu0 0.0
  %4383 = vmatprep.subr.mxu0 0.0
  %4384 = vmatpush1.msra.mxu0 0.0
  %4385 = vmatprep.subr.mxu0 0.0
  %4386 = vmatpush1.msra.mxu0 0.0
  %4387 = vmatprep.subr.mxu0 0.0
  %4388 = vmatpush1.msra.mxu0 0.0
  %4389 = vmatprep.subr.mxu0 0.0
  %4390 = vmatpush1.msra.mxu0 0.0
  %4391 = vmatprep.subr.mxu0 0.0
  %4392 = vmatpush1.msra.mxu0 0.0
  %4393 = vmatprep.subr.mxu0 0.0
  %4394 = vmatpush1.msra.mxu0 0.0
  %4395 = vmatprep.subr.mxu0 0.0
  %4396 = vmatpush1.msra.mxu0 0.0
  %4397 = vmatprep.subr.mxu0 0.0
  %4398 = vmatpush1.msra.mxu0 0.0
  %4399 = vmatprep.subr.mxu0 0.0
  %4400 = vmatpush1.msra.mxu0 0.0
  %4401 = vmatprep.subr.mxu0 0.0
  %4402 = vmatpush1.msra.mxu0 0.0
  %4403 = vmatprep.subr.mxu0 0.0
  %4404 = vmatpush1.msra.mxu0 0.0
  %4405 = vmatprep.subr.mxu0 0.0
  %4406 = vmatpush1.msra.mxu0 0.0
  %4407 = vmatprep.subr.mxu0 0.0
  %4408 = vmatpush1.msra.mxu0 0.0
  %4409 = vmatprep.subr.mxu0 0.0
  %4410 = vmatpush1.msra.mxu0 0.0
  %4411 = vmatprep.mubr.f32.mxu0 0.0
  %v4412 = vand.u32 %v4006, 4294901760
  %4413 = vmatmul.mubr.f32.gmra.mrb[0].mxu0 %v4412
  %v4414 = vpop.f32.mrb[0].mxu0
  %v4415 = vadd.f32 %v4332, %v4414
  %v4416 = vpop.f32.mrb[0].mxu0
  %4417 = vdwg.mxu0
  %4418 = vmatprep.subr.mxu0 0.0
  %v4419 = vand.u32 %v26, 4294901760
  %4420 = vmatpush1.msra.mxu0 %v4419
  %4421 = vmatprep.subr.mxu0 0.0
  %v4422 = vand.u32 %v27, 4294901760
  %4423 = vmatpush1.msra.mxu0 %v4422
  %4424 = vmatprep.subr.mxu0 0.0
  %v4425 = vand.u32 %v28, 4294901760
  %4426 = vmatpush1.msra.mxu0 %v4425
  %4427 = vmatprep.subr.mxu0 0.0
  %v4428 = vand.u32 %v29, 4294901760
  %4429 = vmatpush1.msra.mxu0 %v4428
  %4430 = vmatprep.subr.mxu0 0.0
  %4431 = vmatpush1.msra.mxu0 0.0
  %4432 = vmatprep.subr.mxu0 0.0
  %4433 = vmatpush1.msra.mxu0 0.0
  %4434 = vmatprep.subr.mxu0 0.0
  %4435 = vmatpush1.msra.mxu0 0.0
  %4436 = vmatprep.subr.mxu0 0.0
  %4437 = vmatpush1.msra.mxu0 0.0
  %4438 = vmatprep.subr.mxu0 0.0
  %4439 = vmatpush1.msra.mxu0 0.0
  %4440 = vmatprep.subr.mxu0 0.0
  %4441 = vmatpush1.msra.mxu0 0.0
  %4442 = vmatprep.subr.mxu0 0.0
  %4443 = vmatpush1.msra.mxu0 0.0
  %4444 = vmatprep.subr.mxu0 0.0
  %4445 = vmatpush1.msra.mxu0 0.0
  %4446 = vmatprep.subr.mxu0 0.0
  %4447 = vmatpush1.msra.mxu0 0.0
  %4448 = vmatprep.subr.mxu0 0.0
  %4449 = vmatpush1.msra.mxu0 0.0
  %4450 = vmatprep.subr.mxu0 0.0
  %4451 = vmatpush1.msra.mxu0 0.0
  %4452 = vmatprep.subr.mxu0 0.0
  %4453 = vmatpush1.msra.mxu0 0.0
  %4454 = vmatprep.subr.mxu0 0.0
  %4455 = vmatpush1.msra.mxu0 0.0
  %4456 = vmatprep.subr.mxu0 0.0
  %4457 = vmatpush1.msra.mxu0 0.0
  %4458 = vmatprep.subr.mxu0 0.0
  %4459 = vmatpush1.msra.mxu0 0.0
  %4460 = vmatprep.subr.mxu0 0.0
  %4461 = vmatpush1.msra.mxu0 0.0
  %4462 = vmatprep.subr.mxu0 0.0
  %4463 = vmatpush1.msra.mxu0 0.0
  %4464 = vmatprep.subr.mxu0 0.0
  %4465 = vmatpush1.msra.mxu0 0.0
  %4466 = vmatprep.subr.mxu0 0.0
  %4467 = vmatpush1.msra.mxu0 0.0
  %4468 = vmatprep.subr.mxu0 0.0
  %4469 = vmatpush1.msra.mxu0 0.0
  %4470 = vmatprep.subr.mxu0 0.0
  %4471 = vmatpush1.msra.mxu0 0.0
  %4472 = vmatprep.subr.mxu0 0.0
  %4473 = vmatpush1.msra.mxu0 0.0
  %4474 = vmatprep.subr.mxu0 0.0
  %4475 = vmatpush1.msra.mxu0 0.0
  %4476 = vmatprep.subr.mxu0 0.0
  %4477 = vmatpush1.msra.mxu0 0.0
  %4478 = vmatprep.subr.mxu0 0.0
  %4479 = vmatpush1.msra.mxu0 0.0
  %4480 = vmatprep.subr.mxu0 0.0
  %4481 = vmatpush1.msra.mxu0 0.0
  %4482 = vmatprep.subr.mxu0 0.0
  %4483 = vmatpush1.msra.mxu0 0.0
  %4484 = vmatprep.subr.mxu0 0.0
  %4485 = vmatpush1.msra.mxu0 0.0
  %4486 = vmatprep.mubr.f32.mxu0 0.0
  %v4487 = vand.u32 %v4006, 4294901760
  %4488 = vmatmul.mubr.f32.gmra.mrb[0].mxu0 %v4487
  %v4489 = vpop.f32.mrb[0].mxu0
  %v4490 = vadd.f32 %v4415, %v4489
  %v4491 = vpop.f32.mrb[0].mxu0
  %4492 = vdwg.mxu0
  %v4494 = vrot.slane %v4490, 1
  %v4496 = vadd.f32 %v540, %v4494
  %v4497 = vtanh.pop %v4496
  %v4499 = vrot.slane %v4497, 7
  %v4500 = vsel %vm550, %v4499, 0
  %4502 = vmatprep.subr.mxu0 0.0
  %v4503 = vand.u32 %v30, 4294901760
  %4504 = vmatpush1.msra.mxu0 %v4503
  %4505 = vmatprep.subr.mxu0 0.0
  %v4506 = vand.u32 %v31, 4294901760
  %4507 = vmatpush1.msra.mxu0 %v4506
  %4508 = vmatprep.subr.mxu0 0.0
  %v4509 = vand.u32 %v32, 4294901760
  %4510 = vmatpush1.msra.mxu0 %v4509
  %4511 = vmatprep.subr.mxu0 0.0
  %v4512 = vand.u32 %v33, 4294901760
  %4513 = vmatpush1.msra.mxu0 %v4512
  %4514 = vmatprep.subr.mxu0 0.0
  %4515 = vmatpush1.msra.mxu0 0.0
  %4516 = vmatprep.subr.mxu0 0.0
  %4517 = vmatpush1.msra.mxu0 0.0
  %4518 = vmatprep.subr.mxu0 0.0
  %4519 = vmatpush1.msra.mxu0 0.0
  %4520 = vmatprep.subr.mxu0 0.0
  %4521 = vmatpush1.msra.mxu0 0.0
  %4522 = vmatprep.subr.mxu0 0.0
  %4523 = vmatpush1.msra.mxu0 0.0
  %4524 = vmatprep.subr.mxu0 0.0
  %4525 = vmatpush1.msra.mxu0 0.0
  %4526 = vmatprep.subr.mxu0 0.0
  %4527 = vmatpush1.msra.mxu0 0.0
  %4528 = vmatprep.subr.mxu0 0.0
  %4529 = vmatpush1.msra.mxu0 0.0
  %4530 = vmatprep.subr.mxu0 0.0
  %4531 = vmatpush1.msra.mxu0 0.0
  %4532 = vmatprep.subr.mxu0 0.0
  %4533 = vmatpush1.msra.mxu0 0.0
  %4534 = vmatprep.subr.mxu0 0.0
  %4535 = vmatpush1.msra.mxu0 0.0
  %4536 = vmatprep.subr.mxu0 0.0
  %4537 = vmatpush1.msra.mxu0 0.0
  %4538 = vmatprep.subr.mxu0 0.0
  %4539 = vmatpush1.msra.mxu0 0.0
  %4540 = vmatprep.subr.mxu0 0.0
  %4541 = vmatpush1.msra.mxu0 0.0
  %4542 = vmatprep.subr.mxu0 0.0
  %4543 = vmatpush1.msra.mxu0 0.0
  %4544 = vmatprep.subr.mxu0 0.0
  %4545 = vmatpush1.msra.mxu0 0.0
  %4546 = vmatprep.subr.mxu0 0.0
  %4547 = vmatpush1.msra.mxu0 0.0
  %4548 = vmatprep.subr.mxu0 0.0
  %4549 = vmatpush1.msra.mxu0 0.0
  %4550 = vmatprep.subr.mxu0 0.0
  %4551 = vmatpush1.msra.mxu0 0.0
  %4552 = vmatprep.subr.mxu0 0.0
  %4553 = vmatpush1.msra.mxu0 0.0
  %4554 = vmatprep.subr.mxu0 0.0
  %4555 = vmatpush1.msra.mxu0 0.0
  %4556 = vmatprep.subr.mxu0 0.0
  %4557 = vmatpush1.msra.mxu0 0.0
  %4558 = vmatprep.subr.mxu0 0.0
  %4559 = vmatpush1.msra.mxu0 0.0
  %4560 = vmatprep.subr.mxu0 0.0
  %4561 = vmatpush1.msra.mxu0 0.0
  %4562 = vmatprep.subr.mxu0 0.0
  %4563 = vmatpush1.msra.mxu0 0.0
  %4564 = vmatprep.subr.mxu0 0.0
  %4565 = vmatpush1.msra.mxu0 0.0
  %4566 = vmatprep.subr.mxu0 0.0
  %4567 = vmatpush1.msra.mxu0 0.0
  %4568 = vmatprep.subr.mxu0 0.0
  %4569 = vmatpush1.msra.mxu0 0.0
  %4570 = vmatprep.mubr.f32.mxu0 0.0
  %v4571 = vand.u32 %v4500, 4294901760
  %v4572 = vsub.f32 %v4500, %v4571
  %v4573 = vand.u32 %v4572, 4294901760
  %v4574 = vsub.f32 %v4572, %v4573
  %v4575 = vand.u32 %v4574, 4294901760
  %4576 = vmatmul.mubr.f32.gmra.mrb[0].mxu0 %v4575
  %v4577 = vpop.f32.mrb[0].mxu0
  %v4578 = vadd.f32 0.0, %v4577
  %v4579 = vpop.f32.mrb[0].mxu0
  %4580 = vdwg.mxu0
  %4581 = vmatprep.subr.mxu0 0.0
  %v4582 = vand.u32 %v30, 4294901760
  %v4583 = vsub.f32 %v30, %v4582
  %v4584 = vand.u32 %v4583, 4294901760
  %v4585 = vsub.f32 %v4583, %v4584
  %v4586 = vand.u32 %v4585, 4294901760
  %4587 = vmatpush1.msra.mxu0 %v4586
  %4588 = vmatprep.subr.mxu0 0.0
  %v4589 = vand.u32 %v31, 4294901760
  %v4590 = vsub.f32 %v31, %v4589
  %v4591 = vand.u32 %v4590, 4294901760
  %v4592 = vsub.f32 %v4590, %v4591
  %v4593 = vand.u32 %v4592, 4294901760
  %4594 = vmatpush1.msra.mxu0 %v4593
  %4595 = vmatprep.subr.mxu0 0.0
  %v4596 = vand.u32 %v32, 4294901760
  %v4597 = vsub.f32 %v32, %v4596
  %v4598 = vand.u32 %v4597, 4294901760
  %v4599 = vsub.f32 %v4597, %v4598
  %v4600 = vand.u32 %v4599, 4294901760
  %4601 = vmatpush1.msra.mxu0 %v4600
  %4602 = vmatprep.subr.mxu0 0.0
  %v4603 = vand.u32 %v33, 4294901760
  %v4604 = vsub.f32 %v33, %v4603
  %v4605 = vand.u32 %v4604, 4294901760
  %v4606 = vsub.f32 %v4604, %v4605
  %v4607 = vand.u32 %v4606, 4294901760
  %4608 = vmatpush1.msra.mxu0 %v4607
  %4609 = vmatprep.subr.mxu0 0.0
  %4610 = vmatpush1.msra.mxu0 0.0
  %4611 = vmatprep.subr.mxu0 0.0
  %4612 = vmatpush1.msra.mxu0 0.0
  %4613 = vmatprep.subr.mxu0 0.0
  %4614 = vmatpush1.msra.mxu0 0.0
  %4615 = vmatprep.subr.mxu0 0.0
  %4616 = vmatpush1.msra.mxu0 0.0
  %4617 = vmatprep.subr.mxu0 0.0
  %4618 = vmatpush1.msra.mxu0 0.0
  %4619 = vmatprep.subr.mxu0 0.0
  %4620 = vmatpush1.msra.mxu0 0.0
  %4621 = vmatprep.subr.mxu0 0.0
  %4622 = vmatpush1.msra.mxu0 0.0
  %4623 = vmatprep.subr.mxu0 0.0
  %4624 = vmatpush1.msra.mxu0 0.0
  %4625 = vmatprep.subr.mxu0 0.0
  %4626 = vmatpush1.msra.mxu0 0.0
  %4627 = vmatprep.subr.mxu0 0.0
  %4628 = vmatpush1.msra.mxu0 0.0
  %4629 = vmatprep.subr.mxu0 0.0
  %4630 = vmatpush1.msra.mxu0 0.0
  %4631 = vmatprep.subr.mxu0 0.0
  %4632 = vmatpush1.msra.mxu0 0.0
  %4633 = vmatprep.subr.mxu0 0.0
  %4634 = vmatpush1.msra.mxu0 0.0
  %4635 = vmatprep.subr.mxu0 0.0
  %4636 = vmatpush1.msra.mxu0 0.0
  %4637 = vmatprep.subr.mxu0 0.0
  %4638 = vmatpush1.msra.mxu0 0.0
  %4639 = vmatprep.subr.mxu0 0.0
  %4640 = vmatpush1.msra.mxu0 0.0
  %4641 = vmatprep.subr.mxu0 0.0
  %4642 = vmatpush1.msra.mxu0 0.0
  %4643 = vmatprep.subr.mxu0 0.0
  %4644 = vmatpush1.msra.mxu0 0.0
  %4645 = vmatprep.subr.mxu0 0.0
  %4646 = vmatpush1.msra.mxu0 0.0
  %4647 = vmatprep.subr.mxu0 0.0
  %4648 = vmatpush1.msra.mxu0 0.0
  %4649 = vmatprep.subr.mxu0 0.0
  %4650 = vmatpush1.msra.mxu0 0.0
  %4651 = vmatprep.subr.mxu0 0.0
  %4652 = vmatpush1.msra.mxu0 0.0
  %4653 = vmatprep.subr.mxu0 0.0
  %4654 = vmatpush1.msra.mxu0 0.0
  %4655 = vmatprep.subr.mxu0 0.0
  %4656 = vmatpush1.msra.mxu0 0.0
  %4657 = vmatprep.subr.mxu0 0.0
  %4658 = vmatpush1.msra.mxu0 0.0
  %4659 = vmatprep.subr.mxu0 0.0
  %4660 = vmatpush1.msra.mxu0 0.0
  %4661 = vmatprep.subr.mxu0 0.0
  %4662 = vmatpush1.msra.mxu0 0.0
  %4663 = vmatprep.subr.mxu0 0.0
  %4664 = vmatpush1.msra.mxu0 0.0
  %4665 = vmatprep.mubr.f32.mxu0 0.0
  %v4666 = vand.u32 %v4500, 4294901760
  %4667 = vmatmul.mubr.f32.gmra.mrb[0].mxu0 %v4666
  %v4668 = vpop.f32.mrb[0].mxu0
  %v4669 = vadd.f32 %v4578, %v4668
  %v4670 = vpop.f32.mrb[0].mxu0
  %4671 = vdwg.mxu0
  %4672 = vmatprep.subr.mxu0 0.0
  %v4673 = vand.u32 %v30, 4294901760
  %v4674 = vsub.f32 %v30, %v4673
  %4675 = vmatpush1.msra.mxu0 %v4674
  %4676 = vmatprep.subr.mxu0 0.0
  %v4677 = vand.u32 %v31, 4294901760
  %v4678 = vsub.f32 %v31, %v4677
  %4679 = vmatpush1.msra.mxu0 %v4678
  %4680 = vmatprep.subr.mxu0 0.0
  %v4681 = vand.u32 %v32, 4294901760
  %v4682 = vsub.f32 %v32, %v4681
  %4683 = vmatpush1.msra.mxu0 %v4682
  %4684 = vmatprep.subr.mxu0 0.0
  %v4685 = vand.u32 %v33, 4294901760
  %v4686 = vsub.f32 %v33, %v4685
  %4687 = vmatpush1.msra.mxu0 %v4686
  %4688 = vmatprep.subr.mxu0 0.0
  %4689 = vmatpush1.msra.mxu0 0.0
  %4690 = vmatprep.subr.mxu0 0.0
  %4691 = vmatpush1.msra.mxu0 0.0
  %4692 = vmatprep.subr.mxu0 0.0
  %4693 = vmatpush1.msra.mxu0 0.0
  %4694 = vmatprep.subr.mxu0 0.0
  %4695 = vmatpush1.msra.mxu0 0.0
  %4696 = vmatprep.subr.mxu0 0.0
  %4697 = vmatpush1.msra.mxu0 0.0
  %4698 = vmatprep.subr.mxu0 0.0
  %4699 = vmatpush1.msra.mxu0 0.0
  %4700 = vmatprep.subr.mxu0 0.0
  %4701 = vmatpush1.msra.mxu0 0.0
  %4702 = vmatprep.subr.mxu0 0.0
  %4703 = vmatpush1.msra.mxu0 0.0
  %4704 = vmatprep.subr.mxu0 0.0
  %4705 = vmatpush1.msra.mxu0 0.0
  %4706 = vmatprep.subr.mxu0 0.0
  %4707 = vmatpush1.msra.mxu0 0.0
  %4708 = vmatprep.subr.mxu0 0.0
  %4709 = vmatpush1.msra.mxu0 0.0
  %4710 = vmatprep.subr.mxu0 0.0
  %4711 = vmatpush1.msra.mxu0 0.0
  %4712 = vmatprep.subr.mxu0 0.0
  %4713 = vmatpush1.msra.mxu0 0.0
  %4714 = vmatprep.subr.mxu0 0.0
  %4715 = vmatpush1.msra.mxu0 0.0
  %4716 = vmatprep.subr.mxu0 0.0
  %4717 = vmatpush1.msra.mxu0 0.0
  %4718 = vmatprep.subr.mxu0 0.0
  %4719 = vmatpush1.msra.mxu0 0.0
  %4720 = vmatprep.subr.mxu0 0.0
  %4721 = vmatpush1.msra.mxu0 0.0
  %4722 = vmatprep.subr.mxu0 0.0
  %4723 = vmatpush1.msra.mxu0 0.0
  %4724 = vmatprep.subr.mxu0 0.0
  %4725 = vmatpush1.msra.mxu0 0.0
  %4726 = vmatprep.subr.mxu0 0.0
  %4727 = vmatpush1.msra.mxu0 0.0
  %4728 = vmatprep.subr.mxu0 0.0
  %4729 = vmatpush1.msra.mxu0 0.0
  %4730 = vmatprep.subr.mxu0 0.0
  %4731 = vmatpush1.msra.mxu0 0.0
  %4732 = vmatprep.subr.mxu0 0.0
  %4733 = vmatpush1.msra.mxu0 0.0
  %4734 = vmatprep.subr.mxu0 0.0
  %4735 = vmatpush1.msra.mxu0 0.0
  %4736 = vmatprep.subr.mxu0 0.0
  %4737 = vmatpush1.msra.mxu0 0.0
  %4738 = vmatprep.subr.mxu0 0.0
  %4739 = vmatpush1.msra.mxu0 0.0
  %4740 = vmatprep.subr.mxu0 0.0
  %4741 = vmatpush1.msra.mxu0 0.0
  %4742 = vmatprep.subr.mxu0 0.0
  %4743 = vmatpush1.msra.mxu0 0.0
  %4744 = vmatprep.mubr.f32.mxu0 0.0
  %v4745 = vand.u32 %v4500, 4294901760
  %v4746 = vsub.f32 %v4500, %v4745
  %4747 = vmatmul.mubr.f32.gmra.mrb[0].mxu0 %v4746
  %v4748 = vpop.f32.mrb[0].mxu0
  %v4749 = vadd.f32 %v4669, %v4748
  %v4750 = vpop.f32.mrb[0].mxu0
  %4751 = vdwg.mxu0
  %4752 = vmatprep.subr.mxu0 0.0
  %v4753 = vand.u32 %v30, 4294901760
  %4754 = vmatpush1.msra.mxu0 %v4753
  %4755 = vmatprep.subr.mxu0 0.0
  %v4756 = vand.u32 %v31, 4294901760
  %4757 = vmatpush1.msra.mxu0 %v4756
  %4758 = vmatprep.subr.mxu0 0.0
  %v4759 = vand.u32 %v32, 4294901760
  %4760 = vmatpush1.msra.mxu0 %v4759
  %4761 = vmatprep.subr.mxu0 0.0
  %v4762 = vand.u32 %v33, 4294901760
  %4763 = vmatpush1.msra.mxu0 %v4762
  %4764 = vmatprep.subr.mxu0 0.0
  %4765 = vmatpush1.msra.mxu0 0.0
  %4766 = vmatprep.subr.mxu0 0.0
  %4767 = vmatpush1.msra.mxu0 0.0
  %4768 = vmatprep.subr.mxu0 0.0
  %4769 = vmatpush1.msra.mxu0 0.0
  %4770 = vmatprep.subr.mxu0 0.0
  %4771 = vmatpush1.msra.mxu0 0.0
  %4772 = vmatprep.subr.mxu0 0.0
  %4773 = vmatpush1.msra.mxu0 0.0
  %4774 = vmatprep.subr.mxu0 0.0
  %4775 = vmatpush1.msra.mxu0 0.0
  %4776 = vmatprep.subr.mxu0 0.0
  %4777 = vmatpush1.msra.mxu0 0.0
  %4778 = vmatprep.subr.mxu0 0.0
  %4779 = vmatpush1.msra.mxu0 0.0
  %4780 = vmatprep.subr.mxu0 0.0
  %4781 = vmatpush1.msra.mxu0 0.0
  %4782 = vmatprep.subr.mxu0 0.0
  %4783 = vmatpush1.msra.mxu0 0.0
  %4784 = vmatprep.subr.mxu0 0.0
  %4785 = vmatpush1.msra.mxu0 0.0
  %4786 = vmatprep.subr.mxu0 0.0
  %4787 = vmatpush1.msra.mxu0 0.0
  %4788 = vmatprep.subr.mxu0 0.0
  %4789 = vmatpush1.msra.mxu0 0.0
  %4790 = vmatprep.subr.mxu0 0.0
  %4791 = vmatpush1.msra.mxu0 0.0
  %4792 = vmatprep.subr.mxu0 0.0
  %4793 = vmatpush1.msra.mxu0 0.0
  %4794 = vmatprep.subr.mxu0 0.0
  %4795 = vmatpush1.msra.mxu0 0.0
  %4796 = vmatprep.subr.mxu0 0.0
  %4797 = vmatpush1.msra.mxu0 0.0
  %4798 = vmatprep.subr.mxu0 0.0
  %4799 = vmatpush1.msra.mxu0 0.0
  %4800 = vmatprep.subr.mxu0 0.0
  %4801 = vmatpush1.msra.mxu0 0.0
  %4802 = vmatprep.subr.mxu0 0.0
  %4803 = vmatpush1.msra.mxu0 0.0
  %4804 = vmatprep.subr.mxu0 0.0
  %4805 = vmatpush1.msra.mxu0 0.0
  %4806 = vmatprep.subr.mxu0 0.0
  %4807 = vmatpush1.msra.mxu0 0.0
  %4808 = vmatprep.subr.mxu0 0.0
  %4809 = vmatpush1.msra.mxu0 0.0
  %4810 = vmatprep.subr.mxu0 0.0
  %4811 = vmatpush1.msra.mxu0 0.0
  %4812 = vmatprep.subr.mxu0 0.0
  %4813 = vmatpush1.msra.mxu0 0.0
  %4814 = vmatprep.subr.mxu0 0.0
  %4815 = vmatpush1.msra.mxu0 0.0
  %4816 = vmatprep.subr.mxu0 0.0
  %4817 = vmatpush1.msra.mxu0 0.0
  %4818 = vmatprep.subr.mxu0 0.0
  %4819 = vmatpush1.msra.mxu0 0.0
  %4820 = vmatprep.mubr.f32.mxu0 0.0
  %v4821 = vand.u32 %v4500, 4294901760
  %v4822 = vsub.f32 %v4500, %v4821
  %v4823 = vand.u32 %v4822, 4294901760
  %4824 = vmatmul.mubr.f32.gmra.mrb[0].mxu0 %v4823
  %v4825 = vpop.f32.mrb[0].mxu0
  %v4826 = vadd.f32 %v4749, %v4825
  %v4827 = vpop.f32.mrb[0].mxu0
  %4828 = vdwg.mxu0
  %4829 = vmatprep.subr.mxu0 0.0
  %v4830 = vand.u32 %v30, 4294901760
  %v4831 = vsub.f32 %v30, %v4830
  %v4832 = vand.u32 %v4831, 4294901760
  %4833 = vmatpush1.msra.mxu0 %v4832
  %4834 = vmatprep.subr.mxu0 0.0
  %v4835 = vand.u32 %v31, 4294901760
  %v4836 = vsub.f32 %v31, %v4835
  %v4837 = vand.u32 %v4836, 4294901760
  %4838 = vmatpush1.msra.mxu0 %v4837
  %4839 = vmatprep.subr.mxu0 0.0
  %v4840 = vand.u32 %v32, 4294901760
  %v4841 = vsub.f32 %v32, %v4840
  %v4842 = vand.u32 %v4841, 4294901760
  %4843 = vmatpush1.msra.mxu0 %v4842
  %4844 = vmatprep.subr.mxu0 0.0
  %v4845 = vand.u32 %v33, 4294901760
  %v4846 = vsub.f32 %v33, %v4845
  %v4847 = vand.u32 %v4846, 4294901760
  %4848 = vmatpush1.msra.mxu0 %v4847
  %4849 = vmatprep.subr.mxu0 0.0
  %4850 = vmatpush1.msra.mxu0 0.0
  %4851 = vmatprep.subr.mxu0 0.0
  %4852 = vmatpush1.msra.mxu0 0.0
  %4853 = vmatprep.subr.mxu0 0.0
  %4854 = vmatpush1.msra.mxu0 0.0
  %4855 = vmatprep.subr.mxu0 0.0
  %4856 = vmatpush1.msra.mxu0 0.0
  %4857 = vmatprep.subr.mxu0 0.0
  %4858 = vmatpush1.msra.mxu0 0.0
  %4859 = vmatprep.subr.mxu0 0.0
  %4860 = vmatpush1.msra.mxu0 0.0
  %4861 = vmatprep.subr.mxu0 0.0
  %4862 = vmatpush1.msra.mxu0 0.0
  %4863 = vmatprep.subr.mxu0 0.0
  %4864 = vmatpush1.msra.mxu0 0.0
  %4865 = vmatprep.subr.mxu0 0.0
  %4866 = vmatpush1.msra.mxu0 0.0
  %4867 = vmatprep.subr.mxu0 0.0
  %4868 = vmatpush1.msra.mxu0 0.0
  %4869 = vmatprep.subr.mxu0 0.0
  %4870 = vmatpush1.msra.mxu0 0.0
  %4871 = vmatprep.subr.mxu0 0.0
  %4872 = vmatpush1.msra.mxu0 0.0
  %4873 = vmatprep.subr.mxu0 0.0
  %4874 = vmatpush1.msra.mxu0 0.0
  %4875 = vmatprep.subr.mxu0 0.0
  %4876 = vmatpush1.msra.mxu0 0.0
  %4877 = vmatprep.subr.mxu0 0.0
  %4878 = vmatpush1.msra.mxu0 0.0
  %4879 = vmatprep.subr.mxu0 0.0
  %4880 = vmatpush1.msra.mxu0 0.0
  %4881 = vmatprep.subr.mxu0 0.0
  %4882 = vmatpush1.msra.mxu0 0.0
  %4883 = vmatprep.subr.mxu0 0.0
  %4884 = vmatpush1.msra.mxu0 0.0
  %4885 = vmatprep.subr.mxu0 0.0
  %4886 = vmatpush1.msra.mxu0 0.0
  %4887 = vmatprep.subr.mxu0 0.0
  %4888 = vmatpush1.msra.mxu0 0.0
  %4889 = vmatprep.subr.mxu0 0.0
  %4890 = vmatpush1.msra.mxu0 0.0
  %4891 = vmatprep.subr.mxu0 0.0
  %4892 = vmatpush1.msra.mxu0 0.0
  %4893 = vmatprep.subr.mxu0 0.0
  %4894 = vmatpush1.msra.mxu0 0.0
  %4895 = vmatprep.subr.mxu0 0.0
  %4896 = vmatpush1.msra.mxu0 0.0
  %4897 = vmatprep.subr.mxu0 0.0
  %4898 = vmatpush1.msra.mxu0 0.0
  %4899 = vmatprep.subr.mxu0 0.0
  %4900 = vmatpush1.msra.mxu0 0.0
  %4901 = vmatprep.subr.mxu0 0.0
  %4902 = vmatpush1.msra.mxu0 0.0
  %4903 = vmatprep.subr.mxu0 0.0
  %4904 = vmatpush1.msra.mxu0 0.0
  %4905 = vmatprep.mubr.f32.mxu0 0.0
  %v4906 = vand.u32 %v4500, 4294901760
  %4907 = vmatmul.mubr.f32.gmra.mrb[0].mxu0 %v4906
  %v4908 = vpop.f32.mrb[0].mxu0
  %v4909 = vadd.f32 %v4826, %v4908
  %v4910 = vpop.f32.mrb[0].mxu0
  %4911 = vdwg.mxu0
  %4912 = vmatprep.subr.mxu0 0.0
  %v4913 = vand.u32 %v30, 4294901760
  %4914 = vmatpush1.msra.mxu0 %v4913
  %4915 = vmatprep.subr.mxu0 0.0
  %v4916 = vand.u32 %v31, 4294901760
  %4917 = vmatpush1.msra.mxu0 %v4916
  %4918 = vmatprep.subr.mxu0 0.0
  %v4919 = vand.u32 %v32, 4294901760
  %4920 = vmatpush1.msra.mxu0 %v4919
  %4921 = vmatprep.subr.mxu0 0.0
  %v4922 = vand.u32 %v33, 4294901760
  %4923 = vmatpush1.msra.mxu0 %v4922
  %4924 = vmatprep.subr.mxu0 0.0
  %4925 = vmatpush1.msra.mxu0 0.0
  %4926 = vmatprep.subr.mxu0 0.0
  %4927 = vmatpush1.msra.mxu0 0.0
  %4928 = vmatprep.subr.mxu0 0.0
  %4929 = vmatpush1.msra.mxu0 0.0
  %4930 = vmatprep.subr.mxu0 0.0
  %4931 = vmatpush1.msra.mxu0 0.0
  %4932 = vmatprep.subr.mxu0 0.0
  %4933 = vmatpush1.msra.mxu0 0.0
  %4934 = vmatprep.subr.mxu0 0.0
  %4935 = vmatpush1.msra.mxu0 0.0
  %4936 = vmatprep.subr.mxu0 0.0
  %4937 = vmatpush1.msra.mxu0 0.0
  %4938 = vmatprep.subr.mxu0 0.0
  %4939 = vmatpush1.msra.mxu0 0.0
  %4940 = vmatprep.subr.mxu0 0.0
  %4941 = vmatpush1.msra.mxu0 0.0
  %4942 = vmatprep.subr.mxu0 0.0
  %4943 = vmatpush1.msra.mxu0 0.0
  %4944 = vmatprep.subr.mxu0 0.0
  %4945 = vmatpush1.msra.mxu0 0.0
  %4946 = vmatprep.subr.mxu0 0.0
  %4947 = vmatpush1.msra.mxu0 0.0
  %4948 = vmatprep.subr.mxu0 0.0
  %4949 = vmatpush1.msra.mxu0 0.0
  %4950 = vmatprep.subr.mxu0 0.0
  %4951 = vmatpush1.msra.mxu0 0.0
  %4952 = vmatprep.subr.mxu0 0.0
  %4953 = vmatpush1.msra.mxu0 0.0
  %4954 = vmatprep.subr.mxu0 0.0
  %4955 = vmatpush1.msra.mxu0 0.0
  %4956 = vmatprep.subr.mxu0 0.0
  %4957 = vmatpush1.msra.mxu0 0.0
  %4958 = vmatprep.subr.mxu0 0.0
  %4959 = vmatpush1.msra.mxu0 0.0
  %4960 = vmatprep.subr.mxu0 0.0
  %4961 = vmatpush1.msra.mxu0 0.0
  %4962 = vmatprep.subr.mxu0 0.0
  %4963 = vmatpush1.msra.mxu0 0.0
  %4964 = vmatprep.subr.mxu0 0.0
  %4965 = vmatpush1.msra.mxu0 0.0
  %4966 = vmatprep.subr.mxu0 0.0
  %4967 = vmatpush1.msra.mxu0 0.0
  %4968 = vmatprep.subr.mxu0 0.0
  %4969 = vmatpush1.msra.mxu0 0.0
  %4970 = vmatprep.subr.mxu0 0.0
  %4971 = vmatpush1.msra.mxu0 0.0
  %4972 = vmatprep.subr.mxu0 0.0
  %4973 = vmatpush1.msra.mxu0 0.0
  %4974 = vmatprep.subr.mxu0 0.0
  %4975 = vmatpush1.msra.mxu0 0.0
  %4976 = vmatprep.subr.mxu0 0.0
  %4977 = vmatpush1.msra.mxu0 0.0
  %4978 = vmatprep.subr.mxu0 0.0
  %4979 = vmatpush1.msra.mxu0 0.0
  %4980 = vmatprep.mubr.f32.mxu0 0.0
  %v4981 = vand.u32 %v4500, 4294901760
  %4982 = vmatmul.mubr.f32.gmra.mrb[0].mxu0 %v4981
  %v4983 = vpop.f32.mrb[0].mxu0
  %v4984 = vadd.f32 %v4909, %v4983
  %v4985 = vpop.f32.mrb[0].mxu0
  %4986 = vdwg.mxu0
  %4988 = vrot.lane.b32.xlu0 %v4984, 32
  %v4989 = vpop.permute.xlu0 %4988
  %v4991 = vadd.f32 %v546, %v4989
  %v4992 = vtanh.pop %v4991
  %4994 = vrot.lane.b32.xlu0 %v4992, 96
  %v4995 = vpop.permute.xlu0 %4994
  %v4996 = vsel %vm550, %v4995, 0
  %4998 = vmatprep.subr.mxu0 0.0
  %v4999 = vand.u32 %v30, 4294901760
  %5000 = vmatpush1.msra.mxu0 %v4999
  %5001 = vmatprep.subr.mxu0 0.0
  %v5002 = vand.u32 %v31, 4294901760
  %5003 = vmatpush1.msra.mxu0 %v5002
  %5004 = vmatprep.subr.mxu0 0.0
  %v5005 = vand.u32 %v32, 4294901760
  %5006 = vmatpush1.msra.mxu0 %v5005
  %5007 = vmatprep.subr.mxu0 0.0
  %v5008 = vand.u32 %v33, 4294901760
  %5009 = vmatpush1.msra.mxu0 %v5008
  %5010 = vmatprep.subr.mxu0 0.0
  %5011 = vmatpush1.msra.mxu0 0.0
  %5012 = vmatprep.subr.mxu0 0.0
  %5013 = vmatpush1.msra.mxu0 0.0
  %5014 = vmatprep.subr.mxu0 0.0
  %5015 = vmatpush1.msra.mxu0 0.0
  %5016 = vmatprep.subr.mxu0 0.0
  %5017 = vmatpush1.msra.mxu0 0.0
  %5018 = vmatprep.subr.mxu0 0.0
  %5019 = vmatpush1.msra.mxu0 0.0
  %5020 = vmatprep.subr.mxu0 0.0
  %5021 = vmatpush1.msra.mxu0 0.0
  %5022 = vmatprep.subr.mxu0 0.0
  %5023 = vmatpush1.msra.mxu0 0.0
  %5024 = vmatprep.subr.mxu0 0.0
  %5025 = vmatpush1.msra.mxu0 0.0
  %5026 = vmatprep.subr.mxu0 0.0
  %5027 = vmatpush1.msra.mxu0 0.0
  %5028 = vmatprep.subr.mxu0 0.0
  %5029 = vmatpush1.msra.mxu0 0.0
  %5030 = vmatprep.subr.mxu0 0.0
  %5031 = vmatpush1.msra.mxu0 0.0
  %5032 = vmatprep.subr.mxu0 0.0
  %5033 = vmatpush1.msra.mxu0 0.0
  %5034 = vmatprep.subr.mxu0 0.0
  %5035 = vmatpush1.msra.mxu0 0.0
  %5036 = vmatprep.subr.mxu0 0.0
  %5037 = vmatpush1.msra.mxu0 0.0
  %5038 = vmatprep.subr.mxu0 0.0
  %5039 = vmatpush1.msra.mxu0 0.0
  %5040 = vmatprep.subr.mxu0 0.0
  %5041 = vmatpush1.msra.mxu0 0.0
  %5042 = vmatprep.subr.mxu0 0.0
  %5043 = vmatpush1.msra.mxu0 0.0
  %5044 = vmatprep.subr.mxu0 0.0
  %5045 = vmatpush1.msra.mxu0 0.0
  %5046 = vmatprep.subr.mxu0 0.0
  %5047 = vmatpush1.msra.mxu0 0.0
  %5048 = vmatprep.subr.mxu0 0.0
  %5049 = vmatpush1.msra.mxu0 0.0
  %5050 = vmatprep.subr.mxu0 0.0
  %5051 = vmatpush1.msra.mxu0 0.0
  %5052 = vmatprep.subr.mxu0 0.0
  %5053 = vmatpush1.msra.mxu0 0.0
  %5054 = vmatprep.subr.mxu0 0.0
  %5055 = vmatpush1.msra.mxu0 0.0
  %5056 = vmatprep.subr.mxu0 0.0
  %5057 = vmatpush1.msra.mxu0 0.0
  %5058 = vmatprep.subr.mxu0 0.0
  %5059 = vmatpush1.msra.mxu0 0.0
  %5060 = vmatprep.subr.mxu0 0.0
  %5061 = vmatpush1.msra.mxu0 0.0
  %5062 = vmatprep.subr.mxu0 0.0
  %5063 = vmatpush1.msra.mxu0 0.0
  %5064 = vmatprep.subr.mxu0 0.0
  %5065 = vmatpush1.msra.mxu0 0.0
  %5066 = vmatprep.mubr.f32.mxu0 0.0
  %v5067 = vand.u32 %v4996, 4294901760
  %v5068 = vsub.f32 %v4996, %v5067
  %v5069 = vand.u32 %v5068, 4294901760
  %v5070 = vsub.f32 %v5068, %v5069
  %v5071 = vand.u32 %v5070, 4294901760
  %5072 = vmatmul.mubr.f32.gmra.mrb[0].mxu0 %v5071
  %v5073 = vpop.f32.mrb[0].mxu0
  %v5074 = vadd.f32 0.0, %v5073
  %v5075 = vpop.f32.mrb[0].mxu0
  %5076 = vdwg.mxu0
  %5077 = vmatprep.subr.mxu0 0.0
  %v5078 = vand.u32 %v30, 4294901760
  %v5079 = vsub.f32 %v30, %v5078
  %v5080 = vand.u32 %v5079, 4294901760
  %v5081 = vsub.f32 %v5079, %v5080
  %v5082 = vand.u32 %v5081, 4294901760
  %5083 = vmatpush1.msra.mxu0 %v5082
  %5084 = vmatprep.subr.mxu0 0.0
  %v5085 = vand.u32 %v31, 4294901760
  %v5086 = vsub.f32 %v31, %v5085
  %v5087 = vand.u32 %v5086, 4294901760
  %v5088 = vsub.f32 %v5086, %v5087
  %v5089 = vand.u32 %v5088, 4294901760
  %5090 = vmatpush1.msra.mxu0 %v5089
  %5091 = vmatprep.subr.mxu0 0.0
  %v5092 = vand.u32 %v32, 4294901760
  %v5093 = vsub.f32 %v32, %v5092
  %v5094 = vand.u32 %v5093, 4294901760
  %v5095 = vsub.f32 %v5093, %v5094
  %v5096 = vand.u32 %v5095, 4294901760
  %5097 = vmatpush1.msra.mxu0 %v5096
  %5098 = vmatprep.subr.mxu0 0.0
  %v5099 = vand.u32 %v33, 4294901760
  %v5100 = vsub.f32 %v33, %v5099
  %v5101 = vand.u32 %v5100, 4294901760
  %v5102 = vsub.f32 %v5100, %v5101
  %v5103 = vand.u32 %v5102, 4294901760
  %5104 = vmatpush1.msra.mxu0 %v5103
  %5105 = vmatprep.subr.mxu0 0.0
  %5106 = vmatpush1.msra.mxu0 0.0
  %5107 = vmatprep.subr.mxu0 0.0
  %5108 = vmatpush1.msra.mxu0 0.0
  %5109 = vmatprep.subr.mxu0 0.0
  %5110 = vmatpush1.msra.mxu0 0.0
  %5111 = vmatprep.subr.mxu0 0.0
  %5112 = vmatpush1.msra.mxu0 0.0
  %5113 = vmatprep.subr.mxu0 0.0
  %5114 = vmatpush1.msra.mxu0 0.0
  %5115 = vmatprep.subr.mxu0 0.0
  %5116 = vmatpush1.msra.mxu0 0.0
  %5117 = vmatprep.subr.mxu0 0.0
  %5118 = vmatpush1.msra.mxu0 0.0
  %5119 = vmatprep.subr.mxu0 0.0
  %5120 = vmatpush1.msra.mxu0 0.0
  %5121 = vmatprep.subr.mxu0 0.0
  %5122 = vmatpush1.msra.mxu0 0.0
  %5123 = vmatprep.subr.mxu0 0.0
  %5124 = vmatpush1.msra.mxu0 0.0
  %5125 = vmatprep.subr.mxu0 0.0
  %5126 = vmatpush1.msra.mxu0 0.0
  %5127 = vmatprep.subr.mxu0 0.0
  %5128 = vmatpush1.msra.mxu0 0.0
  %5129 = vmatprep.subr.mxu0 0.0
  %5130 = vmatpush1.msra.mxu0 0.0
  %5131 = vmatprep.subr.mxu0 0.0
  %5132 = vmatpush1.msra.mxu0 0.0
  %5133 = vmatprep.subr.mxu0 0.0
  %5134 = vmatpush1.msra.mxu0 0.0
  %5135 = vmatprep.subr.mxu0 0.0
  %5136 = vmatpush1.msra.mxu0 0.0
  %5137 = vmatprep.subr.mxu0 0.0
  %5138 = vmatpush1.msra.mxu0 0.0
  %5139 = vmatprep.subr.mxu0 0.0
  %5140 = vmatpush1.msra.mxu0 0.0
  %5141 = vmatprep.subr.mxu0 0.0
  %5142 = vmatpush1.msra.mxu0 0.0
  %5143 = vmatprep.subr.mxu0 0.0
  %5144 = vmatpush1.msra.mxu0 0.0
  %5145 = vmatprep.subr.mxu0 0.0
  %5146 = vmatpush1.msra.mxu0 0.0
  %5147 = vmatprep.subr.mxu0 0.0
  %5148 = vmatpush1.msra.mxu0 0.0
  %5149 = vmatprep.subr.mxu0 0.0
  %5150 = vmatpush1.msra.mxu0 0.0
  %5151 = vmatprep.subr.mxu0 0.0
  %5152 = vmatpush1.msra.mxu0 0.0
  %5153 = vmatprep.subr.mxu0 0.0
  %5154 = vmatpush1.msra.mxu0 0.0
  %5155 = vmatprep.subr.mxu0 0.0
  %5156 = vmatpush1.msra.mxu0 0.0
  %5157 = vmatprep.subr.mxu0 0.0
  %5158 = vmatpush1.msra.mxu0 0.0
  %5159 = vmatprep.subr.mxu0 0.0
  %5160 = vmatpush1.msra.mxu0 0.0
  %5161 = vmatprep.mubr.f32.mxu0 0.0
  %v5162 = vand.u32 %v4996, 4294901760
  %5163 = vmatmul.mubr.f32.gmra.mrb[0].mxu0 %v5162
  %v5164 = vpop.f32.mrb[0].mxu0
  %v5165 = vadd.f32 %v5074, %v5164
  %v5166 = vpop.f32.mrb[0].mxu0
  %5167 = vdwg.mxu0
  %5168 = vmatprep.subr.mxu0 0.0
  %v5169 = vand.u32 %v30, 4294901760
  %v5170 = vsub.f32 %v30, %v5169
  %5171 = vmatpush1.msra.mxu0 %v5170
  %5172 = vmatprep.subr.mxu0 0.0
  %v5173 = vand.u32 %v31, 4294901760
  %v5174 = vsub.f32 %v31, %v5173
  %5175 = vmatpush1.msra.mxu0 %v5174
  %5176 = vmatprep.subr.mxu0 0.0
  %v5177 = vand.u32 %v32, 4294901760
  %v5178 = vsub.f32 %v32, %v5177
  %5179 = vmatpush1.msra.mxu0 %v5178
  %5180 = vmatprep.subr.mxu0 0.0
  %v5181 = vand.u32 %v33, 4294901760
  %v5182 = vsub.f32 %v33, %v5181
  %5183 = vmatpush1.msra.mxu0 %v5182
  %5184 = vmatprep.subr.mxu0 0.0
  %5185 = vmatpush1.msra.mxu0 0.0
  %5186 = vmatprep.subr.mxu0 0.0
  %5187 = vmatpush1.msra.mxu0 0.0
  %5188 = vmatprep.subr.mxu0 0.0
  %5189 = vmatpush1.msra.mxu0 0.0
  %5190 = vmatprep.subr.mxu0 0.0
  %5191 = vmatpush1.msra.mxu0 0.0
  %5192 = vmatprep.subr.mxu0 0.0
  %5193 = vmatpush1.msra.mxu0 0.0
  %5194 = vmatprep.subr.mxu0 0.0
  %5195 = vmatpush1.msra.mxu0 0.0
  %5196 = vmatprep.subr.mxu0 0.0
  %5197 = vmatpush1.msra.mxu0 0.0
  %5198 = vmatprep.subr.mxu0 0.0
  %5199 = vmatpush1.msra.mxu0 0.0
  %5200 = vmatprep.subr.mxu0 0.0
  %5201 = vmatpush1.msra.mxu0 0.0
  %5202 = vmatprep.subr.mxu0 0.0
  %5203 = vmatpush1.msra.mxu0 0.0
  %5204 = vmatprep.subr.mxu0 0.0
  %5205 = vmatpush1.msra.mxu0 0.0
  %5206 = vmatprep.subr.mxu0 0.0
  %5207 = vmatpush1.msra.mxu0 0.0
  %5208 = vmatprep.subr.mxu0 0.0
  %5209 = vmatpush1.msra.mxu0 0.0
  %5210 = vmatprep.subr.mxu0 0.0
  %5211 = vmatpush1.msra.mxu0 0.0
  %5212 = vmatprep.subr.mxu0 0.0
  %5213 = vmatpush1.msra.mxu0 0.0
  %5214 = vmatprep.subr.mxu0 0.0
  %5215 = vmatpush1.msra.mxu0 0.0
  %5216 = vmatprep.subr.mxu0 0.0
  %5217 = vmatpush1.msra.mxu0 0.0
  %5218 = vmatprep.subr.mxu0 0.0
  %5219 = vmatpush1.msra.mxu0 0.0
  %5220 = vmatprep.subr.mxu0 0.0
  %5221 = vmatpush1.msra.mxu0 0.0
  %5222 = vmatprep.subr.mxu0 0.0
  %5223 = vmatpush1.msra.mxu0 0.0
  %5224 = vmatprep.subr.mxu0 0.0
  %5225 = vmatpush1.msra.mxu0 0.0
  %5226 = vmatprep.subr.mxu0 0.0
  %5227 = vmatpush1.msra.mxu0 0.0
  %5228 = vmatprep.subr.mxu0 0.0
  %5229 = vmatpush1.msra.mxu0 0.0
  %5230 = vmatprep.subr.mxu0 0.0
  %5231 = vmatpush1.msra.mxu0 0.0
  %5232 = vmatprep.subr.mxu0 0.0
  %5233 = vmatpush1.msra.mxu0 0.0
  %5234 = vmatprep.subr.mxu0 0.0
  %5235 = vmatpush1.msra.mxu0 0.0
  %5236 = vmatprep.subr.mxu0 0.0
  %5237 = vmatpush1.msra.mxu0 0.0
  %5238 = vmatprep.subr.mxu0 0.0
  %5239 = vmatpush1.msra.mxu0 0.0
  %5240 = vmatprep.mubr.f32.mxu0 0.0
  %v5241 = vand.u32 %v4996, 4294901760
  %v5242 = vsub.f32 %v4996, %v5241
  %5243 = vmatmul.mubr.f32.gmra.mrb[0].mxu0 %v5242
  %v5244 = vpop.f32.mrb[0].mxu0
  %v5245 = vadd.f32 %v5165, %v5244
  %v5246 = vpop.f32.mrb[0].mxu0
  %5247 = vdwg.mxu0
  %5248 = vmatprep.subr.mxu0 0.0
  %v5249 = vand.u32 %v30, 4294901760
  %5250 = vmatpush1.msra.mxu0 %v5249
  %5251 = vmatprep.subr.mxu0 0.0
  %v5252 = vand.u32 %v31, 4294901760
  %5253 = vmatpush1.msra.mxu0 %v5252
  %5254 = vmatprep.subr.mxu0 0.0
  %v5255 = vand.u32 %v32, 4294901760
  %5256 = vmatpush1.msra.mxu0 %v5255
  %5257 = vmatprep.subr.mxu0 0.0
  %v5258 = vand.u32 %v33, 4294901760
  %5259 = vmatpush1.msra.mxu0 %v5258
  %5260 = vmatprep.subr.mxu0 0.0
  %5261 = vmatpush1.msra.mxu0 0.0
  %5262 = vmatprep.subr.mxu0 0.0
  %5263 = vmatpush1.msra.mxu0 0.0
  %5264 = vmatprep.subr.mxu0 0.0
  %5265 = vmatpush1.msra.mxu0 0.0
  %5266 = vmatprep.subr.mxu0 0.0
  %5267 = vmatpush1.msra.mxu0 0.0
  %5268 = vmatprep.subr.mxu0 0.0
  %5269 = vmatpush1.msra.mxu0 0.0
  %5270 = vmatprep.subr.mxu0 0.0
  %5271 = vmatpush1.msra.mxu0 0.0
  %5272 = vmatprep.subr.mxu0 0.0
  %5273 = vmatpush1.msra.mxu0 0.0
  %5274 = vmatprep.subr.mxu0 0.0
  %5275 = vmatpush1.msra.mxu0 0.0
  %5276 = vmatprep.subr.mxu0 0.0
  %5277 = vmatpush1.msra.mxu0 0.0
  %5278 = vmatprep.subr.mxu0 0.0
  %5279 = vmatpush1.msra.mxu0 0.0
  %5280 = vmatprep.subr.mxu0 0.0
  %5281 = vmatpush1.msra.mxu0 0.0
  %5282 = vmatprep.subr.mxu0 0.0
  %5283 = vmatpush1.msra.mxu0 0.0
  %5284 = vmatprep.subr.mxu0 0.0
  %5285 = vmatpush1.msra.mxu0 0.0
  %5286 = vmatprep.subr.mxu0 0.0
  %5287 = vmatpush1.msra.mxu0 0.0
  %5288 = vmatprep.subr.mxu0 0.0
  %5289 = vmatpush1.msra.mxu0 0.0
  %5290 = vmatprep.subr.mxu0 0.0
  %5291 = vmatpush1.msra.mxu0 0.0
  %5292 = vmatprep.subr.mxu0 0.0
  %5293 = vmatpush1.msra.mxu0 0.0
  %5294 = vmatprep.subr.mxu0 0.0
  %5295 = vmatpush1.msra.mxu0 0.0
  %5296 = vmatprep.subr.mxu0 0.0
  %5297 = vmatpush1.msra.mxu0 0.0
  %5298 = vmatprep.subr.mxu0 0.0
  %5299 = vmatpush1.msra.mxu0 0.0
  %5300 = vmatprep.subr.mxu0 0.0
  %5301 = vmatpush1.msra.mxu0 0.0
  %5302 = vmatprep.subr.mxu0 0.0
  %5303 = vmatpush1.msra.mxu0 0.0
  %5304 = vmatprep.subr.mxu0 0.0
  %5305 = vmatpush1.msra.mxu0 0.0
  %5306 = vmatprep.subr.mxu0 0.0
  %5307 = vmatpush1.msra.mxu0 0.0
  %5308 = vmatprep.subr.mxu0 0.0
  %5309 = vmatpush1.msra.mxu0 0.0
  %5310 = vmatprep.subr.mxu0 0.0
  %5311 = vmatpush1.msra.mxu0 0.0
  %5312 = vmatprep.subr.mxu0 0.0
  %5313 = vmatpush1.msra.mxu0 0.0
  %5314 = vmatprep.subr.mxu0 0.0
  %5315 = vmatpush1.msra.mxu0 0.0
  %5316 = vmatprep.mubr.f32.mxu0 0.0
  %v5317 = vand.u32 %v4996, 4294901760
  %v5318 = vsub.f32 %v4996, %v5317
  %v5319 = vand.u32 %v5318, 4294901760
  %5320 = vmatmul.mubr.f32.gmra.mrb[0].mxu0 %v5319
  %v5321 = vpop.f32.mrb[0].mxu0
  %v5322 = vadd.f32 %v5245, %v5321
  %v5323 = vpop.f32.mrb[0].mxu0
  %5324 = vdwg.mxu0
  %5325 = vmatprep.subr.mxu0 0.0
  %v5326 = vand.u32 %v30, 4294901760
  %v5327 = vsub.f32 %v30, %v5326
  %v5328 = vand.u32 %v5327, 4294901760
  %5329 = vmatpush1.msra.mxu0 %v5328
  %5330 = vmatprep.subr.mxu0 0.0
  %v5331 = vand.u32 %v31, 4294901760
  %v5332 = vsub.f32 %v31, %v5331
  %v5333 = vand.u32 %v5332, 4294901760
  %5334 = vmatpush1.msra.mxu0 %v5333
  %5335 = vmatprep.subr.mxu0 0.0
  %v5336 = vand.u32 %v32, 4294901760
  %v5337 = vsub.f32 %v32, %v5336
  %v5338 = vand.u32 %v5337, 4294901760
  %5339 = vmatpush1.msra.mxu0 %v5338
  %5340 = vmatprep.subr.mxu0 0.0
  %v5341 = vand.u32 %v33, 4294901760
  %v5342 = vsub.f32 %v33, %v5341
  %v5343 = vand.u32 %v5342, 4294901760
  %5344 = vmatpush1.msra.mxu0 %v5343
  %5345 = vmatprep.subr.mxu0 0.0
  %5346 = vmatpush1.msra.mxu0 0.0
  %5347 = vmatprep.subr.mxu0 0.0
  %5348 = vmatpush1.msra.mxu0 0.0
  %5349 = vmatprep.subr.mxu0 0.0
  %5350 = vmatpush1.msra.mxu0 0.0
  %5351 = vmatprep.subr.mxu0 0.0
  %5352 = vmatpush1.msra.mxu0 0.0
  %5353 = vmatprep.subr.mxu0 0.0
  %5354 = vmatpush1.msra.mxu0 0.0
  %5355 = vmatprep.subr.mxu0 0.0
  %5356 = vmatpush1.msra.mxu0 0.0
  %5357 = vmatprep.subr.mxu0 0.0
  %5358 = vmatpush1.msra.mxu0 0.0
  %5359 = vmatprep.subr.mxu0 0.0
  %5360 = vmatpush1.msra.mxu0 0.0
  %5361 = vmatprep.subr.mxu0 0.0
  %5362 = vmatpush1.msra.mxu0 0.0
  %5363 = vmatprep.subr.mxu0 0.0
  %5364 = vmatpush1.msra.mxu0 0.0
  %5365 = vmatprep.subr.mxu0 0.0
  %5366 = vmatpush1.msra.mxu0 0.0
  %5367 = vmatprep.subr.mxu0 0.0
  %5368 = vmatpush1.msra.mxu0 0.0
  %5369 = vmatprep.subr.mxu0 0.0
  %5370 = vmatpush1.msra.mxu0 0.0
  %5371 = vmatprep.subr.mxu0 0.0
  %5372 = vmatpush1.msra.mxu0 0.0
  %5373 = vmatprep.subr.mxu0 0.0
  %5374 = vmatpush1.msra.mxu0 0.0
  %5375 = vmatprep.subr.mxu0 0.0
  %5376 = vmatpush1.msra.mxu0 0.0
  %5377 = vmatprep.subr.mxu0 0.0
  %5378 = vmatpush1.msra.mxu0 0.0
  %5379 = vmatprep.subr.mxu0 0.0
  %5380 = vmatpush1.msra.mxu0 0.0
  %5381 = vmatprep.subr.mxu0 0.0
  %5382 = vmatpush1.msra.mxu0 0.0
  %5383 = vmatprep.subr.mxu0 0.0
  %5384 = vmatpush1.msra.mxu0 0.0
  %5385 = vmatprep.subr.mxu0 0.0
  %5386 = vmatpush1.msra.mxu0 0.0
  %5387 = vmatprep.subr.mxu0 0.0
  %5388 = vmatpush1.msra.mxu0 0.0
  %5389 = vmatprep.subr.mxu0 0.0
  %5390 = vmatpush1.msra.mxu0 0.0
  %5391 = vmatprep.subr.mxu0 0.0
  %5392 = vmatpush1.msra.mxu0 0.0
  %5393 = vmatprep.subr.mxu0 0.0
  %5394 = vmatpush1.msra.mxu0 0.0
  %5395 = vmatprep.subr.mxu0 0.0
  %5396 = vmatpush1.msra.mxu0 0.0
  %5397 = vmatprep.subr.mxu0 0.0
  %5398 = vmatpush1.msra.mxu0 0.0
  %5399 = vmatprep.subr.mxu0 0.0
  %5400 = vmatpush1.msra.mxu0 0.0
  %5401 = vmatprep.mubr.f32.mxu0 0.0
  %v5402 = vand.u32 %v4996, 4294901760
  %5403 = vmatmul.mubr.f32.gmra.mrb[0].mxu0 %v5402
  %v5404 = vpop.f32.mrb[0].mxu0
  %v5405 = vadd.f32 %v5322, %v5404
  %v5406 = vpop.f32.mrb[0].mxu0
  %5407 = vdwg.mxu0
  %5408 = vmatprep.subr.mxu0 0.0
  %v5409 = vand.u32 %v30, 4294901760
  %5410 = vmatpush1.msra.mxu0 %v5409
  %5411 = vmatprep.subr.mxu0 0.0
  %v5412 = vand.u32 %v31, 4294901760
  %5413 = vmatpush1.msra.mxu0 %v5412
  %5414 = vmatprep.subr.mxu0 0.0
  %v5415 = vand.u32 %v32, 4294901760
  %5416 = vmatpush1.msra.mxu0 %v5415
  %5417 = vmatprep.subr.mxu0 0.0
  %v5418 = vand.u32 %v33, 4294901760
  %5419 = vmatpush1.msra.mxu0 %v5418
  %5420 = vmatprep.subr.mxu0 0.0
  %5421 = vmatpush1.msra.mxu0 0.0
  %5422 = vmatprep.subr.mxu0 0.0
  %5423 = vmatpush1.msra.mxu0 0.0
  %5424 = vmatprep.subr.mxu0 0.0
  %5425 = vmatpush1.msra.mxu0 0.0
  %5426 = vmatprep.subr.mxu0 0.0
  %5427 = vmatpush1.msra.mxu0 0.0
  %5428 = vmatprep.subr.mxu0 0.0
  %5429 = vmatpush1.msra.mxu0 0.0
  %5430 = vmatprep.subr.mxu0 0.0
  %5431 = vmatpush1.msra.mxu0 0.0
  %5432 = vmatprep.subr.mxu0 0.0
  %5433 = vmatpush1.msra.mxu0 0.0
  %5434 = vmatprep.subr.mxu0 0.0
  %5435 = vmatpush1.msra.mxu0 0.0
  %5436 = vmatprep.subr.mxu0 0.0
  %5437 = vmatpush1.msra.mxu0 0.0
  %5438 = vmatprep.subr.mxu0 0.0
  %5439 = vmatpush1.msra.mxu0 0.0
  %5440 = vmatprep.subr.mxu0 0.0
  %5441 = vmatpush1.msra.mxu0 0.0
  %5442 = vmatprep.subr.mxu0 0.0
  %5443 = vmatpush1.msra.mxu0 0.0
  %5444 = vmatprep.subr.mxu0 0.0
  %5445 = vmatpush1.msra.mxu0 0.0
  %5446 = vmatprep.subr.mxu0 0.0
  %5447 = vmatpush1.msra.mxu0 0.0
  %5448 = vmatprep.subr.mxu0 0.0
  %5449 = vmatpush1.msra.mxu0 0.0
  %5450 = vmatprep.subr.mxu0 0.0
  %5451 = vmatpush1.msra.mxu0 0.0
  %5452 = vmatprep.subr.mxu0 0.0
  %5453 = vmatpush1.msra.mxu0 0.0
  %5454 = vmatprep.subr.mxu0 0.0
  %5455 = vmatpush1.msra.mxu0 0.0
  %5456 = vmatprep.subr.mxu0 0.0
  %5457 = vmatpush1.msra.mxu0 0.0
  %5458 = vmatprep.subr.mxu0 0.0
  %5459 = vmatpush1.msra.mxu0 0.0
  %5460 = vmatprep.subr.mxu0 0.0
  %5461 = vmatpush1.msra.mxu0 0.0
  %5462 = vmatprep.subr.mxu0 0.0
  %5463 = vmatpush1.msra.mxu0 0.0
  %5464 = vmatprep.subr.mxu0 0.0
  %5465 = vmatpush1.msra.mxu0 0.0
  %5466 = vmatprep.subr.mxu0 0.0
  %5467 = vmatpush1.msra.mxu0 0.0
  %5468 = vmatprep.subr.mxu0 0.0
  %5469 = vmatpush1.msra.mxu0 0.0
  %5470 = vmatprep.subr.mxu0 0.0
  %5471 = vmatpush1.msra.mxu0 0.0
  %5472 = vmatprep.subr.mxu0 0.0
  %5473 = vmatpush1.msra.mxu0 0.0
  %5474 = vmatprep.subr.mxu0 0.0
  %5475 = vmatpush1.msra.mxu0 0.0
  %5476 = vmatprep.mubr.f32.mxu0 0.0
  %v5477 = vand.u32 %v4996, 4294901760
  %5478 = vmatmul.mubr.f32.gmra.mrb[0].mxu0 %v5477
  %v5479 = vpop.f32.mrb[0].mxu0
  %v5480 = vadd.f32 %v5405, %v5479
  %v5481 = vpop.f32.mrb[0].mxu0
  %5482 = vdwg.mxu0
  %v5484 = vrot.slane %v5480, 7
  %5485 = vrot.lane.b32.xlu0 %v5484, 32
  %v5486 = vpop.permute.xlu0 %5485
  %v5488 = vadd.f32 %v546, %v5486
  %v5489 = vtanh.pop %v5488
  %v5491 = vrot.slane %v5489, 1
  %5492 = vrot.lane.b32.xlu0 %v5491, 96
  %v5493 = vpop.permute.xlu0 %5492
  %v5494 = vsel %vm550, %v5493, 0
  %5496 = vmatprep.subr.mxu0 0.0
  %v5497 = vand.u32 %v30, 4294901760
  %5498 = vmatpush1.msra.mxu0 %v5497
  %5499 = vmatprep.subr.mxu0 0.0
  %v5500 = vand.u32 %v31, 4294901760
  %5501 = vmatpush1.msra.mxu0 %v5500
  %5502 = vmatprep.subr.mxu0 0.0
  %v5503 = vand.u32 %v32, 4294901760
  %5504 = vmatpush1.msra.mxu0 %v5503
  %5505 = vmatprep.subr.mxu0 0.0
  %v5506 = vand.u32 %v33, 4294901760
  %5507 = vmatpush1.msra.mxu0 %v5506
  %5508 = vmatprep.subr.mxu0 0.0
  %5509 = vmatpush1.msra.mxu0 0.0
  %5510 = vmatprep.subr.mxu0 0.0
  %5511 = vmatpush1.msra.mxu0 0.0
  %5512 = vmatprep.subr.mxu0 0.0
  %5513 = vmatpush1.msra.mxu0 0.0
  %5514 = vmatprep.subr.mxu0 0.0
  %5515 = vmatpush1.msra.mxu0 0.0
  %5516 = vmatprep.subr.mxu0 0.0
  %5517 = vmatpush1.msra.mxu0 0.0
  %5518 = vmatprep.subr.mxu0 0.0
  %5519 = vmatpush1.msra.mxu0 0.0
  %5520 = vmatprep.subr.mxu0 0.0
  %5521 = vmatpush1.msra.mxu0 0.0
  %5522 = vmatprep.subr.mxu0 0.0
  %5523 = vmatpush1.msra.mxu0 0.0
  %5524 = vmatprep.subr.mxu0 0.0
  %5525 = vmatpush1.msra.mxu0 0.0
  %5526 = vmatprep.subr.mxu0 0.0
  %5527 = vmatpush1.msra.mxu0 0.0
  %5528 = vmatprep.subr.mxu0 0.0
  %5529 = vmatpush1.msra.mxu0 0.0
  %5530 = vmatprep.subr.mxu0 0.0
  %5531 = vmatpush1.msra.mxu0 0.0
  %5532 = vmatprep.subr.mxu0 0.0
  %5533 = vmatpush1.msra.mxu0 0.0
  %5534 = vmatprep.subr.mxu0 0.0
  %5535 = vmatpush1.msra.mxu0 0.0
  %5536 = vmatprep.subr.mxu0 0.0
  %5537 = vmatpush1.msra.mxu0 0.0
  %5538 = vmatprep.subr.mxu0 0.0
  %5539 = vmatpush1.msra.mxu0 0.0
  %5540 = vmatprep.subr.mxu0 0.0
  %5541 = vmatpush1.msra.mxu0 0.0
  %5542 = vmatprep.subr.mxu0 0.0
  %5543 = vmatpush1.msra.mxu0 0.0
  %5544 = vmatprep.subr.mxu0 0.0
  %5545 = vmatpush1.msra.mxu0 0.0
  %5546 = vmatprep.subr.mxu0 0.0
  %5547 = vmatpush1.msra.mxu0 0.0
  %5548 = vmatprep.subr.mxu0 0.0
  %5549 = vmatpush1.msra.mxu0 0.0
  %5550 = vmatprep.subr.mxu0 0.0
  %5551 = vmatpush1.msra.mxu0 0.0
  %5552 = vmatprep.subr.mxu0 0.0
  %5553 = vmatpush1.msra.mxu0 0.0
  %5554 = vmatprep.subr.mxu0 0.0
  %5555 = vmatpush1.msra.mxu0 0.0
  %5556 = vmatprep.subr.mxu0 0.0
  %5557 = vmatpush1.msra.mxu0 0.0
  %5558 = vmatprep.subr.mxu0 0.0
  %5559 = vmatpush1.msra.mxu0 0.0
  %5560 = vmatprep.subr.mxu0 0.0
  %5561 = vmatpush1.msra.mxu0 0.0
  %5562 = vmatprep.subr.mxu0 0.0
  %5563 = vmatpush1.msra.mxu0 0.0
  %5564 = vmatprep.mubr.f32.mxu0 0.0
  %v5565 = vand.u32 %v5494, 4294901760
  %v5566 = vsub.f32 %v5494, %v5565
  %v5567 = vand.u32 %v5566, 4294901760
  %v5568 = vsub.f32 %v5566, %v5567
  %v5569 = vand.u32 %v5568, 4294901760
  %5570 = vmatmul.mubr.f32.gmra.mrb[0].mxu0 %v5569
  %v5571 = vpop.f32.mrb[0].mxu0
  %v5572 = vadd.f32 0.0, %v5571
  %v5573 = vpop.f32.mrb[0].mxu0
  %5574 = vdwg.mxu0
  %5575 = vmatprep.subr.mxu0 0.0
  %v5576 = vand.u32 %v30, 4294901760
  %v5577 = vsub.f32 %v30, %v5576
  %v5578 = vand.u32 %v5577, 4294901760
  %v5579 = vsub.f32 %v5577, %v5578
  %v5580 = vand.u32 %v5579, 4294901760
  %5581 = vmatpush1.msra.mxu0 %v5580
  %5582 = vmatprep.subr.mxu0 0.0
  %v5583 = vand.u32 %v31, 4294901760
  %v5584 = vsub.f32 %v31, %v5583
  %v5585 = vand.u32 %v5584, 4294901760
  %v5586 = vsub.f32 %v5584, %v5585
  %v5587 = vand.u32 %v5586, 4294901760
  %5588 = vmatpush1.msra.mxu0 %v5587
  %5589 = vmatprep.subr.mxu0 0.0
  %v5590 = vand.u32 %v32, 4294901760
  %v5591 = vsub.f32 %v32, %v5590
  %v5592 = vand.u32 %v5591, 4294901760
  %v5593 = vsub.f32 %v5591, %v5592
  %v5594 = vand.u32 %v5593, 4294901760
  %5595 = vmatpush1.msra.mxu0 %v5594
  %5596 = vmatprep.subr.mxu0 0.0
  %v5597 = vand.u32 %v33, 4294901760
  %v5598 = vsub.f32 %v33, %v5597
  %v5599 = vand.u32 %v5598, 4294901760
  %v5600 = vsub.f32 %v5598, %v5599
  %v5601 = vand.u32 %v5600, 4294901760
  %5602 = vmatpush1.msra.mxu0 %v5601
  %5603 = vmatprep.subr.mxu0 0.0
  %5604 = vmatpush1.msra.mxu0 0.0
  %5605 = vmatprep.subr.mxu0 0.0
  %5606 = vmatpush1.msra.mxu0 0.0
  %5607 = vmatprep.subr.mxu0 0.0
  %5608 = vmatpush1.msra.mxu0 0.0
  %5609 = vmatprep.subr.mxu0 0.0
  %5610 = vmatpush1.msra.mxu0 0.0
  %5611 = vmatprep.subr.mxu0 0.0
  %5612 = vmatpush1.msra.mxu0 0.0
  %5613 = vmatprep.subr.mxu0 0.0
  %5614 = vmatpush1.msra.mxu0 0.0
  %5615 = vmatprep.subr.mxu0 0.0
  %5616 = vmatpush1.msra.mxu0 0.0
  %5617 = vmatprep.subr.mxu0 0.0
  %5618 = vmatpush1.msra.mxu0 0.0
  %5619 = vmatprep.subr.mxu0 0.0
  %5620 = vmatpush1.msra.mxu0 0.0
  %5621 = vmatprep.subr.mxu0 0.0
  %5622 = vmatpush1.msra.mxu0 0.0
  %5623 = vmatprep.subr.mxu0 0.0
  %5624 = vmatpush1.msra.mxu0 0.0
  %5625 = vmatprep.subr.mxu0 0.0
  %5626 = vmatpush1.msra.mxu0 0.0
  %5627 = vmatprep.subr.mxu0 0.0
  %5628 = vmatpush1.msra.mxu0 0.0
  %5629 = vmatprep.subr.mxu0 0.0
  %5630 = vmatpush1.msra.mxu0 0.0
  %5631 = vmatprep.subr.mxu0 0.0
  %5632 = vmatpush1.msra.mxu0 0.0
  %5633 = vmatprep.subr.mxu0 0.0
  %5634 = vmatpush1.msra.mxu0 0.0
  %5635 = vmatprep.subr.mxu0 0.0
  %5636 = vmatpush1.msra.mxu0 0.0
  %5637 = vmatprep.subr.mxu0 0.0
  %5638 = vmatpush1.msra.mxu0 0.0
  %5639 = vmatprep.subr.mxu0 0.0
  %5640 = vmatpush1.msra.mxu0 0.0
  %5641 = vmatprep.subr.mxu0 0.0
  %5642 = vmatpush1.msra.mxu0 0.0
  %5643 = vmatprep.subr.mxu0 0.0
  %5644 = vmatpush1.msra.mxu0 0.0
  %5645 = vmatprep.subr.mxu0 0.0
  %5646 = vmatpush1.msra.mxu0 0.0
  %5647 = vmatprep.subr.mxu0 0.0
  %5648 = vmatpush1.msra.mxu0 0.0
  %5649 = vmatprep.subr.mxu0 0.0
  %5650 = vmatpush1.msra.mxu0 0.0
  %5651 = vmatprep.subr.mxu0 0.0
  %5652 = vmatpush1.msra.mxu0 0.0
  %5653 = vmatprep.subr.mxu0 0.0
  %5654 = vmatpush1.msra.mxu0 0.0
  %5655 = vmatprep.subr.mxu0 0.0
  %5656 = vmatpush1.msra.mxu0 0.0
  %5657 = vmatprep.subr.mxu0 0.0
  %5658 = vmatpush1.msra.mxu0 0.0
  %5659 = vmatprep.mubr.f32.mxu0 0.0
  %v5660 = vand.u32 %v5494, 4294901760
  %5661 = vmatmul.mubr.f32.gmra.mrb[0].mxu0 %v5660
  %v5662 = vpop.f32.mrb[0].mxu0
  %v5663 = vadd.f32 %v5572, %v5662
  %v5664 = vpop.f32.mrb[0].mxu0
  %5665 = vdwg.mxu0
  %5666 = vmatprep.subr.mxu0 0.0
  %v5667 = vand.u32 %v30, 4294901760
  %v5668 = vsub.f32 %v30, %v5667
  %5669 = vmatpush1.msra.mxu0 %v5668
  %5670 = vmatprep.subr.mxu0 0.0
  %v5671 = vand.u32 %v31, 4294901760
  %v5672 = vsub.f32 %v31, %v5671
  %5673 = vmatpush1.msra.mxu0 %v5672
  %5674 = vmatprep.subr.mxu0 0.0
  %v5675 = vand.u32 %v32, 4294901760
  %v5676 = vsub.f32 %v32, %v5675
  %5677 = vmatpush1.msra.mxu0 %v5676
  %5678 = vmatprep.subr.mxu0 0.0
  %v5679 = vand.u32 %v33, 4294901760
  %v5680 = vsub.f32 %v33, %v5679
  %5681 = vmatpush1.msra.mxu0 %v5680
  %5682 = vmatprep.subr.mxu0 0.0
  %5683 = vmatpush1.msra.mxu0 0.0
  %5684 = vmatprep.subr.mxu0 0.0
  %5685 = vmatpush1.msra.mxu0 0.0
  %5686 = vmatprep.subr.mxu0 0.0
  %5687 = vmatpush1.msra.mxu0 0.0
  %5688 = vmatprep.subr.mxu0 0.0
  %5689 = vmatpush1.msra.mxu0 0.0
  %5690 = vmatprep.subr.mxu0 0.0
  %5691 = vmatpush1.msra.mxu0 0.0
  %5692 = vmatprep.subr.mxu0 0.0
  %5693 = vmatpush1.msra.mxu0 0.0
  %5694 = vmatprep.subr.mxu0 0.0
  %5695 = vmatpush1.msra.mxu0 0.0
  %5696 = vmatprep.subr.mxu0 0.0
  %5697 = vmatpush1.msra.mxu0 0.0
  %5698 = vmatprep.subr.mxu0 0.0
  %5699 = vmatpush1.msra.mxu0 0.0
  %5700 = vmatprep.subr.mxu0 0.0
  %5701 = vmatpush1.msra.mxu0 0.0
  %5702 = vmatprep.subr.mxu0 0.0
  %5703 = vmatpush1.msra.mxu0 0.0
  %5704 = vmatprep.subr.mxu0 0.0
  %5705 = vmatpush1.msra.mxu0 0.0
  %5706 = vmatprep.subr.mxu0 0.0
  %5707 = vmatpush1.msra.mxu0 0.0
  %5708 = vmatprep.subr.mxu0 0.0
  %5709 = vmatpush1.msra.mxu0 0.0
  %5710 = vmatprep.subr.mxu0 0.0
  %5711 = vmatpush1.msra.mxu0 0.0
  %5712 = vmatprep.subr.mxu0 0.0
  %5713 = vmatpush1.msra.mxu0 0.0
  %5714 = vmatprep.subr.mxu0 0.0
  %5715 = vmatpush1.msra.mxu0 0.0
  %5716 = vmatprep.subr.mxu0 0.0
  %5717 = vmatpush1.msra.mxu0 0.0
  %5718 = vmatprep.subr.mxu0 0.0
  %5719 = vmatpush1.msra.mxu0 0.0
  %5720 = vmatprep.subr.mxu0 0.0
  %5721 = vmatpush1.msra.mxu0 0.0
  %5722 = vmatprep.subr.mxu0 0.0
  %5723 = vmatpush1.msra.mxu0 0.0
  %5724 = vmatprep.subr.mxu0 0.0
  %5725 = vmatpush1.msra.mxu0 0.0
  %5726 = vmatprep.subr.mxu0 0.0
  %5727 = vmatpush1.msra.mxu0 0.0
  %5728 = vmatprep.subr.mxu0 0.0
  %5729 = vmatpush1.msra.mxu0 0.0
  %5730 = vmatprep.subr.mxu0 0.0
  %5731 = vmatpush1.msra.mxu0 0.0
  %5732 = vmatprep.subr.mxu0 0.0
  %5733 = vmatpush1.msra.mxu0 0.0
  %5734 = vmatprep.subr.mxu0 0.0
  %5735 = vmatpush1.msra.mxu0 0.0
  %5736 = vmatprep.subr.mxu0 0.0
  %5737 = vmatpush1.msra.mxu0 0.0
  %5738 = vmatprep.mubr.f32.mxu0 0.0
  %v5739 = vand.u32 %v5494, 4294901760
  %v5740 = vsub.f32 %v5494, %v5739
  %5741 = vmatmul.mubr.f32.gmra.mrb[0].mxu0 %v5740
  %v5742 = vpop.f32.mrb[0].mxu0
  %v5743 = vadd.f32 %v5663, %v5742
  %v5744 = vpop.f32.mrb[0].mxu0
  %5745 = vdwg.mxu0
  %5746 = vmatprep.subr.mxu0 0.0
  %v5747 = vand.u32 %v30, 4294901760
  %5748 = vmatpush1.msra.mxu0 %v5747
  %5749 = vmatprep.subr.mxu0 0.0
  %v5750 = vand.u32 %v31, 4294901760
  %5751 = vmatpush1.msra.mxu0 %v5750
  %5752 = vmatprep.subr.mxu0 0.0
  %v5753 = vand.u32 %v32, 4294901760
  %5754 = vmatpush1.msra.mxu0 %v5753
  %5755 = vmatprep.subr.mxu0 0.0
  %v5756 = vand.u32 %v33, 4294901760
  %5757 = vmatpush1.msra.mxu0 %v5756
  %5758 = vmatprep.subr.mxu0 0.0
  %5759 = vmatpush1.msra.mxu0 0.0
  %5760 = vmatprep.subr.mxu0 0.0
  %5761 = vmatpush1.msra.mxu0 0.0
  %5762 = vmatprep.subr.mxu0 0.0
  %5763 = vmatpush1.msra.mxu0 0.0
  %5764 = vmatprep.subr.mxu0 0.0
  %5765 = vmatpush1.msra.mxu0 0.0
  %5766 = vmatprep.subr.mxu0 0.0
  %5767 = vmatpush1.msra.mxu0 0.0
  %5768 = vmatprep.subr.mxu0 0.0
  %5769 = vmatpush1.msra.mxu0 0.0
  %5770 = vmatprep.subr.mxu0 0.0
  %5771 = vmatpush1.msra.mxu0 0.0
  %5772 = vmatprep.subr.mxu0 0.0
  %5773 = vmatpush1.msra.mxu0 0.0
  %5774 = vmatprep.subr.mxu0 0.0
  %5775 = vmatpush1.msra.mxu0 0.0
  %5776 = vmatprep.subr.mxu0 0.0
  %5777 = vmatpush1.msra.mxu0 0.0
  %5778 = vmatprep.subr.mxu0 0.0
  %5779 = vmatpush1.msra.mxu0 0.0
  %5780 = vmatprep.subr.mxu0 0.0
  %5781 = vmatpush1.msra.mxu0 0.0
  %5782 = vmatprep.subr.mxu0 0.0
  %5783 = vmatpush1.msra.mxu0 0.0
  %5784 = vmatprep.subr.mxu0 0.0
  %5785 = vmatpush1.msra.mxu0 0.0
  %5786 = vmatprep.subr.mxu0 0.0
  %5787 = vmatpush1.msra.mxu0 0.0
  %5788 = vmatprep.subr.mxu0 0.0
  %5789 = vmatpush1.msra.mxu0 0.0
  %5790 = vmatprep.subr.mxu0 0.0
  %5791 = vmatpush1.msra.mxu0 0.0
  %5792 = vmatprep.subr.mxu0 0.0
  %5793 = vmatpush1.msra.mxu0 0.0
  %5794 = vmatprep.subr.mxu0 0.0
  %5795 = vmatpush1.msra.mxu0 0.0
  %5796 = vmatprep.subr.mxu0 0.0
  %5797 = vmatpush1.msra.mxu0 0.0
  %5798 = vmatprep.subr.mxu0 0.0
  %5799 = vmatpush1.msra.mxu0 0.0
  %5800 = vmatprep.subr.mxu0 0.0
  %5801 = vmatpush1.msra.mxu0 0.0
  %5802 = vmatprep.subr.mxu0 0.0
  %5803 = vmatpush1.msra.mxu0 0.0
  %5804 = vmatprep.subr.mxu0 0.0
  %5805 = vmatpush1.msra.mxu0 0.0
  %5806 = vmatprep.subr.mxu0 0.0
  %5807 = vmatpush1.msra.mxu0 0.0
  %5808 = vmatprep.subr.mxu0 0.0
  %5809 = vmatpush1.msra.mxu0 0.0
  %5810 = vmatprep.subr.mxu0 0.0
  %5811 = vmatpush1.msra.mxu0 0.0
  %5812 = vmatprep.subr.mxu0 0.0
  %5813 = vmatpush1.msra.mxu0 0.0
  %5814 = vmatprep.mubr.f32.mxu0 0.0
  %v5815 = vand.u32 %v5494, 4294901760
  %v5816 = vsub.f32 %v5494, %v5815
  %v5817 = vand.u32 %v5816, 4294901760
  %5818 = vmatmul.mubr.f32.gmra.mrb[0].mxu0 %v5817
  %v5819 = vpop.f32.mrb[0].mxu0
  %v5820 = vadd.f32 %v5743, %v5819
  %v5821 = vpop.f32.mrb[0].mxu0
  %5822 = vdwg.mxu0
  %5823 = vmatprep.subr.mxu0 0.0
  %v5824 = vand.u32 %v30, 4294901760
  %v5825 = vsub.f32 %v30, %v5824
  %v5826 = vand.u32 %v5825, 4294901760
  %5827 = vmatpush1.msra.mxu0 %v5826
  %5828 = vmatprep.subr.mxu0 0.0
  %v5829 = vand.u32 %v31, 4294901760
  %v5830 = vsub.f32 %v31, %v5829
  %v5831 = vand.u32 %v5830, 4294901760
  %5832 = vmatpush1.msra.mxu0 %v5831
  %5833 = vmatprep.subr.mxu0 0.0
  %v5834 = vand.u32 %v32, 4294901760
  %v5835 = vsub.f32 %v32, %v5834
  %v5836 = vand.u32 %v5835, 4294901760
  %5837 = vmatpush1.msra.mxu0 %v5836
  %5838 = vmatprep.subr.mxu0 0.0
  %v5839 = vand.u32 %v33, 4294901760
  %v5840 = vsub.f32 %v33, %v5839
  %v5841 = vand.u32 %v5840, 4294901760
  %5842 = vmatpush1.msra.mxu0 %v5841
  %5843 = vmatprep.subr.mxu0 0.0
  %5844 = vmatpush1.msra.mxu0 0.0
  %5845 = vmatprep.subr.mxu0 0.0
  %5846 = vmatpush1.msra.mxu0 0.0
  %5847 = vmatprep.subr.mxu0 0.0
  %5848 = vmatpush1.msra.mxu0 0.0
  %5849 = vmatprep.subr.mxu0 0.0
  %5850 = vmatpush1.msra.mxu0 0.0
  %5851 = vmatprep.subr.mxu0 0.0
  %5852 = vmatpush1.msra.mxu0 0.0
  %5853 = vmatprep.subr.mxu0 0.0
  %5854 = vmatpush1.msra.mxu0 0.0
  %5855 = vmatprep.subr.mxu0 0.0
  %5856 = vmatpush1.msra.mxu0 0.0
  %5857 = vmatprep.subr.mxu0 0.0
  %5858 = vmatpush1.msra.mxu0 0.0
  %5859 = vmatprep.subr.mxu0 0.0
  %5860 = vmatpush1.msra.mxu0 0.0
  %5861 = vmatprep.subr.mxu0 0.0
  %5862 = vmatpush1.msra.mxu0 0.0
  %5863 = vmatprep.subr.mxu0 0.0
  %5864 = vmatpush1.msra.mxu0 0.0
  %5865 = vmatprep.subr.mxu0 0.0
  %5866 = vmatpush1.msra.mxu0 0.0
  %5867 = vmatprep.subr.mxu0 0.0
  %5868 = vmatpush1.msra.mxu0 0.0
  %5869 = vmatprep.subr.mxu0 0.0
  %5870 = vmatpush1.msra.mxu0 0.0
  %5871 = vmatprep.subr.mxu0 0.0
  %5872 = vmatpush1.msra.mxu0 0.0
  %5873 = vmatprep.subr.mxu0 0.0
  %5874 = vmatpush1.msra.mxu0 0.0
  %5875 = vmatprep.subr.mxu0 0.0
  %5876 = vmatpush1.msra.mxu0 0.0
  %5877 = vmatprep.subr.mxu0 0.0
  %5878 = vmatpush1.msra.mxu0 0.0
  %5879 = vmatprep.subr.mxu0 0.0
  %5880 = vmatpush1.msra.mxu0 0.0
  %5881 = vmatprep.subr.mxu0 0.0
  %5882 = vmatpush1.msra.mxu0 0.0
  %5883 = vmatprep.subr.mxu0 0.0
  %5884 = vmatpush1.msra.mxu0 0.0
  %5885 = vmatprep.subr.mxu0 0.0
  %5886 = vmatpush1.msra.mxu0 0.0
  %5887 = vmatprep.subr.mxu0 0.0
  %5888 = vmatpush1.msra.mxu0 0.0
  %5889 = vmatprep.subr.mxu0 0.0
  %5890 = vmatpush1.msra.mxu0 0.0
  %5891 = vmatprep.subr.mxu0 0.0
  %5892 = vmatpush1.msra.mxu0 0.0
  %5893 = vmatprep.subr.mxu0 0.0
  %5894 = vmatpush1.msra.mxu0 0.0
  %5895 = vmatprep.subr.mxu0 0.0
  %5896 = vmatpush1.msra.mxu0 0.0
  %5897 = vmatprep.subr.mxu0 0.0
  %5898 = vmatpush1.msra.mxu0 0.0
  %5899 = vmatprep.mubr.f32.mxu0 0.0
  %v5900 = vand.u32 %v5494, 4294901760
  %5901 = vmatmul.mubr.f32.gmra.mrb[0].mxu0 %v5900
  %v5902 = vpop.f32.mrb[0].mxu0
  %v5903 = vadd.f32 %v5820, %v5902
  %v5904 = vpop.f32.mrb[0].mxu0
  %5905 = vdwg.mxu0
  %5906 = vmatprep.subr.mxu0 0.0
  %v5907 = vand.u32 %v30, 4294901760
  %5908 = vmatpush1.msra.mxu0 %v5907
  %5909 = vmatprep.subr.mxu0 0.0
  %v5910 = vand.u32 %v31, 4294901760
  %5911 = vmatpush1.msra.mxu0 %v5910
  %5912 = vmatprep.subr.mxu0 0.0
  %v5913 = vand.u32 %v32, 4294901760
  %5914 = vmatpush1.msra.mxu0 %v5913
  %5915 = vmatprep.subr.mxu0 0.0
  %v5916 = vand.u32 %v33, 4294901760
  %5917 = vmatpush1.msra.mxu0 %v5916
  %5918 = vmatprep.subr.mxu0 0.0
  %5919 = vmatpush1.msra.mxu0 0.0
  %5920 = vmatprep.subr.mxu0 0.0
  %5921 = vmatpush1.msra.mxu0 0.0
  %5922 = vmatprep.subr.mxu0 0.0
  %5923 = vmatpush1.msra.mxu0 0.0
  %5924 = vmatprep.subr.mxu0 0.0
  %5925 = vmatpush1.msra.mxu0 0.0
  %5926 = vmatprep.subr.mxu0 0.0
  %5927 = vmatpush1.msra.mxu0 0.0
  %5928 = vmatprep.subr.mxu0 0.0
  %5929 = vmatpush1.msra.mxu0 0.0
  %5930 = vmatprep.subr.mxu0 0.0
  %5931 = vmatpush1.msra.mxu0 0.0
  %5932 = vmatprep.subr.mxu0 0.0
  %5933 = vmatpush1.msra.mxu0 0.0
  %5934 = vmatprep.subr.mxu0 0.0
  %5935 = vmatpush1.msra.mxu0 0.0
  %5936 = vmatprep.subr.mxu0 0.0
  %5937 = vmatpush1.msra.mxu0 0.0
  %5938 = vmatprep.subr.mxu0 0.0
  %5939 = vmatpush1.msra.mxu0 0.0
  %5940 = vmatprep.subr.mxu0 0.0
  %5941 = vmatpush1.msra.mxu0 0.0
  %5942 = vmatprep.subr.mxu0 0.0
  %5943 = vmatpush1.msra.mxu0 0.0
  %5944 = vmatprep.subr.mxu0 0.0
  %5945 = vmatpush1.msra.mxu0 0.0
  %5946 = vmatprep.subr.mxu0 0.0
  %5947 = vmatpush1.msra.mxu0 0.0
  %5948 = vmatprep.subr.mxu0 0.0
  %5949 = vmatpush1.msra.mxu0 0.0
  %5950 = vmatprep.subr.mxu0 0.0
  %5951 = vmatpush1.msra.mxu0 0.0
  %5952 = vmatprep.subr.mxu0 0.0
  %5953 = vmatpush1.msra.mxu0 0.0
  %5954 = vmatprep.subr.mxu0 0.0
  %5955 = vmatpush1.msra.mxu0 0.0
  %5956 = vmatprep.subr.mxu0 0.0
  %5957 = vmatpush1.msra.mxu0 0.0
  %5958 = vmatprep.subr.mxu0 0.0
  %5959 = vmatpush1.msra.mxu0 0.0
  %5960 = vmatprep.subr.mxu0 0.0
  %5961 = vmatpush1.msra.mxu0 0.0
  %5962 = vmatprep.subr.mxu0 0.0
  %5963 = vmatpush1.msra.mxu0 0.0
  %5964 = vmatprep.subr.mxu0 0.0
  %5965 = vmatpush1.msra.mxu0 0.0
  %5966 = vmatprep.subr.mxu0 0.0
  %5967 = vmatpush1.msra.mxu0 0.0
  %5968 = vmatprep.subr.mxu0 0.0
  %5969 = vmatpush1.msra.mxu0 0.0
  %5970 = vmatprep.subr.mxu0 0.0
  %5971 = vmatpush1.msra.mxu0 0.0
  %5972 = vmatprep.subr.mxu0 0.0
  %5973 = vmatpush1.msra.mxu0 0.0
  %5974 = vmatprep.mubr.f32.mxu0 0.0
  %v5975 = vand.u32 %v5494, 4294901760
  %5976 = vmatmul.mubr.f32.gmra.mrb[0].mxu0 %v5975
  %v5977 = vpop.f32.mrb[0].mxu0
  %v5978 = vadd.f32 %v5903, %v5977
  %v5979 = vpop.f32.mrb[0].mxu0
  %5980 = vdwg.mxu0
  %v5982 = vrot.slane %v5978, 6
  %5983 = vrot.lane.b32.xlu0 %v5982, 32
  %v5984 = vpop.permute.xlu0 %5983
  %v5986 = vadd.f32 %v546, %v5984
  %v5987 = vtanh.pop %v5986
  %v5989 = vrot.slane %v5987, 2
  %5990 = vrot.lane.b32.xlu0 %v5989, 96
  %v5991 = vpop.permute.xlu0 %5990
  %v5992 = vsel %vm550, %v5991, 0
  %5994 = vmatprep.subr.mxu0 0.0
  %v5995 = vand.u32 %v30, 4294901760
  %5996 = vmatpush1.msra.mxu0 %v5995
  %5997 = vmatprep.subr.mxu0 0.0
  %v5998 = vand.u32 %v31, 4294901760
  %5999 = vmatpush1.msra.mxu0 %v5998
  %6000 = vmatprep.subr.mxu0 0.0
  %v6001 = vand.u32 %v32, 4294901760
  %6002 = vmatpush1.msra.mxu0 %v6001
  %6003 = vmatprep.subr.mxu0 0.0
  %v6004 = vand.u32 %v33, 4294901760
  %6005 = vmatpush1.msra.mxu0 %v6004
  %6006 = vmatprep.subr.mxu0 0.0
  %6007 = vmatpush1.msra.mxu0 0.0
  %6008 = vmatprep.subr.mxu0 0.0
  %6009 = vmatpush1.msra.mxu0 0.0
  %6010 = vmatprep.subr.mxu0 0.0
  %6011 = vmatpush1.msra.mxu0 0.0
  %6012 = vmatprep.subr.mxu0 0.0
  %6013 = vmatpush1.msra.mxu0 0.0
  %6014 = vmatprep.subr.mxu0 0.0
  %6015 = vmatpush1.msra.mxu0 0.0
  %6016 = vmatprep.subr.mxu0 0.0
  %6017 = vmatpush1.msra.mxu0 0.0
  %6018 = vmatprep.subr.mxu0 0.0
  %6019 = vmatpush1.msra.mxu0 0.0
  %6020 = vmatprep.subr.mxu0 0.0
  %6021 = vmatpush1.msra.mxu0 0.0
  %6022 = vmatprep.subr.mxu0 0.0
  %6023 = vmatpush1.msra.mxu0 0.0
  %6024 = vmatprep.subr.mxu0 0.0
  %6025 = vmatpush1.msra.mxu0 0.0
  %6026 = vmatprep.subr.mxu0 0.0
  %6027 = vmatpush1.msra.mxu0 0.0
  %6028 = vmatprep.subr.mxu0 0.0
  %6029 = vmatpush1.msra.mxu0 0.0
  %6030 = vmatprep.subr.mxu0 0.0
  %6031 = vmatpush1.msra.mxu0 0.0
  %6032 = vmatprep.subr.mxu0 0.0
  %6033 = vmatpush1.msra.mxu0 0.0
  %6034 = vmatprep.subr.mxu0 0.0
  %6035 = vmatpush1.msra.mxu0 0.0
  %6036 = vmatprep.subr.mxu0 0.0
  %6037 = vmatpush1.msra.mxu0 0.0
  %6038 = vmatprep.subr.mxu0 0.0
  %6039 = vmatpush1.msra.mxu0 0.0
  %6040 = vmatprep.subr.mxu0 0.0
  %6041 = vmatpush1.msra.mxu0 0.0
  %6042 = vmatprep.subr.mxu0 0.0
  %6043 = vmatpush1.msra.mxu0 0.0
  %6044 = vmatprep.subr.mxu0 0.0
  %6045 = vmatpush1.msra.mxu0 0.0
  %6046 = vmatprep.subr.mxu0 0.0
  %6047 = vmatpush1.msra.mxu0 0.0
  %6048 = vmatprep.subr.mxu0 0.0
  %6049 = vmatpush1.msra.mxu0 0.0
  %6050 = vmatprep.subr.mxu0 0.0
  %6051 = vmatpush1.msra.mxu0 0.0
  %6052 = vmatprep.subr.mxu0 0.0
  %6053 = vmatpush1.msra.mxu0 0.0
  %6054 = vmatprep.subr.mxu0 0.0
  %6055 = vmatpush1.msra.mxu0 0.0
  %6056 = vmatprep.subr.mxu0 0.0
  %6057 = vmatpush1.msra.mxu0 0.0
  %6058 = vmatprep.subr.mxu0 0.0
  %6059 = vmatpush1.msra.mxu0 0.0
  %6060 = vmatprep.subr.mxu0 0.0
  %6061 = vmatpush1.msra.mxu0 0.0
  %6062 = vmatprep.mubr.f32.mxu0 0.0
  %v6063 = vand.u32 %v5992, 4294901760
  %v6064 = vsub.f32 %v5992, %v6063
  %v6065 = vand.u32 %v6064, 4294901760
  %v6066 = vsub.f32 %v6064, %v6065
  %v6067 = vand.u32 %v6066, 4294901760
  %6068 = vmatmul.mubr.f32.gmra.mrb[0].mxu0 %v6067
  %v6069 = vpop.f32.mrb[0].mxu0
  %v6070 = vadd.f32 0.0, %v6069
  %v6071 = vpop.f32.mrb[0].mxu0
  %6072 = vdwg.mxu0
  %6073 = vmatprep.subr.mxu0 0.0
  %v6074 = vand.u32 %v30, 4294901760
  %v6075 = vsub.f32 %v30, %v6074
  %v6076 = vand.u32 %v6075, 4294901760
  %v6077 = vsub.f32 %v6075, %v6076
  %v6078 = vand.u32 %v6077, 4294901760
  %6079 = vmatpush1.msra.mxu0 %v6078
  %6080 = vmatprep.subr.mxu0 0.0
  %v6081 = vand.u32 %v31, 4294901760
  %v6082 = vsub.f32 %v31, %v6081
  %v6083 = vand.u32 %v6082, 4294901760
  %v6084 = vsub.f32 %v6082, %v6083
  %v6085 = vand.u32 %v6084, 4294901760
  %6086 = vmatpush1.msra.mxu0 %v6085
  %6087 = vmatprep.subr.mxu0 0.0
  %v6088 = vand.u32 %v32, 4294901760
  %v6089 = vsub.f32 %v32, %v6088
  %v6090 = vand.u32 %v6089, 4294901760
  %v6091 = vsub.f32 %v6089, %v6090
  %v6092 = vand.u32 %v6091, 4294901760
  %6093 = vmatpush1.msra.mxu0 %v6092
  %6094 = vmatprep.subr.mxu0 0.0
  %v6095 = vand.u32 %v33, 4294901760
  %v6096 = vsub.f32 %v33, %v6095
  %v6097 = vand.u32 %v6096, 4294901760
  %v6098 = vsub.f32 %v6096, %v6097
  %v6099 = vand.u32 %v6098, 4294901760
  %6100 = vmatpush1.msra.mxu0 %v6099
  %6101 = vmatprep.subr.mxu0 0.0
  %6102 = vmatpush1.msra.mxu0 0.0
  %6103 = vmatprep.subr.mxu0 0.0
  %6104 = vmatpush1.msra.mxu0 0.0
  %6105 = vmatprep.subr.mxu0 0.0
  %6106 = vmatpush1.msra.mxu0 0.0
  %6107 = vmatprep.subr.mxu0 0.0
  %6108 = vmatpush1.msra.mxu0 0.0
  %6109 = vmatprep.subr.mxu0 0.0
  %6110 = vmatpush1.msra.mxu0 0.0
  %6111 = vmatprep.subr.mxu0 0.0
  %6112 = vmatpush1.msra.mxu0 0.0
  %6113 = vmatprep.subr.mxu0 0.0
  %6114 = vmatpush1.msra.mxu0 0.0
  %6115 = vmatprep.subr.mxu0 0.0
  %6116 = vmatpush1.msra.mxu0 0.0
  %6117 = vmatprep.subr.mxu0 0.0
  %6118 = vmatpush1.msra.mxu0 0.0
  %6119 = vmatprep.subr.mxu0 0.0
  %6120 = vmatpush1.msra.mxu0 0.0
  %6121 = vmatprep.subr.mxu0 0.0
  %6122 = vmatpush1.msra.mxu0 0.0
  %6123 = vmatprep.subr.mxu0 0.0
  %6124 = vmatpush1.msra.mxu0 0.0
  %6125 = vmatprep.subr.mxu0 0.0
  %6126 = vmatpush1.msra.mxu0 0.0
  %6127 = vmatprep.subr.mxu0 0.0
  %6128 = vmatpush1.msra.mxu0 0.0
  %6129 = vmatprep.subr.mxu0 0.0
  %6130 = vmatpush1.msra.mxu0 0.0
  %6131 = vmatprep.subr.mxu0 0.0
  %6132 = vmatpush1.msra.mxu0 0.0
  %6133 = vmatprep.subr.mxu0 0.0
  %6134 = vmatpush1.msra.mxu0 0.0
  %6135 = vmatprep.subr.mxu0 0.0
  %6136 = vmatpush1.msra.mxu0 0.0
  %6137 = vmatprep.subr.mxu0 0.0
  %6138 = vmatpush1.msra.mxu0 0.0
  %6139 = vmatprep.subr.mxu0 0.0
  %6140 = vmatpush1.msra.mxu0 0.0
  %6141 = vmatprep.subr.mxu0 0.0
  %6142 = vmatpush1.msra.mxu0 0.0
  %6143 = vmatprep.subr.mxu0 0.0
  %6144 = vmatpush1.msra.mxu0 0.0
  %6145 = vmatprep.subr.mxu0 0.0
  %6146 = vmatpush1.msra.mxu0 0.0
  %6147 = vmatprep.subr.mxu0 0.0
  %6148 = vmatpush1.msra.mxu0 0.0
  %6149 = vmatprep.subr.mxu0 0.0
  %6150 = vmatpush1.msra.mxu0 0.0
  %6151 = vmatprep.subr.mxu0 0.0
  %6152 = vmatpush1.msra.mxu0 0.0
  %6153 = vmatprep.subr.mxu0 0.0
  %6154 = vmatpush1.msra.mxu0 0.0
  %6155 = vmatprep.subr.mxu0 0.0
  %6156 = vmatpush1.msra.mxu0 0.0
  %6157 = vmatprep.mubr.f32.mxu0 0.0
  %v6158 = vand.u32 %v5992, 4294901760
  %6159 = vmatmul.mubr.f32.gmra.mrb[0].mxu0 %v6158
  %v6160 = vpop.f32.mrb[0].mxu0
  %v6161 = vadd.f32 %v6070, %v6160
  %v6162 = vpop.f32.mrb[0].mxu0
  %6163 = vdwg.mxu0
  %6164 = vmatprep.subr.mxu0 0.0
  %v6165 = vand.u32 %v30, 4294901760
  %v6166 = vsub.f32 %v30, %v6165
  %6167 = vmatpush1.msra.mxu0 %v6166
  %6168 = vmatprep.subr.mxu0 0.0
  %v6169 = vand.u32 %v31, 4294901760
  %v6170 = vsub.f32 %v31, %v6169
  %6171 = vmatpush1.msra.mxu0 %v6170
  %6172 = vmatprep.subr.mxu0 0.0
  %v6173 = vand.u32 %v32, 4294901760
  %v6174 = vsub.f32 %v32, %v6173
  %6175 = vmatpush1.msra.mxu0 %v6174
  %6176 = vmatprep.subr.mxu0 0.0
  %v6177 = vand.u32 %v33, 4294901760
  %v6178 = vsub.f32 %v33, %v6177
  %6179 = vmatpush1.msra.mxu0 %v6178
  %6180 = vmatprep.subr.mxu0 0.0
  %6181 = vmatpush1.msra.mxu0 0.0
  %6182 = vmatprep.subr.mxu0 0.0
  %6183 = vmatpush1.msra.mxu0 0.0
  %6184 = vmatprep.subr.mxu0 0.0
  %6185 = vmatpush1.msra.mxu0 0.0
  %6186 = vmatprep.subr.mxu0 0.0
  %6187 = vmatpush1.msra.mxu0 0.0
  %6188 = vmatprep.subr.mxu0 0.0
  %6189 = vmatpush1.msra.mxu0 0.0
  %6190 = vmatprep.subr.mxu0 0.0
  %6191 = vmatpush1.msra.mxu0 0.0
  %6192 = vmatprep.subr.mxu0 0.0
  %6193 = vmatpush1.msra.mxu0 0.0
  %6194 = vmatprep.subr.mxu0 0.0
  %6195 = vmatpush1.msra.mxu0 0.0
  %6196 = vmatprep.subr.mxu0 0.0
  %6197 = vmatpush1.msra.mxu0 0.0
  %6198 = vmatprep.subr.mxu0 0.0
  %6199 = vmatpush1.msra.mxu0 0.0
  %6200 = vmatprep.subr.mxu0 0.0
  %6201 = vmatpush1.msra.mxu0 0.0
  %6202 = vmatprep.subr.mxu0 0.0
  %6203 = vmatpush1.msra.mxu0 0.0
  %6204 = vmatprep.subr.mxu0 0.0
  %6205 = vmatpush1.msra.mxu0 0.0
  %6206 = vmatprep.subr.mxu0 0.0
  %6207 = vmatpush1.msra.mxu0 0.0
  %6208 = vmatprep.subr.mxu0 0.0
  %6209 = vmatpush1.msra.mxu0 0.0
  %6210 = vmatprep.subr.mxu0 0.0
  %6211 = vmatpush1.msra.mxu0 0.0
  %6212 = vmatprep.subr.mxu0 0.0
  %6213 = vmatpush1.msra.mxu0 0.0
  %6214 = vmatprep.subr.mxu0 0.0
  %6215 = vmatpush1.msra.mxu0 0.0
  %6216 = vmatprep.subr.mxu0 0.0
  %6217 = vmatpush1.msra.mxu0 0.0
  %6218 = vmatprep.subr.mxu0 0.0
  %6219 = vmatpush1.msra.mxu0 0.0
  %6220 = vmatprep.subr.mxu0 0.0
  %6221 = vmatpush1.msra.mxu0 0.0
  %6222 = vmatprep.subr.mxu0 0.0
  %6223 = vmatpush1.msra.mxu0 0.0
  %6224 = vmatprep.subr.mxu0 0.0
  %6225 = vmatpush1.msra.mxu0 0.0
  %6226 = vmatprep.subr.mxu0 0.0
  %6227 = vmatpush1.msra.mxu0 0.0
  %6228 = vmatprep.subr.mxu0 0.0
  %6229 = vmatpush1.msra.mxu0 0.0
  %6230 = vmatprep.subr.mxu0 0.0
  %6231 = vmatpush1.msra.mxu0 0.0
  %6232 = vmatprep.subr.mxu0 0.0
  %6233 = vmatpush1.msra.mxu0 0.0
  %6234 = vmatprep.subr.mxu0 0.0
  %6235 = vmatpush1.msra.mxu0 0.0
  %6236 = vmatprep.mubr.f32.mxu0 0.0
  %v6237 = vand.u32 %v5992, 4294901760
  %v6238 = vsub.f32 %v5992, %v6237
  %6239 = vmatmul.mubr.f32.gmra.mrb[0].mxu0 %v6238
  %v6240 = vpop.f32.mrb[0].mxu0
  %v6241 = vadd.f32 %v6161, %v6240
  %v6242 = vpop.f32.mrb[0].mxu0
  %6243 = vdwg.mxu0
  %6244 = vmatprep.subr.mxu0 0.0
  %v6245 = vand.u32 %v30, 4294901760
  %6246 = vmatpush1.msra.mxu0 %v6245
  %6247 = vmatprep.subr.mxu0 0.0
  %v6248 = vand.u32 %v31, 4294901760
  %6249 = vmatpush1.msra.mxu0 %v6248
  %6250 = vmatprep.subr.mxu0 0.0
  %v6251 = vand.u32 %v32, 4294901760
  %6252 = vmatpush1.msra.mxu0 %v6251
  %6253 = vmatprep.subr.mxu0 0.0
  %v6254 = vand.u32 %v33, 4294901760
  %6255 = vmatpush1.msra.mxu0 %v6254
  %6256 = vmatprep.subr.mxu0 0.0
  %6257 = vmatpush1.msra.mxu0 0.0
  %6258 = vmatprep.subr.mxu0 0.0
  %6259 = vmatpush1.msra.mxu0 0.0
  %6260 = vmatprep.subr.mxu0 0.0
  %6261 = vmatpush1.msra.mxu0 0.0
  %6262 = vmatprep.subr.mxu0 0.0
  %6263 = vmatpush1.msra.mxu0 0.0
  %6264 = vmatprep.subr.mxu0 0.0
  %6265 = vmatpush1.msra.mxu0 0.0
  %6266 = vmatprep.subr.mxu0 0.0
  %6267 = vmatpush1.msra.mxu0 0.0
  %6268 = vmatprep.subr.mxu0 0.0
  %6269 = vmatpush1.msra.mxu0 0.0
  %6270 = vmatprep.subr.mxu0 0.0
  %6271 = vmatpush1.msra.mxu0 0.0
  %6272 = vmatprep.subr.mxu0 0.0
  %6273 = vmatpush1.msra.mxu0 0.0
  %6274 = vmatprep.subr.mxu0 0.0
  %6275 = vmatpush1.msra.mxu0 0.0
  %6276 = vmatprep.subr.mxu0 0.0
  %6277 = vmatpush1.msra.mxu0 0.0
  %6278 = vmatprep.subr.mxu0 0.0
  %6279 = vmatpush1.msra.mxu0 0.0
  %6280 = vmatprep.subr.mxu0 0.0
  %6281 = vmatpush1.msra.mxu0 0.0
  %6282 = vmatprep.subr.mxu0 0.0
  %6283 = vmatpush1.msra.mxu0 0.0
  %6284 = vmatprep.subr.mxu0 0.0
  %6285 = vmatpush1.msra.mxu0 0.0
  %6286 = vmatprep.subr.mxu0 0.0
  %6287 = vmatpush1.msra.mxu0 0.0
  %6288 = vmatprep.subr.mxu0 0.0
  %6289 = vmatpush1.msra.mxu0 0.0
  %6290 = vmatprep.subr.mxu0 0.0
  %6291 = vmatpush1.msra.mxu0 0.0
  %6292 = vmatprep.subr.mxu0 0.0
  %6293 = vmatpush1.msra.mxu0 0.0
  %6294 = vmatprep.subr.mxu0 0.0
  %6295 = vmatpush1.msra.mxu0 0.0
  %6296 = vmatprep.subr.mxu0 0.0
  %6297 = vmatpush1.msra.mxu0 0.0
  %6298 = vmatprep.subr.mxu0 0.0
  %6299 = vmatpush1.msra.mxu0 0.0
  %6300 = vmatprep.subr.mxu0 0.0
  %6301 = vmatpush1.msra.mxu0 0.0
  %6302 = vmatprep.subr.mxu0 0.0
  %6303 = vmatpush1.msra.mxu0 0.0
  %6304 = vmatprep.subr.mxu0 0.0
  %6305 = vmatpush1.msra.mxu0 0.0
  %6306 = vmatprep.subr.mxu0 0.0
  %6307 = vmatpush1.msra.mxu0 0.0
  %6308 = vmatprep.subr.mxu0 0.0
  %6309 = vmatpush1.msra.mxu0 0.0
  %6310 = vmatprep.subr.mxu0 0.0
  %6311 = vmatpush1.msra.mxu0 0.0
  %6312 = vmatprep.mubr.f32.mxu0 0.0
  %v6313 = vand.u32 %v5992, 4294901760
  %v6314 = vsub.f32 %v5992, %v6313
  %v6315 = vand.u32 %v6314, 4294901760
  %6316 = vmatmul.mubr.f32.gmra.mrb[0].mxu0 %v6315
  %v6317 = vpop.f32.mrb[0].mxu0
  %v6318 = vadd.f32 %v6241, %v6317
  %v6319 = vpop.f32.mrb[0].mxu0
  %6320 = vdwg.mxu0
  %6321 = vmatprep.subr.mxu0 0.0
  %v6322 = vand.u32 %v30, 4294901760
  %v6323 = vsub.f32 %v30, %v6322
  %v6324 = vand.u32 %v6323, 4294901760
  %6325 = vmatpush1.msra.mxu0 %v6324
  %6326 = vmatprep.subr.mxu0 0.0
  %v6327 = vand.u32 %v31, 4294901760
  %v6328 = vsub.f32 %v31, %v6327
  %v6329 = vand.u32 %v6328, 4294901760
  %6330 = vmatpush1.msra.mxu0 %v6329
  %6331 = vmatprep.subr.mxu0 0.0
  %v6332 = vand.u32 %v32, 4294901760
  %v6333 = vsub.f32 %v32, %v6332
  %v6334 = vand.u32 %v6333, 4294901760
  %6335 = vmatpush1.msra.mxu0 %v6334
  %6336 = vmatprep.subr.mxu0 0.0
  %v6337 = vand.u32 %v33, 4294901760
  %v6338 = vsub.f32 %v33, %v6337
  %v6339 = vand.u32 %v6338, 4294901760
  %6340 = vmatpush1.msra.mxu0 %v6339
  %6341 = vmatprep.subr.mxu0 0.0
  %6342 = vmatpush1.msra.mxu0 0.0
  %6343 = vmatprep.subr.mxu0 0.0
  %6344 = vmatpush1.msra.mxu0 0.0
  %6345 = vmatprep.subr.mxu0 0.0
  %6346 = vmatpush1.msra.mxu0 0.0
  %6347 = vmatprep.subr.mxu0 0.0
  %6348 = vmatpush1.msra.mxu0 0.0
  %6349 = vmatprep.subr.mxu0 0.0
  %6350 = vmatpush1.msra.mxu0 0.0
  %6351 = vmatprep.subr.mxu0 0.0
  %6352 = vmatpush1.msra.mxu0 0.0
  %6353 = vmatprep.subr.mxu0 0.0
  %6354 = vmatpush1.msra.mxu0 0.0
  %6355 = vmatprep.subr.mxu0 0.0
  %6356 = vmatpush1.msra.mxu0 0.0
  %6357 = vmatprep.subr.mxu0 0.0
  %6358 = vmatpush1.msra.mxu0 0.0
  %6359 = vmatprep.subr.mxu0 0.0
  %6360 = vmatpush1.msra.mxu0 0.0
  %6361 = vmatprep.subr.mxu0 0.0
  %6362 = vmatpush1.msra.mxu0 0.0
  %6363 = vmatprep.subr.mxu0 0.0
  %6364 = vmatpush1.msra.mxu0 0.0
  %6365 = vmatprep.subr.mxu0 0.0
  %6366 = vmatpush1.msra.mxu0 0.0
  %6367 = vmatprep.subr.mxu0 0.0
  %6368 = vmatpush1.msra.mxu0 0.0
  %6369 = vmatprep.subr.mxu0 0.0
  %6370 = vmatpush1.msra.mxu0 0.0
  %6371 = vmatprep.subr.mxu0 0.0
  %6372 = vmatpush1.msra.mxu0 0.0
  %6373 = vmatprep.subr.mxu0 0.0
  %6374 = vmatpush1.msra.mxu0 0.0
  %6375 = vmatprep.subr.mxu0 0.0
  %6376 = vmatpush1.msra.mxu0 0.0
  %6377 = vmatprep.subr.mxu0 0.0
  %6378 = vmatpush1.msra.mxu0 0.0
  %6379 = vmatprep.subr.mxu0 0.0
  %6380 = vmatpush1.msra.mxu0 0.0
  %6381 = vmatprep.subr.mxu0 0.0
  %6382 = vmatpush1.msra.mxu0 0.0
  %6383 = vmatprep.subr.mxu0 0.0
  %6384 = vmatpush1.msra.mxu0 0.0
  %6385 = vmatprep.subr.mxu0 0.0
  %6386 = vmatpush1.msra.mxu0 0.0
  %6387 = vmatprep.subr.mxu0 0.0
  %6388 = vmatpush1.msra.mxu0 0.0
  %6389 = vmatprep.subr.mxu0 0.0
  %6390 = vmatpush1.msra.mxu0 0.0
  %6391 = vmatprep.subr.mxu0 0.0
  %6392 = vmatpush1.msra.mxu0 0.0
  %6393 = vmatprep.subr.mxu0 0.0
  %6394 = vmatpush1.msra.mxu0 0.0
  %6395 = vmatprep.subr.mxu0 0.0
  %6396 = vmatpush1.msra.mxu0 0.0
  %6397 = vmatprep.mubr.f32.mxu0 0.0
  %v6398 = vand.u32 %v5992, 4294901760
  %6399 = vmatmul.mubr.f32.gmra.mrb[0].mxu0 %v6398
  %v6400 = vpop.f32.mrb[0].mxu0
  %v6401 = vadd.f32 %v6318, %v6400
  %v6402 = vpop.f32.mrb[0].mxu0
  %6403 = vdwg.mxu0
  %6404 = vmatprep.subr.mxu0 0.0
  %v6405 = vand.u32 %v30, 4294901760
  %6406 = vmatpush1.msra.mxu0 %v6405
  %6407 = vmatprep.subr.mxu0 0.0
  %v6408 = vand.u32 %v31, 4294901760
  %6409 = vmatpush1.msra.mxu0 %v6408
  %6410 = vmatprep.subr.mxu0 0.0
  %v6411 = vand.u32 %v32, 4294901760
  %6412 = vmatpush1.msra.mxu0 %v6411
  %6413 = vmatprep.subr.mxu0 0.0
  %v6414 = vand.u32 %v33, 4294901760
  %6415 = vmatpush1.msra.mxu0 %v6414
  %6416 = vmatprep.subr.mxu0 0.0
  %6417 = vmatpush1.msra.mxu0 0.0
  %6418 = vmatprep.subr.mxu0 0.0
  %6419 = vmatpush1.msra.mxu0 0.0
  %6420 = vmatprep.subr.mxu0 0.0
  %6421 = vmatpush1.msra.mxu0 0.0
  %6422 = vmatprep.subr.mxu0 0.0
  %6423 = vmatpush1.msra.mxu0 0.0
  %6424 = vmatprep.subr.mxu0 0.0
  %6425 = vmatpush1.msra.mxu0 0.0
  %6426 = vmatprep.subr.mxu0 0.0
  %6427 = vmatpush1.msra.mxu0 0.0
  %6428 = vmatprep.subr.mxu0 0.0
  %6429 = vmatpush1.msra.mxu0 0.0
  %6430 = vmatprep.subr.mxu0 0.0
  %6431 = vmatpush1.msra.mxu0 0.0
  %6432 = vmatprep.subr.mxu0 0.0
  %6433 = vmatpush1.msra.mxu0 0.0
  %6434 = vmatprep.subr.mxu0 0.0
  %6435 = vmatpush1.msra.mxu0 0.0
  %6436 = vmatprep.subr.mxu0 0.0
  %6437 = vmatpush1.msra.mxu0 0.0
  %6438 = vmatprep.subr.mxu0 0.0
  %6439 = vmatpush1.msra.mxu0 0.0
  %6440 = vmatprep.subr.mxu0 0.0
  %6441 = vmatpush1.msra.mxu0 0.0
  %6442 = vmatprep.subr.mxu0 0.0
  %6443 = vmatpush1.msra.mxu0 0.0
  %6444 = vmatprep.subr.mxu0 0.0
  %6445 = vmatpush1.msra.mxu0 0.0
  %6446 = vmatprep.subr.mxu0 0.0
  %6447 = vmatpush1.msra.mxu0 0.0
  %6448 = vmatprep.subr.mxu0 0.0
  %6449 = vmatpush1.msra.mxu0 0.0
  %6450 = vmatprep.subr.mxu0 0.0
  %6451 = vmatpush1.msra.mxu0 0.0
  %6452 = vmatprep.subr.mxu0 0.0
  %6453 = vmatpush1.msra.mxu0 0.0
  %6454 = vmatprep.subr.mxu0 0.0
  %6455 = vmatpush1.msra.mxu0 0.0
  %6456 = vmatprep.subr.mxu0 0.0
  %6457 = vmatpush1.msra.mxu0 0.0
  %6458 = vmatprep.subr.mxu0 0.0
  %6459 = vmatpush1.msra.mxu0 0.0
  %6460 = vmatprep.subr.mxu0 0.0
  %6461 = vmatpush1.msra.mxu0 0.0
  %6462 = vmatprep.subr.mxu0 0.0
  %6463 = vmatpush1.msra.mxu0 0.0
  %6464 = vmatprep.subr.mxu0 0.0
  %6465 = vmatpush1.msra.mxu0 0.0
  %6466 = vmatprep.subr.mxu0 0.0
  %6467 = vmatpush1.msra.mxu0 0.0
  %6468 = vmatprep.subr.mxu0 0.0
  %6469 = vmatpush1.msra.mxu0 0.0
  %6470 = vmatprep.subr.mxu0 0.0
  %6471 = vmatpush1.msra.mxu0 0.0
  %6472 = vmatprep.mubr.f32.mxu0 0.0
  %v6473 = vand.u32 %v5992, 4294901760
  %6474 = vmatmul.mubr.f32.gmra.mrb[0].mxu0 %v6473
  %v6475 = vpop.f32.mrb[0].mxu0
  %v6476 = vadd.f32 %v6401, %v6475
  %v6477 = vpop.f32.mrb[0].mxu0
  %6478 = vdwg.mxu0
  %v6480 = vrot.slane %v6476, 5
  %6481 = vrot.lane.b32.xlu0 %v6480, 32
  %v6482 = vpop.permute.xlu0 %6481
  %v6484 = vadd.f32 %v546, %v6482
  %v6485 = vtanh.pop %v6484
  %v6487 = vrot.slane %v6485, 3
  %6488 = vrot.lane.b32.xlu0 %v6487, 96
  %v6489 = vpop.permute.xlu0 %6488
  %v6490 = vsel %vm550, %v6489, 0
  %6492 = vmatprep.subr.mxu0 0.0
  %v6493 = vand.u32 %v30, 4294901760
  %6494 = vmatpush1.msra.mxu0 %v6493
  %6495 = vmatprep.subr.mxu0 0.0
  %v6496 = vand.u32 %v31, 4294901760
  %6497 = vmatpush1.msra.mxu0 %v6496
  %6498 = vmatprep.subr.mxu0 0.0
  %v6499 = vand.u32 %v32, 4294901760
  %6500 = vmatpush1.msra.mxu0 %v6499
  %6501 = vmatprep.subr.mxu0 0.0
  %v6502 = vand.u32 %v33, 4294901760
  %6503 = vmatpush1.msra.mxu0 %v6502
  %6504 = vmatprep.subr.mxu0 0.0
  %6505 = vmatpush1.msra.mxu0 0.0
  %6506 = vmatprep.subr.mxu0 0.0
  %6507 = vmatpush1.msra.mxu0 0.0
  %6508 = vmatprep.subr.mxu0 0.0
  %6509 = vmatpush1.msra.mxu0 0.0
  %6510 = vmatprep.subr.mxu0 0.0
  %6511 = vmatpush1.msra.mxu0 0.0
  %6512 = vmatprep.subr.mxu0 0.0
  %6513 = vmatpush1.msra.mxu0 0.0
  %6514 = vmatprep.subr.mxu0 0.0
  %6515 = vmatpush1.msra.mxu0 0.0
  %6516 = vmatprep.subr.mxu0 0.0
  %6517 = vmatpush1.msra.mxu0 0.0
  %6518 = vmatprep.subr.mxu0 0.0
  %6519 = vmatpush1.msra.mxu0 0.0
  %6520 = vmatprep.subr.mxu0 0.0
  %6521 = vmatpush1.msra.mxu0 0.0
  %6522 = vmatprep.subr.mxu0 0.0
  %6523 = vmatpush1.msra.mxu0 0.0
  %6524 = vmatprep.subr.mxu0 0.0
  %6525 = vmatpush1.msra.mxu0 0.0
  %6526 = vmatprep.subr.mxu0 0.0
  %6527 = vmatpush1.msra.mxu0 0.0
  %6528 = vmatprep.subr.mxu0 0.0
  %6529 = vmatpush1.msra.mxu0 0.0
  %6530 = vmatprep.subr.mxu0 0.0
  %6531 = vmatpush1.msra.mxu0 0.0
  %6532 = vmatprep.subr.mxu0 0.0
  %6533 = vmatpush1.msra.mxu0 0.0
  %6534 = vmatprep.subr.mxu0 0.0
  %6535 = vmatpush1.msra.mxu0 0.0
  %6536 = vmatprep.subr.mxu0 0.0
  %6537 = vmatpush1.msra.mxu0 0.0
  %6538 = vmatprep.subr.mxu0 0.0
  %6539 = vmatpush1.msra.mxu0 0.0
  %6540 = vmatprep.subr.mxu0 0.0
  %6541 = vmatpush1.msra.mxu0 0.0
  %6542 = vmatprep.subr.mxu0 0.0
  %6543 = vmatpush1.msra.mxu0 0.0
  %6544 = vmatprep.subr.mxu0 0.0
  %6545 = vmatpush1.msra.mxu0 0.0
  %6546 = vmatprep.subr.mxu0 0.0
  %6547 = vmatpush1.msra.mxu0 0.0
  %6548 = vmatprep.subr.mxu0 0.0
  %6549 = vmatpush1.msra.mxu0 0.0
  %6550 = vmatprep.subr.mxu0 0.0
  %6551 = vmatpush1.msra.mxu0 0.0
  %6552 = vmatprep.subr.mxu0 0.0
  %6553 = vmatpush1.msra.mxu0 0.0
  %6554 = vmatprep.subr.mxu0 0.0
  %6555 = vmatpush1.msra.mxu0 0.0
  %6556 = vmatprep.subr.mxu0 0.0
  %6557 = vmatpush1.msra.mxu0 0.0
  %6558 = vmatprep.subr.mxu0 0.0
  %6559 = vmatpush1.msra.mxu0 0.0
  %6560 = vmatprep.mubr.f32.mxu0 0.0
  %v6561 = vand.u32 %v6490, 4294901760
  %v6562 = vsub.f32 %v6490, %v6561
  %v6563 = vand.u32 %v6562, 4294901760
  %v6564 = vsub.f32 %v6562, %v6563
  %v6565 = vand.u32 %v6564, 4294901760
  %6566 = vmatmul.mubr.f32.gmra.mrb[0].mxu0 %v6565
  %v6567 = vpop.f32.mrb[0].mxu0
  %v6568 = vadd.f32 0.0, %v6567
  %v6569 = vpop.f32.mrb[0].mxu0
  %6570 = vdwg.mxu0
  %6571 = vmatprep.subr.mxu0 0.0
  %v6572 = vand.u32 %v30, 4294901760
  %v6573 = vsub.f32 %v30, %v6572
  %v6574 = vand.u32 %v6573, 4294901760
  %v6575 = vsub.f32 %v6573, %v6574
  %v6576 = vand.u32 %v6575, 4294901760
  %6577 = vmatpush1.msra.mxu0 %v6576
  %6578 = vmatprep.subr.mxu0 0.0
  %v6579 = vand.u32 %v31, 4294901760
  %v6580 = vsub.f32 %v31, %v6579
  %v6581 = vand.u32 %v6580, 4294901760
  %v6582 = vsub.f32 %v6580, %v6581
  %v6583 = vand.u32 %v6582, 4294901760
  %6584 = vmatpush1.msra.mxu0 %v6583
  %6585 = vmatprep.subr.mxu0 0.0
  %v6586 = vand.u32 %v32, 4294901760
  %v6587 = vsub.f32 %v32, %v6586
  %v6588 = vand.u32 %v6587, 4294901760
  %v6589 = vsub.f32 %v6587, %v6588
  %v6590 = vand.u32 %v6589, 4294901760
  %6591 = vmatpush1.msra.mxu0 %v6590
  %6592 = vmatprep.subr.mxu0 0.0
  %v6593 = vand.u32 %v33, 4294901760
  %v6594 = vsub.f32 %v33, %v6593
  %v6595 = vand.u32 %v6594, 4294901760
  %v6596 = vsub.f32 %v6594, %v6595
  %v6597 = vand.u32 %v6596, 4294901760
  %6598 = vmatpush1.msra.mxu0 %v6597
  %6599 = vmatprep.subr.mxu0 0.0
  %6600 = vmatpush1.msra.mxu0 0.0
  %6601 = vmatprep.subr.mxu0 0.0
  %6602 = vmatpush1.msra.mxu0 0.0
  %6603 = vmatprep.subr.mxu0 0.0
  %6604 = vmatpush1.msra.mxu0 0.0
  %6605 = vmatprep.subr.mxu0 0.0
  %6606 = vmatpush1.msra.mxu0 0.0
  %6607 = vmatprep.subr.mxu0 0.0
  %6608 = vmatpush1.msra.mxu0 0.0
  %6609 = vmatprep.subr.mxu0 0.0
  %6610 = vmatpush1.msra.mxu0 0.0
  %6611 = vmatprep.subr.mxu0 0.0
  %6612 = vmatpush1.msra.mxu0 0.0
  %6613 = vmatprep.subr.mxu0 0.0
  %6614 = vmatpush1.msra.mxu0 0.0
  %6615 = vmatprep.subr.mxu0 0.0
  %6616 = vmatpush1.msra.mxu0 0.0
  %6617 = vmatprep.subr.mxu0 0.0
  %6618 = vmatpush1.msra.mxu0 0.0
  %6619 = vmatprep.subr.mxu0 0.0
  %6620 = vmatpush1.msra.mxu0 0.0
  %6621 = vmatprep.subr.mxu0 0.0
  %6622 = vmatpush1.msra.mxu0 0.0
  %6623 = vmatprep.subr.mxu0 0.0
  %6624 = vmatpush1.msra.mxu0 0.0
  %6625 = vmatprep.subr.mxu0 0.0
  %6626 = vmatpush1.msra.mxu0 0.0
  %6627 = vmatprep.subr.mxu0 0.0
  %6628 = vmatpush1.msra.mxu0 0.0
  %6629 = vmatprep.subr.mxu0 0.0
  %6630 = vmatpush1.msra.mxu0 0.0
  %6631 = vmatprep.subr.mxu0 0.0
  %6632 = vmatpush1.msra.mxu0 0.0
  %6633 = vmatprep.subr.mxu0 0.0
  %6634 = vmatpush1.msra.mxu0 0.0
  %6635 = vmatprep.subr.mxu0 0.0
  %6636 = vmatpush1.msra.mxu0 0.0
  %6637 = vmatprep.subr.mxu0 0.0
  %6638 = vmatpush1.msra.mxu0 0.0
  %6639 = vmatprep.subr.mxu0 0.0
  %6640 = vmatpush1.msra.mxu0 0.0
  %6641 = vmatprep.subr.mxu0 0.0
  %6642 = vmatpush1.msra.mxu0 0.0
  %6643 = vmatprep.subr.mxu0 0.0
  %6644 = vmatpush1.msra.mxu0 0.0
  %6645 = vmatprep.subr.mxu0 0.0
  %6646 = vmatpush1.msra.mxu0 0.0
  %6647 = vmatprep.subr.mxu0 0.0
  %6648 = vmatpush1.msra.mxu0 0.0
  %6649 = vmatprep.subr.mxu0 0.0
  %6650 = vmatpush1.msra.mxu0 0.0
  %6651 = vmatprep.subr.mxu0 0.0
  %6652 = vmatpush1.msra.mxu0 0.0
  %6653 = vmatprep.subr.mxu0 0.0
  %6654 = vmatpush1.msra.mxu0 0.0
  %6655 = vmatprep.mubr.f32.mxu0 0.0
  %v6656 = vand.u32 %v6490, 4294901760
  %6657 = vmatmul.mubr.f32.gmra.mrb[0].mxu0 %v6656
  %v6658 = vpop.f32.mrb[0].mxu0
  %v6659 = vadd.f32 %v6568, %v6658
  %v6660 = vpop.f32.mrb[0].mxu0
  %6661 = vdwg.mxu0
  %6662 = vmatprep.subr.mxu0 0.0
  %v6663 = vand.u32 %v30, 4294901760
  %v6664 = vsub.f32 %v30, %v6663
  %6665 = vmatpush1.msra.mxu0 %v6664
  %6666 = vmatprep.subr.mxu0 0.0
  %v6667 = vand.u32 %v31, 4294901760
  %v6668 = vsub.f32 %v31, %v6667
  %6669 = vmatpush1.msra.mxu0 %v6668
  %6670 = vmatprep.subr.mxu0 0.0
  %v6671 = vand.u32 %v32, 4294901760
  %v6672 = vsub.f32 %v32, %v6671
  %6673 = vmatpush1.msra.mxu0 %v6672
  %6674 = vmatprep.subr.mxu0 0.0
  %v6675 = vand.u32 %v33, 4294901760
  %v6676 = vsub.f32 %v33, %v6675
  %6677 = vmatpush1.msra.mxu0 %v6676
  %6678 = vmatprep.subr.mxu0 0.0
  %6679 = vmatpush1.msra.mxu0 0.0
  %6680 = vmatprep.subr.mxu0 0.0
  %6681 = vmatpush1.msra.mxu0 0.0
  %6682 = vmatprep.subr.mxu0 0.0
  %6683 = vmatpush1.msra.mxu0 0.0
  %6684 = vmatprep.subr.mxu0 0.0
  %6685 = vmatpush1.msra.mxu0 0.0
  %6686 = vmatprep.subr.mxu0 0.0
  %6687 = vmatpush1.msra.mxu0 0.0
  %6688 = vmatprep.subr.mxu0 0.0
  %6689 = vmatpush1.msra.mxu0 0.0
  %6690 = vmatprep.subr.mxu0 0.0
  %6691 = vmatpush1.msra.mxu0 0.0
  %6692 = vmatprep.subr.mxu0 0.0
  %6693 = vmatpush1.msra.mxu0 0.0
  %6694 = vmatprep.subr.mxu0 0.0
  %6695 = vmatpush1.msra.mxu0 0.0
  %6696 = vmatprep.subr.mxu0 0.0
  %6697 = vmatpush1.msra.mxu0 0.0
  %6698 = vmatprep.subr.mxu0 0.0
  %6699 = vmatpush1.msra.mxu0 0.0
  %6700 = vmatprep.subr.mxu0 0.0
  %6701 = vmatpush1.msra.mxu0 0.0
  %6702 = vmatprep.subr.mxu0 0.0
  %6703 = vmatpush1.msra.mxu0 0.0
  %6704 = vmatprep.subr.mxu0 0.0
  %6705 = vmatpush1.msra.mxu0 0.0
  %6706 = vmatprep.subr.mxu0 0.0
  %6707 = vmatpush1.msra.mxu0 0.0
  %6708 = vmatprep.subr.mxu0 0.0
  %6709 = vmatpush1.msra.mxu0 0.0
  %6710 = vmatprep.subr.mxu0 0.0
  %6711 = vmatpush1.msra.mxu0 0.0
  %6712 = vmatprep.subr.mxu0 0.0
  %6713 = vmatpush1.msra.mxu0 0.0
  %6714 = vmatprep.subr.mxu0 0.0
  %6715 = vmatpush1.msra.mxu0 0.0
  %6716 = vmatprep.subr.mxu0 0.0
  %6717 = vmatpush1.msra.mxu0 0.0
  %6718 = vmatprep.subr.mxu0 0.0
  %6719 = vmatpush1.msra.mxu0 0.0
  %6720 = vmatprep.subr.mxu0 0.0
  %6721 = vmatpush1.msra.mxu0 0.0
  %6722 = vmatprep.subr.mxu0 0.0
  %6723 = vmatpush1.msra.mxu0 0.0
  %6724 = vmatprep.subr.mxu0 0.0
  %6725 = vmatpush1.msra.mxu0 0.0
  %6726 = vmatprep.subr.mxu0 0.0
  %6727 = vmatpush1.msra.mxu0 0.0
  %6728 = vmatprep.subr.mxu0 0.0
  %6729 = vmatpush1.msra.mxu0 0.0
  %6730 = vmatprep.subr.mxu0 0.0
  %6731 = vmatpush1.msra.mxu0 0.0
  %6732 = vmatprep.subr.mxu0 0.0
  %6733 = vmatpush1.msra.mxu0 0.0
  %6734 = vmatprep.mubr.f32.mxu0 0.0
  %v6735 = vand.u32 %v6490, 4294901760
  %v6736 = vsub.f32 %v6490, %v6735
  %6737 = vmatmul.mubr.f32.gmra.mrb[0].mxu0 %v6736
  %v6738 = vpop.f32.mrb[0].mxu0
  %v6739 = vadd.f32 %v6659, %v6738
  %v6740 = vpop.f32.mrb[0].mxu0
  %6741 = vdwg.mxu0
  %6742 = vmatprep.subr.mxu0 0.0
  %v6743 = vand.u32 %v30, 4294901760
  %6744 = vmatpush1.msra.mxu0 %v6743
  %6745 = vmatprep.subr.mxu0 0.0
  %v6746 = vand.u32 %v31, 4294901760
  %6747 = vmatpush1.msra.mxu0 %v6746
  %6748 = vmatprep.subr.mxu0 0.0
  %v6749 = vand.u32 %v32, 4294901760
  %6750 = vmatpush1.msra.mxu0 %v6749
  %6751 = vmatprep.subr.mxu0 0.0
  %v6752 = vand.u32 %v33, 4294901760
  %6753 = vmatpush1.msra.mxu0 %v6752
  %6754 = vmatprep.subr.mxu0 0.0
  %6755 = vmatpush1.msra.mxu0 0.0
  %6756 = vmatprep.subr.mxu0 0.0
  %6757 = vmatpush1.msra.mxu0 0.0
  %6758 = vmatprep.subr.mxu0 0.0
  %6759 = vmatpush1.msra.mxu0 0.0
  %6760 = vmatprep.subr.mxu0 0.0
  %6761 = vmatpush1.msra.mxu0 0.0
  %6762 = vmatprep.subr.mxu0 0.0
  %6763 = vmatpush1.msra.mxu0 0.0
  %6764 = vmatprep.subr.mxu0 0.0
  %6765 = vmatpush1.msra.mxu0 0.0
  %6766 = vmatprep.subr.mxu0 0.0
  %6767 = vmatpush1.msra.mxu0 0.0
  %6768 = vmatprep.subr.mxu0 0.0
  %6769 = vmatpush1.msra.mxu0 0.0
  %6770 = vmatprep.subr.mxu0 0.0
  %6771 = vmatpush1.msra.mxu0 0.0
  %6772 = vmatprep.subr.mxu0 0.0
  %6773 = vmatpush1.msra.mxu0 0.0
  %6774 = vmatprep.subr.mxu0 0.0
  %6775 = vmatpush1.msra.mxu0 0.0
  %6776 = vmatprep.subr.mxu0 0.0
  %6777 = vmatpush1.msra.mxu0 0.0
  %6778 = vmatprep.subr.mxu0 0.0
  %6779 = vmatpush1.msra.mxu0 0.0
  %6780 = vmatprep.subr.mxu0 0.0
  %6781 = vmatpush1.msra.mxu0 0.0
  %6782 = vmatprep.subr.mxu0 0.0
  %6783 = vmatpush1.msra.mxu0 0.0
  %6784 = vmatprep.subr.mxu0 0.0
  %6785 = vmatpush1.msra.mxu0 0.0
  %6786 = vmatprep.subr.mxu0 0.0
  %6787 = vmatpush1.msra.mxu0 0.0
  %6788 = vmatprep.subr.mxu0 0.0
  %6789 = vmatpush1.msra.mxu0 0.0
  %6790 = vmatprep.subr.mxu0 0.0
  %6791 = vmatpush1.msra.mxu0 0.0
  %6792 = vmatprep.subr.mxu0 0.0
  %6793 = vmatpush1.msra.mxu0 0.0
  %6794 = vmatprep.subr.mxu0 0.0
  %6795 = vmatpush1.msra.mxu0 0.0
  %6796 = vmatprep.subr.mxu0 0.0
  %6797 = vmatpush1.msra.mxu0 0.0
  %6798 = vmatprep.subr.mxu0 0.0
  %6799 = vmatpush1.msra.mxu0 0.0
  %6800 = vmatprep.subr.mxu0 0.0
  %6801 = vmatpush1.msra.mxu0 0.0
  %6802 = vmatprep.subr.mxu0 0.0
  %6803 = vmatpush1.msra.mxu0 0.0
  %6804 = vmatprep.subr.mxu0 0.0
  %6805 = vmatpush1.msra.mxu0 0.0
  %6806 = vmatprep.subr.mxu0 0.0
  %6807 = vmatpush1.msra.mxu0 0.0
  %6808 = vmatprep.subr.mxu0 0.0
  %6809 = vmatpush1.msra.mxu0 0.0
  %6810 = vmatprep.mubr.f32.mxu0 0.0
  %v6811 = vand.u32 %v6490, 4294901760
  %v6812 = vsub.f32 %v6490, %v6811
  %v6813 = vand.u32 %v6812, 4294901760
  %6814 = vmatmul.mubr.f32.gmra.mrb[0].mxu0 %v6813
  %v6815 = vpop.f32.mrb[0].mxu0
  %v6816 = vadd.f32 %v6739, %v6815
  %v6817 = vpop.f32.mrb[0].mxu0
  %6818 = vdwg.mxu0
  %6819 = vmatprep.subr.mxu0 0.0
  %v6820 = vand.u32 %v30, 4294901760
  %v6821 = vsub.f32 %v30, %v6820
  %v6822 = vand.u32 %v6821, 4294901760
  %6823 = vmatpush1.msra.mxu0 %v6822
  %6824 = vmatprep.subr.mxu0 0.0
  %v6825 = vand.u32 %v31, 4294901760
  %v6826 = vsub.f32 %v31, %v6825
  %v6827 = vand.u32 %v6826, 4294901760
  %6828 = vmatpush1.msra.mxu0 %v6827
  %6829 = vmatprep.subr.mxu0 0.0
  %v6830 = vand.u32 %v32, 4294901760
  %v6831 = vsub.f32 %v32, %v6830
  %v6832 = vand.u32 %v6831, 4294901760
  %6833 = vmatpush1.msra.mxu0 %v6832
  %6834 = vmatprep.subr.mxu0 0.0
  %v6835 = vand.u32 %v33, 4294901760
  %v6836 = vsub.f32 %v33, %v6835
  %v6837 = vand.u32 %v6836, 4294901760
  %6838 = vmatpush1.msra.mxu0 %v6837
  %6839 = vmatprep.subr.mxu0 0.0
  %6840 = vmatpush1.msra.mxu0 0.0
  %6841 = vmatprep.subr.mxu0 0.0
  %6842 = vmatpush1.msra.mxu0 0.0
  %6843 = vmatprep.subr.mxu0 0.0
  %6844 = vmatpush1.msra.mxu0 0.0
  %6845 = vmatprep.subr.mxu0 0.0
  %6846 = vmatpush1.msra.mxu0 0.0
  %6847 = vmatprep.subr.mxu0 0.0
  %6848 = vmatpush1.msra.mxu0 0.0
  %6849 = vmatprep.subr.mxu0 0.0
  %6850 = vmatpush1.msra.mxu0 0.0
  %6851 = vmatprep.subr.mxu0 0.0
  %6852 = vmatpush1.msra.mxu0 0.0
  %6853 = vmatprep.subr.mxu0 0.0
  %6854 = vmatpush1.msra.mxu0 0.0
  %6855 = vmatprep.subr.mxu0 0.0
  %6856 = vmatpush1.msra.mxu0 0.0
  %6857 = vmatprep.subr.mxu0 0.0
  %6858 = vmatpush1.msra.mxu0 0.0
  %6859 = vmatprep.subr.mxu0 0.0
  %6860 = vmatpush1.msra.mxu0 0.0
  %6861 = vmatprep.subr.mxu0 0.0
  %6862 = vmatpush1.msra.mxu0 0.0
  %6863 = vmatprep.subr.mxu0 0.0
  %6864 = vmatpush1.msra.mxu0 0.0
  %6865 = vmatprep.subr.mxu0 0.0
  %6866 = vmatpush1.msra.mxu0 0.0
  %6867 = vmatprep.subr.mxu0 0.0
  %6868 = vmatpush1.msra.mxu0 0.0
  %6869 = vmatprep.subr.mxu0 0.0
  %6870 = vmatpush1.msra.mxu0 0.0
  %6871 = vmatprep.subr.mxu0 0.0
  %6872 = vmatpush1.msra.mxu0 0.0
  %6873 = vmatprep.subr.mxu0 0.0
  %6874 = vmatpush1.msra.mxu0 0.0
  %6875 = vmatprep.subr.mxu0 0.0
  %6876 = vmatpush1.msra.mxu0 0.0
  %6877 = vmatprep.subr.mxu0 0.0
  %6878 = vmatpush1.msra.mxu0 0.0
  %6879 = vmatprep.subr.mxu0 0.0
  %6880 = vmatpush1.msra.mxu0 0.0
  %6881 = vmatprep.subr.mxu0 0.0
  %6882 = vmatpush1.msra.mxu0 0.0
  %6883 = vmatprep.subr.mxu0 0.0
  %6884 = vmatpush1.msra.mxu0 0.0
  %6885 = vmatprep.subr.mxu0 0.0
  %6886 = vmatpush1.msra.mxu0 0.0
  %6887 = vmatprep.subr.mxu0 0.0
  %6888 = vmatpush1.msra.mxu0 0.0
  %6889 = vmatprep.subr.mxu0 0.0
  %6890 = vmatpush1.msra.mxu0 0.0
  %6891 = vmatprep.subr.mxu0 0.0
  %6892 = vmatpush1.msra.mxu0 0.0
  %6893 = vmatprep.subr.mxu0 0.0
  %6894 = vmatpush1.msra.mxu0 0.0
  %6895 = vmatprep.mubr.f32.mxu0 0.0
  %v6896 = vand.u32 %v6490, 4294901760
  %6897 = vmatmul.mubr.f32.gmra.mrb[0].mxu0 %v6896
  %v6898 = vpop.f32.mrb[0].mxu0
  %v6899 = vadd.f32 %v6816, %v6898
  %v6900 = vpop.f32.mrb[0].mxu0
  %6901 = vdwg.mxu0
  %6902 = vmatprep.subr.mxu0 0.0
  %v6903 = vand.u32 %v30, 4294901760
  %6904 = vmatpush1.msra.mxu0 %v6903
  %6905 = vmatprep.subr.mxu0 0.0
  %v6906 = vand.u32 %v31, 4294901760
  %6907 = vmatpush1.msra.mxu0 %v6906
  %6908 = vmatprep.subr.mxu0 0.0
  %v6909 = vand.u32 %v32, 4294901760
  %6910 = vmatpush1.msra.mxu0 %v6909
  %6911 = vmatprep.subr.mxu0 0.0
  %v6912 = vand.u32 %v33, 4294901760
  %6913 = vmatpush1.msra.mxu0 %v6912
  %6914 = vmatprep.subr.mxu0 0.0
  %6915 = vmatpush1.msra.mxu0 0.0
  %6916 = vmatprep.subr.mxu0 0.0
  %6917 = vmatpush1.msra.mxu0 0.0
  %6918 = vmatprep.subr.mxu0 0.0
  %6919 = vmatpush1.msra.mxu0 0.0
  %6920 = vmatprep.subr.mxu0 0.0
  %6921 = vmatpush1.msra.mxu0 0.0
  %6922 = vmatprep.subr.mxu0 0.0
  %6923 = vmatpush1.msra.mxu0 0.0
  %6924 = vmatprep.subr.mxu0 0.0
  %6925 = vmatpush1.msra.mxu0 0.0
  %6926 = vmatprep.subr.mxu0 0.0
  %6927 = vmatpush1.msra.mxu0 0.0
  %6928 = vmatprep.subr.mxu0 0.0
  %6929 = vmatpush1.msra.mxu0 0.0
  %6930 = vmatprep.subr.mxu0 0.0
  %6931 = vmatpush1.msra.mxu0 0.0
  %6932 = vmatprep.subr.mxu0 0.0
  %6933 = vmatpush1.msra.mxu0 0.0
  %6934 = vmatprep.subr.mxu0 0.0
  %6935 = vmatpush1.msra.mxu0 0.0
  %6936 = vmatprep.subr.mxu0 0.0
  %6937 = vmatpush1.msra.mxu0 0.0
  %6938 = vmatprep.subr.mxu0 0.0
  %6939 = vmatpush1.msra.mxu0 0.0
  %6940 = vmatprep.subr.mxu0 0.0
  %6941 = vmatpush1.msra.mxu0 0.0
  %6942 = vmatprep.subr.mxu0 0.0
  %6943 = vmatpush1.msra.mxu0 0.0
  %6944 = vmatprep.subr.mxu0 0.0
  %6945 = vmatpush1.msra.mxu0 0.0
  %6946 = vmatprep.subr.mxu0 0.0
  %6947 = vmatpush1.msra.mxu0 0.0
  %6948 = vmatprep.subr.mxu0 0.0
  %6949 = vmatpush1.msra.mxu0 0.0
  %6950 = vmatprep.subr.mxu0 0.0
  %6951 = vmatpush1.msra.mxu0 0.0
  %6952 = vmatprep.subr.mxu0 0.0
  %6953 = vmatpush1.msra.mxu0 0.0
  %6954 = vmatprep.subr.mxu0 0.0
  %6955 = vmatpush1.msra.mxu0 0.0
  %6956 = vmatprep.subr.mxu0 0.0
  %6957 = vmatpush1.msra.mxu0 0.0
  %6958 = vmatprep.subr.mxu0 0.0
  %6959 = vmatpush1.msra.mxu0 0.0
  %6960 = vmatprep.subr.mxu0 0.0
  %6961 = vmatpush1.msra.mxu0 0.0
  %6962 = vmatprep.subr.mxu0 0.0
  %6963 = vmatpush1.msra.mxu0 0.0
  %6964 = vmatprep.subr.mxu0 0.0
  %6965 = vmatpush1.msra.mxu0 0.0
  %6966 = vmatprep.subr.mxu0 0.0
  %6967 = vmatpush1.msra.mxu0 0.0
  %6968 = vmatprep.subr.mxu0 0.0
  %6969 = vmatpush1.msra.mxu0 0.0
  %6970 = vmatprep.mubr.f32.mxu0 0.0
  %v6971 = vand.u32 %v6490, 4294901760
  %6972 = vmatmul.mubr.f32.gmra.mrb[0].mxu0 %v6971
  %v6973 = vpop.f32.mrb[0].mxu0
  %v6974 = vadd.f32 %v6899, %v6973
  %v6975 = vpop.f32.mrb[0].mxu0
  %6976 = vdwg.mxu0
  %v6978 = vrot.slane %v6974, 4
  %6979 = vrot.lane.b32.xlu0 %v6978, 32
  %v6980 = vpop.permute.xlu0 %6979
  %v6982 = vadd.f32 %v546, %v6980
  %v6983 = vtanh.pop %v6982
  %v6985 = vrot.slane %v6983, 4
  %6986 = vrot.lane.b32.xlu0 %v6985, 96
  %v6987 = vpop.permute.xlu0 %6986
  %v6988 = vsel %vm550, %v6987, 0
  %6990 = vmatprep.subr.mxu0 0.0
  %v6991 = vand.u32 %v30, 4294901760
  %6992 = vmatpush1.msra.mxu0 %v6991
  %6993 = vmatprep.subr.mxu0 0.0
  %v6994 = vand.u32 %v31, 4294901760
  %6995 = vmatpush1.msra.mxu0 %v6994
  %6996 = vmatprep.subr.mxu0 0.0
  %v6997 = vand.u32 %v32, 4294901760
  %6998 = vmatpush1.msra.mxu0 %v6997
  %6999 = vmatprep.subr.mxu0 0.0
  %v7000 = vand.u32 %v33, 4294901760
  %7001 = vmatpush1.msra.mxu0 %v7000
  %7002 = vmatprep.subr.mxu0 0.0
  %7003 = vmatpush1.msra.mxu0 0.0
  %7004 = vmatprep.subr.mxu0 0.0
  %7005 = vmatpush1.msra.mxu0 0.0
  %7006 = vmatprep.subr.mxu0 0.0
  %7007 = vmatpush1.msra.mxu0 0.0
  %7008 = vmatprep.subr.mxu0 0.0
  %7009 = vmatpush1.msra.mxu0 0.0
  %7010 = vmatprep.subr.mxu0 0.0
  %7011 = vmatpush1.msra.mxu0 0.0
  %7012 = vmatprep.subr.mxu0 0.0
  %7013 = vmatpush1.msra.mxu0 0.0
  %7014 = vmatprep.subr.mxu0 0.0
  %7015 = vmatpush1.msra.mxu0 0.0
  %7016 = vmatprep.subr.mxu0 0.0
  %7017 = vmatpush1.msra.mxu0 0.0
  %7018 = vmatprep.subr.mxu0 0.0
  %7019 = vmatpush1.msra.mxu0 0.0
  %7020 = vmatprep.subr.mxu0 0.0
  %7021 = vmatpush1.msra.mxu0 0.0
  %7022 = vmatprep.subr.mxu0 0.0
  %7023 = vmatpush1.msra.mxu0 0.0
  %7024 = vmatprep.subr.mxu0 0.0
  %7025 = vmatpush1.msra.mxu0 0.0
  %7026 = vmatprep.subr.mxu0 0.0
  %7027 = vmatpush1.msra.mxu0 0.0
  %7028 = vmatprep.subr.mxu0 0.0
  %7029 = vmatpush1.msra.mxu0 0.0
  %7030 = vmatprep.subr.mxu0 0.0
  %7031 = vmatpush1.msra.mxu0 0.0
  %7032 = vmatprep.subr.mxu0 0.0
  %7033 = vmatpush1.msra.mxu0 0.0
  %7034 = vmatprep.subr.mxu0 0.0
  %7035 = vmatpush1.msra.mxu0 0.0
  %7036 = vmatprep.subr.mxu0 0.0
  %7037 = vmatpush1.msra.mxu0 0.0
  %7038 = vmatprep.subr.mxu0 0.0
  %7039 = vmatpush1.msra.mxu0 0.0
  %7040 = vmatprep.subr.mxu0 0.0
  %7041 = vmatpush1.msra.mxu0 0.0
  %7042 = vmatprep.subr.mxu0 0.0
  %7043 = vmatpush1.msra.mxu0 0.0
  %7044 = vmatprep.subr.mxu0 0.0
  %7045 = vmatpush1.msra.mxu0 0.0
  %7046 = vmatprep.subr.mxu0 0.0
  %7047 = vmatpush1.msra.mxu0 0.0
  %7048 = vmatprep.subr.mxu0 0.0
  %7049 = vmatpush1.msra.mxu0 0.0
  %7050 = vmatprep.subr.mxu0 0.0
  %7051 = vmatpush1.msra.mxu0 0.0
  %7052 = vmatprep.subr.mxu0 0.0
  %7053 = vmatpush1.msra.mxu0 0.0
  %7054 = vmatprep.subr.mxu0 0.0
  %7055 = vmatpush1.msra.mxu0 0.0
  %7056 = vmatprep.subr.mxu0 0.0
  %7057 = vmatpush1.msra.mxu0 0.0
  %7058 = vmatprep.mubr.f32.mxu0 0.0
  %v7059 = vand.u32 %v6988, 4294901760
  %v7060 = vsub.f32 %v6988, %v7059
  %v7061 = vand.u32 %v7060, 4294901760
  %v7062 = vsub.f32 %v7060, %v7061
  %v7063 = vand.u32 %v7062, 4294901760
  %7064 = vmatmul.mubr.f32.gmra.mrb[0].mxu0 %v7063
  %v7065 = vpop.f32.mrb[0].mxu0
  %v7066 = vadd.f32 0.0, %v7065
  %v7067 = vpop.f32.mrb[0].mxu0
  %7068 = vdwg.mxu0
  %7069 = vmatprep.subr.mxu0 0.0
  %v7070 = vand.u32 %v30, 4294901760
  %v7071 = vsub.f32 %v30, %v7070
  %v7072 = vand.u32 %v7071, 4294901760
  %v7073 = vsub.f32 %v7071, %v7072
  %v7074 = vand.u32 %v7073, 4294901760
  %7075 = vmatpush1.msra.mxu0 %v7074
  %7076 = vmatprep.subr.mxu0 0.0
  %v7077 = vand.u32 %v31, 4294901760
  %v7078 = vsub.f32 %v31, %v7077
  %v7079 = vand.u32 %v7078, 4294901760
  %v7080 = vsub.f32 %v7078, %v7079
  %v7081 = vand.u32 %v7080, 4294901760
  %7082 = vmatpush1.msra.mxu0 %v7081
  %7083 = vmatprep.subr.mxu0 0.0
  %v7084 = vand.u32 %v32, 4294901760
  %v7085 = vsub.f32 %v32, %v7084
  %v7086 = vand.u32 %v7085, 4294901760
  %v7087 = vsub.f32 %v7085, %v7086
  %v7088 = vand.u32 %v7087, 4294901760
  %7089 = vmatpush1.msra.mxu0 %v7088
  %7090 = vmatprep.subr.mxu0 0.0
  %v7091 = vand.u32 %v33, 4294901760
  %v7092 = vsub.f32 %v33, %v7091
  %v7093 = vand.u32 %v7092, 4294901760
  %v7094 = vsub.f32 %v7092, %v7093
  %v7095 = vand.u32 %v7094, 4294901760
  %7096 = vmatpush1.msra.mxu0 %v7095
  %7097 = vmatprep.subr.mxu0 0.0
  %7098 = vmatpush1.msra.mxu0 0.0
  %7099 = vmatprep.subr.mxu0 0.0
  %7100 = vmatpush1.msra.mxu0 0.0
  %7101 = vmatprep.subr.mxu0 0.0
  %7102 = vmatpush1.msra.mxu0 0.0
  %7103 = vmatprep.subr.mxu0 0.0
  %7104 = vmatpush1.msra.mxu0 0.0
  %7105 = vmatprep.subr.mxu0 0.0
  %7106 = vmatpush1.msra.mxu0 0.0
  %7107 = vmatprep.subr.mxu0 0.0
  %7108 = vmatpush1.msra.mxu0 0.0
  %7109 = vmatprep.subr.mxu0 0.0
  %7110 = vmatpush1.msra.mxu0 0.0
  %7111 = vmatprep.subr.mxu0 0.0
  %7112 = vmatpush1.msra.mxu0 0.0
  %7113 = vmatprep.subr.mxu0 0.0
  %7114 = vmatpush1.msra.mxu0 0.0
  %7115 = vmatprep.subr.mxu0 0.0
  %7116 = vmatpush1.msra.mxu0 0.0
  %7117 = vmatprep.subr.mxu0 0.0
  %7118 = vmatpush1.msra.mxu0 0.0
  %7119 = vmatprep.subr.mxu0 0.0
  %7120 = vmatpush1.msra.mxu0 0.0
  %7121 = vmatprep.subr.mxu0 0.0
  %7122 = vmatpush1.msra.mxu0 0.0
  %7123 = vmatprep.subr.mxu0 0.0
  %7124 = vmatpush1.msra.mxu0 0.0
  %7125 = vmatprep.subr.mxu0 0.0
  %7126 = vmatpush1.msra.mxu0 0.0
  %7127 = vmatprep.subr.mxu0 0.0
  %7128 = vmatpush1.msra.mxu0 0.0
  %7129 = vmatprep.subr.mxu0 0.0
  %7130 = vmatpush1.msra.mxu0 0.0
  %7131 = vmatprep.subr.mxu0 0.0
  %7132 = vmatpush1.msra.mxu0 0.0
  %7133 = vmatprep.subr.mxu0 0.0
  %7134 = vmatpush1.msra.mxu0 0.0
  %7135 = vmatprep.subr.mxu0 0.0
  %7136 = vmatpush1.msra.mxu0 0.0
  %7137 = vmatprep.subr.mxu0 0.0
  %7138 = vmatpush1.msra.mxu0 0.0
  %7139 = vmatprep.subr.mxu0 0.0
  %7140 = vmatpush1.msra.mxu0 0.0
  %7141 = vmatprep.subr.mxu0 0.0
  %7142 = vmatpush1.msra.mxu0 0.0
  %7143 = vmatprep.subr.mxu0 0.0
  %7144 = vmatpush1.msra.mxu0 0.0
  %7145 = vmatprep.subr.mxu0 0.0
  %7146 = vmatpush1.msra.mxu0 0.0
  %7147 = vmatprep.subr.mxu0 0.0
  %7148 = vmatpush1.msra.mxu0 0.0
  %7149 = vmatprep.subr.mxu0 0.0
  %7150 = vmatpush1.msra.mxu0 0.0
  %7151 = vmatprep.subr.mxu0 0.0
  %7152 = vmatpush1.msra.mxu0 0.0
  %7153 = vmatprep.mubr.f32.mxu0 0.0
  %v7154 = vand.u32 %v6988, 4294901760
  %7155 = vmatmul.mubr.f32.gmra.mrb[0].mxu0 %v7154
  %v7156 = vpop.f32.mrb[0].mxu0
  %v7157 = vadd.f32 %v7066, %v7156
  %v7158 = vpop.f32.mrb[0].mxu0
  %7159 = vdwg.mxu0
  %7160 = vmatprep.subr.mxu0 0.0
  %v7161 = vand.u32 %v30, 4294901760
  %v7162 = vsub.f32 %v30, %v7161
  %7163 = vmatpush1.msra.mxu0 %v7162
  %7164 = vmatprep.subr.mxu0 0.0
  %v7165 = vand.u32 %v31, 4294901760
  %v7166 = vsub.f32 %v31, %v7165
  %7167 = vmatpush1.msra.mxu0 %v7166
  %7168 = vmatprep.subr.mxu0 0.0
  %v7169 = vand.u32 %v32, 4294901760
  %v7170 = vsub.f32 %v32, %v7169
  %7171 = vmatpush1.msra.mxu0 %v7170
  %7172 = vmatprep.subr.mxu0 0.0
  %v7173 = vand.u32 %v33, 4294901760
  %v7174 = vsub.f32 %v33, %v7173
  %7175 = vmatpush1.msra.mxu0 %v7174
  %7176 = vmatprep.subr.mxu0 0.0
  %7177 = vmatpush1.msra.mxu0 0.0
  %7178 = vmatprep.subr.mxu0 0.0
  %7179 = vmatpush1.msra.mxu0 0.0
  %7180 = vmatprep.subr.mxu0 0.0
  %7181 = vmatpush1.msra.mxu0 0.0
  %7182 = vmatprep.subr.mxu0 0.0
  %7183 = vmatpush1.msra.mxu0 0.0
  %7184 = vmatprep.subr.mxu0 0.0
  %7185 = vmatpush1.msra.mxu0 0.0
  %7186 = vmatprep.subr.mxu0 0.0
  %7187 = vmatpush1.msra.mxu0 0.0
  %7188 = vmatprep.subr.mxu0 0.0
  %7189 = vmatpush1.msra.mxu0 0.0
  %7190 = vmatprep.subr.mxu0 0.0
  %7191 = vmatpush1.msra.mxu0 0.0
  %7192 = vmatprep.subr.mxu0 0.0
  %7193 = vmatpush1.msra.mxu0 0.0
  %7194 = vmatprep.subr.mxu0 0.0
  %7195 = vmatpush1.msra.mxu0 0.0
  %7196 = vmatprep.subr.mxu0 0.0
  %7197 = vmatpush1.msra.mxu0 0.0
  %7198 = vmatprep.subr.mxu0 0.0
  %7199 = vmatpush1.msra.mxu0 0.0
  %7200 = vmatprep.subr.mxu0 0.0
  %7201 = vmatpush1.msra.mxu0 0.0
  %7202 = vmatprep.subr.mxu0 0.0
  %7203 = vmatpush1.msra.mxu0 0.0
  %7204 = vmatprep.subr.mxu0 0.0
  %7205 = vmatpush1.msra.mxu0 0.0
  %7206 = vmatprep.subr.mxu0 0.0
  %7207 = vmatpush1.msra.mxu0 0.0
  %7208 = vmatprep.subr.mxu0 0.0
  %7209 = vmatpush1.msra.mxu0 0.0
  %7210 = vmatprep.subr.mxu0 0.0
  %7211 = vmatpush1.msra.mxu0 0.0
  %7212 = vmatprep.subr.mxu0 0.0
  %7213 = vmatpush1.msra.mxu0 0.0
  %7214 = vmatprep.subr.mxu0 0.0
  %7215 = vmatpush1.msra.mxu0 0.0
  %7216 = vmatprep.subr.mxu0 0.0
  %7217 = vmatpush1.msra.mxu0 0.0
  %7218 = vmatprep.subr.mxu0 0.0
  %7219 = vmatpush1.msra.mxu0 0.0
  %7220 = vmatprep.subr.mxu0 0.0
  %7221 = vmatpush1.msra.mxu0 0.0
  %7222 = vmatprep.subr.mxu0 0.0
  %7223 = vmatpush1.msra.mxu0 0.0
  %7224 = vmatprep.subr.mxu0 0.0
  %7225 = vmatpush1.msra.mxu0 0.0
  %7226 = vmatprep.subr.mxu0 0.0
  %7227 = vmatpush1.msra.mxu0 0.0
  %7228 = vmatprep.subr.mxu0 0.0
  %7229 = vmatpush1.msra.mxu0 0.0
  %7230 = vmatprep.subr.mxu0 0.0
  %7231 = vmatpush1.msra.mxu0 0.0
  %7232 = vmatprep.mubr.f32.mxu0 0.0
  %v7233 = vand.u32 %v6988, 4294901760
  %v7234 = vsub.f32 %v6988, %v7233
  %7235 = vmatmul.mubr.f32.gmra.mrb[0].mxu0 %v7234
  %v7236 = vpop.f32.mrb[0].mxu0
  %v7237 = vadd.f32 %v7157, %v7236
  %v7238 = vpop.f32.mrb[0].mxu0
  %7239 = vdwg.mxu0
  %7240 = vmatprep.subr.mxu0 0.0
  %v7241 = vand.u32 %v30, 4294901760
  %7242 = vmatpush1.msra.mxu0 %v7241
  %7243 = vmatprep.subr.mxu0 0.0
  %v7244 = vand.u32 %v31, 4294901760
  %7245 = vmatpush1.msra.mxu0 %v7244
  %7246 = vmatprep.subr.mxu0 0.0
  %v7247 = vand.u32 %v32, 4294901760
  %7248 = vmatpush1.msra.mxu0 %v7247
  %7249 = vmatprep.subr.mxu0 0.0
  %v7250 = vand.u32 %v33, 4294901760
  %7251 = vmatpush1.msra.mxu0 %v7250
  %7252 = vmatprep.subr.mxu0 0.0
  %7253 = vmatpush1.msra.mxu0 0.0
  %7254 = vmatprep.subr.mxu0 0.0
  %7255 = vmatpush1.msra.mxu0 0.0
  %7256 = vmatprep.subr.mxu0 0.0
  %7257 = vmatpush1.msra.mxu0 0.0
  %7258 = vmatprep.subr.mxu0 0.0
  %7259 = vmatpush1.msra.mxu0 0.0
  %7260 = vmatprep.subr.mxu0 0.0
  %7261 = vmatpush1.msra.mxu0 0.0
  %7262 = vmatprep.subr.mxu0 0.0
  %7263 = vmatpush1.msra.mxu0 0.0
  %7264 = vmatprep.subr.mxu0 0.0
  %7265 = vmatpush1.msra.mxu0 0.0
  %7266 = vmatprep.subr.mxu0 0.0
  %7267 = vmatpush1.msra.mxu0 0.0
  %7268 = vmatprep.subr.mxu0 0.0
  %7269 = vmatpush1.msra.mxu0 0.0
  %7270 = vmatprep.subr.mxu0 0.0
  %7271 = vmatpush1.msra.mxu0 0.0
  %7272 = vmatprep.subr.mxu0 0.0
  %7273 = vmatpush1.msra.mxu0 0.0
  %7274 = vmatprep.subr.mxu0 0.0
  %7275 = vmatpush1.msra.mxu0 0.0
  %7276 = vmatprep.subr.mxu0 0.0
  %7277 = vmatpush1.msra.mxu0 0.0
  %7278 = vmatprep.subr.mxu0 0.0
  %7279 = vmatpush1.msra.mxu0 0.0
  %7280 = vmatprep.subr.mxu0 0.0
  %7281 = vmatpush1.msra.mxu0 0.0
  %7282 = vmatprep.subr.mxu0 0.0
  %7283 = vmatpush1.msra.mxu0 0.0
  %7284 = vmatprep.subr.mxu0 0.0
  %7285 = vmatpush1.msra.mxu0 0.0
  %7286 = vmatprep.subr.mxu0 0.0
  %7287 = vmatpush1.msra.mxu0 0.0
  %7288 = vmatprep.subr.mxu0 0.0
  %7289 = vmatpush1.msra.mxu0 0.0
  %7290 = vmatprep.subr.mxu0 0.0
  %7291 = vmatpush1.msra.mxu0 0.0
  %7292 = vmatprep.subr.mxu0 0.0
  %7293 = vmatpush1.msra.mxu0 0.0
  %7294 = vmatprep.subr.mxu0 0.0
  %7295 = vmatpush1.msra.mxu0 0.0
  %7296 = vmatprep.subr.mxu0 0.0
  %7297 = vmatpush1.msra.mxu0 0.0
  %7298 = vmatprep.subr.mxu0 0.0
  %7299 = vmatpush1.msra.mxu0 0.0
  %7300 = vmatprep.subr.mxu0 0.0
  %7301 = vmatpush1.msra.mxu0 0.0
  %7302 = vmatprep.subr.mxu0 0.0
  %7303 = vmatpush1.msra.mxu0 0.0
  %7304 = vmatprep.subr.mxu0 0.0
  %7305 = vmatpush1.msra.mxu0 0.0
  %7306 = vmatprep.subr.mxu0 0.0
  %7307 = vmatpush1.msra.mxu0 0.0
  %7308 = vmatprep.mubr.f32.mxu0 0.0
  %v7309 = vand.u32 %v6988, 4294901760
  %v7310 = vsub.f32 %v6988, %v7309
  %v7311 = vand.u32 %v7310, 4294901760
  %7312 = vmatmul.mubr.f32.gmra.mrb[0].mxu0 %v7311
  %v7313 = vpop.f32.mrb[0].mxu0
  %v7314 = vadd.f32 %v7237, %v7313
  %v7315 = vpop.f32.mrb[0].mxu0
  %7316 = vdwg.mxu0
  %7317 = vmatprep.subr.mxu0 0.0
  %v7318 = vand.u32 %v30, 4294901760
  %v7319 = vsub.f32 %v30, %v7318
  %v7320 = vand.u32 %v7319, 4294901760
  %7321 = vmatpush1.msra.mxu0 %v7320
  %7322 = vmatprep.subr.mxu0 0.0
  %v7323 = vand.u32 %v31, 4294901760
  %v7324 = vsub.f32 %v31, %v7323
  %v7325 = vand.u32 %v7324, 4294901760
  %7326 = vmatpush1.msra.mxu0 %v7325
  %7327 = vmatprep.subr.mxu0 0.0
  %v7328 = vand.u32 %v32, 4294901760
  %v7329 = vsub.f32 %v32, %v7328
  %v7330 = vand.u32 %v7329, 4294901760
  %7331 = vmatpush1.msra.mxu0 %v7330
  %7332 = vmatprep.subr.mxu0 0.0
  %v7333 = vand.u32 %v33, 4294901760
  %v7334 = vsub.f32 %v33, %v7333
  %v7335 = vand.u32 %v7334, 4294901760
  %7336 = vmatpush1.msra.mxu0 %v7335
  %7337 = vmatprep.subr.mxu0 0.0
  %7338 = vmatpush1.msra.mxu0 0.0
  %7339 = vmatprep.subr.mxu0 0.0
  %7340 = vmatpush1.msra.mxu0 0.0
  %7341 = vmatprep.subr.mxu0 0.0
  %7342 = vmatpush1.msra.mxu0 0.0
  %7343 = vmatprep.subr.mxu0 0.0
  %7344 = vmatpush1.msra.mxu0 0.0
  %7345 = vmatprep.subr.mxu0 0.0
  %7346 = vmatpush1.msra.mxu0 0.0
  %7347 = vmatprep.subr.mxu0 0.0
  %7348 = vmatpush1.msra.mxu0 0.0
  %7349 = vmatprep.subr.mxu0 0.0
  %7350 = vmatpush1.msra.mxu0 0.0
  %7351 = vmatprep.subr.mxu0 0.0
  %7352 = vmatpush1.msra.mxu0 0.0
  %7353 = vmatprep.subr.mxu0 0.0
  %7354 = vmatpush1.msra.mxu0 0.0
  %7355 = vmatprep.subr.mxu0 0.0
  %7356 = vmatpush1.msra.mxu0 0.0
  %7357 = vmatprep.subr.mxu0 0.0
  %7358 = vmatpush1.msra.mxu0 0.0
  %7359 = vmatprep.subr.mxu0 0.0
  %7360 = vmatpush1.msra.mxu0 0.0
  %7361 = vmatprep.subr.mxu0 0.0
  %7362 = vmatpush1.msra.mxu0 0.0
  %7363 = vmatprep.subr.mxu0 0.0
  %7364 = vmatpush1.msra.mxu0 0.0
  %7365 = vmatprep.subr.mxu0 0.0
  %7366 = vmatpush1.msra.mxu0 0.0
  %7367 = vmatprep.subr.mxu0 0.0
  %7368 = vmatpush1.msra.mxu0 0.0
  %7369 = vmatprep.subr.mxu0 0.0
  %7370 = vmatpush1.msra.mxu0 0.0
  %7371 = vmatprep.subr.mxu0 0.0
  %7372 = vmatpush1.msra.mxu0 0.0
  %7373 = vmatprep.subr.mxu0 0.0
  %7374 = vmatpush1.msra.mxu0 0.0
  %7375 = vmatprep.subr.mxu0 0.0
  %7376 = vmatpush1.msra.mxu0 0.0
  %7377 = vmatprep.subr.mxu0 0.0
  %7378 = vmatpush1.msra.mxu0 0.0
  %7379 = vmatprep.subr.mxu0 0.0
  %7380 = vmatpush1.msra.mxu0 0.0
  %7381 = vmatprep.subr.mxu0 0.0
  %7382 = vmatpush1.msra.mxu0 0.0
  %7383 = vmatprep.subr.mxu0 0.0
  %7384 = vmatpush1.msra.mxu0 0.0
  %7385 = vmatprep.subr.mxu0 0.0
  %7386 = vmatpush1.msra.mxu0 0.0
  %7387 = vmatprep.subr.mxu0 0.0
  %7388 = vmatpush1.msra.mxu0 0.0
  %7389 = vmatprep.subr.mxu0 0.0
  %7390 = vmatpush1.msra.mxu0 0.0
  %7391 = vmatprep.subr.mxu0 0.0
  %7392 = vmatpush1.msra.mxu0 0.0
  %7393 = vmatprep.mubr.f32.mxu0 0.0
  %v7394 = vand.u32 %v6988, 4294901760
  %7395 = vmatmul.mubr.f32.gmra.mrb[0].mxu0 %v7394
  %v7396 = vpop.f32.mrb[0].mxu0
  %v7397 = vadd.f32 %v7314, %v7396
  %v7398 = vpop.f32.mrb[0].mxu0
  %7399 = vdwg.mxu0
  %7400 = vmatprep.subr.mxu0 0.0
  %v7401 = vand.u32 %v30, 4294901760
  %7402 = vmatpush1.msra.mxu0 %v7401
  %7403 = vmatprep.subr.mxu0 0.0
  %v7404 = vand.u32 %v31, 4294901760
  %7405 = vmatpush1.msra.mxu0 %v7404
  %7406 = vmatprep.subr.mxu0 0.0
  %v7407 = vand.u32 %v32, 4294901760
  %7408 = vmatpush1.msra.mxu0 %v7407
  %7409 = vmatprep.subr.mxu0 0.0
  %v7410 = vand.u32 %v33, 4294901760
  %7411 = vmatpush1.msra.mxu0 %v7410
  %7412 = vmatprep.subr.mxu0 0.0
  %7413 = vmatpush1.msra.mxu0 0.0
  %7414 = vmatprep.subr.mxu0 0.0
  %7415 = vmatpush1.msra.mxu0 0.0
  %7416 = vmatprep.subr.mxu0 0.0
  %7417 = vmatpush1.msra.mxu0 0.0
  %7418 = vmatprep.subr.mxu0 0.0
  %7419 = vmatpush1.msra.mxu0 0.0
  %7420 = vmatprep.subr.mxu0 0.0
  %7421 = vmatpush1.msra.mxu0 0.0
  %7422 = vmatprep.subr.mxu0 0.0
  %7423 = vmatpush1.msra.mxu0 0.0
  %7424 = vmatprep.subr.mxu0 0.0
  %7425 = vmatpush1.msra.mxu0 0.0
  %7426 = vmatprep.subr.mxu0 0.0
  %7427 = vmatpush1.msra.mxu0 0.0
  %7428 = vmatprep.subr.mxu0 0.0
  %7429 = vmatpush1.msra.mxu0 0.0
  %7430 = vmatprep.subr.mxu0 0.0
  %7431 = vmatpush1.msra.mxu0 0.0
  %7432 = vmatprep.subr.mxu0 0.0
  %7433 = vmatpush1.msra.mxu0 0.0
  %7434 = vmatprep.subr.mxu0 0.0
  %7435 = vmatpush1.msra.mxu0 0.0
  %7436 = vmatprep.subr.mxu0 0.0
  %7437 = vmatpush1.msra.mxu0 0.0
  %7438 = vmatprep.subr.mxu0 0.0
  %7439 = vmatpush1.msra.mxu0 0.0
  %7440 = vmatprep.subr.mxu0 0.0
  %7441 = vmatpush1.msra.mxu0 0.0
  %7442 = vmatprep.subr.mxu0 0.0
  %7443 = vmatpush1.msra.mxu0 0.0
  %7444 = vmatprep.subr.mxu0 0.0
  %7445 = vmatpush1.msra.mxu0 0.0
  %7446 = vmatprep.subr.mxu0 0.0
  %7447 = vmatpush1.msra.mxu0 0.0
  %7448 = vmatprep.subr.mxu0 0.0
  %7449 = vmatpush1.msra.mxu0 0.0
  %7450 = vmatprep.subr.mxu0 0.0
  %7451 = vmatpush1.msra.mxu0 0.0
  %7452 = vmatprep.subr.mxu0 0.0
  %7453 = vmatpush1.msra.mxu0 0.0
  %7454 = vmatprep.subr.mxu0 0.0
  %7455 = vmatpush1.msra.mxu0 0.0
  %7456 = vmatprep.subr.mxu0 0.0
  %7457 = vmatpush1.msra.mxu0 0.0
  %7458 = vmatprep.subr.mxu0 0.0
  %7459 = vmatpush1.msra.mxu0 0.0
  %7460 = vmatprep.subr.mxu0 0.0
  %7461 = vmatpush1.msra.mxu0 0.0
  %7462 = vmatprep.subr.mxu0 0.0
  %7463 = vmatpush1.msra.mxu0 0.0
  %7464 = vmatprep.subr.mxu0 0.0
  %7465 = vmatpush1.msra.mxu0 0.0
  %7466 = vmatprep.subr.mxu0 0.0
  %7467 = vmatpush1.msra.mxu0 0.0
  %7468 = vmatprep.mubr.f32.mxu0 0.0
  %v7469 = vand.u32 %v6988, 4294901760
  %7470 = vmatmul.mubr.f32.gmra.mrb[0].mxu0 %v7469
  %v7471 = vpop.f32.mrb[0].mxu0
  %v7472 = vadd.f32 %v7397, %v7471
  %v7473 = vpop.f32.mrb[0].mxu0
  %7474 = vdwg.mxu0
  %v7476 = vrot.slane %v7472, 3
  %7477 = vrot.lane.b32.xlu0 %v7476, 32
  %v7478 = vpop.permute.xlu0 %7477
  %v7480 = vadd.f32 %v546, %v7478
  %v7481 = vtanh.pop %v7480
  %v7483 = vrot.slane %v7481, 5
  %7484 = vrot.lane.b32.xlu0 %v7483, 96
  %v7485 = vpop.permute.xlu0 %7484
  %v7486 = vsel %vm550, %v7485, 0
  %7488 = vmatprep.subr.mxu0 0.0
  %v7489 = vand.u32 %v30, 4294901760
  %7490 = vmatpush1.msra.mxu0 %v7489
  %7491 = vmatprep.subr.mxu0 0.0
  %v7492 = vand.u32 %v31, 4294901760
  %7493 = vmatpush1.msra.mxu0 %v7492
  %7494 = vmatprep.subr.mxu0 0.0
  %v7495 = vand.u32 %v32, 4294901760
  %7496 = vmatpush1.msra.mxu0 %v7495
  %7497 = vmatprep.subr.mxu0 0.0
  %v7498 = vand.u32 %v33, 4294901760
  %7499 = vmatpush1.msra.mxu0 %v7498
  %7500 = vmatprep.subr.mxu0 0.0
  %7501 = vmatpush1.msra.mxu0 0.0
  %7502 = vmatprep.subr.mxu0 0.0
  %7503 = vmatpush1.msra.mxu0 0.0
  %7504 = vmatprep.subr.mxu0 0.0
  %7505 = vmatpush1.msra.mxu0 0.0
  %7506 = vmatprep.subr.mxu0 0.0
  %7507 = vmatpush1.msra.mxu0 0.0
  %7508 = vmatprep.subr.mxu0 0.0
  %7509 = vmatpush1.msra.mxu0 0.0
  %7510 = vmatprep.subr.mxu0 0.0
  %7511 = vmatpush1.msra.mxu0 0.0
  %7512 = vmatprep.subr.mxu0 0.0
  %7513 = vmatpush1.msra.mxu0 0.0
  %7514 = vmatprep.subr.mxu0 0.0
  %7515 = vmatpush1.msra.mxu0 0.0
  %7516 = vmatprep.subr.mxu0 0.0
  %7517 = vmatpush1.msra.mxu0 0.0
  %7518 = vmatprep.subr.mxu0 0.0
  %7519 = vmatpush1.msra.mxu0 0.0
  %7520 = vmatprep.subr.mxu0 0.0
  %7521 = vmatpush1.msra.mxu0 0.0
  %7522 = vmatprep.subr.mxu0 0.0
  %7523 = vmatpush1.msra.mxu0 0.0
  %7524 = vmatprep.subr.mxu0 0.0
  %7525 = vmatpush1.msra.mxu0 0.0
  %7526 = vmatprep.subr.mxu0 0.0
  %7527 = vmatpush1.msra.mxu0 0.0
  %7528 = vmatprep.subr.mxu0 0.0
  %7529 = vmatpush1.msra.mxu0 0.0
  %7530 = vmatprep.subr.mxu0 0.0
  %7531 = vmatpush1.msra.mxu0 0.0
  %7532 = vmatprep.subr.mxu0 0.0
  %7533 = vmatpush1.msra.mxu0 0.0
  %7534 = vmatprep.subr.mxu0 0.0
  %7535 = vmatpush1.msra.mxu0 0.0
  %7536 = vmatprep.subr.mxu0 0.0
  %7537 = vmatpush1.msra.mxu0 0.0
  %7538 = vmatprep.subr.mxu0 0.0
  %7539 = vmatpush1.msra.mxu0 0.0
  %7540 = vmatprep.subr.mxu0 0.0
  %7541 = vmatpush1.msra.mxu0 0.0
  %7542 = vmatprep.subr.mxu0 0.0
  %7543 = vmatpush1.msra.mxu0 0.0
  %7544 = vmatprep.subr.mxu0 0.0
  %7545 = vmatpush1.msra.mxu0 0.0
  %7546 = vmatprep.subr.mxu0 0.0
  %7547 = vmatpush1.msra.mxu0 0.0
  %7548 = vmatprep.subr.mxu0 0.0
  %7549 = vmatpush1.msra.mxu0 0.0
  %7550 = vmatprep.subr.mxu0 0.0
  %7551 = vmatpush1.msra.mxu0 0.0
  %7552 = vmatprep.subr.mxu0 0.0
  %7553 = vmatpush1.msra.mxu0 0.0
  %7554 = vmatprep.subr.mxu0 0.0
  %7555 = vmatpush1.msra.mxu0 0.0
  %7556 = vmatprep.mubr.f32.mxu0 0.0
  %v7557 = vand.u32 %v7486, 4294901760
  %v7558 = vsub.f32 %v7486, %v7557
  %v7559 = vand.u32 %v7558, 4294901760
  %v7560 = vsub.f32 %v7558, %v7559
  %v7561 = vand.u32 %v7560, 4294901760
  %7562 = vmatmul.mubr.f32.gmra.mrb[0].mxu0 %v7561
  %v7563 = vpop.f32.mrb[0].mxu0
  %v7564 = vadd.f32 0.0, %v7563
  %v7565 = vpop.f32.mrb[0].mxu0
  %7566 = vdwg.mxu0
  %7567 = vmatprep.subr.mxu0 0.0
  %v7568 = vand.u32 %v30, 4294901760
  %v7569 = vsub.f32 %v30, %v7568
  %v7570 = vand.u32 %v7569, 4294901760
  %v7571 = vsub.f32 %v7569, %v7570
  %v7572 = vand.u32 %v7571, 4294901760
  %7573 = vmatpush1.msra.mxu0 %v7572
  %7574 = vmatprep.subr.mxu0 0.0
  %v7575 = vand.u32 %v31, 4294901760
  %v7576 = vsub.f32 %v31, %v7575
  %v7577 = vand.u32 %v7576, 4294901760
  %v7578 = vsub.f32 %v7576, %v7577
  %v7579 = vand.u32 %v7578, 4294901760
  %7580 = vmatpush1.msra.mxu0 %v7579
  %7581 = vmatprep.subr.mxu0 0.0
  %v7582 = vand.u32 %v32, 4294901760
  %v7583 = vsub.f32 %v32, %v7582
  %v7584 = vand.u32 %v7583, 4294901760
  %v7585 = vsub.f32 %v7583, %v7584
  %v7586 = vand.u32 %v7585, 4294901760
  %7587 = vmatpush1.msra.mxu0 %v7586
  %7588 = vmatprep.subr.mxu0 0.0
  %v7589 = vand.u32 %v33, 4294901760
  %v7590 = vsub.f32 %v33, %v7589
  %v7591 = vand.u32 %v7590, 4294901760
  %v7592 = vsub.f32 %v7590, %v7591
  %v7593 = vand.u32 %v7592, 4294901760
  %7594 = vmatpush1.msra.mxu0 %v7593
  %7595 = vmatprep.subr.mxu0 0.0
  %7596 = vmatpush1.msra.mxu0 0.0
  %7597 = vmatprep.subr.mxu0 0.0
  %7598 = vmatpush1.msra.mxu0 0.0
  %7599 = vmatprep.subr.mxu0 0.0
  %7600 = vmatpush1.msra.mxu0 0.0
  %7601 = vmatprep.subr.mxu0 0.0
  %7602 = vmatpush1.msra.mxu0 0.0
  %7603 = vmatprep.subr.mxu0 0.0
  %7604 = vmatpush1.msra.mxu0 0.0
  %7605 = vmatprep.subr.mxu0 0.0
  %7606 = vmatpush1.msra.mxu0 0.0
  %7607 = vmatprep.subr.mxu0 0.0
  %7608 = vmatpush1.msra.mxu0 0.0
  %7609 = vmatprep.subr.mxu0 0.0
  %7610 = vmatpush1.msra.mxu0 0.0
  %7611 = vmatprep.subr.mxu0 0.0
  %7612 = vmatpush1.msra.mxu0 0.0
  %7613 = vmatprep.subr.mxu0 0.0
  %7614 = vmatpush1.msra.mxu0 0.0
  %7615 = vmatprep.subr.mxu0 0.0
  %7616 = vmatpush1.msra.mxu0 0.0
  %7617 = vmatprep.subr.mxu0 0.0
  %7618 = vmatpush1.msra.mxu0 0.0
  %7619 = vmatprep.subr.mxu0 0.0
  %7620 = vmatpush1.msra.mxu0 0.0
  %7621 = vmatprep.subr.mxu0 0.0
  %7622 = vmatpush1.msra.mxu0 0.0
  %7623 = vmatprep.subr.mxu0 0.0
  %7624 = vmatpush1.msra.mxu0 0.0
  %7625 = vmatprep.subr.mxu0 0.0
  %7626 = vmatpush1.msra.mxu0 0.0
  %7627 = vmatprep.subr.mxu0 0.0
  %7628 = vmatpush1.msra.mxu0 0.0
  %7629 = vmatprep.subr.mxu0 0.0
  %7630 = vmatpush1.msra.mxu0 0.0
  %7631 = vmatprep.subr.mxu0 0.0
  %7632 = vmatpush1.msra.mxu0 0.0
  %7633 = vmatprep.subr.mxu0 0.0
  %7634 = vmatpush1.msra.mxu0 0.0
  %7635 = vmatprep.subr.mxu0 0.0
  %7636 = vmatpush1.msra.mxu0 0.0
  %7637 = vmatprep.subr.mxu0 0.0
  %7638 = vmatpush1.msra.mxu0 0.0
  %7639 = vmatprep.subr.mxu0 0.0
  %7640 = vmatpush1.msra.mxu0 0.0
  %7641 = vmatprep.subr.mxu0 0.0
  %7642 = vmatpush1.msra.mxu0 0.0
  %7643 = vmatprep.subr.mxu0 0.0
  %7644 = vmatpush1.msra.mxu0 0.0
  %7645 = vmatprep.subr.mxu0 0.0
  %7646 = vmatpush1.msra.mxu0 0.0
  %7647 = vmatprep.subr.mxu0 0.0
  %7648 = vmatpush1.msra.mxu0 0.0
  %7649 = vmatprep.subr.mxu0 0.0
  %7650 = vmatpush1.msra.mxu0 0.0
  %7651 = vmatprep.mubr.f32.mxu0 0.0
  %v7652 = vand.u32 %v7486, 4294901760
  %7653 = vmatmul.mubr.f32.gmra.mrb[0].mxu0 %v7652
  %v7654 = vpop.f32.mrb[0].mxu0
  %v7655 = vadd.f32 %v7564, %v7654
  %v7656 = vpop.f32.mrb[0].mxu0
  %7657 = vdwg.mxu0
  %7658 = vmatprep.subr.mxu0 0.0
  %v7659 = vand.u32 %v30, 4294901760
  %v7660 = vsub.f32 %v30, %v7659
  %7661 = vmatpush1.msra.mxu0 %v7660
  %7662 = vmatprep.subr.mxu0 0.0
  %v7663 = vand.u32 %v31, 4294901760
  %v7664 = vsub.f32 %v31, %v7663
  %7665 = vmatpush1.msra.mxu0 %v7664
  %7666 = vmatprep.subr.mxu0 0.0
  %v7667 = vand.u32 %v32, 4294901760
  %v7668 = vsub.f32 %v32, %v7667
  %7669 = vmatpush1.msra.mxu0 %v7668
  %7670 = vmatprep.subr.mxu0 0.0
  %v7671 = vand.u32 %v33, 4294901760
  %v7672 = vsub.f32 %v33, %v7671
  %7673 = vmatpush1.msra.mxu0 %v7672
  %7674 = vmatprep.subr.mxu0 0.0
  %7675 = vmatpush1.msra.mxu0 0.0
  %7676 = vmatprep.subr.mxu0 0.0
  %7677 = vmatpush1.msra.mxu0 0.0
  %7678 = vmatprep.subr.mxu0 0.0
  %7679 = vmatpush1.msra.mxu0 0.0
  %7680 = vmatprep.subr.mxu0 0.0
  %7681 = vmatpush1.msra.mxu0 0.0
  %7682 = vmatprep.subr.mxu0 0.0
  %7683 = vmatpush1.msra.mxu0 0.0
  %7684 = vmatprep.subr.mxu0 0.0
  %7685 = vmatpush1.msra.mxu0 0.0
  %7686 = vmatprep.subr.mxu0 0.0
  %7687 = vmatpush1.msra.mxu0 0.0
  %7688 = vmatprep.subr.mxu0 0.0
  %7689 = vmatpush1.msra.mxu0 0.0
  %7690 = vmatprep.subr.mxu0 0.0
  %7691 = vmatpush1.msra.mxu0 0.0
  %7692 = vmatprep.subr.mxu0 0.0
  %7693 = vmatpush1.msra.mxu0 0.0
  %7694 = vmatprep.subr.mxu0 0.0
  %7695 = vmatpush1.msra.mxu0 0.0
  %7696 = vmatprep.subr.mxu0 0.0
  %7697 = vmatpush1.msra.mxu0 0.0
  %7698 = vmatprep.subr.mxu0 0.0
  %7699 = vmatpush1.msra.mxu0 0.0
  %7700 = vmatprep.subr.mxu0 0.0
  %7701 = vmatpush1.msra.mxu0 0.0
  %7702 = vmatprep.subr.mxu0 0.0
  %7703 = vmatpush1.msra.mxu0 0.0
  %7704 = vmatprep.subr.mxu0 0.0
  %7705 = vmatpush1.msra.mxu0 0.0
  %7706 = vmatprep.subr.mxu0 0.0
  %7707 = vmatpush1.msra.mxu0 0.0
  %7708 = vmatprep.subr.mxu0 0.0
  %7709 = vmatpush1.msra.mxu0 0.0
  %7710 = vmatprep.subr.mxu0 0.0
  %7711 = vmatpush1.msra.mxu0 0.0
  %7712 = vmatprep.subr.mxu0 0.0
  %7713 = vmatpush1.msra.mxu0 0.0
  %7714 = vmatprep.subr.mxu0 0.0
  %7715 = vmatpush1.msra.mxu0 0.0
  %7716 = vmatprep.subr.mxu0 0.0
  %7717 = vmatpush1.msra.mxu0 0.0
  %7718 = vmatprep.subr.mxu0 0.0
  %7719 = vmatpush1.msra.mxu0 0.0
  %7720 = vmatprep.subr.mxu0 0.0
  %7721 = vmatpush1.msra.mxu0 0.0
  %7722 = vmatprep.subr.mxu0 0.0
  %7723 = vmatpush1.msra.mxu0 0.0
  %7724 = vmatprep.subr.mxu0 0.0
  %7725 = vmatpush1.msra.mxu0 0.0
  %7726 = vmatprep.subr.mxu0 0.0
  %7727 = vmatpush1.msra.mxu0 0.0
  %7728 = vmatprep.subr.mxu0 0.0
  %7729 = vmatpush1.msra.mxu0 0.0
  %7730 = vmatprep.mubr.f32.mxu0 0.0
  %v7731 = vand.u32 %v7486, 4294901760
  %v7732 = vsub.f32 %v7486, %v7731
  %7733 = vmatmul.mubr.f32.gmra.mrb[0].mxu0 %v7732
  %v7734 = vpop.f32.mrb[0].mxu0
  %v7735 = vadd.f32 %v7655, %v7734
  %v7736 = vpop.f32.mrb[0].mxu0
  %7737 = vdwg.mxu0
  %7738 = vmatprep.subr.mxu0 0.0
  %v7739 = vand.u32 %v30, 4294901760
  %7740 = vmatpush1.msra.mxu0 %v7739
  %7741 = vmatprep.subr.mxu0 0.0
  %v7742 = vand.u32 %v31, 4294901760
  %7743 = vmatpush1.msra.mxu0 %v7742
  %7744 = vmatprep.subr.mxu0 0.0
  %v7745 = vand.u32 %v32, 4294901760
  %7746 = vmatpush1.msra.mxu0 %v7745
  %7747 = vmatprep.subr.mxu0 0.0
  %v7748 = vand.u32 %v33, 4294901760
  %7749 = vmatpush1.msra.mxu0 %v7748
  %7750 = vmatprep.subr.mxu0 0.0
  %7751 = vmatpush1.msra.mxu0 0.0
  %7752 = vmatprep.subr.mxu0 0.0
  %7753 = vmatpush1.msra.mxu0 0.0
  %7754 = vmatprep.subr.mxu0 0.0
  %7755 = vmatpush1.msra.mxu0 0.0
  %7756 = vmatprep.subr.mxu0 0.0
  %7757 = vmatpush1.msra.mxu0 0.0
  %7758 = vmatprep.subr.mxu0 0.0
  %7759 = vmatpush1.msra.mxu0 0.0
  %7760 = vmatprep.subr.mxu0 0.0
  %7761 = vmatpush1.msra.mxu0 0.0
  %7762 = vmatprep.subr.mxu0 0.0
  %7763 = vmatpush1.msra.mxu0 0.0
  %7764 = vmatprep.subr.mxu0 0.0
  %7765 = vmatpush1.msra.mxu0 0.0
  %7766 = vmatprep.subr.mxu0 0.0
  %7767 = vmatpush1.msra.mxu0 0.0
  %7768 = vmatprep.subr.mxu0 0.0
  %7769 = vmatpush1.msra.mxu0 0.0
  %7770 = vmatprep.subr.mxu0 0.0
  %7771 = vmatpush1.msra.mxu0 0.0
  %7772 = vmatprep.subr.mxu0 0.0
  %7773 = vmatpush1.msra.mxu0 0.0
  %7774 = vmatprep.subr.mxu0 0.0
  %7775 = vmatpush1.msra.mxu0 0.0
  %7776 = vmatprep.subr.mxu0 0.0
  %7777 = vmatpush1.msra.mxu0 0.0
  %7778 = vmatprep.subr.mxu0 0.0
  %7779 = vmatpush1.msra.mxu0 0.0
  %7780 = vmatprep.subr.mxu0 0.0
  %7781 = vmatpush1.msra.mxu0 0.0
  %7782 = vmatprep.subr.mxu0 0.0
  %7783 = vmatpush1.msra.mxu0 0.0
  %7784 = vmatprep.subr.mxu0 0.0
  %7785 = vmatpush1.msra.mxu0 0.0
  %7786 = vmatprep.subr.mxu0 0.0
  %7787 = vmatpush1.msra.mxu0 0.0
  %7788 = vmatprep.subr.mxu0 0.0
  %7789 = vmatpush1.msra.mxu0 0.0
  %7790 = vmatprep.subr.mxu0 0.0
  %7791 = vmatpush1.msra.mxu0 0.0
  %7792 = vmatprep.subr.mxu0 0.0
  %7793 = vmatpush1.msra.mxu0 0.0
  %7794 = vmatprep.subr.mxu0 0.0
  %7795 = vmatpush1.msra.mxu0 0.0
  %7796 = vmatprep.subr.mxu0 0.0
  %7797 = vmatpush1.msra.mxu0 0.0
  %7798 = vmatprep.subr.mxu0 0.0
  %7799 = vmatpush1.msra.mxu0 0.0
  %7800 = vmatprep.subr.mxu0 0.0
  %7801 = vmatpush1.msra.mxu0 0.0
  %7802 = vmatprep.subr.mxu0 0.0
  %7803 = vmatpush1.msra.mxu0 0.0
  %7804 = vmatprep.subr.mxu0 0.0
  %7805 = vmatpush1.msra.mxu0 0.0
  %7806 = vmatprep.mubr.f32.mxu0 0.0
  %v7807 = vand.u32 %v7486, 4294901760
  %v7808 = vsub.f32 %v7486, %v7807
  %v7809 = vand.u32 %v7808, 4294901760
  %7810 = vmatmul.mubr.f32.gmra.mrb[0].mxu0 %v7809
  %v7811 = vpop.f32.mrb[0].mxu0
  %v7812 = vadd.f32 %v7735, %v7811
  %v7813 = vpop.f32.mrb[0].mxu0
  %7814 = vdwg.mxu0
  %7815 = vmatprep.subr.mxu0 0.0
  %v7816 = vand.u32 %v30, 4294901760
  %v7817 = vsub.f32 %v30, %v7816
  %v7818 = vand.u32 %v7817, 4294901760
  %7819 = vmatpush1.msra.mxu0 %v7818
  %7820 = vmatprep.subr.mxu0 0.0
  %v7821 = vand.u32 %v31, 4294901760
  %v7822 = vsub.f32 %v31, %v7821
  %v7823 = vand.u32 %v7822, 4294901760
  %7824 = vmatpush1.msra.mxu0 %v7823
  %7825 = vmatprep.subr.mxu0 0.0
  %v7826 = vand.u32 %v32, 4294901760
  %v7827 = vsub.f32 %v32, %v7826
  %v7828 = vand.u32 %v7827, 4294901760
  %7829 = vmatpush1.msra.mxu0 %v7828
  %7830 = vmatprep.subr.mxu0 0.0
  %v7831 = vand.u32 %v33, 4294901760
  %v7832 = vsub.f32 %v33, %v7831
  %v7833 = vand.u32 %v7832, 4294901760
  %7834 = vmatpush1.msra.mxu0 %v7833
  %7835 = vmatprep.subr.mxu0 0.0
  %7836 = vmatpush1.msra.mxu0 0.0
  %7837 = vmatprep.subr.mxu0 0.0
  %7838 = vmatpush1.msra.mxu0 0.0
  %7839 = vmatprep.subr.mxu0 0.0
  %7840 = vmatpush1.msra.mxu0 0.0
  %7841 = vmatprep.subr.mxu0 0.0
  %7842 = vmatpush1.msra.mxu0 0.0
  %7843 = vmatprep.subr.mxu0 0.0
  %7844 = vmatpush1.msra.mxu0 0.0
  %7845 = vmatprep.subr.mxu0 0.0
  %7846 = vmatpush1.msra.mxu0 0.0
  %7847 = vmatprep.subr.mxu0 0.0
  %7848 = vmatpush1.msra.mxu0 0.0
  %7849 = vmatprep.subr.mxu0 0.0
  %7850 = vmatpush1.msra.mxu0 0.0
  %7851 = vmatprep.subr.mxu0 0.0
  %7852 = vmatpush1.msra.mxu0 0.0
  %7853 = vmatprep.subr.mxu0 0.0
  %7854 = vmatpush1.msra.mxu0 0.0
  %7855 = vmatprep.subr.mxu0 0.0
  %7856 = vmatpush1.msra.mxu0 0.0
  %7857 = vmatprep.subr.mxu0 0.0
  %7858 = vmatpush1.msra.mxu0 0.0
  %7859 = vmatprep.subr.mxu0 0.0
  %7860 = vmatpush1.msra.mxu0 0.0
  %7861 = vmatprep.subr.mxu0 0.0
  %7862 = vmatpush1.msra.mxu0 0.0
  %7863 = vmatprep.subr.mxu0 0.0
  %7864 = vmatpush1.msra.mxu0 0.0
  %7865 = vmatprep.subr.mxu0 0.0
  %7866 = vmatpush1.msra.mxu0 0.0
  %7867 = vmatprep.subr.mxu0 0.0
  %7868 = vmatpush1.msra.mxu0 0.0
  %7869 = vmatprep.subr.mxu0 0.0
  %7870 = vmatpush1.msra.mxu0 0.0
  %7871 = vmatprep.subr.mxu0 0.0
  %7872 = vmatpush1.msra.mxu0 0.0
  %7873 = vmatprep.subr.mxu0 0.0
  %7874 = vmatpush1.msra.mxu0 0.0
  %7875 = vmatprep.subr.mxu0 0.0
  %7876 = vmatpush1.msra.mxu0 0.0
  %7877 = vmatprep.subr.mxu0 0.0
  %7878 = vmatpush1.msra.mxu0 0.0
  %7879 = vmatprep.subr.mxu0 0.0
  %7880 = vmatpush1.msra.mxu0 0.0
  %7881 = vmatprep.subr.mxu0 0.0
  %7882 = vmatpush1.msra.mxu0 0.0
  %7883 = vmatprep.subr.mxu0 0.0
  %7884 = vmatpush1.msra.mxu0 0.0
  %7885 = vmatprep.subr.mxu0 0.0
  %7886 = vmatpush1.msra.mxu0 0.0
  %7887 = vmatprep.subr.mxu0 0.0
  %7888 = vmatpush1.msra.mxu0 0.0
  %7889 = vmatprep.subr.mxu0 0.0
  %7890 = vmatpush1.msra.mxu0 0.0
  %7891 = vmatprep.mubr.f32.mxu0 0.0
  %v7892 = vand.u32 %v7486, 4294901760
  %7893 = vmatmul.mubr.f32.gmra.mrb[0].mxu0 %v7892
  %v7894 = vpop.f32.mrb[0].mxu0
  %v7895 = vadd.f32 %v7812, %v7894
  %v7896 = vpop.f32.mrb[0].mxu0
  %7897 = vdwg.mxu0
  %7898 = vmatprep.subr.mxu0 0.0
  %v7899 = vand.u32 %v30, 4294901760
  %7900 = vmatpush1.msra.mxu0 %v7899
  %7901 = vmatprep.subr.mxu0 0.0
  %v7902 = vand.u32 %v31, 4294901760
  %7903 = vmatpush1.msra.mxu0 %v7902
  %7904 = vmatprep.subr.mxu0 0.0
  %v7905 = vand.u32 %v32, 4294901760
  %7906 = vmatpush1.msra.mxu0 %v7905
  %7907 = vmatprep.subr.mxu0 0.0
  %v7908 = vand.u32 %v33, 4294901760
  %7909 = vmatpush1.msra.mxu0 %v7908
  %7910 = vmatprep.subr.mxu0 0.0
  %7911 = vmatpush1.msra.mxu0 0.0
  %7912 = vmatprep.subr.mxu0 0.0
  %7913 = vmatpush1.msra.mxu0 0.0
  %7914 = vmatprep.subr.mxu0 0.0
  %7915 = vmatpush1.msra.mxu0 0.0
  %7916 = vmatprep.subr.mxu0 0.0
  %7917 = vmatpush1.msra.mxu0 0.0
  %7918 = vmatprep.subr.mxu0 0.0
  %7919 = vmatpush1.msra.mxu0 0.0
  %7920 = vmatprep.subr.mxu0 0.0
  %7921 = vmatpush1.msra.mxu0 0.0
  %7922 = vmatprep.subr.mxu0 0.0
  %7923 = vmatpush1.msra.mxu0 0.0
  %7924 = vmatprep.subr.mxu0 0.0
  %7925 = vmatpush1.msra.mxu0 0.0
  %7926 = vmatprep.subr.mxu0 0.0
  %7927 = vmatpush1.msra.mxu0 0.0
  %7928 = vmatprep.subr.mxu0 0.0
  %7929 = vmatpush1.msra.mxu0 0.0
  %7930 = vmatprep.subr.mxu0 0.0
  %7931 = vmatpush1.msra.mxu0 0.0
  %7932 = vmatprep.subr.mxu0 0.0
  %7933 = vmatpush1.msra.mxu0 0.0
  %7934 = vmatprep.subr.mxu0 0.0
  %7935 = vmatpush1.msra.mxu0 0.0
  %7936 = vmatprep.subr.mxu0 0.0
  %7937 = vmatpush1.msra.mxu0 0.0
  %7938 = vmatprep.subr.mxu0 0.0
  %7939 = vmatpush1.msra.mxu0 0.0
  %7940 = vmatprep.subr.mxu0 0.0
  %7941 = vmatpush1.msra.mxu0 0.0
  %7942 = vmatprep.subr.mxu0 0.0
  %7943 = vmatpush1.msra.mxu0 0.0
  %7944 = vmatprep.subr.mxu0 0.0
  %7945 = vmatpush1.msra.mxu0 0.0
  %7946 = vmatprep.subr.mxu0 0.0
  %7947 = vmatpush1.msra.mxu0 0.0
  %7948 = vmatprep.subr.mxu0 0.0
  %7949 = vmatpush1.msra.mxu0 0.0
  %7950 = vmatprep.subr.mxu0 0.0
  %7951 = vmatpush1.msra.mxu0 0.0
  %7952 = vmatprep.subr.mxu0 0.0
  %7953 = vmatpush1.msra.mxu0 0.0
  %7954 = vmatprep.subr.mxu0 0.0
  %7955 = vmatpush1.msra.mxu0 0.0
  %7956 = vmatprep.subr.mxu0 0.0
  %7957 = vmatpush1.msra.mxu0 0.0
  %7958 = vmatprep.subr.mxu0 0.0
  %7959 = vmatpush1.msra.mxu0 0.0
  %7960 = vmatprep.subr.mxu0 0.0
  %7961 = vmatpush1.msra.mxu0 0.0
  %7962 = vmatprep.subr.mxu0 0.0
  %7963 = vmatpush1.msra.mxu0 0.0
  %7964 = vmatprep.subr.mxu0 0.0
  %7965 = vmatpush1.msra.mxu0 0.0
  %7966 = vmatprep.mubr.f32.mxu0 0.0
  %v7967 = vand.u32 %v7486, 4294901760
  %7968 = vmatmul.mubr.f32.gmra.mrb[0].mxu0 %v7967
  %v7969 = vpop.f32.mrb[0].mxu0
  %v7970 = vadd.f32 %v7895, %v7969
  %v7971 = vpop.f32.mrb[0].mxu0
  %7972 = vdwg.mxu0
  %v7974 = vrot.slane %v7970, 2
  %7975 = vrot.lane.b32.xlu0 %v7974, 32
  %v7976 = vpop.permute.xlu0 %7975
  %v7978 = vadd.f32 %v546, %v7976
  %v7979 = vtanh.pop %v7978
  %v7981 = vrot.slane %v7979, 6
  %7982 = vrot.lane.b32.xlu0 %v7981, 96
  %v7983 = vpop.permute.xlu0 %7982
  %v7984 = vsel %vm550, %v7983, 0
  %7986 = vmatprep.subr.mxu0 0.0
  %v7987 = vand.u32 %v30, 4294901760
  %7988 = vmatpush1.msra.mxu0 %v7987
  %7989 = vmatprep.subr.mxu0 0.0
  %v7990 = vand.u32 %v31, 4294901760
  %7991 = vmatpush1.msra.mxu0 %v7990
  %7992 = vmatprep.subr.mxu0 0.0
  %v7993 = vand.u32 %v32, 4294901760
  %7994 = vmatpush1.msra.mxu0 %v7993
  %7995 = vmatprep.subr.mxu0 0.0
  %v7996 = vand.u32 %v33, 4294901760
  %7997 = vmatpush1.msra.mxu0 %v7996
  %7998 = vmatprep.subr.mxu0 0.0
  %7999 = vmatpush1.msra.mxu0 0.0
  %8000 = vmatprep.subr.mxu0 0.0
  %8001 = vmatpush1.msra.mxu0 0.0
  %8002 = vmatprep.subr.mxu0 0.0
  %8003 = vmatpush1.msra.mxu0 0.0
  %8004 = vmatprep.subr.mxu0 0.0
  %8005 = vmatpush1.msra.mxu0 0.0
  %8006 = vmatprep.subr.mxu0 0.0
  %8007 = vmatpush1.msra.mxu0 0.0
  %8008 = vmatprep.subr.mxu0 0.0
  %8009 = vmatpush1.msra.mxu0 0.0
  %8010 = vmatprep.subr.mxu0 0.0
  %8011 = vmatpush1.msra.mxu0 0.0
  %8012 = vmatprep.subr.mxu0 0.0
  %8013 = vmatpush1.msra.mxu0 0.0
  %8014 = vmatprep.subr.mxu0 0.0
  %8015 = vmatpush1.msra.mxu0 0.0
  %8016 = vmatprep.subr.mxu0 0.0
  %8017 = vmatpush1.msra.mxu0 0.0
  %8018 = vmatprep.subr.mxu0 0.0
  %8019 = vmatpush1.msra.mxu0 0.0
  %8020 = vmatprep.subr.mxu0 0.0
  %8021 = vmatpush1.msra.mxu0 0.0
  %8022 = vmatprep.subr.mxu0 0.0
  %8023 = vmatpush1.msra.mxu0 0.0
  %8024 = vmatprep.subr.mxu0 0.0
  %8025 = vmatpush1.msra.mxu0 0.0
  %8026 = vmatprep.subr.mxu0 0.0
  %8027 = vmatpush1.msra.mxu0 0.0
  %8028 = vmatprep.subr.mxu0 0.0
  %8029 = vmatpush1.msra.mxu0 0.0
  %8030 = vmatprep.subr.mxu0 0.0
  %8031 = vmatpush1.msra.mxu0 0.0
  %8032 = vmatprep.subr.mxu0 0.0
  %8033 = vmatpush1.msra.mxu0 0.0
  %8034 = vmatprep.subr.mxu0 0.0
  %8035 = vmatpush1.msra.mxu0 0.0
  %8036 = vmatprep.subr.mxu0 0.0
  %8037 = vmatpush1.msra.mxu0 0.0
  %8038 = vmatprep.subr.mxu0 0.0
  %8039 = vmatpush1.msra.mxu0 0.0
  %8040 = vmatprep.subr.mxu0 0.0
  %8041 = vmatpush1.msra.mxu0 0.0
  %8042 = vmatprep.subr.mxu0 0.0
  %8043 = vmatpush1.msra.mxu0 0.0
  %8044 = vmatprep.subr.mxu0 0.0
  %8045 = vmatpush1.msra.mxu0 0.0
  %8046 = vmatprep.subr.mxu0 0.0
  %8047 = vmatpush1.msra.mxu0 0.0
  %8048 = vmatprep.subr.mxu0 0.0
  %8049 = vmatpush1.msra.mxu0 0.0
  %8050 = vmatprep.subr.mxu0 0.0
  %8051 = vmatpush1.msra.mxu0 0.0
  %8052 = vmatprep.subr.mxu0 0.0
  %8053 = vmatpush1.msra.mxu0 0.0
  %8054 = vmatprep.mubr.f32.mxu0 0.0
  %v8055 = vand.u32 %v7984, 4294901760
  %v8056 = vsub.f32 %v7984, %v8055
  %v8057 = vand.u32 %v8056, 4294901760
  %v8058 = vsub.f32 %v8056, %v8057
  %v8059 = vand.u32 %v8058, 4294901760
  %8060 = vmatmul.mubr.f32.gmra.mrb[0].mxu0 %v8059
  %v8061 = vpop.f32.mrb[0].mxu0
  %v8062 = vadd.f32 0.0, %v8061
  %v8063 = vpop.f32.mrb[0].mxu0
  %8064 = vdwg.mxu0
  %8065 = vmatprep.subr.mxu0 0.0
  %v8066 = vand.u32 %v30, 4294901760
  %v8067 = vsub.f32 %v30, %v8066
  %v8068 = vand.u32 %v8067, 4294901760
  %v8069 = vsub.f32 %v8067, %v8068
  %v8070 = vand.u32 %v8069, 4294901760
  %8071 = vmatpush1.msra.mxu0 %v8070
  %8072 = vmatprep.subr.mxu0 0.0
  %v8073 = vand.u32 %v31, 4294901760
  %v8074 = vsub.f32 %v31, %v8073
  %v8075 = vand.u32 %v8074, 4294901760
  %v8076 = vsub.f32 %v8074, %v8075
  %v8077 = vand.u32 %v8076, 4294901760
  %8078 = vmatpush1.msra.mxu0 %v8077
  %8079 = vmatprep.subr.mxu0 0.0
  %v8080 = vand.u32 %v32, 4294901760
  %v8081 = vsub.f32 %v32, %v8080
  %v8082 = vand.u32 %v8081, 4294901760
  %v8083 = vsub.f32 %v8081, %v8082
  %v8084 = vand.u32 %v8083, 4294901760
  %8085 = vmatpush1.msra.mxu0 %v8084
  %8086 = vmatprep.subr.mxu0 0.0
  %v8087 = vand.u32 %v33, 4294901760
  %v8088 = vsub.f32 %v33, %v8087
  %v8089 = vand.u32 %v8088, 4294901760
  %v8090 = vsub.f32 %v8088, %v8089
  %v8091 = vand.u32 %v8090, 4294901760
  %8092 = vmatpush1.msra.mxu0 %v8091
  %8093 = vmatprep.subr.mxu0 0.0
  %8094 = vmatpush1.msra.mxu0 0.0
  %8095 = vmatprep.subr.mxu0 0.0
  %8096 = vmatpush1.msra.mxu0 0.0
  %8097 = vmatprep.subr.mxu0 0.0
  %8098 = vmatpush1.msra.mxu0 0.0
  %8099 = vmatprep.subr.mxu0 0.0
  %8100 = vmatpush1.msra.mxu0 0.0
  %8101 = vmatprep.subr.mxu0 0.0
  %8102 = vmatpush1.msra.mxu0 0.0
  %8103 = vmatprep.subr.mxu0 0.0
  %8104 = vmatpush1.msra.mxu0 0.0
  %8105 = vmatprep.subr.mxu0 0.0
  %8106 = vmatpush1.msra.mxu0 0.0
  %8107 = vmatprep.subr.mxu0 0.0
  %8108 = vmatpush1.msra.mxu0 0.0
  %8109 = vmatprep.subr.mxu0 0.0
  %8110 = vmatpush1.msra.mxu0 0.0
  %8111 = vmatprep.subr.mxu0 0.0
  %8112 = vmatpush1.msra.mxu0 0.0
  %8113 = vmatprep.subr.mxu0 0.0
  %8114 = vmatpush1.msra.mxu0 0.0
  %8115 = vmatprep.subr.mxu0 0.0
  %8116 = vmatpush1.msra.mxu0 0.0
  %8117 = vmatprep.subr.mxu0 0.0
  %8118 = vmatpush1.msra.mxu0 0.0
  %8119 = vmatprep.subr.mxu0 0.0
  %8120 = vmatpush1.msra.mxu0 0.0
  %8121 = vmatprep.subr.mxu0 0.0
  %8122 = vmatpush1.msra.mxu0 0.0
  %8123 = vmatprep.subr.mxu0 0.0
  %8124 = vmatpush1.msra.mxu0 0.0
  %8125 = vmatprep.subr.mxu0 0.0
  %8126 = vmatpush1.msra.mxu0 0.0
  %8127 = vmatprep.subr.mxu0 0.0
  %8128 = vmatpush1.msra.mxu0 0.0
  %8129 = vmatprep.subr.mxu0 0.0
  %8130 = vmatpush1.msra.mxu0 0.0
  %8131 = vmatprep.subr.mxu0 0.0
  %8132 = vmatpush1.msra.mxu0 0.0
  %8133 = vmatprep.subr.mxu0 0.0
  %8134 = vmatpush1.msra.mxu0 0.0
  %8135 = vmatprep.subr.mxu0 0.0
  %8136 = vmatpush1.msra.mxu0 0.0
  %8137 = vmatprep.subr.mxu0 0.0
  %8138 = vmatpush1.msra.mxu0 0.0
  %8139 = vmatprep.subr.mxu0 0.0
  %8140 = vmatpush1.msra.mxu0 0.0
  %8141 = vmatprep.subr.mxu0 0.0
  %8142 = vmatpush1.msra.mxu0 0.0
  %8143 = vmatprep.subr.mxu0 0.0
  %8144 = vmatpush1.msra.mxu0 0.0
  %8145 = vmatprep.subr.mxu0 0.0
  %8146 = vmatpush1.msra.mxu0 0.0
  %8147 = vmatprep.subr.mxu0 0.0
  %8148 = vmatpush1.msra.mxu0 0.0
  %8149 = vmatprep.mubr.f32.mxu0 0.0
  %v8150 = vand.u32 %v7984, 4294901760
  %8151 = vmatmul.mubr.f32.gmra.mrb[0].mxu0 %v8150
  %v8152 = vpop.f32.mrb[0].mxu0
  %v8153 = vadd.f32 %v8062, %v8152
  %v8154 = vpop.f32.mrb[0].mxu0
  %8155 = vdwg.mxu0
  %8156 = vmatprep.subr.mxu0 0.0
  %v8157 = vand.u32 %v30, 4294901760
  %v8158 = vsub.f32 %v30, %v8157
  %8159 = vmatpush1.msra.mxu0 %v8158
  %8160 = vmatprep.subr.mxu0 0.0
  %v8161 = vand.u32 %v31, 4294901760
  %v8162 = vsub.f32 %v31, %v8161
  %8163 = vmatpush1.msra.mxu0 %v8162
  %8164 = vmatprep.subr.mxu0 0.0
  %v8165 = vand.u32 %v32, 4294901760
  %v8166 = vsub.f32 %v32, %v8165
  %8167 = vmatpush1.msra.mxu0 %v8166
  %8168 = vmatprep.subr.mxu0 0.0
  %v8169 = vand.u32 %v33, 4294901760
  %v8170 = vsub.f32 %v33, %v8169
  %8171 = vmatpush1.msra.mxu0 %v8170
  %8172 = vmatprep.subr.mxu0 0.0
  %8173 = vmatpush1.msra.mxu0 0.0
  %8174 = vmatprep.subr.mxu0 0.0
  %8175 = vmatpush1.msra.mxu0 0.0
  %8176 = vmatprep.subr.mxu0 0.0
  %8177 = vmatpush1.msra.mxu0 0.0
  %8178 = vmatprep.subr.mxu0 0.0
  %8179 = vmatpush1.msra.mxu0 0.0
  %8180 = vmatprep.subr.mxu0 0.0
  %8181 = vmatpush1.msra.mxu0 0.0
  %8182 = vmatprep.subr.mxu0 0.0
  %8183 = vmatpush1.msra.mxu0 0.0
  %8184 = vmatprep.subr.mxu0 0.0
  %8185 = vmatpush1.msra.mxu0 0.0
  %8186 = vmatprep.subr.mxu0 0.0
  %8187 = vmatpush1.msra.mxu0 0.0
  %8188 = vmatprep.subr.mxu0 0.0
  %8189 = vmatpush1.msra.mxu0 0.0
  %8190 = vmatprep.subr.mxu0 0.0
  %8191 = vmatpush1.msra.mxu0 0.0
  %8192 = vmatprep.subr.mxu0 0.0
  %8193 = vmatpush1.msra.mxu0 0.0
  %8194 = vmatprep.subr.mxu0 0.0
  %8195 = vmatpush1.msra.mxu0 0.0
  %8196 = vmatprep.subr.mxu0 0.0
  %8197 = vmatpush1.msra.mxu0 0.0
  %8198 = vmatprep.subr.mxu0 0.0
  %8199 = vmatpush1.msra.mxu0 0.0
  %8200 = vmatprep.subr.mxu0 0.0
  %8201 = vmatpush1.msra.mxu0 0.0
  %8202 = vmatprep.subr.mxu0 0.0
  %8203 = vmatpush1.msra.mxu0 0.0
  %8204 = vmatprep.subr.mxu0 0.0
  %8205 = vmatpush1.msra.mxu0 0.0
  %8206 = vmatprep.subr.mxu0 0.0
  %8207 = vmatpush1.msra.mxu0 0.0
  %8208 = vmatprep.subr.mxu0 0.0
  %8209 = vmatpush1.msra.mxu0 0.0
  %8210 = vmatprep.subr.mxu0 0.0
  %8211 = vmatpush1.msra.mxu0 0.0
  %8212 = vmatprep.subr.mxu0 0.0
  %8213 = vmatpush1.msra.mxu0 0.0
  %8214 = vmatprep.subr.mxu0 0.0
  %8215 = vmatpush1.msra.mxu0 0.0
  %8216 = vmatprep.subr.mxu0 0.0
  %8217 = vmatpush1.msra.mxu0 0.0
  %8218 = vmatprep.subr.mxu0 0.0
  %8219 = vmatpush1.msra.mxu0 0.0
  %8220 = vmatprep.subr.mxu0 0.0
  %8221 = vmatpush1.msra.mxu0 0.0
  %8222 = vmatprep.subr.mxu0 0.0
  %8223 = vmatpush1.msra.mxu0 0.0
  %8224 = vmatprep.subr.mxu0 0.0
  %8225 = vmatpush1.msra.mxu0 0.0
  %8226 = vmatprep.subr.mxu0 0.0
  %8227 = vmatpush1.msra.mxu0 0.0
  %8228 = vmatprep.mubr.f32.mxu0 0.0
  %v8229 = vand.u32 %v7984, 4294901760
  %v8230 = vsub.f32 %v7984, %v8229
  %8231 = vmatmul.mubr.f32.gmra.mrb[0].mxu0 %v8230
  %v8232 = vpop.f32.mrb[0].mxu0
  %v8233 = vadd.f32 %v8153, %v8232
  %v8234 = vpop.f32.mrb[0].mxu0
  %8235 = vdwg.mxu0
  %8236 = vmatprep.subr.mxu0 0.0
  %v8237 = vand.u32 %v30, 4294901760
  %8238 = vmatpush1.msra.mxu0 %v8237
  %8239 = vmatprep.subr.mxu0 0.0
  %v8240 = vand.u32 %v31, 4294901760
  %8241 = vmatpush1.msra.mxu0 %v8240
  %8242 = vmatprep.subr.mxu0 0.0
  %v8243 = vand.u32 %v32, 4294901760
  %8244 = vmatpush1.msra.mxu0 %v8243
  %8245 = vmatprep.subr.mxu0 0.0
  %v8246 = vand.u32 %v33, 4294901760
  %8247 = vmatpush1.msra.mxu0 %v8246
  %8248 = vmatprep.subr.mxu0 0.0
  %8249 = vmatpush1.msra.mxu0 0.0
  %8250 = vmatprep.subr.mxu0 0.0
  %8251 = vmatpush1.msra.mxu0 0.0
  %8252 = vmatprep.subr.mxu0 0.0
  %8253 = vmatpush1.msra.mxu0 0.0
  %8254 = vmatprep.subr.mxu0 0.0
  %8255 = vmatpush1.msra.mxu0 0.0
  %8256 = vmatprep.subr.mxu0 0.0
  %8257 = vmatpush1.msra.mxu0 0.0
  %8258 = vmatprep.subr.mxu0 0.0
  %8259 = vmatpush1.msra.mxu0 0.0
  %8260 = vmatprep.subr.mxu0 0.0
  %8261 = vmatpush1.msra.mxu0 0.0
  %8262 = vmatprep.subr.mxu0 0.0
  %8263 = vmatpush1.msra.mxu0 0.0
  %8264 = vmatprep.subr.mxu0 0.0
  %8265 = vmatpush1.msra.mxu0 0.0
  %8266 = vmatprep.subr.mxu0 0.0
  %8267 = vmatpush1.msra.mxu0 0.0
  %8268 = vmatprep.subr.mxu0 0.0
  %8269 = vmatpush1.msra.mxu0 0.0
  %8270 = vmatprep.subr.mxu0 0.0
  %8271 = vmatpush1.msra.mxu0 0.0
  %8272 = vmatprep.subr.mxu0 0.0
  %8273 = vmatpush1.msra.mxu0 0.0
  %8274 = vmatprep.subr.mxu0 0.0
  %8275 = vmatpush1.msra.mxu0 0.0
  %8276 = vmatprep.subr.mxu0 0.0
  %8277 = vmatpush1.msra.mxu0 0.0
  %8278 = vmatprep.subr.mxu0 0.0
  %8279 = vmatpush1.msra.mxu0 0.0
  %8280 = vmatprep.subr.mxu0 0.0
  %8281 = vmatpush1.msra.mxu0 0.0
  %8282 = vmatprep.subr.mxu0 0.0
  %8283 = vmatpush1.msra.mxu0 0.0
  %8284 = vmatprep.subr.mxu0 0.0
  %8285 = vmatpush1.msra.mxu0 0.0
  %8286 = vmatprep.subr.mxu0 0.0
  %8287 = vmatpush1.msra.mxu0 0.0
  %8288 = vmatprep.subr.mxu0 0.0
  %8289 = vmatpush1.msra.mxu0 0.0
  %8290 = vmatprep.subr.mxu0 0.0
  %8291 = vmatpush1.msra.mxu0 0.0
  %8292 = vmatprep.subr.mxu0 0.0
  %8293 = vmatpush1.msra.mxu0 0.0
  %8294 = vmatprep.subr.mxu0 0.0
  %8295 = vmatpush1.msra.mxu0 0.0
  %8296 = vmatprep.subr.mxu0 0.0
  %8297 = vmatpush1.msra.mxu0 0.0
  %8298 = vmatprep.subr.mxu0 0.0
  %8299 = vmatpush1.msra.mxu0 0.0
  %8300 = vmatprep.subr.mxu0 0.0
  %8301 = vmatpush1.msra.mxu0 0.0
  %8302 = vmatprep.subr.mxu0 0.0
  %8303 = vmatpush1.msra.mxu0 0.0
  %8304 = vmatprep.mubr.f32.mxu0 0.0
  %v8305 = vand.u32 %v7984, 4294901760
  %v8306 = vsub.f32 %v7984, %v8305
  %v8307 = vand.u32 %v8306, 4294901760
  %8308 = vmatmul.mubr.f32.gmra.mrb[0].mxu0 %v8307
  %v8309 = vpop.f32.mrb[0].mxu0
  %v8310 = vadd.f32 %v8233, %v8309
  %v8311 = vpop.f32.mrb[0].mxu0
  %8312 = vdwg.mxu0
  %8313 = vmatprep.subr.mxu0 0.0
  %v8314 = vand.u32 %v30, 4294901760
  %v8315 = vsub.f32 %v30, %v8314
  %v8316 = vand.u32 %v8315, 4294901760
  %8317 = vmatpush1.msra.mxu0 %v8316
  %8318 = vmatprep.subr.mxu0 0.0
  %v8319 = vand.u32 %v31, 4294901760
  %v8320 = vsub.f32 %v31, %v8319
  %v8321 = vand.u32 %v8320, 4294901760
  %8322 = vmatpush1.msra.mxu0 %v8321
  %8323 = vmatprep.subr.mxu0 0.0
  %v8324 = vand.u32 %v32, 4294901760
  %v8325 = vsub.f32 %v32, %v8324
  %v8326 = vand.u32 %v8325, 4294901760
  %8327 = vmatpush1.msra.mxu0 %v8326
  %8328 = vmatprep.subr.mxu0 0.0
  %v8329 = vand.u32 %v33, 4294901760
  %v8330 = vsub.f32 %v33, %v8329
  %v8331 = vand.u32 %v8330, 4294901760
  %8332 = vmatpush1.msra.mxu0 %v8331
  %8333 = vmatprep.subr.mxu0 0.0
  %8334 = vmatpush1.msra.mxu0 0.0
  %8335 = vmatprep.subr.mxu0 0.0
  %8336 = vmatpush1.msra.mxu0 0.0
  %8337 = vmatprep.subr.mxu0 0.0
  %8338 = vmatpush1.msra.mxu0 0.0
  %8339 = vmatprep.subr.mxu0 0.0
  %8340 = vmatpush1.msra.mxu0 0.0
  %8341 = vmatprep.subr.mxu0 0.0
  %8342 = vmatpush1.msra.mxu0 0.0
  %8343 = vmatprep.subr.mxu0 0.0
  %8344 = vmatpush1.msra.mxu0 0.0
  %8345 = vmatprep.subr.mxu0 0.0
  %8346 = vmatpush1.msra.mxu0 0.0
  %8347 = vmatprep.subr.mxu0 0.0
  %8348 = vmatpush1.msra.mxu0 0.0
  %8349 = vmatprep.subr.mxu0 0.0
  %8350 = vmatpush1.msra.mxu0 0.0
  %8351 = vmatprep.subr.mxu0 0.0
  %8352 = vmatpush1.msra.mxu0 0.0
  %8353 = vmatprep.subr.mxu0 0.0
  %8354 = vmatpush1.msra.mxu0 0.0
  %8355 = vmatprep.subr.mxu0 0.0
  %8356 = vmatpush1.msra.mxu0 0.0
  %8357 = vmatprep.subr.mxu0 0.0
  %8358 = vmatpush1.msra.mxu0 0.0
  %8359 = vmatprep.subr.mxu0 0.0
  %8360 = vmatpush1.msra.mxu0 0.0
  %8361 = vmatprep.subr.mxu0 0.0
  %8362 = vmatpush1.msra.mxu0 0.0
  %8363 = vmatprep.subr.mxu0 0.0
  %8364 = vmatpush1.msra.mxu0 0.0
  %8365 = vmatprep.subr.mxu0 0.0
  %8366 = vmatpush1.msra.mxu0 0.0
  %8367 = vmatprep.subr.mxu0 0.0
  %8368 = vmatpush1.msra.mxu0 0.0
  %8369 = vmatprep.subr.mxu0 0.0
  %8370 = vmatpush1.msra.mxu0 0.0
  %8371 = vmatprep.subr.mxu0 0.0
  %8372 = vmatpush1.msra.mxu0 0.0
  %8373 = vmatprep.subr.mxu0 0.0
  %8374 = vmatpush1.msra.mxu0 0.0
  %8375 = vmatprep.subr.mxu0 0.0
  %8376 = vmatpush1.msra.mxu0 0.0
  %8377 = vmatprep.subr.mxu0 0.0
  %8378 = vmatpush1.msra.mxu0 0.0
  %8379 = vmatprep.subr.mxu0 0.0
  %8380 = vmatpush1.msra.mxu0 0.0
  %8381 = vmatprep.subr.mxu0 0.0
  %8382 = vmatpush1.msra.mxu0 0.0
  %8383 = vmatprep.subr.mxu0 0.0
  %8384 = vmatpush1.msra.mxu0 0.0
  %8385 = vmatprep.subr.mxu0 0.0
  %8386 = vmatpush1.msra.mxu0 0.0
  %8387 = vmatprep.subr.mxu0 0.0
  %8388 = vmatpush1.msra.mxu0 0.0
  %8389 = vmatprep.mubr.f32.mxu0 0.0
  %v8390 = vand.u32 %v7984, 4294901760
  %8391 = vmatmul.mubr.f32.gmra.mrb[0].mxu0 %v8390
  %v8392 = vpop.f32.mrb[0].mxu0
  %v8393 = vadd.f32 %v8310, %v8392
  %v8394 = vpop.f32.mrb[0].mxu0
  %8395 = vdwg.mxu0
  %8396 = vmatprep.subr.mxu0 0.0
  %v8397 = vand.u32 %v30, 4294901760
  %8398 = vmatpush1.msra.mxu0 %v8397
  %8399 = vmatprep.subr.mxu0 0.0
  %v8400 = vand.u32 %v31, 4294901760
  %8401 = vmatpush1.msra.mxu0 %v8400
  %8402 = vmatprep.subr.mxu0 0.0
  %v8403 = vand.u32 %v32, 4294901760
  %8404 = vmatpush1.msra.mxu0 %v8403
  %8405 = vmatprep.subr.mxu0 0.0
  %v8406 = vand.u32 %v33, 4294901760
  %8407 = vmatpush1.msra.mxu0 %v8406
  %8408 = vmatprep.subr.mxu0 0.0
  %8409 = vmatpush1.msra.mxu0 0.0
  %8410 = vmatprep.subr.mxu0 0.0
  %8411 = vmatpush1.msra.mxu0 0.0
  %8412 = vmatprep.subr.mxu0 0.0
  %8413 = vmatpush1.msra.mxu0 0.0
  %8414 = vmatprep.subr.mxu0 0.0
  %8415 = vmatpush1.msra.mxu0 0.0
  %8416 = vmatprep.subr.mxu0 0.0
  %8417 = vmatpush1.msra.mxu0 0.0
  %8418 = vmatprep.subr.mxu0 0.0
  %8419 = vmatpush1.msra.mxu0 0.0
  %8420 = vmatprep.subr.mxu0 0.0
  %8421 = vmatpush1.msra.mxu0 0.0
  %8422 = vmatprep.subr.mxu0 0.0
  %8423 = vmatpush1.msra.mxu0 0.0
  %8424 = vmatprep.subr.mxu0 0.0
  %8425 = vmatpush1.msra.mxu0 0.0
  %8426 = vmatprep.subr.mxu0 0.0
  %8427 = vmatpush1.msra.mxu0 0.0
  %8428 = vmatprep.subr.mxu0 0.0
  %8429 = vmatpush1.msra.mxu0 0.0
  %8430 = vmatprep.subr.mxu0 0.0
  %8431 = vmatpush1.msra.mxu0 0.0
  %8432 = vmatprep.subr.mxu0 0.0
  %8433 = vmatpush1.msra.mxu0 0.0
  %8434 = vmatprep.subr.mxu0 0.0
  %8435 = vmatpush1.msra.mxu0 0.0
  %8436 = vmatprep.subr.mxu0 0.0
  %8437 = vmatpush1.msra.mxu0 0.0
  %8438 = vmatprep.subr.mxu0 0.0
  %8439 = vmatpush1.msra.mxu0 0.0
  %8440 = vmatprep.subr.mxu0 0.0
  %8441 = vmatpush1.msra.mxu0 0.0
  %8442 = vmatprep.subr.mxu0 0.0
  %8443 = vmatpush1.msra.mxu0 0.0
  %8444 = vmatprep.subr.mxu0 0.0
  %8445 = vmatpush1.msra.mxu0 0.0
  %8446 = vmatprep.subr.mxu0 0.0
  %8447 = vmatpush1.msra.mxu0 0.0
  %8448 = vmatprep.subr.mxu0 0.0
  %8449 = vmatpush1.msra.mxu0 0.0
  %8450 = vmatprep.subr.mxu0 0.0
  %8451 = vmatpush1.msra.mxu0 0.0
  %8452 = vmatprep.subr.mxu0 0.0
  %8453 = vmatpush1.msra.mxu0 0.0
  %8454 = vmatprep.subr.mxu0 0.0
  %8455 = vmatpush1.msra.mxu0 0.0
  %8456 = vmatprep.subr.mxu0 0.0
  %8457 = vmatpush1.msra.mxu0 0.0
  %8458 = vmatprep.subr.mxu0 0.0
  %8459 = vmatpush1.msra.mxu0 0.0
  %8460 = vmatprep.subr.mxu0 0.0
  %8461 = vmatpush1.msra.mxu0 0.0
  %8462 = vmatprep.subr.mxu0 0.0
  %8463 = vmatpush1.msra.mxu0 0.0
  %8464 = vmatprep.mubr.f32.mxu0 0.0
  %v8465 = vand.u32 %v7984, 4294901760
  %8466 = vmatmul.mubr.f32.gmra.mrb[0].mxu0 %v8465
  %v8467 = vpop.f32.mrb[0].mxu0
  %v8468 = vadd.f32 %v8393, %v8467
  %v8469 = vpop.f32.mrb[0].mxu0
  %8470 = vdwg.mxu0
  %v8472 = vrot.slane %v8468, 1
  %8473 = vrot.lane.b32.xlu0 %v8472, 32
  %v8474 = vpop.permute.xlu0 %8473
  %v8476 = vadd.f32 %v546, %v8474
  %v8477 = vtanh.pop %v8476
  %vm8478 = vcmask 1040384
  %v8479 = vsel %vm8478, %v1040, %v1533
  %vm8480 = vcmask 1041408
  %v8481 = vsel %vm8480, %v8479, %v2027
  %vm8482 = vcmask 1042432
  %v8483 = vsel %vm8482, %v8481, %v2521
  %vm8484 = vcmask 1043456
  %v8485 = vsel %vm8484, %v8483, %v3015
  %vm8486 = vcmask 1044480
  %v8487 = vsel %vm8486, %v8485, %v3509
  %vm8488 = vcmask 1045504
  %v8489 = vsel %vm8488, %v8487, %v4003
  %vm8490 = vcmask 1046528
  %v8491 = vsel %vm8490, %v8489, %v4497
  %v8492 = vsel %vm8478, %v4992, %v5489
  %v8493 = vsel %vm8480, %v8492, %v5987
  %v8494 = vsel %vm8482, %v8493, %v6485
  %v8495 = vsel %vm8484, %v8494, %v6983
  %v8496 = vsel %vm8486, %v8495, %v7481
  %v8497 = vsel %vm8488, %v8496, %v7979
  %v8498 = vsel %vm8490, %v8497, %v8477
  %v8500 = vsel %vm550, %v8491, 0
  %8502 = vmatprep.subr.mxu0 0.0
  %v8503 = vand.u32 %v19, 4294901760
  %8504 = vmatpush1.msra.mxu0 %v8503
  %8505 = vmatprep.subr.mxu0 0.0
  %v8506 = vand.u32 %v20, 4294901760
  %8507 = vmatpush1.msra.mxu0 %v8506
  %8508 = vmatprep.subr.mxu0 0.0
  %v8509 = vand.u32 %v21, 4294901760
  %8510 = vmatpush1.msra.mxu0 %v8509
  %8511 = vmatprep.subr.mxu0 0.0
  %v8512 = vand.u32 %v22, 4294901760
  %8513 = vmatpush1.msra.mxu0 %v8512
  %8514 = vmatprep.subr.mxu0 0.0
  %8515 = vmatpush1.msra.mxu0 0.0
  %8516 = vmatprep.subr.mxu0 0.0
  %8517 = vmatpush1.msra.mxu0 0.0
  %8518 = vmatprep.subr.mxu0 0.0
  %8519 = vmatpush1.msra.mxu0 0.0
  %8520 = vmatprep.subr.mxu0 0.0
  %8521 = vmatpush1.msra.mxu0 0.0
  %8522 = vmatprep.subr.mxu0 0.0
  %8523 = vmatpush1.msra.mxu0 0.0
  %8524 = vmatprep.subr.mxu0 0.0
  %8525 = vmatpush1.msra.mxu0 0.0
  %8526 = vmatprep.subr.mxu0 0.0
  %8527 = vmatpush1.msra.mxu0 0.0
  %8528 = vmatprep.subr.mxu0 0.0
  %8529 = vmatpush1.msra.mxu0 0.0
  %8530 = vmatprep.subr.mxu0 0.0
  %8531 = vmatpush1.msra.mxu0 0.0
  %8532 = vmatprep.subr.mxu0 0.0
  %8533 = vmatpush1.msra.mxu0 0.0
  %8534 = vmatprep.subr.mxu0 0.0
  %8535 = vmatpush1.msra.mxu0 0.0
  %8536 = vmatprep.subr.mxu0 0.0
  %8537 = vmatpush1.msra.mxu0 0.0
  %8538 = vmatprep.subr.mxu0 0.0
  %8539 = vmatpush1.msra.mxu0 0.0
  %8540 = vmatprep.subr.mxu0 0.0
  %8541 = vmatpush1.msra.mxu0 0.0
  %8542 = vmatprep.subr.mxu0 0.0
  %8543 = vmatpush1.msra.mxu0 0.0
  %8544 = vmatprep.subr.mxu0 0.0
  %8545 = vmatpush1.msra.mxu0 0.0
  %8546 = vmatprep.subr.mxu0 0.0
  %8547 = vmatpush1.msra.mxu0 0.0
  %8548 = vmatprep.subr.mxu0 0.0
  %8549 = vmatpush1.msra.mxu0 0.0
  %8550 = vmatprep.subr.mxu0 0.0
  %8551 = vmatpush1.msra.mxu0 0.0
  %8552 = vmatprep.subr.mxu0 0.0
  %8553 = vmatpush1.msra.mxu0 0.0
  %8554 = vmatprep.subr.mxu0 0.0
  %8555 = vmatpush1.msra.mxu0 0.0
  %8556 = vmatprep.subr.mxu0 0.0
  %8557 = vmatpush1.msra.mxu0 0.0
  %8558 = vmatprep.subr.mxu0 0.0
  %8559 = vmatpush1.msra.mxu0 0.0
  %8560 = vmatprep.subr.mxu0 0.0
  %8561 = vmatpush1.msra.mxu0 0.0
  %8562 = vmatprep.subr.mxu0 0.0
  %8563 = vmatpush1.msra.mxu0 0.0
  %8564 = vmatprep.subr.mxu0 0.0
  %8565 = vmatpush1.msra.mxu0 0.0
  %8566 = vmatprep.subr.mxu0 0.0
  %8567 = vmatpush1.msra.mxu0 0.0
  %8568 = vmatprep.subr.mxu0 0.0
  %8569 = vmatpush1.msra.mxu0 0.0
  %8570 = vmatprep.mubr.f32.mxu0 0.0
  %v8571 = vand.u32 %v8500, 4294901760
  %v8572 = vsub.f32 %v8500, %v8571
  %v8573 = vand.u32 %v8572, 4294901760
  %v8574 = vsub.f32 %v8572, %v8573
  %v8575 = vand.u32 %v8574, 4294901760
  %8576 = vmatmul.mubr.f32.gmra.mrb[0].mxu0 %v8575
  %v8577 = vpop.f32.mrb[0].mxu0
  %v8578 = vadd.f32 0.0, %v8577
  %v8579 = vpop.f32.mrb[0].mxu0
  %8580 = vdwg.mxu0
  %8581 = vmatprep.subr.mxu0 0.0
  %v8582 = vand.u32 %v19, 4294901760
  %v8583 = vsub.f32 %v19, %v8582
  %v8584 = vand.u32 %v8583, 4294901760
  %v8585 = vsub.f32 %v8583, %v8584
  %v8586 = vand.u32 %v8585, 4294901760
  %8587 = vmatpush1.msra.mxu0 %v8586
  %8588 = vmatprep.subr.mxu0 0.0
  %v8589 = vand.u32 %v20, 4294901760
  %v8590 = vsub.f32 %v20, %v8589
  %v8591 = vand.u32 %v8590, 4294901760
  %v8592 = vsub.f32 %v8590, %v8591
  %v8593 = vand.u32 %v8592, 4294901760
  %8594 = vmatpush1.msra.mxu0 %v8593
  %8595 = vmatprep.subr.mxu0 0.0
  %v8596 = vand.u32 %v21, 4294901760
  %v8597 = vsub.f32 %v21, %v8596
  %v8598 = vand.u32 %v8597, 4294901760
  %v8599 = vsub.f32 %v8597, %v8598
  %v8600 = vand.u32 %v8599, 4294901760
  %8601 = vmatpush1.msra.mxu0 %v8600
  %8602 = vmatprep.subr.mxu0 0.0
  %v8603 = vand.u32 %v22, 4294901760
  %v8604 = vsub.f32 %v22, %v8603
  %v8605 = vand.u32 %v8604, 4294901760
  %v8606 = vsub.f32 %v8604, %v8605
  %v8607 = vand.u32 %v8606, 4294901760
  %8608 = vmatpush1.msra.mxu0 %v8607
  %8609 = vmatprep.subr.mxu0 0.0
  %8610 = vmatpush1.msra.mxu0 0.0
  %8611 = vmatprep.subr.mxu0 0.0
  %8612 = vmatpush1.msra.mxu0 0.0
  %8613 = vmatprep.subr.mxu0 0.0
  %8614 = vmatpush1.msra.mxu0 0.0
  %8615 = vmatprep.subr.mxu0 0.0
  %8616 = vmatpush1.msra.mxu0 0.0
  %8617 = vmatprep.subr.mxu0 0.0
  %8618 = vmatpush1.msra.mxu0 0.0
  %8619 = vmatprep.subr.mxu0 0.0
  %8620 = vmatpush1.msra.mxu0 0.0
  %8621 = vmatprep.subr.mxu0 0.0
  %8622 = vmatpush1.msra.mxu0 0.0
  %8623 = vmatprep.subr.mxu0 0.0
  %8624 = vmatpush1.msra.mxu0 0.0
  %8625 = vmatprep.subr.mxu0 0.0
  %8626 = vmatpush1.msra.mxu0 0.0
  %8627 = vmatprep.subr.mxu0 0.0
  %8628 = vmatpush1.msra.mxu0 0.0
  %8629 = vmatprep.subr.mxu0 0.0
  %8630 = vmatpush1.msra.mxu0 0.0
  %8631 = vmatprep.subr.mxu0 0.0
  %8632 = vmatpush1.msra.mxu0 0.0
  %8633 = vmatprep.subr.mxu0 0.0
  %8634 = vmatpush1.msra.mxu0 0.0
  %8635 = vmatprep.subr.mxu0 0.0
  %8636 = vmatpush1.msra.mxu0 0.0
  %8637 = vmatprep.subr.mxu0 0.0
  %8638 = vmatpush1.msra.mxu0 0.0
  %8639 = vmatprep.subr.mxu0 0.0
  %8640 = vmatpush1.msra.mxu0 0.0
  %8641 = vmatprep.subr.mxu0 0.0
  %8642 = vmatpush1.msra.mxu0 0.0
  %8643 = vmatprep.subr.mxu0 0.0
  %8644 = vmatpush1.msra.mxu0 0.0
  %8645 = vmatprep.subr.mxu0 0.0
  %8646 = vmatpush1.msra.mxu0 0.0
  %8647 = vmatprep.subr.mxu0 0.0
  %8648 = vmatpush1.msra.mxu0 0.0
  %8649 = vmatprep.subr.mxu0 0.0
  %8650 = vmatpush1.msra.mxu0 0.0
  %8651 = vmatprep.subr.mxu0 0.0
  %8652 = vmatpush1.msra.mxu0 0.0
  %8653 = vmatprep.subr.mxu0 0.0
  %8654 = vmatpush1.msra.mxu0 0.0
  %8655 = vmatprep.subr.mxu0 0.0
  %8656 = vmatpush1.msra.mxu0 0.0
  %8657 = vmatprep.subr.mxu0 0.0
  %8658 = vmatpush1.msra.mxu0 0.0
  %8659 = vmatprep.subr.mxu0 0.0
  %8660 = vmatpush1.msra.mxu0 0.0
  %8661 = vmatprep.subr.mxu0 0.0
  %8662 = vmatpush1.msra.mxu0 0.0
  %8663 = vmatprep.subr.mxu0 0.0
  %8664 = vmatpush1.msra.mxu0 0.0
  %8665 = vmatprep.mubr.f32.mxu0 0.0
  %v8666 = vand.u32 %v8500, 4294901760
  %8667 = vmatmul.mubr.f32.gmra.mrb[0].mxu0 %v8666
  %v8668 = vpop.f32.mrb[0].mxu0
  %v8669 = vadd.f32 %v8578, %v8668
  %v8670 = vpop.f32.mrb[0].mxu0
  %8671 = vdwg.mxu0
  %8672 = vmatprep.subr.mxu0 0.0
  %v8673 = vand.u32 %v19, 4294901760
  %v8674 = vsub.f32 %v19, %v8673
  %8675 = vmatpush1.msra.mxu0 %v8674
  %8676 = vmatprep.subr.mxu0 0.0
  %v8677 = vand.u32 %v20, 4294901760
  %v8678 = vsub.f32 %v20, %v8677
  %8679 = vmatpush1.msra.mxu0 %v8678
  %8680 = vmatprep.subr.mxu0 0.0
  %v8681 = vand.u32 %v21, 4294901760
  %v8682 = vsub.f32 %v21, %v8681
  %8683 = vmatpush1.msra.mxu0 %v8682
  %8684 = vmatprep.subr.mxu0 0.0
  %v8685 = vand.u32 %v22, 4294901760
  %v8686 = vsub.f32 %v22, %v8685
  %8687 = vmatpush1.msra.mxu0 %v8686
  %8688 = vmatprep.subr.mxu0 0.0
  %8689 = vmatpush1.msra.mxu0 0.0
  %8690 = vmatprep.subr.mxu0 0.0
  %8691 = vmatpush1.msra.mxu0 0.0
  %8692 = vmatprep.subr.mxu0 0.0
  %8693 = vmatpush1.msra.mxu0 0.0
  %8694 = vmatprep.subr.mxu0 0.0
  %8695 = vmatpush1.msra.mxu0 0.0
  %8696 = vmatprep.subr.mxu0 0.0
  %8697 = vmatpush1.msra.mxu0 0.0
  %8698 = vmatprep.subr.mxu0 0.0
  %8699 = vmatpush1.msra.mxu0 0.0
  %8700 = vmatprep.subr.mxu0 0.0
  %8701 = vmatpush1.msra.mxu0 0.0
  %8702 = vmatprep.subr.mxu0 0.0
  %8703 = vmatpush1.msra.mxu0 0.0
  %8704 = vmatprep.subr.mxu0 0.0
  %8705 = vmatpush1.msra.mxu0 0.0
  %8706 = vmatprep.subr.mxu0 0.0
  %8707 = vmatpush1.msra.mxu0 0.0
  %8708 = vmatprep.subr.mxu0 0.0
  %8709 = vmatpush1.msra.mxu0 0.0
  %8710 = vmatprep.subr.mxu0 0.0
  %8711 = vmatpush1.msra.mxu0 0.0
  %8712 = vmatprep.subr.mxu0 0.0
  %8713 = vmatpush1.msra.mxu0 0.0
  %8714 = vmatprep.subr.mxu0 0.0
  %8715 = vmatpush1.msra.mxu0 0.0
  %8716 = vmatprep.subr.mxu0 0.0
  %8717 = vmatpush1.msra.mxu0 0.0
  %8718 = vmatprep.subr.mxu0 0.0
  %8719 = vmatpush1.msra.mxu0 0.0
  %8720 = vmatprep.subr.mxu0 0.0
  %8721 = vmatpush1.msra.mxu0 0.0
  %8722 = vmatprep.subr.mxu0 0.0
  %8723 = vmatpush1.msra.mxu0 0.0
  %8724 = vmatprep.subr.mxu0 0.0
  %8725 = vmatpush1.msra.mxu0 0.0
  %8726 = vmatprep.subr.mxu0 0.0
  %8727 = vmatpush1.msra.mxu0 0.0
  %8728 = vmatprep.subr.mxu0 0.0
  %8729 = vmatpush1.msra.mxu0 0.0
  %8730 = vmatprep.subr.mxu0 0.0
  %8731 = vmatpush1.msra.mxu0 0.0
  %8732 = vmatprep.subr.mxu0 0.0
  %8733 = vmatpush1.msra.mxu0 0.0
  %8734 = vmatprep.subr.mxu0 0.0
  %8735 = vmatpush1.msra.mxu0 0.0
  %8736 = vmatprep.subr.mxu0 0.0
  %8737 = vmatpush1.msra.mxu0 0.0
  %8738 = vmatprep.subr.mxu0 0.0
  %8739 = vmatpush1.msra.mxu0 0.0
  %8740 = vmatprep.subr.mxu0 0.0
  %8741 = vmatpush1.msra.mxu0 0.0
  %8742 = vmatprep.subr.mxu0 0.0
  %8743 = vmatpush1.msra.mxu0 0.0
  %8744 = vmatprep.mubr.f32.mxu0 0.0
  %v8745 = vand.u32 %v8500, 4294901760
  %v8746 = vsub.f32 %v8500, %v8745
  %8747 = vmatmul.mubr.f32.gmra.mrb[0].mxu0 %v8746
  %v8748 = vpop.f32.mrb[0].mxu0
  %v8749 = vadd.f32 %v8669, %v8748
  %v8750 = vpop.f32.mrb[0].mxu0
  %8751 = vdwg.mxu0
  %8752 = vmatprep.subr.mxu0 0.0
  %v8753 = vand.u32 %v19, 4294901760
  %8754 = vmatpush1.msra.mxu0 %v8753
  %8755 = vmatprep.subr.mxu0 0.0
  %v8756 = vand.u32 %v20, 4294901760
  %8757 = vmatpush1.msra.mxu0 %v8756
  %8758 = vmatprep.subr.mxu0 0.0
  %v8759 = vand.u32 %v21, 4294901760
  %8760 = vmatpush1.msra.mxu0 %v8759
  %8761 = vmatprep.subr.mxu0 0.0
  %v8762 = vand.u32 %v22, 4294901760
  %8763 = vmatpush1.msra.mxu0 %v8762
  %8764 = vmatprep.subr.mxu0 0.0
  %8765 = vmatpush1.msra.mxu0 0.0
  %8766 = vmatprep.subr.mxu0 0.0
  %8767 = vmatpush1.msra.mxu0 0.0
  %8768 = vmatprep.subr.mxu0 0.0
  %8769 = vmatpush1.msra.mxu0 0.0
  %8770 = vmatprep.subr.mxu0 0.0
  %8771 = vmatpush1.msra.mxu0 0.0
  %8772 = vmatprep.subr.mxu0 0.0
  %8773 = vmatpush1.msra.mxu0 0.0
  %8774 = vmatprep.subr.mxu0 0.0
  %8775 = vmatpush1.msra.mxu0 0.0
  %8776 = vmatprep.subr.mxu0 0.0
  %8777 = vmatpush1.msra.mxu0 0.0
  %8778 = vmatprep.subr.mxu0 0.0
  %8779 = vmatpush1.msra.mxu0 0.0
  %8780 = vmatprep.subr.mxu0 0.0
  %8781 = vmatpush1.msra.mxu0 0.0
  %8782 = vmatprep.subr.mxu0 0.0
  %8783 = vmatpush1.msra.mxu0 0.0
  %8784 = vmatprep.subr.mxu0 0.0
  %8785 = vmatpush1.msra.mxu0 0.0
  %8786 = vmatprep.subr.mxu0 0.0
  %8787 = vmatpush1.msra.mxu0 0.0
  %8788 = vmatprep.subr.mxu0 0.0
  %8789 = vmatpush1.msra.mxu0 0.0
  %8790 = vmatprep.subr.mxu0 0.0
  %8791 = vmatpush1.msra.mxu0 0.0
  %8792 = vmatprep.subr.mxu0 0.0
  %8793 = vmatpush1.msra.mxu0 0.0
  %8794 = vmatprep.subr.mxu0 0.0
  %8795 = vmatpush1.msra.mxu0 0.0
  %8796 = vmatprep.subr.mxu0 0.0
  %8797 = vmatpush1.msra.mxu0 0.0
  %8798 = vmatprep.subr.mxu0 0.0
  %8799 = vmatpush1.msra.mxu0 0.0
  %8800 = vmatprep.subr.mxu0 0.0
  %8801 = vmatpush1.msra.mxu0 0.0
  %8802 = vmatprep.subr.mxu0 0.0
  %8803 = vmatpush1.msra.mxu0 0.0
  %8804 = vmatprep.subr.mxu0 0.0
  %8805 = vmatpush1.msra.mxu0 0.0
  %8806 = vmatprep.subr.mxu0 0.0
  %8807 = vmatpush1.msra.mxu0 0.0
  %8808 = vmatprep.subr.mxu0 0.0
  %8809 = vmatpush1.msra.mxu0 0.0
  %8810 = vmatprep.subr.mxu0 0.0
  %8811 = vmatpush1.msra.mxu0 0.0
  %8812 = vmatprep.subr.mxu0 0.0
  %8813 = vmatpush1.msra.mxu0 0.0
  %8814 = vmatprep.subr.mxu0 0.0
  %8815 = vmatpush1.msra.mxu0 0.0
  %8816 = vmatprep.subr.mxu0 0.0
  %8817 = vmatpush1.msra.mxu0 0.0
  %8818 = vmatprep.subr.mxu0 0.0
  %8819 = vmatpush1.msra.mxu0 0.0
  %8820 = vmatprep.mubr.f32.mxu0 0.0
  %v8821 = vand.u32 %v8500, 4294901760
  %v8822 = vsub.f32 %v8500, %v8821
  %v8823 = vand.u32 %v8822, 4294901760
  %8824 = vmatmul.mubr.f32.gmra.mrb[0].mxu0 %v8823
  %v8825 = vpop.f32.mrb[0].mxu0
  %v8826 = vadd.f32 %v8749, %v8825
  %v8827 = vpop.f32.mrb[0].mxu0
  %8828 = vdwg.mxu0
  %8829 = vmatprep.subr.mxu0 0.0
  %v8830 = vand.u32 %v19, 4294901760
  %v8831 = vsub.f32 %v19, %v8830
  %v8832 = vand.u32 %v8831, 4294901760
  %8833 = vmatpush1.msra.mxu0 %v8832
  %8834 = vmatprep.subr.mxu0 0.0
  %v8835 = vand.u32 %v20, 4294901760
  %v8836 = vsub.f32 %v20, %v8835
  %v8837 = vand.u32 %v8836, 4294901760
  %8838 = vmatpush1.msra.mxu0 %v8837
  %8839 = vmatprep.subr.mxu0 0.0
  %v8840 = vand.u32 %v21, 4294901760
  %v8841 = vsub.f32 %v21, %v8840
  %v8842 = vand.u32 %v8841, 4294901760
  %8843 = vmatpush1.msra.mxu0 %v8842
  %8844 = vmatprep.subr.mxu0 0.0
  %v8845 = vand.u32 %v22, 4294901760
  %v8846 = vsub.f32 %v22, %v8845
  %v8847 = vand.u32 %v8846, 4294901760
  %8848 = vmatpush1.msra.mxu0 %v8847
  %8849 = vmatprep.subr.mxu0 0.0
  %8850 = vmatpush1.msra.mxu0 0.0
  %8851 = vmatprep.subr.mxu0 0.0
  %8852 = vmatpush1.msra.mxu0 0.0
  %8853 = vmatprep.subr.mxu0 0.0
  %8854 = vmatpush1.msra.mxu0 0.0
  %8855 = vmatprep.subr.mxu0 0.0
  %8856 = vmatpush1.msra.mxu0 0.0
  %8857 = vmatprep.subr.mxu0 0.0
  %8858 = vmatpush1.msra.mxu0 0.0
  %8859 = vmatprep.subr.mxu0 0.0
  %8860 = vmatpush1.msra.mxu0 0.0
  %8861 = vmatprep.subr.mxu0 0.0
  %8862 = vmatpush1.msra.mxu0 0.0
  %8863 = vmatprep.subr.mxu0 0.0
  %8864 = vmatpush1.msra.mxu0 0.0
  %8865 = vmatprep.subr.mxu0 0.0
  %8866 = vmatpush1.msra.mxu0 0.0
  %8867 = vmatprep.subr.mxu0 0.0
  %8868 = vmatpush1.msra.mxu0 0.0
  %8869 = vmatprep.subr.mxu0 0.0
  %8870 = vmatpush1.msra.mxu0 0.0
  %8871 = vmatprep.subr.mxu0 0.0
  %8872 = vmatpush1.msra.mxu0 0.0
  %8873 = vmatprep.subr.mxu0 0.0
  %8874 = vmatpush1.msra.mxu0 0.0
  %8875 = vmatprep.subr.mxu0 0.0
  %8876 = vmatpush1.msra.mxu0 0.0
  %8877 = vmatprep.subr.mxu0 0.0
  %8878 = vmatpush1.msra.mxu0 0.0
  %8879 = vmatprep.subr.mxu0 0.0
  %8880 = vmatpush1.msra.mxu0 0.0
  %8881 = vmatprep.subr.mxu0 0.0
  %8882 = vmatpush1.msra.mxu0 0.0
  %8883 = vmatprep.subr.mxu0 0.0
  %8884 = vmatpush1.msra.mxu0 0.0
  %8885 = vmatprep.subr.mxu0 0.0
  %8886 = vmatpush1.msra.mxu0 0.0
  %8887 = vmatprep.subr.mxu0 0.0
  %8888 = vmatpush1.msra.mxu0 0.0
  %8889 = vmatprep.subr.mxu0 0.0
  %8890 = vmatpush1.msra.mxu0 0.0
  %8891 = vmatprep.subr.mxu0 0.0
  %8892 = vmatpush1.msra.mxu0 0.0
  %8893 = vmatprep.subr.mxu0 0.0
  %8894 = vmatpush1.msra.mxu0 0.0
  %8895 = vmatprep.subr.mxu0 0.0
  %8896 = vmatpush1.msra.mxu0 0.0
  %8897 = vmatprep.subr.mxu0 0.0
  %8898 = vmatpush1.msra.mxu0 0.0
  %8899 = vmatprep.subr.mxu0 0.0
  %8900 = vmatpush1.msra.mxu0 0.0
  %8901 = vmatprep.subr.mxu0 0.0
  %8902 = vmatpush1.msra.mxu0 0.0
  %8903 = vmatprep.subr.mxu0 0.0
  %8904 = vmatpush1.msra.mxu0 0.0
  %8905 = vmatprep.mubr.f32.mxu0 0.0
  %v8906 = vand.u32 %v8500, 4294901760
  %8907 = vmatmul.mubr.f32.gmra.mrb[0].mxu0 %v8906
  %v8908 = vpop.f32.mrb[0].mxu0
  %v8909 = vadd.f32 %v8826, %v8908
  %v8910 = vpop.f32.mrb[0].mxu0
  %8911 = vdwg.mxu0
  %8912 = vmatprep.subr.mxu0 0.0
  %v8913 = vand.u32 %v19, 4294901760
  %8914 = vmatpush1.msra.mxu0 %v8913
  %8915 = vmatprep.subr.mxu0 0.0
  %v8916 = vand.u32 %v20, 4294901760
  %8917 = vmatpush1.msra.mxu0 %v8916
  %8918 = vmatprep.subr.mxu0 0.0
  %v8919 = vand.u32 %v21, 4294901760
  %8920 = vmatpush1.msra.mxu0 %v8919
  %8921 = vmatprep.subr.mxu0 0.0
  %v8922 = vand.u32 %v22, 4294901760
  %8923 = vmatpush1.msra.mxu0 %v8922
  %8924 = vmatprep.subr.mxu0 0.0
  %8925 = vmatpush1.msra.mxu0 0.0
  %8926 = vmatprep.subr.mxu0 0.0
  %8927 = vmatpush1.msra.mxu0 0.0
  %8928 = vmatprep.subr.mxu0 0.0
  %8929 = vmatpush1.msra.mxu0 0.0
  %8930 = vmatprep.subr.mxu0 0.0
  %8931 = vmatpush1.msra.mxu0 0.0
  %8932 = vmatprep.subr.mxu0 0.0
  %8933 = vmatpush1.msra.mxu0 0.0
  %8934 = vmatprep.subr.mxu0 0.0
  %8935 = vmatpush1.msra.mxu0 0.0
  %8936 = vmatprep.subr.mxu0 0.0
  %8937 = vmatpush1.msra.mxu0 0.0
  %8938 = vmatprep.subr.mxu0 0.0
  %8939 = vmatpush1.msra.mxu0 0.0
  %8940 = vmatprep.subr.mxu0 0.0
  %8941 = vmatpush1.msra.mxu0 0.0
  %8942 = vmatprep.subr.mxu0 0.0
  %8943 = vmatpush1.msra.mxu0 0.0
  %8944 = vmatprep.subr.mxu0 0.0
  %8945 = vmatpush1.msra.mxu0 0.0
  %8946 = vmatprep.subr.mxu0 0.0
  %8947 = vmatpush1.msra.mxu0 0.0
  %8948 = vmatprep.subr.mxu0 0.0
  %8949 = vmatpush1.msra.mxu0 0.0
  %8950 = vmatprep.subr.mxu0 0.0
  %8951 = vmatpush1.msra.mxu0 0.0
  %8952 = vmatprep.subr.mxu0 0.0
  %8953 = vmatpush1.msra.mxu0 0.0
  %8954 = vmatprep.subr.mxu0 0.0
  %8955 = vmatpush1.msra.mxu0 0.0
  %8956 = vmatprep.subr.mxu0 0.0
  %8957 = vmatpush1.msra.mxu0 0.0
  %8958 = vmatprep.subr.mxu0 0.0
  %8959 = vmatpush1.msra.mxu0 0.0
  %8960 = vmatprep.subr.mxu0 0.0
  %8961 = vmatpush1.msra.mxu0 0.0
  %8962 = vmatprep.subr.mxu0 0.0
  %8963 = vmatpush1.msra.mxu0 0.0
  %8964 = vmatprep.subr.mxu0 0.0
  %8965 = vmatpush1.msra.mxu0 0.0
  %8966 = vmatprep.subr.mxu0 0.0
  %8967 = vmatpush1.msra.mxu0 0.0
  %8968 = vmatprep.subr.mxu0 0.0
  %8969 = vmatpush1.msra.mxu0 0.0
  %8970 = vmatprep.subr.mxu0 0.0
  %8971 = vmatpush1.msra.mxu0 0.0
  %8972 = vmatprep.subr.mxu0 0.0
  %8973 = vmatpush1.msra.mxu0 0.0
  %8974 = vmatprep.subr.mxu0 0.0
  %8975 = vmatpush1.msra.mxu0 0.0
  %8976 = vmatprep.subr.mxu0 0.0
  %8977 = vmatpush1.msra.mxu0 0.0
  %8978 = vmatprep.subr.mxu0 0.0
  %8979 = vmatpush1.msra.mxu0 0.0
  %8980 = vmatprep.mubr.f32.mxu0 0.0
  %v8981 = vand.u32 %v8500, 4294901760
  %8982 = vmatmul.mubr.f32.gmra.mrb[0].mxu0 %v8981
  %v8983 = vpop.f32.mrb[0].mxu0
  %v8984 = vadd.f32 %v8909, %v8983
  %v8985 = vpop.f32.mrb[0].mxu0
  %8986 = vdwg.mxu0
  %v8987 = vlaneseq
  %v8988 = vshrl.u32 %v8987, 7
  %v8989 = vsub.s32 0, %v8988
  %v8990 = vrot.slane %v24, %v8989
  %v8991 = vadd.f32 %v8984, %v8990
  %8993 = vrot.lane.b32.xlu0 %v8498, 96
  %v8994 = vpop.permute.xlu0 %8993
  %v8995 = vsel %vm550, %v8994, 0
  %8997 = vmatprep.subr.mxu0 0.0
  %v8998 = vand.u32 %v19, 4294901760
  %8999 = vmatpush1.msra.mxu0 %v8998
  %9000 = vmatprep.subr.mxu0 0.0
  %v9001 = vand.u32 %v20, 4294901760
  %9002 = vmatpush1.msra.mxu0 %v9001
  %9003 = vmatprep.subr.mxu0 0.0
  %v9004 = vand.u32 %v21, 4294901760
  %9005 = vmatpush1.msra.mxu0 %v9004
  %9006 = vmatprep.subr.mxu0 0.0
  %v9007 = vand.u32 %v22, 4294901760
  %9008 = vmatpush1.msra.mxu0 %v9007
  %9009 = vmatprep.subr.mxu0 0.0
  %9010 = vmatpush1.msra.mxu0 0.0
  %9011 = vmatprep.subr.mxu0 0.0
  %9012 = vmatpush1.msra.mxu0 0.0
  %9013 = vmatprep.subr.mxu0 0.0
  %9014 = vmatpush1.msra.mxu0 0.0
  %9015 = vmatprep.subr.mxu0 0.0
  %9016 = vmatpush1.msra.mxu0 0.0
  %9017 = vmatprep.subr.mxu0 0.0
  %9018 = vmatpush1.msra.mxu0 0.0
  %9019 = vmatprep.subr.mxu0 0.0
  %9020 = vmatpush1.msra.mxu0 0.0
  %9021 = vmatprep.subr.mxu0 0.0
  %9022 = vmatpush1.msra.mxu0 0.0
  %9023 = vmatprep.subr.mxu0 0.0
  %9024 = vmatpush1.msra.mxu0 0.0
  %9025 = vmatprep.subr.mxu0 0.0
  %9026 = vmatpush1.msra.mxu0 0.0
  %9027 = vmatprep.subr.mxu0 0.0
  %9028 = vmatpush1.msra.mxu0 0.0
  %9029 = vmatprep.subr.mxu0 0.0
  %9030 = vmatpush1.msra.mxu0 0.0
  %9031 = vmatprep.subr.mxu0 0.0
  %9032 = vmatpush1.msra.mxu0 0.0
  %9033 = vmatprep.subr.mxu0 0.0
  %9034 = vmatpush1.msra.mxu0 0.0
  %9035 = vmatprep.subr.mxu0 0.0
  %9036 = vmatpush1.msra.mxu0 0.0
  %9037 = vmatprep.subr.mxu0 0.0
  %9038 = vmatpush1.msra.mxu0 0.0
  %9039 = vmatprep.subr.mxu0 0.0
  %9040 = vmatpush1.msra.mxu0 0.0
  %9041 = vmatprep.subr.mxu0 0.0
  %9042 = vmatpush1.msra.mxu0 0.0
  %9043 = vmatprep.subr.mxu0 0.0
  %9044 = vmatpush1.msra.mxu0 0.0
  %9045 = vmatprep.subr.mxu0 0.0
  %9046 = vmatpush1.msra.mxu0 0.0
  %9047 = vmatprep.subr.mxu0 0.0
  %9048 = vmatpush1.msra.mxu0 0.0
  %9049 = vmatprep.subr.mxu0 0.0
  %9050 = vmatpush1.msra.mxu0 0.0
  %9051 = vmatprep.subr.mxu0 0.0
  %9052 = vmatpush1.msra.mxu0 0.0
  %9053 = vmatprep.subr.mxu0 0.0
  %9054 = vmatpush1.msra.mxu0 0.0
  %9055 = vmatprep.subr.mxu0 0.0
  %9056 = vmatpush1.msra.mxu0 0.0
  %9057 = vmatprep.subr.mxu0 0.0
  %9058 = vmatpush1.msra.mxu0 0.0
  %9059 = vmatprep.subr.mxu0 0.0
  %9060 = vmatpush1.msra.mxu0 0.0
  %9061 = vmatprep.subr.mxu0 0.0
  %9062 = vmatpush1.msra.mxu0 0.0
  %9063 = vmatprep.subr.mxu0 0.0
  %9064 = vmatpush1.msra.mxu0 0.0
  %9065 = vmatprep.mubr.f32.mxu0 0.0
  %v9066 = vand.u32 %v8995, 4294901760
  %v9067 = vsub.f32 %v8995, %v9066
  %v9068 = vand.u32 %v9067, 4294901760
  %v9069 = vsub.f32 %v9067, %v9068
  %v9070 = vand.u32 %v9069, 4294901760
  %9071 = vmatmul.mubr.f32.gmra.mrb[0].mxu0 %v9070
  %v9072 = vpop.f32.mrb[0].mxu0
  %v9073 = vadd.f32 0.0, %v9072
  %v9074 = vpop.f32.mrb[0].mxu0
  %9075 = vdwg.mxu0
  %9076 = vmatprep.subr.mxu0 0.0
  %v9077 = vand.u32 %v19, 4294901760
  %v9078 = vsub.f32 %v19, %v9077
  %v9079 = vand.u32 %v9078, 4294901760
  %v9080 = vsub.f32 %v9078, %v9079
  %v9081 = vand.u32 %v9080, 4294901760
  %9082 = vmatpush1.msra.mxu0 %v9081
  %9083 = vmatprep.subr.mxu0 0.0
  %v9084 = vand.u32 %v20, 4294901760
  %v9085 = vsub.f32 %v20, %v9084
  %v9086 = vand.u32 %v9085, 4294901760
  %v9087 = vsub.f32 %v9085, %v9086
  %v9088 = vand.u32 %v9087, 4294901760
  %9089 = vmatpush1.msra.mxu0 %v9088
  %9090 = vmatprep.subr.mxu0 0.0
  %v9091 = vand.u32 %v21, 4294901760
  %v9092 = vsub.f32 %v21, %v9091
  %v9093 = vand.u32 %v9092, 4294901760
  %v9094 = vsub.f32 %v9092, %v9093
  %v9095 = vand.u32 %v9094, 4294901760
  %9096 = vmatpush1.msra.mxu0 %v9095
  %9097 = vmatprep.subr.mxu0 0.0
  %v9098 = vand.u32 %v22, 4294901760
  %v9099 = vsub.f32 %v22, %v9098
  %v9100 = vand.u32 %v9099, 4294901760
  %v9101 = vsub.f32 %v9099, %v9100
  %v9102 = vand.u32 %v9101, 4294901760
  %9103 = vmatpush1.msra.mxu0 %v9102
  %9104 = vmatprep.subr.mxu0 0.0
  %9105 = vmatpush1.msra.mxu0 0.0
  %9106 = vmatprep.subr.mxu0 0.0
  %9107 = vmatpush1.msra.mxu0 0.0
  %9108 = vmatprep.subr.mxu0 0.0
  %9109 = vmatpush1.msra.mxu0 0.0
  %9110 = vmatprep.subr.mxu0 0.0
  %9111 = vmatpush1.msra.mxu0 0.0
  %9112 = vmatprep.subr.mxu0 0.0
  %9113 = vmatpush1.msra.mxu0 0.0
  %9114 = vmatprep.subr.mxu0 0.0
  %9115 = vmatpush1.msra.mxu0 0.0
  %9116 = vmatprep.subr.mxu0 0.0
  %9117 = vmatpush1.msra.mxu0 0.0
  %9118 = vmatprep.subr.mxu0 0.0
  %9119 = vmatpush1.msra.mxu0 0.0
  %9120 = vmatprep.subr.mxu0 0.0
  %9121 = vmatpush1.msra.mxu0 0.0
  %9122 = vmatprep.subr.mxu0 0.0
  %9123 = vmatpush1.msra.mxu0 0.0
  %9124 = vmatprep.subr.mxu0 0.0
  %9125 = vmatpush1.msra.mxu0 0.0
  %9126 = vmatprep.subr.mxu0 0.0
  %9127 = vmatpush1.msra.mxu0 0.0
  %9128 = vmatprep.subr.mxu0 0.0
  %9129 = vmatpush1.msra.mxu0 0.0
  %9130 = vmatprep.subr.mxu0 0.0
  %9131 = vmatpush1.msra.mxu0 0.0
  %9132 = vmatprep.subr.mxu0 0.0
  %9133 = vmatpush1.msra.mxu0 0.0
  %9134 = vmatprep.subr.mxu0 0.0
  %9135 = vmatpush1.msra.mxu0 0.0
  %9136 = vmatprep.subr.mxu0 0.0
  %9137 = vmatpush1.msra.mxu0 0.0
  %9138 = vmatprep.subr.mxu0 0.0
  %9139 = vmatpush1.msra.mxu0 0.0
  %9140 = vmatprep.subr.mxu0 0.0
  %9141 = vmatpush1.msra.mxu0 0.0
  %9142 = vmatprep.subr.mxu0 0.0
  %9143 = vmatpush1.msra.mxu0 0.0
  %9144 = vmatprep.subr.mxu0 0.0
  %9145 = vmatpush1.msra.mxu0 0.0
  %9146 = vmatprep.subr.mxu0 0.0
  %9147 = vmatpush1.msra.mxu0 0.0
  %9148 = vmatprep.subr.mxu0 0.0
  %9149 = vmatpush1.msra.mxu0 0.0
  %9150 = vmatprep.subr.mxu0 0.0
  %9151 = vmatpush1.msra.mxu0 0.0
  %9152 = vmatprep.subr.mxu0 0.0
  %9153 = vmatpush1.msra.mxu0 0.0
  %9154 = vmatprep.subr.mxu0 0.0
  %9155 = vmatpush1.msra.mxu0 0.0
  %9156 = vmatprep.subr.mxu0 0.0
  %9157 = vmatpush1.msra.mxu0 0.0
  %9158 = vmatprep.subr.mxu0 0.0
  %9159 = vmatpush1.msra.mxu0 0.0
  %9160 = vmatprep.mubr.f32.mxu0 0.0
  %v9161 = vand.u32 %v8995, 4294901760
  %9162 = vmatmul.mubr.f32.gmra.mrb[0].mxu0 %v9161
  %v9163 = vpop.f32.mrb[0].mxu0
  %v9164 = vadd.f32 %v9073, %v9163
  %v9165 = vpop.f32.mrb[0].mxu0
  %9166 = vdwg.mxu0
  %9167 = vmatprep.subr.mxu0 0.0
  %v9168 = vand.u32 %v19, 4294901760
  %v9169 = vsub.f32 %v19, %v9168
  %9170 = vmatpush1.msra.mxu0 %v9169
  %9171 = vmatprep.subr.mxu0 0.0
  %v9172 = vand.u32 %v20, 4294901760
  %v9173 = vsub.f32 %v20, %v9172
  %9174 = vmatpush1.msra.mxu0 %v9173
  %9175 = vmatprep.subr.mxu0 0.0
  %v9176 = vand.u32 %v21, 4294901760
  %v9177 = vsub.f32 %v21, %v9176
  %9178 = vmatpush1.msra.mxu0 %v9177
  %9179 = vmatprep.subr.mxu0 0.0
  %v9180 = vand.u32 %v22, 4294901760
  %v9181 = vsub.f32 %v22, %v9180
  %9182 = vmatpush1.msra.mxu0 %v9181
  %9183 = vmatprep.subr.mxu0 0.0
  %9184 = vmatpush1.msra.mxu0 0.0
  %9185 = vmatprep.subr.mxu0 0.0
  %9186 = vmatpush1.msra.mxu0 0.0
  %9187 = vmatprep.subr.mxu0 0.0
  %9188 = vmatpush1.msra.mxu0 0.0
  %9189 = vmatprep.subr.mxu0 0.0
  %9190 = vmatpush1.msra.mxu0 0.0
  %9191 = vmatprep.subr.mxu0 0.0
  %9192 = vmatpush1.msra.mxu0 0.0
  %9193 = vmatprep.subr.mxu0 0.0
  %9194 = vmatpush1.msra.mxu0 0.0
  %9195 = vmatprep.subr.mxu0 0.0
  %9196 = vmatpush1.msra.mxu0 0.0
  %9197 = vmatprep.subr.mxu0 0.0
  %9198 = vmatpush1.msra.mxu0 0.0
  %9199 = vmatprep.subr.mxu0 0.0
  %9200 = vmatpush1.msra.mxu0 0.0
  %9201 = vmatprep.subr.mxu0 0.0
  %9202 = vmatpush1.msra.mxu0 0.0
  %9203 = vmatprep.subr.mxu0 0.0
  %9204 = vmatpush1.msra.mxu0 0.0
  %9205 = vmatprep.subr.mxu0 0.0
  %9206 = vmatpush1.msra.mxu0 0.0
  %9207 = vmatprep.subr.mxu0 0.0
  %9208 = vmatpush1.msra.mxu0 0.0
  %9209 = vmatprep.subr.mxu0 0.0
  %9210 = vmatpush1.msra.mxu0 0.0
  %9211 = vmatprep.subr.mxu0 0.0
  %9212 = vmatpush1.msra.mxu0 0.0
  %9213 = vmatprep.subr.mxu0 0.0
  %9214 = vmatpush1.msra.mxu0 0.0
  %9215 = vmatprep.subr.mxu0 0.0
  %9216 = vmatpush1.msra.mxu0 0.0
  %9217 = vmatprep.subr.mxu0 0.0
  %9218 = vmatpush1.msra.mxu0 0.0
  %9219 = vmatprep.subr.mxu0 0.0
  %9220 = vmatpush1.msra.mxu0 0.0
  %9221 = vmatprep.subr.mxu0 0.0
  %9222 = vmatpush1.msra.mxu0 0.0
  %9223 = vmatprep.subr.mxu0 0.0
  %9224 = vmatpush1.msra.mxu0 0.0
  %9225 = vmatprep.subr.mxu0 0.0
  %9226 = vmatpush1.msra.mxu0 0.0
  %9227 = vmatprep.subr.mxu0 0.0
  %9228 = vmatpush1.msra.mxu0 0.0
  %9229 = vmatprep.subr.mxu0 0.0
  %9230 = vmatpush1.msra.mxu0 0.0
  %9231 = vmatprep.subr.mxu0 0.0
  %9232 = vmatpush1.msra.mxu0 0.0
  %9233 = vmatprep.subr.mxu0 0.0
  %9234 = vmatpush1.msra.mxu0 0.0
  %9235 = vmatprep.subr.mxu0 0.0
  %9236 = vmatpush1.msra.mxu0 0.0
  %9237 = vmatprep.subr.mxu0 0.0
  %9238 = vmatpush1.msra.mxu0 0.0
  %9239 = vmatprep.mubr.f32.mxu0 0.0
  %v9240 = vand.u32 %v8995, 4294901760
  %v9241 = vsub.f32 %v8995, %v9240
  %9242 = vmatmul.mubr.f32.gmra.mrb[0].mxu0 %v9241
  %v9243 = vpop.f32.mrb[0].mxu0
  %v9244 = vadd.f32 %v9164, %v9243
  %v9245 = vpop.f32.mrb[0].mxu0
  %9246 = vdwg.mxu0
  %9247 = vmatprep.subr.mxu0 0.0
  %v9248 = vand.u32 %v19, 4294901760
  %9249 = vmatpush1.msra.mxu0 %v9248
  %9250 = vmatprep.subr.mxu0 0.0
  %v9251 = vand.u32 %v20, 4294901760
  %9252 = vmatpush1.msra.mxu0 %v9251
  %9253 = vmatprep.subr.mxu0 0.0
  %v9254 = vand.u32 %v21, 4294901760
  %9255 = vmatpush1.msra.mxu0 %v9254
  %9256 = vmatprep.subr.mxu0 0.0
  %v9257 = vand.u32 %v22, 4294901760
  %9258 = vmatpush1.msra.mxu0 %v9257
  %9259 = vmatprep.subr.mxu0 0.0
  %9260 = vmatpush1.msra.mxu0 0.0
  %9261 = vmatprep.subr.mxu0 0.0
  %9262 = vmatpush1.msra.mxu0 0.0
  %9263 = vmatprep.subr.mxu0 0.0
  %9264 = vmatpush1.msra.mxu0 0.0
  %9265 = vmatprep.subr.mxu0 0.0
  %9266 = vmatpush1.msra.mxu0 0.0
  %9267 = vmatprep.subr.mxu0 0.0
  %9268 = vmatpush1.msra.mxu0 0.0
  %9269 = vmatprep.subr.mxu0 0.0
  %9270 = vmatpush1.msra.mxu0 0.0
  %9271 = vmatprep.subr.mxu0 0.0
  %9272 = vmatpush1.msra.mxu0 0.0
  %9273 = vmatprep.subr.mxu0 0.0
  %9274 = vmatpush1.msra.mxu0 0.0
  %9275 = vmatprep.subr.mxu0 0.0
  %9276 = vmatpush1.msra.mxu0 0.0
  %9277 = vmatprep.subr.mxu0 0.0
  %9278 = vmatpush1.msra.mxu0 0.0
  %9279 = vmatprep.subr.mxu0 0.0
  %9280 = vmatpush1.msra.mxu0 0.0
  %9281 = vmatprep.subr.mxu0 0.0
  %9282 = vmatpush1.msra.mxu0 0.0
  %9283 = vmatprep.subr.mxu0 0.0
  %9284 = vmatpush1.msra.mxu0 0.0
  %9285 = vmatprep.subr.mxu0 0.0
  %9286 = vmatpush1.msra.mxu0 0.0
  %9287 = vmatprep.subr.mxu0 0.0
  %9288 = vmatpush1.msra.mxu0 0.0
  %9289 = vmatprep.subr.mxu0 0.0
  %9290 = vmatpush1.msra.mxu0 0.0
  %9291 = vmatprep.subr.mxu0 0.0
  %9292 = vmatpush1.msra.mxu0 0.0
  %9293 = vmatprep.subr.mxu0 0.0
  %9294 = vmatpush1.msra.mxu0 0.0
  %9295 = vmatprep.subr.mxu0 0.0
  %9296 = vmatpush1.msra.mxu0 0.0
  %9297 = vmatprep.subr.mxu0 0.0
  %9298 = vmatpush1.msra.mxu0 0.0
  %9299 = vmatprep.subr.mxu0 0.0
  %9300 = vmatpush1.msra.mxu0 0.0
  %9301 = vmatprep.subr.mxu0 0.0
  %9302 = vmatpush1.msra.mxu0 0.0
  %9303 = vmatprep.subr.mxu0 0.0
  %9304 = vmatpush1.msra.mxu0 0.0
  %9305 = vmatprep.subr.mxu0 0.0
  %9306 = vmatpush1.msra.mxu0 0.0
  %9307 = vmatprep.subr.mxu0 0.0
  %9308 = vmatpush1.msra.mxu0 0.0
  %9309 = vmatprep.subr.mxu0 0.0
  %9310 = vmatpush1.msra.mxu0 0.0
  %9311 = vmatprep.subr.mxu0 0.0
  %9312 = vmatpush1.msra.mxu0 0.0
  %9313 = vmatprep.subr.mxu0 0.0
  %9314 = vmatpush1.msra.mxu0 0.0
  %9315 = vmatprep.mubr.f32.mxu0 0.0
  %v9316 = vand.u32 %v8995, 4294901760
  %v9317 = vsub.f32 %v8995, %v9316
  %v9318 = vand.u32 %v9317, 4294901760
  %9319 = vmatmul.mubr.f32.gmra.mrb[0].mxu0 %v9318
  %v9320 = vpop.f32.mrb[0].mxu0
  %v9321 = vadd.f32 %v9244, %v9320
  %v9322 = vpop.f32.mrb[0].mxu0
  %9323 = vdwg.mxu0
  %9324 = vmatprep.subr.mxu0 0.0
  %v9325 = vand.u32 %v19, 4294901760
  %v9326 = vsub.f32 %v19, %v9325
  %v9327 = vand.u32 %v9326, 4294901760
  %9328 = vmatpush1.msra.mxu0 %v9327
  %9329 = vmatprep.subr.mxu0 0.0
  %v9330 = vand.u32 %v20, 4294901760
  %v9331 = vsub.f32 %v20, %v9330
  %v9332 = vand.u32 %v9331, 4294901760
  %9333 = vmatpush1.msra.mxu0 %v9332
  %9334 = vmatprep.subr.mxu0 0.0
  %v9335 = vand.u32 %v21, 4294901760
  %v9336 = vsub.f32 %v21, %v9335
  %v9337 = vand.u32 %v9336, 4294901760
  %9338 = vmatpush1.msra.mxu0 %v9337
  %9339 = vmatprep.subr.mxu0 0.0
  %v9340 = vand.u32 %v22, 4294901760
  %v9341 = vsub.f32 %v22, %v9340
  %v9342 = vand.u32 %v9341, 4294901760
  %9343 = vmatpush1.msra.mxu0 %v9342
  %9344 = vmatprep.subr.mxu0 0.0
  %9345 = vmatpush1.msra.mxu0 0.0
  %9346 = vmatprep.subr.mxu0 0.0
  %9347 = vmatpush1.msra.mxu0 0.0
  %9348 = vmatprep.subr.mxu0 0.0
  %9349 = vmatpush1.msra.mxu0 0.0
  %9350 = vmatprep.subr.mxu0 0.0
  %9351 = vmatpush1.msra.mxu0 0.0
  %9352 = vmatprep.subr.mxu0 0.0
  %9353 = vmatpush1.msra.mxu0 0.0
  %9354 = vmatprep.subr.mxu0 0.0
  %9355 = vmatpush1.msra.mxu0 0.0
  %9356 = vmatprep.subr.mxu0 0.0
  %9357 = vmatpush1.msra.mxu0 0.0
  %9358 = vmatprep.subr.mxu0 0.0
  %9359 = vmatpush1.msra.mxu0 0.0
  %9360 = vmatprep.subr.mxu0 0.0
  %9361 = vmatpush1.msra.mxu0 0.0
  %9362 = vmatprep.subr.mxu0 0.0
  %9363 = vmatpush1.msra.mxu0 0.0
  %9364 = vmatprep.subr.mxu0 0.0
  %9365 = vmatpush1.msra.mxu0 0.0
  %9366 = vmatprep.subr.mxu0 0.0
  %9367 = vmatpush1.msra.mxu0 0.0
  %9368 = vmatprep.subr.mxu0 0.0
  %9369 = vmatpush1.msra.mxu0 0.0
  %9370 = vmatprep.subr.mxu0 0.0
  %9371 = vmatpush1.msra.mxu0 0.0
  %9372 = vmatprep.subr.mxu0 0.0
  %9373 = vmatpush1.msra.mxu0 0.0
  %9374 = vmatprep.subr.mxu0 0.0
  %9375 = vmatpush1.msra.mxu0 0.0
  %9376 = vmatprep.subr.mxu0 0.0
  %9377 = vmatpush1.msra.mxu0 0.0
  %9378 = vmatprep.subr.mxu0 0.0
  %9379 = vmatpush1.msra.mxu0 0.0
  %9380 = vmatprep.subr.mxu0 0.0
  %9381 = vmatpush1.msra.mxu0 0.0
  %9382 = vmatprep.subr.mxu0 0.0
  %9383 = vmatpush1.msra.mxu0 0.0
  %9384 = vmatprep.subr.mxu0 0.0
  %9385 = vmatpush1.msra.mxu0 0.0
  %9386 = vmatprep.subr.mxu0 0.0
  %9387 = vmatpush1.msra.mxu0 0.0
  %9388 = vmatprep.subr.mxu0 0.0
  %9389 = vmatpush1.msra.mxu0 0.0
  %9390 = vmatprep.subr.mxu0 0.0
  %9391 = vmatpush1.msra.mxu0 0.0
  %9392 = vmatprep.subr.mxu0 0.0
  %9393 = vmatpush1.msra.mxu0 0.0
  %9394 = vmatprep.subr.mxu0 0.0
  %9395 = vmatpush1.msra.mxu0 0.0
  %9396 = vmatprep.subr.mxu0 0.0
  %9397 = vmatpush1.msra.mxu0 0.0
  %9398 = vmatprep.subr.mxu0 0.0
  %9399 = vmatpush1.msra.mxu0 0.0
  %9400 = vmatprep.mubr.f32.mxu0 0.0
  %v9401 = vand.u32 %v8995, 4294901760
  %9402 = vmatmul.mubr.f32.gmra.mrb[0].mxu0 %v9401
  %v9403 = vpop.f32.mrb[0].mxu0
  %v9404 = vadd.f32 %v9321, %v9403
  %v9405 = vpop.f32.mrb[0].mxu0
  %9406 = vdwg.mxu0
  %9407 = vmatprep.subr.mxu0 0.0
  %v9408 = vand.u32 %v19, 4294901760
  %9409 = vmatpush1.msra.mxu0 %v9408
  %9410 = vmatprep.subr.mxu0 0.0
  %v9411 = vand.u32 %v20, 4294901760
  %9412 = vmatpush1.msra.mxu0 %v9411
  %9413 = vmatprep.subr.mxu0 0.0
  %v9414 = vand.u32 %v21, 4294901760
  %9415 = vmatpush1.msra.mxu0 %v9414
  %9416 = vmatprep.subr.mxu0 0.0
  %v9417 = vand.u32 %v22, 4294901760
  %9418 = vmatpush1.msra.mxu0 %v9417
  %9419 = vmatprep.subr.mxu0 0.0
  %9420 = vmatpush1.msra.mxu0 0.0
  %9421 = vmatprep.subr.mxu0 0.0
  %9422 = vmatpush1.msra.mxu0 0.0
  %9423 = vmatprep.subr.mxu0 0.0
  %9424 = vmatpush1.msra.mxu0 0.0
  %9425 = vmatprep.subr.mxu0 0.0
  %9426 = vmatpush1.msra.mxu0 0.0
  %9427 = vmatprep.subr.mxu0 0.0
  %9428 = vmatpush1.msra.mxu0 0.0
  %9429 = vmatprep.subr.mxu0 0.0
  %9430 = vmatpush1.msra.mxu0 0.0
  %9431 = vmatprep.subr.mxu0 0.0
  %9432 = vmatpush1.msra.mxu0 0.0
  %9433 = vmatprep.subr.mxu0 0.0
  %9434 = vmatpush1.msra.mxu0 0.0
  %9435 = vmatprep.subr.mxu0 0.0
  %9436 = vmatpush1.msra.mxu0 0.0
  %9437 = vmatprep.subr.mxu0 0.0
  %9438 = vmatpush1.msra.mxu0 0.0
  %9439 = vmatprep.subr.mxu0 0.0
  %9440 = vmatpush1.msra.mxu0 0.0
  %9441 = vmatprep.subr.mxu0 0.0
  %9442 = vmatpush1.msra.mxu0 0.0
  %9443 = vmatprep.subr.mxu0 0.0
  %9444 = vmatpush1.msra.mxu0 0.0
  %9445 = vmatprep.subr.mxu0 0.0
  %9446 = vmatpush1.msra.mxu0 0.0
  %9447 = vmatprep.subr.mxu0 0.0
  %9448 = vmatpush1.msra.mxu0 0.0
  %9449 = vmatprep.subr.mxu0 0.0
  %9450 = vmatpush1.msra.mxu0 0.0
  %9451 = vmatprep.subr.mxu0 0.0
  %9452 = vmatpush1.msra.mxu0 0.0
  %9453 = vmatprep.subr.mxu0 0.0
  %9454 = vmatpush1.msra.mxu0 0.0
  %9455 = vmatprep.subr.mxu0 0.0
  %9456 = vmatpush1.msra.mxu0 0.0
  %9457 = vmatprep.subr.mxu0 0.0
  %9458 = vmatpush1.msra.mxu0 0.0
  %9459 = vmatprep.subr.mxu0 0.0
  %9460 = vmatpush1.msra.mxu0 0.0
  %9461 = vmatprep.subr.mxu0 0.0
  %9462 = vmatpush1.msra.mxu0 0.0
  %9463 = vmatprep.subr.mxu0 0.0
  %9464 = vmatpush1.msra.mxu0 0.0
  %9465 = vmatprep.subr.mxu0 0.0
  %9466 = vmatpush1.msra.mxu0 0.0
  %9467 = vmatprep.subr.mxu0 0.0
  %9468 = vmatpush1.msra.mxu0 0.0
  %9469 = vmatprep.subr.mxu0 0.0
  %9470 = vmatpush1.msra.mxu0 0.0
  %9471 = vmatprep.subr.mxu0 0.0
  %9472 = vmatpush1.msra.mxu0 0.0
  %9473 = vmatprep.subr.mxu0 0.0
  %9474 = vmatpush1.msra.mxu0 0.0
  %9475 = vmatprep.mubr.f32.mxu0 0.0
  %v9476 = vand.u32 %v8995, 4294901760
  %9477 = vmatmul.mubr.f32.gmra.mrb[0].mxu0 %v9476
  %v9478 = vpop.f32.mrb[0].mxu0
  %v9479 = vadd.f32 %v9404, %v9478
  %v9480 = vpop.f32.mrb[0].mxu0
  %9481 = vdwg.mxu0
  %v9483 = vsel %vm550, %v8991, 0
  %9485 = vmatprep.subr.mxu0 0.0
  %v9486 = vand.u32 %v9483, 4294901760
  %9487 = vmatpush1.xpose.msra.mxu0 %v9486
  %9488 = vmatprep.subr.mxu0 0.0
  %9489 = vmatpush1.xpose.msra.mxu0 0.0
  %9490 = vmatprep.subr.mxu0 0.0
  %9491 = vmatpush1.xpose.msra.mxu0 0.0
  %9492 = vmatprep.subr.mxu0 0.0
  %9493 = vmatpush1.xpose.msra.mxu0 0.0
  %9494 = vmatprep.subr.mxu0 0.0
  %9495 = vmatpush1.xpose.msra.mxu0 0.0
  %9496 = vmatprep.subr.mxu0 0.0
  %9497 = vmatpush1.xpose.msra.mxu0 0.0
  %9498 = vmatprep.subr.mxu0 0.0
  %9499 = vmatpush1.xpose.msra.mxu0 0.0
  %9500 = vmatprep.subr.mxu0 0.0
  %9501 = vmatpush1.xpose.msra.mxu0 0.0
  %9502 = vmatprep.subr.mxu0 0.0
  %9503 = vmatpush1.xpose.msra.mxu0 0.0
  %9504 = vmatprep.subr.mxu0 0.0
  %9505 = vmatpush1.xpose.msra.mxu0 0.0
  %9506 = vmatprep.subr.mxu0 0.0
  %9507 = vmatpush1.xpose.msra.mxu0 0.0
  %9508 = vmatprep.subr.mxu0 0.0
  %9509 = vmatpush1.xpose.msra.mxu0 0.0
  %9510 = vmatprep.subr.mxu0 0.0
  %9511 = vmatpush1.xpose.msra.mxu0 0.0
  %9512 = vmatprep.subr.mxu0 0.0
  %9513 = vmatpush1.xpose.msra.mxu0 0.0
  %9514 = vmatprep.subr.mxu0 0.0
  %9515 = vmatpush1.xpose.msra.mxu0 0.0
  %9516 = vmatprep.subr.mxu0 0.0
  %9517 = vmatpush1.xpose.msra.mxu0 0.0
  %9518 = vmatprep.subr.mxu0 0.0
  %9519 = vmatpush1.xpose.msra.mxu0 0.0
  %9520 = vmatprep.subr.mxu0 0.0
  %9521 = vmatpush1.xpose.msra.mxu0 0.0
  %9522 = vmatprep.subr.mxu0 0.0
  %9523 = vmatpush1.xpose.msra.mxu0 0.0
  %9524 = vmatprep.subr.mxu0 0.0
  %9525 = vmatpush1.xpose.msra.mxu0 0.0
  %9526 = vmatprep.subr.mxu0 0.0
  %9527 = vmatpush1.xpose.msra.mxu0 0.0
  %9528 = vmatprep.subr.mxu0 0.0
  %9529 = vmatpush1.xpose.msra.mxu0 0.0
  %9530 = vmatprep.subr.mxu0 0.0
  %9531 = vmatpush1.xpose.msra.mxu0 0.0
  %9532 = vmatprep.subr.mxu0 0.0
  %9533 = vmatpush1.xpose.msra.mxu0 0.0
  %9534 = vmatprep.subr.mxu0 0.0
  %9535 = vmatpush1.xpose.msra.mxu0 0.0
  %9536 = vmatprep.subr.mxu0 0.0
  %9537 = vmatpush1.xpose.msra.mxu0 0.0
  %9538 = vmatprep.subr.mxu0 0.0
  %9539 = vmatpush1.xpose.msra.mxu0 0.0
  %9540 = vmatprep.subr.mxu0 0.0
  %9541 = vmatpush1.xpose.msra.mxu0 0.0
  %9542 = vmatprep.subr.mxu0 0.0
  %9543 = vmatpush1.xpose.msra.mxu0 0.0
  %9544 = vmatprep.subr.mxu0 0.0
  %9545 = vmatpush1.xpose.msra.mxu0 0.0
  %9546 = vmatprep.subr.mxu0 0.0
  %9547 = vmatpush1.xpose.msra.mxu0 0.0
  %9548 = vmatprep.subr.mxu0 0.0
  %9549 = vmatpush1.xpose.msra.mxu0 0.0
  %9550 = vmatprep.mubr.f32.mxu0 0.0
  %v9551 = vand.u32 %v8995, 4294901760
  %v9552 = vsub.f32 %v8995, %v9551
  %v9553 = vand.u32 %v9552, 4294901760
  %v9554 = vsub.f32 %v9552, %v9553
  %v9555 = vand.u32 %v9554, 4294901760
  %9556 = vmatmul.mubr.f32.gmra.mrb[0].mxu0 %v9555
  %v9557 = vpop.f32.mrb[0].mxu0
  %v9558 = vadd.f32 0.0, %v9557
  %v9559 = vpop.f32.mrb[0].mxu0
  %9560 = vdwg.mxu0
  %9561 = vmatprep.subr.mxu0 0.0
  %v9562 = vand.u32 %v9483, 4294901760
  %v9563 = vsub.f32 %v9483, %v9562
  %v9564 = vand.u32 %v9563, 4294901760
  %v9565 = vsub.f32 %v9563, %v9564
  %v9566 = vand.u32 %v9565, 4294901760
  %9567 = vmatpush1.xpose.msra.mxu0 %v9566
  %9568 = vmatprep.subr.mxu0 0.0
  %9569 = vmatpush1.xpose.msra.mxu0 0.0
  %9570 = vmatprep.subr.mxu0 0.0
  %9571 = vmatpush1.xpose.msra.mxu0 0.0
  %9572 = vmatprep.subr.mxu0 0.0
  %9573 = vmatpush1.xpose.msra.mxu0 0.0
  %9574 = vmatprep.subr.mxu0 0.0
  %9575 = vmatpush1.xpose.msra.mxu0 0.0
  %9576 = vmatprep.subr.mxu0 0.0
  %9577 = vmatpush1.xpose.msra.mxu0 0.0
  %9578 = vmatprep.subr.mxu0 0.0
  %9579 = vmatpush1.xpose.msra.mxu0 0.0
  %9580 = vmatprep.subr.mxu0 0.0
  %9581 = vmatpush1.xpose.msra.mxu0 0.0
  %9582 = vmatprep.subr.mxu0 0.0
  %9583 = vmatpush1.xpose.msra.mxu0 0.0
  %9584 = vmatprep.subr.mxu0 0.0
  %9585 = vmatpush1.xpose.msra.mxu0 0.0
  %9586 = vmatprep.subr.mxu0 0.0
  %9587 = vmatpush1.xpose.msra.mxu0 0.0
  %9588 = vmatprep.subr.mxu0 0.0
  %9589 = vmatpush1.xpose.msra.mxu0 0.0
  %9590 = vmatprep.subr.mxu0 0.0
  %9591 = vmatpush1.xpose.msra.mxu0 0.0
  %9592 = vmatprep.subr.mxu0 0.0
  %9593 = vmatpush1.xpose.msra.mxu0 0.0
  %9594 = vmatprep.subr.mxu0 0.0
  %9595 = vmatpush1.xpose.msra.mxu0 0.0
  %9596 = vmatprep.subr.mxu0 0.0
  %9597 = vmatpush1.xpose.msra.mxu0 0.0
  %9598 = vmatprep.subr.mxu0 0.0
  %9599 = vmatpush1.xpose.msra.mxu0 0.0
  %9600 = vmatprep.subr.mxu0 0.0
  %9601 = vmatpush1.xpose.msra.mxu0 0.0
  %9602 = vmatprep.subr.mxu0 0.0
  %9603 = vmatpush1.xpose.msra.mxu0 0.0
  %9604 = vmatprep.subr.mxu0 0.0
  %9605 = vmatpush1.xpose.msra.mxu0 0.0
  %9606 = vmatprep.subr.mxu0 0.0
  %9607 = vmatpush1.xpose.msra.mxu0 0.0
  %9608 = vmatprep.subr.mxu0 0.0
  %9609 = vmatpush1.xpose.msra.mxu0 0.0
  %9610 = vmatprep.subr.mxu0 0.0
  %9611 = vmatpush1.xpose.msra.mxu0 0.0
  %9612 = vmatprep.subr.mxu0 0.0
  %9613 = vmatpush1.xpose.msra.mxu0 0.0
  %9614 = vmatprep.subr.mxu0 0.0
  %9615 = vmatpush1.xpose.msra.mxu0 0.0
  %9616 = vmatprep.subr.mxu0 0.0
  %9617 = vmatpush1.xpose.msra.mxu0 0.0
  %9618 = vmatprep.subr.mxu0 0.0
  %9619 = vmatpush1.xpose.msra.mxu0 0.0
  %9620 = vmatprep.subr.mxu0 0.0
  %9621 = vmatpush1.xpose.msra.mxu0 0.0
  %9622 = vmatprep.subr.mxu0 0.0
  %9623 = vmatpush1.xpose.msra.mxu0 0.0
  %9624 = vmatprep.subr.mxu0 0.0
  %9625 = vmatpush1.xpose.msra.mxu0 0.0
  %9626 = vmatprep.subr.mxu0 0.0
  %9627 = vmatpush1.xpose.msra.mxu0 0.0
  %9628 = vmatprep.subr.mxu0 0.0
  %9629 = vmatpush1.xpose.msra.mxu0 0.0
  %9630 = vmatprep.mubr.f32.mxu0 0.0
  %v9631 = vand.u32 %v8995, 4294901760
  %9632 = vmatmul.mubr.f32.gmra.mrb[0].mxu0 %v9631
  %v9633 = vpop.f32.mrb[0].mxu0
  %v9634 = vadd.f32 %v9558, %v9633
  %v9635 = vpop.f32.mrb[0].mxu0
  %9636 = vdwg.mxu0
  %9637 = vmatprep.subr.mxu0 0.0
  %v9638 = vand.u32 %v9483, 4294901760
  %v9639 = vsub.f32 %v9483, %v9638
  %9640 = vmatpush1.xpose.msra.mxu0 %v9639
  %9641 = vmatprep.subr.mxu0 0.0
  %9642 = vmatpush1.xpose.msra.mxu0 0.0
  %9643 = vmatprep.subr.mxu0 0.0
  %9644 = vmatpush1.xpose.msra.mxu0 0.0
  %9645 = vmatprep.subr.mxu0 0.0
  %9646 = vmatpush1.xpose.msra.mxu0 0.0
  %9647 = vmatprep.subr.mxu0 0.0
  %9648 = vmatpush1.xpose.msra.mxu0 0.0
  %9649 = vmatprep.subr.mxu0 0.0
  %9650 = vmatpush1.xpose.msra.mxu0 0.0
  %9651 = vmatprep.subr.mxu0 0.0
  %9652 = vmatpush1.xpose.msra.mxu0 0.0
  %9653 = vmatprep.subr.mxu0 0.0
  %9654 = vmatpush1.xpose.msra.mxu0 0.0
  %9655 = vmatprep.subr.mxu0 0.0
  %9656 = vmatpush1.xpose.msra.mxu0 0.0
  %9657 = vmatprep.subr.mxu0 0.0
  %9658 = vmatpush1.xpose.msra.mxu0 0.0
  %9659 = vmatprep.subr.mxu0 0.0
  %9660 = vmatpush1.xpose.msra.mxu0 0.0
  %9661 = vmatprep.subr.mxu0 0.0
  %9662 = vmatpush1.xpose.msra.mxu0 0.0
  %9663 = vmatprep.subr.mxu0 0.0
  %9664 = vmatpush1.xpose.msra.mxu0 0.0
  %9665 = vmatprep.subr.mxu0 0.0
  %9666 = vmatpush1.xpose.msra.mxu0 0.0
  %9667 = vmatprep.subr.mxu0 0.0
  %9668 = vmatpush1.xpose.msra.mxu0 0.0
  %9669 = vmatprep.subr.mxu0 0.0
  %9670 = vmatpush1.xpose.msra.mxu0 0.0
  %9671 = vmatprep.subr.mxu0 0.0
  %9672 = vmatpush1.xpose.msra.mxu0 0.0
  %9673 = vmatprep.subr.mxu0 0.0
  %9674 = vmatpush1.xpose.msra.mxu0 0.0
  %9675 = vmatprep.subr.mxu0 0.0
  %9676 = vmatpush1.xpose.msra.mxu0 0.0
  %9677 = vmatprep.subr.mxu0 0.0
  %9678 = vmatpush1.xpose.msra.mxu0 0.0
  %9679 = vmatprep.subr.mxu0 0.0
  %9680 = vmatpush1.xpose.msra.mxu0 0.0
  %9681 = vmatprep.subr.mxu0 0.0
  %9682 = vmatpush1.xpose.msra.mxu0 0.0
  %9683 = vmatprep.subr.mxu0 0.0
  %9684 = vmatpush1.xpose.msra.mxu0 0.0
  %9685 = vmatprep.subr.mxu0 0.0
  %9686 = vmatpush1.xpose.msra.mxu0 0.0
  %9687 = vmatprep.subr.mxu0 0.0
  %9688 = vmatpush1.xpose.msra.mxu0 0.0
  %9689 = vmatprep.subr.mxu0 0.0
  %9690 = vmatpush1.xpose.msra.mxu0 0.0
  %9691 = vmatprep.subr.mxu0 0.0
  %9692 = vmatpush1.xpose.msra.mxu0 0.0
  %9693 = vmatprep.subr.mxu0 0.0
  %9694 = vmatpush1.xpose.msra.mxu0 0.0
  %9695 = vmatprep.subr.mxu0 0.0
  %9696 = vmatpush1.xpose.msra.mxu0 0.0
  %9697 = vmatprep.subr.mxu0 0.0
  %9698 = vmatpush1.xpose.msra.mxu0 0.0
  %9699 = vmatprep.subr.mxu0 0.0
  %9700 = vmatpush1.xpose.msra.mxu0 0.0
  %9701 = vmatprep.subr.mxu0 0.0
  %9702 = vmatpush1.xpose.msra.mxu0 0.0
  %9703 = vmatprep.mubr.f32.mxu0 0.0
  %v9704 = vand.u32 %v8995, 4294901760
  %v9705 = vsub.f32 %v8995, %v9704
  %9706 = vmatmul.mubr.f32.gmra.mrb[0].mxu0 %v9705
  %v9707 = vpop.f32.mrb[0].mxu0
  %v9708 = vadd.f32 %v9634, %v9707
  %v9709 = vpop.f32.mrb[0].mxu0
  %9710 = vdwg.mxu0
  %9711 = vmatprep.subr.mxu0 0.0
  %v9712 = vand.u32 %v9483, 4294901760
  %9713 = vmatpush1.xpose.msra.mxu0 %v9712
  %9714 = vmatprep.subr.mxu0 0.0
  %9715 = vmatpush1.xpose.msra.mxu0 0.0
  %9716 = vmatprep.subr.mxu0 0.0
  %9717 = vmatpush1.xpose.msra.mxu0 0.0
  %9718 = vmatprep.subr.mxu0 0.0
  %9719 = vmatpush1.xpose.msra.mxu0 0.0
  %9720 = vmatprep.subr.mxu0 0.0
  %9721 = vmatpush1.xpose.msra.mxu0 0.0
  %9722 = vmatprep.subr.mxu0 0.0
  %9723 = vmatpush1.xpose.msra.mxu0 0.0
  %9724 = vmatprep.subr.mxu0 0.0
  %9725 = vmatpush1.xpose.msra.mxu0 0.0
  %9726 = vmatprep.subr.mxu0 0.0
  %9727 = vmatpush1.xpose.msra.mxu0 0.0
  %9728 = vmatprep.subr.mxu0 0.0
  %9729 = vmatpush1.xpose.msra.mxu0 0.0
  %9730 = vmatprep.subr.mxu0 0.0
  %9731 = vmatpush1.xpose.msra.mxu0 0.0
  %9732 = vmatprep.subr.mxu0 0.0
  %9733 = vmatpush1.xpose.msra.mxu0 0.0
  %9734 = vmatprep.subr.mxu0 0.0
  %9735 = vmatpush1.xpose.msra.mxu0 0.0
  %9736 = vmatprep.subr.mxu0 0.0
  %9737 = vmatpush1.xpose.msra.mxu0 0.0
  %9738 = vmatprep.subr.mxu0 0.0
  %9739 = vmatpush1.xpose.msra.mxu0 0.0
  %9740 = vmatprep.subr.mxu0 0.0
  %9741 = vmatpush1.xpose.msra.mxu0 0.0
  %9742 = vmatprep.subr.mxu0 0.0
  %9743 = vmatpush1.xpose.msra.mxu0 0.0
  %9744 = vmatprep.subr.mxu0 0.0
  %9745 = vmatpush1.xpose.msra.mxu0 0.0
  %9746 = vmatprep.subr.mxu0 0.0
  %9747 = vmatpush1.xpose.msra.mxu0 0.0
  %9748 = vmatprep.subr.mxu0 0.0
  %9749 = vmatpush1.xpose.msra.mxu0 0.0
  %9750 = vmatprep.subr.mxu0 0.0
  %9751 = vmatpush1.xpose.msra.mxu0 0.0
  %9752 = vmatprep.subr.mxu0 0.0
  %9753 = vmatpush1.xpose.msra.mxu0 0.0
  %9754 = vmatprep.subr.mxu0 0.0
  %9755 = vmatpush1.xpose.msra.mxu0 0.0
  %9756 = vmatprep.subr.mxu0 0.0
  %9757 = vmatpush1.xpose.msra.mxu0 0.0
  %9758 = vmatprep.subr.mxu0 0.0
  %9759 = vmatpush1.xpose.msra.mxu0 0.0
  %9760 = vmatprep.subr.mxu0 0.0
  %9761 = vmatpush1.xpose.msra.mxu0 0.0
  %9762 = vmatprep.subr.mxu0 0.0
  %9763 = vmatpush1.xpose.msra.mxu0 0.0
  %9764 = vmatprep.subr.mxu0 0.0
  %9765 = vmatpush1.xpose.msra.mxu0 0.0
  %9766 = vmatprep.subr.mxu0 0.0
  %9767 = vmatpush1.xpose.msra.mxu0 0.0
  %9768 = vmatprep.subr.mxu0 0.0
  %9769 = vmatpush1.xpose.msra.mxu0 0.0
  %9770 = vmatprep.subr.mxu0 0.0
  %9771 = vmatpush1.xpose.msra.mxu0 0.0
  %9772 = vmatprep.subr.mxu0 0.0
  %9773 = vmatpush1.xpose.msra.mxu0 0.0
  %9774 = vmatprep.subr.mxu0 0.0
  %9775 = vmatpush1.xpose.msra.mxu0 0.0
  %9776 = vmatprep.mubr.f32.mxu0 0.0
  %v9777 = vand.u32 %v8995, 4294901760
  %v9778 = vsub.f32 %v8995, %v9777
  %v9779 = vand.u32 %v9778, 4294901760
  %9780 = vmatmul.mubr.f32.gmra.mrb[0].mxu0 %v9779
  %v9781 = vpop.f32.mrb[0].mxu0
  %v9782 = vadd.f32 %v9708, %v9781
  %v9783 = vpop.f32.mrb[0].mxu0
  %9784 = vdwg.mxu0
  %9785 = vmatprep.subr.mxu0 0.0
  %v9786 = vand.u32 %v9483, 4294901760
  %v9787 = vsub.f32 %v9483, %v9786
  %v9788 = vand.u32 %v9787, 4294901760
  %9789 = vmatpush1.xpose.msra.mxu0 %v9788
  %9790 = vmatprep.subr.mxu0 0.0
  %9791 = vmatpush1.xpose.msra.mxu0 0.0
  %9792 = vmatprep.subr.mxu0 0.0
  %9793 = vmatpush1.xpose.msra.mxu0 0.0
  %9794 = vmatprep.subr.mxu0 0.0
  %9795 = vmatpush1.xpose.msra.mxu0 0.0
  %9796 = vmatprep.subr.mxu0 0.0
  %9797 = vmatpush1.xpose.msra.mxu0 0.0
  %9798 = vmatprep.subr.mxu0 0.0
  %9799 = vmatpush1.xpose.msra.mxu0 0.0
  %9800 = vmatprep.subr.mxu0 0.0
  %9801 = vmatpush1.xpose.msra.mxu0 0.0
  %9802 = vmatprep.subr.mxu0 0.0
  %9803 = vmatpush1.xpose.msra.mxu0 0.0
  %9804 = vmatprep.subr.mxu0 0.0
  %9805 = vmatpush1.xpose.msra.mxu0 0.0
  %9806 = vmatprep.subr.mxu0 0.0
  %9807 = vmatpush1.xpose.msra.mxu0 0.0
  %9808 = vmatprep.subr.mxu0 0.0
  %9809 = vmatpush1.xpose.msra.mxu0 0.0
  %9810 = vmatprep.subr.mxu0 0.0
  %9811 = vmatpush1.xpose.msra.mxu0 0.0
  %9812 = vmatprep.subr.mxu0 0.0
  %9813 = vmatpush1.xpose.msra.mxu0 0.0
  %9814 = vmatprep.subr.mxu0 0.0
  %9815 = vmatpush1.xpose.msra.mxu0 0.0
  %9816 = vmatprep.subr.mxu0 0.0
  %9817 = vmatpush1.xpose.msra.mxu0 0.0
  %9818 = vmatprep.subr.mxu0 0.0
  %9819 = vmatpush1.xpose.msra.mxu0 0.0
  %9820 = vmatprep.subr.mxu0 0.0
  %9821 = vmatpush1.xpose.msra.mxu0 0.0
  %9822 = vmatprep.subr.mxu0 0.0
  %9823 = vmatpush1.xpose.msra.mxu0 0.0
  %9824 = vmatprep.subr.mxu0 0.0
  %9825 = vmatpush1.xpose.msra.mxu0 0.0
  %9826 = vmatprep.subr.mxu0 0.0
  %9827 = vmatpush1.xpose.msra.mxu0 0.0
  %9828 = vmatprep.subr.mxu0 0.0
  %9829 = vmatpush1.xpose.msra.mxu0 0.0
  %9830 = vmatprep.subr.mxu0 0.0
  %9831 = vmatpush1.xpose.msra.mxu0 0.0
  %9832 = vmatprep.subr.mxu0 0.0
  %9833 = vmatpush1.xpose.msra.mxu0 0.0
  %9834 = vmatprep.subr.mxu0 0.0
  %9835 = vmatpush1.xpose.msra.mxu0 0.0
  %9836 = vmatprep.subr.mxu0 0.0
  %9837 = vmatpush1.xpose.msra.mxu0 0.0
  %9838 = vmatprep.subr.mxu0 0.0
  %9839 = vmatpush1.xpose.msra.mxu0 0.0
  %9840 = vmatprep.subr.mxu0 0.0
  %9841 = vmatpush1.xpose.msra.mxu0 0.0
  %9842 = vmatprep.subr.mxu0 0.0
  %9843 = vmatpush1.xpose.msra.mxu0 0.0
  %9844 = vmatprep.subr.mxu0 0.0
  %9845 = vmatpush1.xpose.msra.mxu0 0.0
  %9846 = vmatprep.subr.mxu0 0.0
  %9847 = vmatpush1.xpose.msra.mxu0 0.0
  %9848 = vmatprep.subr.mxu0 0.0
  %9849 = vmatpush1.xpose.msra.mxu0 0.0
  %9850 = vmatprep.subr.mxu0 0.0
  %9851 = vmatpush1.xpose.msra.mxu0 0.0
  %9852 = vmatprep.mubr.f32.mxu0 0.0
  %v9853 = vand.u32 %v8995, 4294901760
  %9854 = vmatmul.mubr.f32.gmra.mrb[0].mxu0 %v9853
  %v9855 = vpop.f32.mrb[0].mxu0
  %v9856 = vadd.f32 %v9782, %v9855
  %v9857 = vpop.f32.mrb[0].mxu0
  %9858 = vdwg.mxu0
  %9859 = vmatprep.subr.mxu0 0.0
  %v9860 = vand.u32 %v9483, 4294901760
  %9861 = vmatpush1.xpose.msra.mxu0 %v9860
  %9862 = vmatprep.subr.mxu0 0.0
  %9863 = vmatpush1.xpose.msra.mxu0 0.0
  %9864 = vmatprep.subr.mxu0 0.0
  %9865 = vmatpush1.xpose.msra.mxu0 0.0
  %9866 = vmatprep.subr.mxu0 0.0
  %9867 = vmatpush1.xpose.msra.mxu0 0.0
  %9868 = vmatprep.subr.mxu0 0.0
  %9869 = vmatpush1.xpose.msra.mxu0 0.0
  %9870 = vmatprep.subr.mxu0 0.0
  %9871 = vmatpush1.xpose.msra.mxu0 0.0
  %9872 = vmatprep.subr.mxu0 0.0
  %9873 = vmatpush1.xpose.msra.mxu0 0.0
  %9874 = vmatprep.subr.mxu0 0.0
  %9875 = vmatpush1.xpose.msra.mxu0 0.0
  %9876 = vmatprep.subr.mxu0 0.0
  %9877 = vmatpush1.xpose.msra.mxu0 0.0
  %9878 = vmatprep.subr.mxu0 0.0
  %9879 = vmatpush1.xpose.msra.mxu0 0.0
  %9880 = vmatprep.subr.mxu0 0.0
  %9881 = vmatpush1.xpose.msra.mxu0 0.0
  %9882 = vmatprep.subr.mxu0 0.0
  %9883 = vmatpush1.xpose.msra.mxu0 0.0
  %9884 = vmatprep.subr.mxu0 0.0
  %9885 = vmatpush1.xpose.msra.mxu0 0.0
  %9886 = vmatprep.subr.mxu0 0.0
  %9887 = vmatpush1.xpose.msra.mxu0 0.0
  %9888 = vmatprep.subr.mxu0 0.0
  %9889 = vmatpush1.xpose.msra.mxu0 0.0
  %9890 = vmatprep.subr.mxu0 0.0
  %9891 = vmatpush1.xpose.msra.mxu0 0.0
  %9892 = vmatprep.subr.mxu0 0.0
  %9893 = vmatpush1.xpose.msra.mxu0 0.0
  %9894 = vmatprep.subr.mxu0 0.0
  %9895 = vmatpush1.xpose.msra.mxu0 0.0
  %9896 = vmatprep.subr.mxu0 0.0
  %9897 = vmatpush1.xpose.msra.mxu0 0.0
  %9898 = vmatprep.subr.mxu0 0.0
  %9899 = vmatpush1.xpose.msra.mxu0 0.0
  %9900 = vmatprep.subr.mxu0 0.0
  %9901 = vmatpush1.xpose.msra.mxu0 0.0
  %9902 = vmatprep.subr.mxu0 0.0
  %9903 = vmatpush1.xpose.msra.mxu0 0.0
  %9904 = vmatprep.subr.mxu0 0.0
  %9905 = vmatpush1.xpose.msra.mxu0 0.0
  %9906 = vmatprep.subr.mxu0 0.0
  %9907 = vmatpush1.xpose.msra.mxu0 0.0
  %9908 = vmatprep.subr.mxu0 0.0
  %9909 = vmatpush1.xpose.msra.mxu0 0.0
  %9910 = vmatprep.subr.mxu0 0.0
  %9911 = vmatpush1.xpose.msra.mxu0 0.0
  %9912 = vmatprep.subr.mxu0 0.0
  %9913 = vmatpush1.xpose.msra.mxu0 0.0
  %9914 = vmatprep.subr.mxu0 0.0
  %9915 = vmatpush1.xpose.msra.mxu0 0.0
  %9916 = vmatprep.subr.mxu0 0.0
  %9917 = vmatpush1.xpose.msra.mxu0 0.0
  %9918 = vmatprep.subr.mxu0 0.0
  %9919 = vmatpush1.xpose.msra.mxu0 0.0
  %9920 = vmatprep.subr.mxu0 0.0
  %9921 = vmatpush1.xpose.msra.mxu0 0.0
  %9922 = vmatprep.subr.mxu0 0.0
  %9923 = vmatpush1.xpose.msra.mxu0 0.0
  %9924 = vmatprep.mubr.f32.mxu0 0.0
  %v9925 = vand.u32 %v8995, 4294901760
  %9926 = vmatmul.mubr.f32.gmra.mrb[0].mxu0 %v9925
  %v9927 = vpop.f32.mrb[0].mxu0
  %v9928 = vadd.f32 %v9856, %v9927
  %v9929 = vpop.f32.mrb[0].mxu0
  %9930 = vdwg.mxu0
  %vm9931 = vcmask 64512
  %v9932 = vsel %vm9931, %v9928, -inf
  %9933 = vmax.xlane.f32.xlu0 %v9932
  %v9934 = vpop.xlane.xlu0 %9933
  %v9935 = vsub.f32 %v9928, %v9934
  %v9936 = vmul.f32 %v9935, 1.442695
  %v9937 = vpow.pop %v9936
  %v9938 = vsel %vm9931, %v9937, 0.0
  %9939 = vadd.xlane.f32.xlu0 %v9938
  %v9940 = vpop.xlane.xlu0 %9939
  %v9941 = vrcp.pop %v9940
  %v9942 = vmul.f32 %v9937, %v9941
  %9944 = vrot.lane.b32.xlu0 %v8984, 96
  %v9945 = vpop.permute.xlu0 %9944
  %v9948 = vsel %vm9931, %v9942, 0
  %9950 = vmatprep.subr.mxu0 0.0
  %v9951 = vand.u32 %v9945, 4294901760
  %9952 = vmatpush1.msra.mxu0 %v9951
  %9953 = vmatprep.subr.mxu0 0.0
  %9954 = vmatpush1.msra.mxu0 0.0
  %9955 = vmatprep.subr.mxu0 0.0
  %9956 = vmatpush1.msra.mxu0 0.0
  %9957 = vmatprep.subr.mxu0 0.0
  %9958 = vmatpush1.msra.mxu0 0.0
  %9959 = vmatprep.subr.mxu0 0.0
  %9960 = vmatpush1.msra.mxu0 0.0
  %9961 = vmatprep.subr.mxu0 0.0
  %9962 = vmatpush1.msra.mxu0 0.0
  %9963 = vmatprep.subr.mxu0 0.0
  %9964 = vmatpush1.msra.mxu0 0.0
  %9965 = vmatprep.subr.mxu0 0.0
  %9966 = vmatpush1.msra.mxu0 0.0
  %9967 = vmatprep.subr.mxu0 0.0
  %9968 = vmatpush1.msra.mxu0 0.0
  %9969 = vmatprep.subr.mxu0 0.0
  %9970 = vmatpush1.msra.mxu0 0.0
  %9971 = vmatprep.subr.mxu0 0.0
  %9972 = vmatpush1.msra.mxu0 0.0
  %9973 = vmatprep.subr.mxu0 0.0
  %9974 = vmatpush1.msra.mxu0 0.0
  %9975 = vmatprep.subr.mxu0 0.0
  %9976 = vmatpush1.msra.mxu0 0.0
  %9977 = vmatprep.subr.mxu0 0.0
  %9978 = vmatpush1.msra.mxu0 0.0
  %9979 = vmatprep.subr.mxu0 0.0
  %9980 = vmatpush1.msra.mxu0 0.0
  %9981 = vmatprep.subr.mxu0 0.0
  %9982 = vmatpush1.msra.mxu0 0.0
  %9983 = vmatprep.subr.mxu0 0.0
  %9984 = vmatpush1.msra.mxu0 0.0
  %9985 = vmatprep.subr.mxu0 0.0
  %9986 = vmatpush1.msra.mxu0 0.0
  %9987 = vmatprep.subr.mxu0 0.0
  %9988 = vmatpush1.msra.mxu0 0.0
  %9989 = vmatprep.subr.mxu0 0.0
  %9990 = vmatpush1.msra.mxu0 0.0
  %9991 = vmatprep.subr.mxu0 0.0
  %9992 = vmatpush1.msra.mxu0 0.0
  %9993 = vmatprep.subr.mxu0 0.0
  %9994 = vmatpush1.msra.mxu0 0.0
  %9995 = vmatprep.subr.mxu0 0.0
  %9996 = vmatpush1.msra.mxu0 0.0
  %9997 = vmatprep.subr.mxu0 0.0
  %9998 = vmatpush1.msra.mxu0 0.0
  %9999 = vmatprep.subr.mxu0 0.0
  %10000 = vmatpush1.msra.mxu0 0.0
  %10001 = vmatprep.subr.mxu0 0.0
  %10002 = vmatpush1.msra.mxu0 0.0
  %10003 = vmatprep.subr.mxu0 0.0
  %10004 = vmatpush1.msra.mxu0 0.0
  %10005 = vmatprep.subr.mxu0 0.0
  %10006 = vmatpush1.msra.mxu0 0.0
  %10007 = vmatprep.subr.mxu0 0.0
  %10008 = vmatpush1.msra.mxu0 0.0
  %10009 = vmatprep.subr.mxu0 0.0
  %10010 = vmatpush1.msra.mxu0 0.0
  %10011 = vmatprep.subr.mxu0 0.0
  %10012 = vmatpush1.msra.mxu0 0.0
  %10013 = vmatprep.subr.mxu0 0.0
  %10014 = vmatpush1.msra.mxu0 0.0
  %10015 = vmatprep.mubr.f32.mxu0 0.0
  %v10016 = vand.u32 %v9948, 4294901760
  %v10017 = vsub.f32 %v9948, %v10016
  %v10018 = vand.u32 %v10017, 4294901760
  %v10019 = vsub.f32 %v10017, %v10018
  %v10020 = vand.u32 %v10019, 4294901760
  %10021 = vmatmul.mubr.f32.gmra.mrb[0].mxu0 %v10020
  %v10022 = vpop.f32.mrb[0].mxu0
  %v10023 = vadd.f32 0.0, %v10022
  %v10024 = vpop.f32.mrb[0].mxu0
  %10025 = vdwg.mxu0
  %10026 = vmatprep.subr.mxu0 0.0
  %v10027 = vand.u32 %v9945, 4294901760
  %v10028 = vsub.f32 %v9945, %v10027
  %v10029 = vand.u32 %v10028, 4294901760
  %v10030 = vsub.f32 %v10028, %v10029
  %v10031 = vand.u32 %v10030, 4294901760
  %10032 = vmatpush1.msra.mxu0 %v10031
  %10033 = vmatprep.subr.mxu0 0.0
  %10034 = vmatpush1.msra.mxu0 0.0
  %10035 = vmatprep.subr.mxu0 0.0
  %10036 = vmatpush1.msra.mxu0 0.0
  %10037 = vmatprep.subr.mxu0 0.0
  %10038 = vmatpush1.msra.mxu0 0.0
  %10039 = vmatprep.subr.mxu0 0.0
  %10040 = vmatpush1.msra.mxu0 0.0
  %10041 = vmatprep.subr.mxu0 0.0
  %10042 = vmatpush1.msra.mxu0 0.0
  %10043 = vmatprep.subr.mxu0 0.0
  %10044 = vmatpush1.msra.mxu0 0.0
  %10045 = vmatprep.subr.mxu0 0.0
  %10046 = vmatpush1.msra.mxu0 0.0
  %10047 = vmatprep.subr.mxu0 0.0
  %10048 = vmatpush1.msra.mxu0 0.0
  %10049 = vmatprep.subr.mxu0 0.0
  %10050 = vmatpush1.msra.mxu0 0.0
  %10051 = vmatprep.subr.mxu0 0.0
  %10052 = vmatpush1.msra.mxu0 0.0
  %10053 = vmatprep.subr.mxu0 0.0
  %10054 = vmatpush1.msra.mxu0 0.0
  %10055 = vmatprep.subr.mxu0 0.0
  %10056 = vmatpush1.msra.mxu0 0.0
  %10057 = vmatprep.subr.mxu0 0.0
  %10058 = vmatpush1.msra.mxu0 0.0
  %10059 = vmatprep.subr.mxu0 0.0
  %10060 = vmatpush1.msra.mxu0 0.0
  %10061 = vmatprep.subr.mxu0 0.0
  %10062 = vmatpush1.msra.mxu0 0.0
  %10063 = vmatprep.subr.mxu0 0.0
  %10064 = vmatpush1.msra.mxu0 0.0
  %10065 = vmatprep.subr.mxu0 0.0
  %10066 = vmatpush1.msra.mxu0 0.0
  %10067 = vmatprep.subr.mxu0 0.0
  %10068 = vmatpush1.msra.mxu0 0.0
  %10069 = vmatprep.subr.mxu0 0.0
  %10070 = vmatpush1.msra.mxu0 0.0
  %10071 = vmatprep.subr.mxu0 0.0
  %10072 = vmatpush1.msra.mxu0 0.0
  %10073 = vmatprep.subr.mxu0 0.0
  %10074 = vmatpush1.msra.mxu0 0.0
  %10075 = vmatprep.subr.mxu0 0.0
  %10076 = vmatpush1.msra.mxu0 0.0
  %10077 = vmatprep.subr.mxu0 0.0
  %10078 = vmatpush1.msra.mxu0 0.0
  %10079 = vmatprep.subr.mxu0 0.0
  %10080 = vmatpush1.msra.mxu0 0.0
  %10081 = vmatprep.subr.mxu0 0.0
  %10082 = vmatpush1.msra.mxu0 0.0
  %10083 = vmatprep.subr.mxu0 0.0
  %10084 = vmatpush1.msra.mxu0 0.0
  %10085 = vmatprep.subr.mxu0 0.0
  %10086 = vmatpush1.msra.mxu0 0.0
  %10087 = vmatprep.subr.mxu0 0.0
  %10088 = vmatpush1.msra.mxu0 0.0
  %10089 = vmatprep.subr.mxu0 0.0
  %10090 = vmatpush1.msra.mxu0 0.0
  %10091 = vmatprep.subr.mxu0 0.0
  %10092 = vmatpush1.msra.mxu0 0.0
  %10093 = vmatprep.subr.mxu0 0.0
  %10094 = vmatpush1.msra.mxu0 0.0
  %10095 = vmatprep.mubr.f32.mxu0 0.0
  %v10096 = vand.u32 %v9948, 4294901760
  %10097 = vmatmul.mubr.f32.gmra.mrb[0].mxu0 %v10096
  %v10098 = vpop.f32.mrb[0].mxu0
  %v10099 = vadd.f32 %v10023, %v10098
  %v10100 = vpop.f32.mrb[0].mxu0
  %10101 = vdwg.mxu0
  %10102 = vmatprep.subr.mxu0 0.0
  %v10103 = vand.u32 %v9945, 4294901760
  %v10104 = vsub.f32 %v9945, %v10103
  %10105 = vmatpush1.msra.mxu0 %v10104
  %10106 = vmatprep.subr.mxu0 0.0
  %10107 = vmatpush1.msra.mxu0 0.0
  %10108 = vmatprep.subr.mxu0 0.0
  %10109 = vmatpush1.msra.mxu0 0.0
  %10110 = vmatprep.subr.mxu0 0.0
  %10111 = vmatpush1.msra.mxu0 0.0
  %10112 = vmatprep.subr.mxu0 0.0
  %10113 = vmatpush1.msra.mxu0 0.0
  %10114 = vmatprep.subr.mxu0 0.0
  %10115 = vmatpush1.msra.mxu0 0.0
  %10116 = vmatprep.subr.mxu0 0.0
  %10117 = vmatpush1.msra.mxu0 0.0
  %10118 = vmatprep.subr.mxu0 0.0
  %10119 = vmatpush1.msra.mxu0 0.0
  %10120 = vmatprep.subr.mxu0 0.0
  %10121 = vmatpush1.msra.mxu0 0.0
  %10122 = vmatprep.subr.mxu0 0.0
  %10123 = vmatpush1.msra.mxu0 0.0
  %10124 = vmatprep.subr.mxu0 0.0
  %10125 = vmatpush1.msra.mxu0 0.0
  %10126 = vmatprep.subr.mxu0 0.0
  %10127 = vmatpush1.msra.mxu0 0.0
  %10128 = vmatprep.subr.mxu0 0.0
  %10129 = vmatpush1.msra.mxu0 0.0
  %10130 = vmatprep.subr.mxu0 0.0
  %10131 = vmatpush1.msra.mxu0 0.0
  %10132 = vmatprep.subr.mxu0 0.0
  %10133 = vmatpush1.msra.mxu0 0.0
  %10134 = vmatprep.subr.mxu0 0.0
  %10135 = vmatpush1.msra.mxu0 0.0
  %10136 = vmatprep.subr.mxu0 0.0
  %10137 = vmatpush1.msra.mxu0 0.0
  %10138 = vmatprep.subr.mxu0 0.0
  %10139 = vmatpush1.msra.mxu0 0.0
  %10140 = vmatprep.subr.mxu0 0.0
  %10141 = vmatpush1.msra.mxu0 0.0
  %10142 = vmatprep.subr.mxu0 0.0
  %10143 = vmatpush1.msra.mxu0 0.0
  %10144 = vmatprep.subr.mxu0 0.0
  %10145 = vmatpush1.msra.mxu0 0.0
  %10146 = vmatprep.subr.mxu0 0.0
  %10147 = vmatpush1.msra.mxu0 0.0
  %10148 = vmatprep.subr.mxu0 0.0
  %10149 = vmatpush1.msra.mxu0 0.0
  %10150 = vmatprep.subr.mxu0 0.0
  %10151 = vmatpush1.msra.mxu0 0.0
  %10152 = vmatprep.subr.mxu0 0.0
  %10153 = vmatpush1.msra.mxu0 0.0
  %10154 = vmatprep.subr.mxu0 0.0
  %10155 = vmatpush1.msra.mxu0 0.0
  %10156 = vmatprep.subr.mxu0 0.0
  %10157 = vmatpush1.msra.mxu0 0.0
  %10158 = vmatprep.subr.mxu0 0.0
  %10159 = vmatpush1.msra.mxu0 0.0
  %10160 = vmatprep.subr.mxu0 0.0
  %10161 = vmatpush1.msra.mxu0 0.0
  %10162 = vmatprep.subr.mxu0 0.0
  %10163 = vmatpush1.msra.mxu0 0.0
  %10164 = vmatprep.subr.mxu0 0.0
  %10165 = vmatpush1.msra.mxu0 0.0
  %10166 = vmatprep.subr.mxu0 0.0
  %10167 = vmatpush1.msra.mxu0 0.0
  %10168 = vmatprep.mubr.f32.mxu0 0.0
  %v10169 = vand.u32 %v9948, 4294901760
  %v10170 = vsub.f32 %v9948, %v10169
  %10171 = vmatmul.mubr.f32.gmra.mrb[0].mxu0 %v10170
  %v10172 = vpop.f32.mrb[0].mxu0
  %v10173 = vadd.f32 %v10099, %v10172
  %v10174 = vpop.f32.mrb[0].mxu0
  %10175 = vdwg.mxu0
  %10176 = vmatprep.subr.mxu0 0.0
  %v10177 = vand.u32 %v9945, 4294901760
  %10178 = vmatpush1.msra.mxu0 %v10177
  %10179 = vmatprep.subr.mxu0 0.0
  %10180 = vmatpush1.msra.mxu0 0.0
  %10181 = vmatprep.subr.mxu0 0.0
  %10182 = vmatpush1.msra.mxu0 0.0
  %10183 = vmatprep.subr.mxu0 0.0
  %10184 = vmatpush1.msra.mxu0 0.0
  %10185 = vmatprep.subr.mxu0 0.0
  %10186 = vmatpush1.msra.mxu0 0.0
  %10187 = vmatprep.subr.mxu0 0.0
  %10188 = vmatpush1.msra.mxu0 0.0
  %10189 = vmatprep.subr.mxu0 0.0
  %10190 = vmatpush1.msra.mxu0 0.0
  %10191 = vmatprep.subr.mxu0 0.0
  %10192 = vmatpush1.msra.mxu0 0.0
  %10193 = vmatprep.subr.mxu0 0.0
  %10194 = vmatpush1.msra.mxu0 0.0
  %10195 = vmatprep.subr.mxu0 0.0
  %10196 = vmatpush1.msra.mxu0 0.0
  %10197 = vmatprep.subr.mxu0 0.0
  %10198 = vmatpush1.msra.mxu0 0.0
  %10199 = vmatprep.subr.mxu0 0.0
  %10200 = vmatpush1.msra.mxu0 0.0
  %10201 = vmatprep.subr.mxu0 0.0
  %10202 = vmatpush1.msra.mxu0 0.0
  %10203 = vmatprep.subr.mxu0 0.0
  %10204 = vmatpush1.msra.mxu0 0.0
  %10205 = vmatprep.subr.mxu0 0.0
  %10206 = vmatpush1.msra.mxu0 0.0
  %10207 = vmatprep.subr.mxu0 0.0
  %10208 = vmatpush1.msra.mxu0 0.0
  %10209 = vmatprep.subr.mxu0 0.0
  %10210 = vmatpush1.msra.mxu0 0.0
  %10211 = vmatprep.subr.mxu0 0.0
  %10212 = vmatpush1.msra.mxu0 0.0
  %10213 = vmatprep.subr.mxu0 0.0
  %10214 = vmatpush1.msra.mxu0 0.0
  %10215 = vmatprep.subr.mxu0 0.0
  %10216 = vmatpush1.msra.mxu0 0.0
  %10217 = vmatprep.subr.mxu0 0.0
  %10218 = vmatpush1.msra.mxu0 0.0
  %10219 = vmatprep.subr.mxu0 0.0
  %10220 = vmatpush1.msra.mxu0 0.0
  %10221 = vmatprep.subr.mxu0 0.0
  %10222 = vmatpush1.msra.mxu0 0.0
  %10223 = vmatprep.subr.mxu0 0.0
  %10224 = vmatpush1.msra.mxu0 0.0
  %10225 = vmatprep.subr.mxu0 0.0
  %10226 = vmatpush1.msra.mxu0 0.0
  %10227 = vmatprep.subr.mxu0 0.0
  %10228 = vmatpush1.msra.mxu0 0.0
  %10229 = vmatprep.subr.mxu0 0.0
  %10230 = vmatpush1.msra.mxu0 0.0
  %10231 = vmatprep.subr.mxu0 0.0
  %10232 = vmatpush1.msra.mxu0 0.0
  %10233 = vmatprep.subr.mxu0 0.0
  %10234 = vmatpush1.msra.mxu0 0.0
  %10235 = vmatprep.subr.mxu0 0.0
  %10236 = vmatpush1.msra.mxu0 0.0
  %10237 = vmatprep.subr.mxu0 0.0
  %10238 = vmatpush1.msra.mxu0 0.0
  %10239 = vmatprep.subr.mxu0 0.0
  %10240 = vmatpush1.msra.mxu0 0.0
  %10241 = vmatprep.mubr.f32.mxu0 0.0
  %v10242 = vand.u32 %v9948, 4294901760
  %v10243 = vsub.f32 %v9948, %v10242
  %v10244 = vand.u32 %v10243, 4294901760
  %10245 = vmatmul.mubr.f32.gmra.mrb[0].mxu0 %v10244
  %v10246 = vpop.f32.mrb[0].mxu0
  %v10247 = vadd.f32 %v10173, %v10246
  %v10248 = vpop.f32.mrb[0].mxu0
  %10249 = vdwg.mxu0
  %10250 = vmatprep.subr.mxu0 0.0
  %v10251 = vand.u32 %v9945, 4294901760
  %v10252 = vsub.f32 %v9945, %v10251
  %v10253 = vand.u32 %v10252, 4294901760
  %10254 = vmatpush1.msra.mxu0 %v10253
  %10255 = vmatprep.subr.mxu0 0.0
  %10256 = vmatpush1.msra.mxu0 0.0
  %10257 = vmatprep.subr.mxu0 0.0
  %10258 = vmatpush1.msra.mxu0 0.0
  %10259 = vmatprep.subr.mxu0 0.0
  %10260 = vmatpush1.msra.mxu0 0.0
  %10261 = vmatprep.subr.mxu0 0.0
  %10262 = vmatpush1.msra.mxu0 0.0
  %10263 = vmatprep.subr.mxu0 0.0
  %10264 = vmatpush1.msra.mxu0 0.0
  %10265 = vmatprep.subr.mxu0 0.0
  %10266 = vmatpush1.msra.mxu0 0.0
  %10267 = vmatprep.subr.mxu0 0.0
  %10268 = vmatpush1.msra.mxu0 0.0
  %10269 = vmatprep.subr.mxu0 0.0
  %10270 = vmatpush1.msra.mxu0 0.0
  %10271 = vmatprep.subr.mxu0 0.0
  %10272 = vmatpush1.msra.mxu0 0.0
  %10273 = vmatprep.subr.mxu0 0.0
  %10274 = vmatpush1.msra.mxu0 0.0
  %10275 = vmatprep.subr.mxu0 0.0
  %10276 = vmatpush1.msra.mxu0 0.0
  %10277 = vmatprep.subr.mxu0 0.0
  %10278 = vmatpush1.msra.mxu0 0.0
  %10279 = vmatprep.subr.mxu0 0.0
  %10280 = vmatpush1.msra.mxu0 0.0
  %10281 = vmatprep.subr.mxu0 0.0
  %10282 = vmatpush1.msra.mxu0 0.0
  %10283 = vmatprep.subr.mxu0 0.0
  %10284 = vmatpush1.msra.mxu0 0.0
  %10285 = vmatprep.subr.mxu0 0.0
  %10286 = vmatpush1.msra.mxu0 0.0
  %10287 = vmatprep.subr.mxu0 0.0
  %10288 = vmatpush1.msra.mxu0 0.0
  %10289 = vmatprep.subr.mxu0 0.0
  %10290 = vmatpush1.msra.mxu0 0.0
  %10291 = vmatprep.subr.mxu0 0.0
  %10292 = vmatpush1.msra.mxu0 0.0
  %10293 = vmatprep.subr.mxu0 0.0
  %10294 = vmatpush1.msra.mxu0 0.0
  %10295 = vmatprep.subr.mxu0 0.0
  %10296 = vmatpush1.msra.mxu0 0.0
  %10297 = vmatprep.subr.mxu0 0.0
  %10298 = vmatpush1.msra.mxu0 0.0
  %10299 = vmatprep.subr.mxu0 0.0
  %10300 = vmatpush1.msra.mxu0 0.0
  %10301 = vmatprep.subr.mxu0 0.0
  %10302 = vmatpush1.msra.mxu0 0.0
  %10303 = vmatprep.subr.mxu0 0.0
  %10304 = vmatpush1.msra.mxu0 0.0
  %10305 = vmatprep.subr.mxu0 0.0
  %10306 = vmatpush1.msra.mxu0 0.0
  %10307 = vmatprep.subr.mxu0 0.0
  %10308 = vmatpush1.msra.mxu0 0.0
  %10309 = vmatprep.subr.mxu0 0.0
  %10310 = vmatpush1.msra.mxu0 0.0
  %10311 = vmatprep.subr.mxu0 0.0
  %10312 = vmatpush1.msra.mxu0 0.0
  %10313 = vmatprep.subr.mxu0 0.0
  %10314 = vmatpush1.msra.mxu0 0.0
  %10315 = vmatprep.subr.mxu0 0.0
  %10316 = vmatpush1.msra.mxu0 0.0
  %10317 = vmatprep.mubr.f32.mxu0 0.0
  %v10318 = vand.u32 %v9948, 4294901760
  %10319 = vmatmul.mubr.f32.gmra.mrb[0].mxu0 %v10318
  %v10320 = vpop.f32.mrb[0].mxu0
  %v10321 = vadd.f32 %v10247, %v10320
  %v10322 = vpop.f32.mrb[0].mxu0
  %10323 = vdwg.mxu0
  %10324 = vmatprep.subr.mxu0 0.0
  %v10325 = vand.u32 %v9945, 4294901760
  %10326 = vmatpush1.msra.mxu0 %v10325
  %10327 = vmatprep.subr.mxu0 0.0
  %10328 = vmatpush1.msra.mxu0 0.0
  %10329 = vmatprep.subr.mxu0 0.0
  %10330 = vmatpush1.msra.mxu0 0.0
  %10331 = vmatprep.subr.mxu0 0.0
  %10332 = vmatpush1.msra.mxu0 0.0
  %10333 = vmatprep.subr.mxu0 0.0
  %10334 = vmatpush1.msra.mxu0 0.0
  %10335 = vmatprep.subr.mxu0 0.0
  %10336 = vmatpush1.msra.mxu0 0.0
  %10337 = vmatprep.subr.mxu0 0.0
  %10338 = vmatpush1.msra.mxu0 0.0
  %10339 = vmatprep.subr.mxu0 0.0
  %10340 = vmatpush1.msra.mxu0 0.0
  %10341 = vmatprep.subr.mxu0 0.0
  %10342 = vmatpush1.msra.mxu0 0.0
  %10343 = vmatprep.subr.mxu0 0.0
  %10344 = vmatpush1.msra.mxu0 0.0
  %10345 = vmatprep.subr.mxu0 0.0
  %10346 = vmatpush1.msra.mxu0 0.0
  %10347 = vmatprep.subr.mxu0 0.0
  %10348 = vmatpush1.msra.mxu0 0.0
  %10349 = vmatprep.subr.mxu0 0.0
  %10350 = vmatpush1.msra.mxu0 0.0
  %10351 = vmatprep.subr.mxu0 0.0
  %10352 = vmatpush1.msra.mxu0 0.0
  %10353 = vmatprep.subr.mxu0 0.0
  %10354 = vmatpush1.msra.mxu0 0.0
  %10355 = vmatprep.subr.mxu0 0.0
  %10356 = vmatpush1.msra.mxu0 0.0
  %10357 = vmatprep.subr.mxu0 0.0
  %10358 = vmatpush1.msra.mxu0 0.0
  %10359 = vmatprep.subr.mxu0 0.0
  %10360 = vmatpush1.msra.mxu0 0.0
  %10361 = vmatprep.subr.mxu0 0.0
  %10362 = vmatpush1.msra.mxu0 0.0
  %10363 = vmatprep.subr.mxu0 0.0
  %10364 = vmatpush1.msra.mxu0 0.0
  %10365 = vmatprep.subr.mxu0 0.0
  %10366 = vmatpush1.msra.mxu0 0.0
  %10367 = vmatprep.subr.mxu0 0.0
  %10368 = vmatpush1.msra.mxu0 0.0
  %10369 = vmatprep.subr.mxu0 0.0
  %10370 = vmatpush1.msra.mxu0 0.0
  %10371 = vmatprep.subr.mxu0 0.0
  %10372 = vmatpush1.msra.mxu0 0.0
  %10373 = vmatprep.subr.mxu0 0.0
  %10374 = vmatpush1.msra.mxu0 0.0
  %10375 = vmatprep.subr.mxu0 0.0
  %10376 = vmatpush1.msra.mxu0 0.0
  %10377 = vmatprep.subr.mxu0 0.0
  %10378 = vmatpush1.msra.mxu0 0.0
  %10379 = vmatprep.subr.mxu0 0.0
  %10380 = vmatpush1.msra.mxu0 0.0
  %10381 = vmatprep.subr.mxu0 0.0
  %10382 = vmatpush1.msra.mxu0 0.0
  %10383 = vmatprep.subr.mxu0 0.0
  %10384 = vmatpush1.msra.mxu0 0.0
  %10385 = vmatprep.subr.mxu0 0.0
  %10386 = vmatpush1.msra.mxu0 0.0
  %10387 = vmatprep.subr.mxu0 0.0
  %10388 = vmatpush1.msra.mxu0 0.0
  %10389 = vmatprep.mubr.f32.mxu0 0.0
  %v10390 = vand.u32 %v9948, 4294901760
  %10391 = vmatmul.mubr.f32.gmra.mrb[0].mxu0 %v10390
  %v10392 = vpop.f32.mrb[0].mxu0
  %v10393 = vadd.f32 %v10321, %v10392
  %v10394 = vpop.f32.mrb[0].mxu0
  %10395 = vdwg.mxu0
  %10397 = vrot.lane.b32.xlu0 %v10393, 48
  %v10398 = vpop.permute.xlu0 %10397
  %v10400 = vadd.f32 %v9479, %v10398
  %v10401 = vlaneseq
  %v10402 = vshrl.u32 %v10401, 7
  %v10403 = vsub.s32 0, %v10402
  %v10404 = vrot.slane %v25, %v10403
  %10406 = vrot.lane.b32.xlu0 %v10404, 48
  %v10407 = vpop.permute.xlu0 %10406
  %v10409 = vadd.f32 %v10400, %v10407
  %10411 = vrot.lane.b32.xlu0 %v10409, 80
  %v10412 = vpop.permute.xlu0 %10411
  %10414 = vrot.lane.b32.xlu0 %v9942, 16
  %v10415 = vpop.permute.xlu0 %10414
  %v10417 = vsel %vm40, %v10412, %v10415
  %vm10418 = vcmask 195584
  %10419 = vst.msk [vmem:[%s4] sm:$0xff] %vm10418, %v10417
  // Predicated region
  $region18: #{attention_forward.1} parent=0 // pred_check
    _
  $region19: #{attention_forward.1} parent=0 // pred_check_branch
    %10421 = sbr.rel (0) target = $region21
  $region20: #{attention_forward.1} parent=0 // pred_region
    _
  $region21: #{attention_forward.1} parent=0 // pred_fallthru
    _
  // Predicated region
  $region22: #{attention_forward.1} parent=0 // pred_check
    _
  $region23: #{attention_forward.1} parent=0 // pred_check_branch
    %10423 = sbr.rel (0) target = $region25
  $region24: #{attention_forward.1} parent=0 // pred_region
    _
  $region25: #{attention_forward.1} parent=0 // pred_fallthru
    _

</llo_original>
